<compile_context>
chip_gen: v6e
topology: v6e:2x2x1
jax: 0.10.0
libtpu: 0.0.40
codegen_flags: <defaults>
</compile_context>

<pallas_src>
import functools
import math
from typing import NamedTuple

import jax
import jax.numpy as jnp
from jax import lax
from jax.experimental import pallas as pl
from jax.experimental.pallas import tpu as pltpu


_LANES = 128


class ModelCfg(NamedTuple):
    d_model: int
    dim_ff: int
    nhead: int
    num_channel: int
    max_len: int


# ----------------------------------------------------------------------------
# Parameter-blob layout (shared by the host-side packer and the kernel)
# ----------------------------------------------------------------------------
def _make_layout(cfg: ModelCfg):
    D, F, H, C, L = cfg.d_model, cfg.dim_ff, cfg.nhead, cfg.num_channel, cfg.max_len
    hd = D // H
    # Weight blob: 2-D matrices, each padded to 128 lanes, stacked along rows.
    # *_wqT/_wkT/_wvT are stored TRANSPOSED (rows = output features) so a
    # per-head slice is a sublane-aligned row slice of the Ref.
    w_specs = [
        ("up_w", C, D),
        ("e_wqT", D, D), ("e_wkT", D, D), ("e_wvT", D, D), ("e_wo", D, D),
        ("e_w1", D, F), ("e_w2", F, D),
        ("d_wqT", D, D), ("d_wkT", D, D), ("d_wvT", D, D), ("d_wo", D, D),
        ("d_cwqT", D, D), ("d_cwkT", D, D), ("d_cwvT", D, D), ("d_cwo", D, D),
        ("d_w1", D, F), ("d_w2", F, D),
        ("down_w", D, C),
    ]
    # Vector blob: biases / LayerNorm params / positional-encoding rows.
    # Attention Q/K/V biases are stored head-major: one row per head.
    v_specs = [
        ("up_b", 1, D), ("pe", L, D),
        ("e_bq", H, hd), ("e_bk", H, hd), ("e_bv", H, hd), ("e_bo", 1, D),
        ("e_n1g", 1, D), ("e_n1b", 1, D),
        ("e_b1", 1, F), ("e_b2", 1, D),
        ("e_n2g", 1, D), ("e_n2b", 1, D),
        ("e_nfg", 1, D), ("e_nfb", 1, D),
        ("d_bq", H, hd), ("d_bk", H, hd), ("d_bv", H, hd), ("d_bo", 1, D),
        ("d_n1g", 1, D), ("d_n1b", 1, D),
        ("d_cbq", H, hd), ("d_cbk", H, hd), ("d_cbv", H, hd), ("d_cbo", 1, D),
        ("d_n2g", 1, D), ("d_n2b", 1, D),
        ("d_b1", 1, F), ("d_b2", 1, D),
        ("d_n3g", 1, D), ("d_n3b", 1, D),
        ("d_nfg", 1, D), ("d_nfb", 1, D),
        ("down_b", 1, C),
    ]

    def offs(specs):
        lay, off = {}, 0
        for name, r, c in specs:
            lay[name] = (off, r, c)
            off += r
        return lay, ((off + 7) // 8) * 8

    w_lay, w_rows = offs(w_specs)
    v_lay, v_rows = offs(v_specs)
    return w_lay, w_rows, v_lay, v_rows


# ----------------------------------------------------------------------------
# Fused whole-model kernel + jitted wrapper
# ----------------------------------------------------------------------------
@functools.partial(jax.jit, static_argnames=("cfg",))
def transam_forward(src, tgt, w_blob, v_blob, *, cfg: ModelCfg):
    """src, tgt: [T, B, num_channel] (sequence-first, like nn.Transformer)."""
    Ts, B, C = src.shape
    Tt = tgt.shape[0]
    D, H = cfg.d_model, cfg.nhead
    hd = D // H
    assert D % H == 0 and C == cfg.num_channel
    assert max(Ts, Tt) <= cfg.max_len
    w_lay, _, v_lay, _ = _make_layout(cfg)

    ns, nt = B * Ts, B * Tt

    def kernel(x_ref, w_ref, v_ref, o_ref):
        f32 = jnp.float32
        nt_dims = (((1,), (1,)), ((), ()))        # contract last dims: A @ B^T

        # ---- point-of-use loads from the packed parameter blobs ------------
        def W(name):
            off, r, c = w_lay[name]
            return w_ref[off:off + r, :c]

        def Wrows(name, r0, nr):
            off, _, c = w_lay[name]
            return w_ref[off + r0:off + r0 + nr, :c]

        def V(name):
            off, r, c = v_lay[name]
            return v_ref[off:off + r, :c]

        def Vrows(name, r0, nr):
            off, _, c = v_lay[name]
            return v_ref[off + r0:off + r0 + nr, :c]

        def layer_norm(x, gn, bn):
            mu = jnp.mean(x, axis=-1, keepdims=True)
            xc = x - mu
            var = jnp.mean(xc * xc, axis=-1, keepdims=True)
            return xc * lax.rsqrt(var + 1e-5) * V(gn) + V(bn)

        def ffn(x, w1, b1, w2, b2):
            h1 = jnp.dot(x, W(w1), preferred_element_type=f32) + V(b1)
            h1 = jnp.maximum(h1, 0.0)
            return jnp.dot(h1, W(w2), preferred_element_type=f32) + V(b2)

        def attention(xq, xkv, wq, bq, wk, bk, wv, bv, wo, bo, tq, tk, causal):
            nq, nk = B * tq, B * tk
            # Batch-block-diagonal (+ causal) additive mask, built once per
            # attention and shared by every head (no vector integer division).
            ri = lax.broadcasted_iota(jnp.int32, (nq, nk), 0)
            ci = lax.broadcasted_iota(jnp.int32, (nq, nk), 1)
            ok = None
            for b in range(B):                     # static, unrolled
                blk = ((ri >= b * tq) & (ri < (b + 1) * tq)
                       & (ci >= b * tk) & (ci < (b + 1) * tk))
                ok = blk if ok is None else (ok | blk)
            if causal:                             # only used when tq == tk
                ok = ok & (ci <= ri)
            mask = jnp.where(ok, 0.0, -1e30).astype(f32)

            acc = jnp.broadcast_to(V(bo), (nq, D)).astype(f32)
            for h in range(H):                     # static, unrolled
                r0 = h * hd
                # Per-head projections = sublane-aligned row slices of the
                # transposed weights (no lane slicing of activations).
                q_h = lax.dot_general(xq, Wrows(wq, r0, hd), nt_dims,
                                      preferred_element_type=f32) + Vrows(bq, h, 1)
                k_h = lax.dot_general(xkv, Wrows(wk, r0, hd), nt_dims,
                                      preferred_element_type=f32) + Vrows(bk, h, 1)
                v_h = lax.dot_general(xkv, Wrows(wv, r0, hd), nt_dims,
                                      preferred_element_type=f32) + Vrows(bv, h, 1)
                s = lax.dot_general(q_h, k_h, nt_dims,
                                    preferred_element_type=f32) + mask
                m = jnp.max(s, axis=-1, keepdims=True)
                p = jnp.exp(s - m)
                l = jnp.sum(p, axis=-1, keepdims=True)
                p = p * pl.reciprocal(l, approx=True)
                o_h = jnp.dot(p, v_h, preferred_element_type=f32)   # [nq, hd]
                # Fold the output projection into the head loop.
                acc = acc + jnp.dot(o_h, Wrows(wo, r0, hd),
                                    preferred_element_type=f32)
            return acc

        # ---- up projection on concatenated [src; tgt] rows + positional enc
        x = x_ref[...]                                          # [B*(Ts+Tt), C]
        hup = jnp.dot(x, W("up_w"), preferred_element_type=f32) + V("up_b")
        xs = (hup[:ns].reshape(B, Ts, D) + Vrows("pe", 0, Ts)[None]).reshape(ns, D)
        xt = (hup[ns:].reshape(B, Tt, D) + Vrows("pe", 0, Tt)[None]).reshape(nt, D)

        # ---- encoder layer (post-norm) + encoder-stack final norm ----------
        sa = attention(xs, xs, "e_wqT", "e_bq", "e_wkT", "e_bk",
                       "e_wvT", "e_bv", "e_wo", "e_bo", Ts, Ts, causal=True)
        enc = layer_norm(xs + sa, "e_n1g", "e_n1b")
        enc = layer_norm(enc + ffn(enc, "e_w1", "e_b1", "e_w2", "e_b2"),
                         "e_n2g", "e_n2b")
        mem = layer_norm(enc, "e_nfg", "e_nfb")

        # ---- decoder layer (post-norm) + decoder-stack final norm ----------
        sa = attention(xt, xt, "d_wqT", "d_bq", "d_wkT", "d_bk",
                       "d_wvT", "d_bv", "d_wo", "d_bo", Tt, Tt, causal=True)
        y = layer_norm(xt + sa, "d_n1g", "d_n1b")
        ca = attention(y, mem, "d_cwqT", "d_cbq", "d_cwkT", "d_cbk",
                       "d_cwvT", "d_cbv", "d_cwo", "d_cbo", Tt, Ts, causal=False)
        y = layer_norm(y + ca, "d_n2g", "d_n2b")
        y = layer_norm(y + ffn(y, "d_w1", "d_b1", "d_w2", "d_b2"),
                       "d_n3g", "d_n3b")
        y = layer_norm(y, "d_nfg", "d_nfb")

        # ---- down projection: one [B*Tt, C] store ---------------------------
        o_ref[...] = jnp.dot(y, W("down_w"), preferred_element_type=f32) + V("down_b")

    # Layout plumbing: [T, B, C] -> batch-major rows, one concatenated input.
    xs_rows = jnp.transpose(src, (1, 0, 2)).reshape(ns, C)
    xt_rows = jnp.transpose(tgt, (1, 0, 2)).reshape(nt, C)
    x_in = jnp.concatenate([xs_rows, xt_rows], axis=0)          # [B*(Ts+Tt), C]

    vmem = pl.BlockSpec(memory_space=pltpu.MemorySpace.VMEM)    # whole array
    out2d = pl.pallas_call(
        kernel,
        out_shape=jax.ShapeDtypeStruct((nt, C), jnp.float32),
        in_specs=[vmem, vmem, vmem],
        out_specs=vmem,
    )(x_in, w_blob, v_blob)

    return jnp.transpose(out2d.reshape(B, Tt, C), (1, 0, 2))    # [Tt, B, C]


# ----------------------------------------------------------------------------
# Parameter init (eval mode; dropout omitted) and host-side packing
# ----------------------------------------------------------------------------
def positional_encoding_table(max_len, d_model):
    position = jnp.arange(max_len, dtype=jnp.float32)[:, None]
    div_term = jnp.exp(jnp.arange(0, d_model, 2, dtype=jnp.float32)
                       * (-math.log(10000.0) / d_model))
    pe = jnp.zeros((max_len, d_model), jnp.float32)
    pe = pe.at[:, 0::2].set(jnp.sin(position * div_term))
    pe = pe.at[:, 1::2].set(jnp.cos(position * div_term))
    return pe


def init_params(key, cfg: ModelCfg):
    D, F, C, L = cfg.d_model, cfg.dim_ff, cfg.num_channel, cfg.max_len
    keys = iter(jax.random.split(key, 64))

    def rnd(shape, scale=0.05):
        return scale * jax.random.normal(next(keys), shape, jnp.float32)

    p = {"up_w": rnd((C, D)), "up_b": rnd((D,)),
         "down_w": rnd((D, C)), "down_b": rnd((C,))}

    def attn_block(prefix):
        p[prefix + "wq"] = rnd((D, D)); p[prefix + "bq"] = rnd((D,))
        p[prefix + "wk"] = rnd((D, D)); p[prefix + "bk"] = rnd((D,))
        p[prefix + "wv"] = rnd((D, D)); p[prefix + "bv"] = rnd((D,))
        p[prefix + "wo"] = rnd((D, D)); p[prefix + "bo"] = rnd((D,))

    def ffn_block(prefix):
        p[prefix + "w1"] = rnd((D, F)); p[prefix + "b1"] = rnd((F,))
        p[prefix + "w2"] = rnd((F, D)); p[prefix + "b2"] = rnd((D,))

    def norm(prefix):
        p[prefix + "g"] = 1.0 + rnd((D,), 0.1)
        p[prefix + "b"] = rnd((D,), 0.1)

    attn_block("e_"); ffn_block("e_")
    norm("e_n1"); norm("e_n2"); norm("e_nf")
    attn_block("d_"); attn_block("d_c"); ffn_block("d_")
    norm("d_n1"); norm("d_n2"); norm("d_n3"); norm("d_nf")

    p["pe"] = positional_encoding_table(L, D)
    return p


def prepare_params(params, cfg: ModelCfg):
    """Pack raw parameters into the two [rows, 128] f32 blobs the kernel reads."""
    D, H = cfg.d_model, cfg.nhead
    hd = D // H
    scale = 1.0 / math.sqrt(hd)          # folded into the Q projection, once
    p = params
    w_lay, w_rows, v_lay, v_rows = _make_layout(cfg)

    def qT(w):
        return (w * scale).T

    w_src = {
        "up_w": p["up_w"],
        "e_wqT": qT(p["e_wq"]), "e_wkT": p["e_wk"].T, "e_wvT": p["e_wv"].T,
        "e_wo": p["e_wo"], "e_w1": p["e_w1"], "e_w2": p["e_w2"],
        "d_wqT": qT(p["d_wq"]), "d_wkT": p["d_wk"].T, "d_wvT": p["d_wv"].T,
        "d_wo": p["d_wo"],
        "d_cwqT": qT(p["d_cwq"]), "d_cwkT": p["d_cwk"].T, "d_cwvT": p["d_cwv"].T,
        "d_cwo": p["d_cwo"], "d_w1": p["d_w1"], "d_w2": p["d_w2"],
        "down_w": p["down_w"],
    }

    def hm(b, scaled=False):             # head-major bias rows [H, hd]
        b = b * scale if scaled else b
        return b.reshape(H, hd)

    v_src = {
        "up_b": p["up_b"], "pe": p["pe"][:cfg.max_len],
        "e_bq": hm(p["e_bq"], True), "e_bk": hm(p["e_bk"]), "e_bv": hm(p["e_bv"]),
        "e_bo": p["e_bo"],
        "e_n1g": p["e_n1g"], "e_n1b": p["e_n1b"],
        "e_b1": p["e_b1"], "e_b2": p["e_b2"],
        "e_n2g": p["e_n2g"], "e_n2b": p["e_n2b"],
        "e_nfg": p["e_nfg"], "e_nfb": p["e_nfb"],
        "d_bq": hm(p["d_bq"], True), "d_bk": hm(p["d_bk"]), "d_bv": hm(p["d_bv"]),
        "d_bo": p["d_bo"],
        "d_n1g": p["d_n1g"], "d_n1b": p["d_n1b"],
        "d_cbq": hm(p["d_cbq"], True), "d_cbk": hm(p["d_cbk"]), "d_cbv": hm(p["d_cbv"]),
        "d_cbo": p["d_cbo"],
        "d_n2g": p["d_n2g"], "d_n2b": p["d_n2b"],
        "d_b1": p["d_b1"], "d_b2": p["d_b2"],
        "d_n3g": p["d_n3g"], "d_n3b": p["d_n3b"],
        "d_nfg": p["d_nfg"], "d_nfb": p["d_nfb"],
        "down_b": p["down_b"],
    }

    def pack(lay, rows, src):
        blob = jnp.zeros((rows, _LANES), jnp.float32)
        for name, (off, r, c) in lay.items():
            blob = blob.at[off:off + r, :c].set(
                jnp.asarray(src[name], jnp.float32).reshape(r, c))
        return blob

    return pack(w_lay, w_rows, w_src), pack(v_lay, v_rows, v_src)


# ----------------------------------------------------------------------------
# Pure-JAX reference (same math, exact softmax division) for a sanity check
# ----------------------------------------------------------------------------
def reference_forward(src, tgt, p, cfg: ModelCfg):
    D, H = cfg.d_model, cfg.nhead
    hd = D // H

    def ln(x, g, b):
        mu = jnp.mean(x, -1, keepdims=True)
        var = jnp.mean((x - mu) ** 2, -1, keepdims=True)
        return (x - mu) / jnp.sqrt(var + 1e-5) * g + b

    def mha(xq, xkv, pre, causal):
        q = xq @ p[pre + "wq"] + p[pre + "bq"]
        k = xkv @ p[pre + "wk"] + p[pre + "bk"]
        v = xkv @ p[pre + "wv"] + p[pre + "bv"]
        tq, tk = q.shape[0], k.shape[0]
        outs = []
        for h in range(H):
            sl = slice(h * hd, (h + 1) * hd)
            s = q[:, sl] @ k[:, sl].T / math.sqrt(hd)
            if causal:
                s = jnp.where(jnp.tril(jnp.ones((tq, tk), bool)), s, -1e30)
            outs.append(jax.nn.softmax(s, -1) @ v[:, sl])
        return jnp.concatenate(outs, -1) @ p[pre + "wo"] + p[pre + "bo"]

    def ffn(x, pre):
        h1 = jnp.maximum(x @ p[pre + "w1"] + p[pre + "b1"], 0.0)
        return h1 @ p[pre + "w2"] + p[pre + "b2"]

    def one(s, t):
        xs = s @ p["up_w"] + p["up_b"] + p["pe"][: s.shape[0]]
        xt = t @ p["up_w"] + p["up_b"] + p["pe"][: t.shape[0]]
        m = ln(xs + mha(xs, xs, "e_", True), p["e_n1g"], p["e_n1b"])
        m = ln(m + ffn(m, "e_"), p["e_n2g"], p["e_n2b"])
        mem = ln(m, p["e_nfg"], p["e_nfb"])
        y = ln(xt + mha(xt, xt, "d_", True), p["d_n1g"], p["d_n1b"])
        y = ln(y + mha(y, mem, "d_c", False), p["d_n2g"], p["d_n2b"])
        y = ln(y + ffn(y, "d_"), p["d_n3g"], p["d_n3b"])
        y = ln(y, p["d_nfg"], p["d_nfb"])
        return y @ p["down_w"] + p["down_b"]

    outs = [one(src[:, b, :], tgt[:, b, :]) for b in range(src.shape[1])]
    return jnp.stack(outs, axis=1)


# ----------------------------------------------------------------------------

if __name__ == "__main__":
    # Small shapes consistent with the module: src/tgt are [T, B, num_channel].
    T, B, C = 8, 2, 8
    cfg = ModelCfg(d_model=32, dim_ff=64, nhead=4, num_channel=C, max_len=64)

    key = jax.random.PRNGKey(0)
    k_src, k_tgt, k_par = jax.random.split(key, 3)
    src = jax.random.normal(k_src, (T, B, C), jnp.float32)
    tgt = jax.random.normal(k_tgt, (T, B, C), jnp.float32)

    params = init_params(k_par, cfg)
    w_blob, v_blob = prepare_params(params, cfg)

    out = transam_forward(src, tgt, w_blob, v_blob, cfg=cfg)
    out = jax.block_until_ready(out)

    assert out.shape == (T, B, C), out.shape
    assert bool(jnp.all(jnp.isfinite(out)))

    ref = reference_forward(src, tgt, params, cfg)
    err = float(jnp.max(jnp.abs(out - ref)))
    assert bool(jnp.allclose(out, ref, rtol=5e-2, atol=5e-2)), err

    print("KERNEL_OK")
</pallas_src>

<mosaic_0001>
module attributes {stable_mosaic.version = 11 : i64} {
  func.func @kernel(%arg0: memref<32x8xf32, #tpu.memory_space<vmem>>, %arg1: memref<616x128xf32, #tpu.memory_space<vmem>>, %arg2: memref<128x128xf32, #tpu.memory_space<vmem>>, %arg3: memref<16x8xf32, #tpu.memory_space<vmem>>) attributes {dimension_semantics = [], scalar_prefetch = 0 : i64, scratch_operands = 0 : i64, tpu.core_type = #tpu.core_type<tc>} {
    %c0 = arith.constant 0 : index
    %c0_0 = arith.constant 0 : index
    %0 = vector.load %arg0[%c0, %c0_0] : memref<32x8xf32, #tpu.memory_space<vmem>>, vector<32x8xf32>
    %c0_1 = arith.constant 0 : index
    %c0_2 = arith.constant 0 : index
    %1 = vector.load %arg1[%c0_1, %c0_2] : memref<616x128xf32, #tpu.memory_space<vmem>>, vector<8x32xf32>
    %cst = arith.constant dense<0.000000e+00> : vector<32x32xf32>
    %2 = tpu.matmul %0, %1, %cst {dimension_numbers = #tpu.dot_dimension_numbers<[1], [0], [0], [1], [0, 0, 1, 1], [], []>} : vector<32x8xf32>, vector<8x32xf32>, vector<32x32xf32> -> vector<32x32xf32>
    %c0_3 = arith.constant 0 : index
    %c0_4 = arith.constant 0 : index
    %3 = vector.load %arg2[%c0_3, %c0_4] : memref<128x128xf32, #tpu.memory_space<vmem>>, vector<1x32xf32>
    %4 = vector.broadcast %3 : vector<1x32xf32> to vector<32x32xf32>
    %5 = arith.addf %2, %4 : vector<32x32xf32>
    %6 = vector.extract_strided_slice %5 {offsets = [0, 0], sizes = [16, 32], strides = [1, 1]} : vector<32x32xf32> to vector<16x32xf32>
    %7 = vector.shape_cast %6 : vector<16x32xf32> to vector<2x8x32xf32>
    %c1 = arith.constant 1 : index
    %c0_5 = arith.constant 0 : index
    %8 = vector.load %arg2[%c1, %c0_5] : memref<128x128xf32, #tpu.memory_space<vmem>>, vector<8x32xf32>
    %9 = vector.shape_cast %8 : vector<8x32xf32> to vector<1x8x32xf32>
    %10 = vector.broadcast %9 : vector<1x8x32xf32> to vector<2x8x32xf32>
    %11 = arith.addf %7, %10 : vector<2x8x32xf32>
    %12 = vector.shape_cast %11 : vector<2x8x32xf32> to vector<16x32xf32>
    %13 = vector.extract_strided_slice %5 {offsets = [16, 0], sizes = [16, 32], strides = [1, 1]} : vector<32x32xf32> to vector<16x32xf32>
    %14 = vector.shape_cast %13 : vector<16x32xf32> to vector<2x8x32xf32>
    %c1_6 = arith.constant 1 : index
    %c0_7 = arith.constant 0 : index
    %15 = vector.load %arg2[%c1_6, %c0_7] : memref<128x128xf32, #tpu.memory_space<vmem>>, vector<8x32xf32>
    %16 = vector.shape_cast %15 : vector<8x32xf32> to vector<1x8x32xf32>
    %17 = vector.broadcast %16 : vector<1x8x32xf32> to vector<2x8x32xf32>
    %18 = arith.addf %14, %17 : vector<2x8x32xf32>
    %19 = vector.shape_cast %18 : vector<2x8x32xf32> to vector<16x32xf32>
    %20 = tpu.iota {dimensions = array<i32: 0>} : vector<16x16xi32>
    %21 = tpu.iota {dimensions = array<i32: 1>} : vector<16x16xi32>
    %c0_i32 = arith.constant 0 : i32
    %22 = vector.broadcast %c0_i32 : i32 to vector<16x16xi32>
    %23 = arith.cmpi sge, %20, %22 : vector<16x16xi32>
    %c8_i32 = arith.constant 8 : i32
    %24 = vector.broadcast %c8_i32 : i32 to vector<16x16xi32>
    %25 = arith.cmpi slt, %20, %24 : vector<16x16xi32>
    %26 = arith.andi %23, %25 : vector<16x16xi1>
    %c0_i32_8 = arith.constant 0 : i32
    %27 = vector.broadcast %c0_i32_8 : i32 to vector<16x16xi32>
    %28 = arith.cmpi sge, %21, %27 : vector<16x16xi32>
    %29 = arith.andi %26, %28 : vector<16x16xi1>
    %c8_i32_9 = arith.constant 8 : i32
    %30 = vector.broadcast %c8_i32_9 : i32 to vector<16x16xi32>
    %31 = arith.cmpi slt, %21, %30 : vector<16x16xi32>
    %32 = arith.andi %29, %31 : vector<16x16xi1>
    %c8_i32_10 = arith.constant 8 : i32
    %33 = vector.broadcast %c8_i32_10 : i32 to vector<16x16xi32>
    %34 = arith.cmpi sge, %20, %33 : vector<16x16xi32>
    %c16_i32 = arith.constant 16 : i32
    %35 = vector.broadcast %c16_i32 : i32 to vector<16x16xi32>
    %36 = arith.cmpi slt, %20, %35 : vector<16x16xi32>
    %37 = arith.andi %34, %36 : vector<16x16xi1>
    %c8_i32_11 = arith.constant 8 : i32
    %38 = vector.broadcast %c8_i32_11 : i32 to vector<16x16xi32>
    %39 = arith.cmpi sge, %21, %38 : vector<16x16xi32>
    %40 = arith.andi %37, %39 : vector<16x16xi1>
    %c16_i32_12 = arith.constant 16 : i32
    %41 = vector.broadcast %c16_i32_12 : i32 to vector<16x16xi32>
    %42 = arith.cmpi slt, %21, %41 : vector<16x16xi32>
    %43 = arith.andi %40, %42 : vector<16x16xi1>
    %44 = arith.ori %32, %43 : vector<16x16xi1>
    %45 = arith.cmpi sle, %21, %20 : vector<16x16xi32>
    %46 = arith.andi %44, %45 : vector<16x16xi1>
    %cst_13 = arith.constant 0.000000e+00 : f32
    %cst_14 = arith.constant -1.000000e+30 : f32
    %47 = vector.broadcast %cst_13 : f32 to vector<16x16xf32>
    %48 = vector.broadcast %cst_14 : f32 to vector<16x16xf32>
    %49 = arith.select %46, %47, %48 : vector<16x16xi1>, vector<16x16xf32>
    %c77 = arith.constant 77 : index
    %c0_15 = arith.constant 0 : index
    %50 = vector.load %arg2[%c77, %c0_15] : memref<128x128xf32, #tpu.memory_space<vmem>>, vector<1x32xf32>
    %51 = vector.shape_cast %50 : vector<1x32xf32> to vector<1x32xf32>
    %52 = vector.broadcast %51 : vector<1x32xf32> to vector<16x32xf32>
    %c8 = arith.constant 8 : index
    %c0_16 = arith.constant 0 : index
    %53 = vector.load %arg1[%c8, %c0_16] : memref<616x128xf32, #tpu.memory_space<vmem>>, vector<8x32xf32>
    %cst_17 = arith.constant dense<0.000000e+00> : vector<16x8xf32>
    %54 = tpu.matmul %12, %53, %cst_17 {dimension_numbers = #tpu.dot_dimension_numbers<[1], [1], [0], [0], [0, 0, 1, 0], [], []>} : vector<16x32xf32>, vector<8x32xf32>, vector<16x8xf32> -> vector<16x8xf32>
    %c65 = arith.constant 65 : index
    %c0_18 = arith.constant 0 : index
    %55 = vector.load %arg2[%c65, %c0_18] : memref<128x128xf32, #tpu.memory_space<vmem>>, vector<1x8xf32>
    %56 = vector.broadcast %55 : vector<1x8xf32> to vector<16x8xf32>
    %57 = arith.addf %54, %56 : vector<16x8xf32>
    %c40 = arith.constant 40 : index
    %c0_19 = arith.constant 0 : index
    %58 = vector.load %arg1[%c40, %c0_19] : memref<616x128xf32, #tpu.memory_space<vmem>>, vector<8x32xf32>
    %cst_20 = arith.constant dense<0.000000e+00> : vector<16x8xf32>
    %59 = tpu.matmul %12, %58, %cst_20 {dimension_numbers = #tpu.dot_dimension_numbers<[1], [1], [0], [0], [0, 0, 1, 0], [], []>} : vector<16x32xf32>, vector<8x32xf32>, vector<16x8xf32> -> vector<16x8xf32>
    %c69 = arith.constant 69 : index
    %c0_21 = arith.constant 0 : index
    %60 = vector.load %arg2[%c69, %c0_21] : memref<128x128xf32, #tpu.memory_space<vmem>>, vector<1x8xf32>
    %61 = vector.broadcast %60 : vector<1x8xf32> to vector<16x8xf32>
    %62 = arith.addf %59, %61 : vector<16x8xf32>
    %c72 = arith.constant 72 : index
    %c0_22 = arith.constant 0 : index
    %63 = vector.load %arg1[%c72, %c0_22] : memref<616x128xf32, #tpu.memory_space<vmem>>, vector<8x32xf32>
    %cst_23 = arith.constant dense<0.000000e+00> : vector<16x8xf32>
    %64 = tpu.matmul %12, %63, %cst_23 {dimension_numbers = #tpu.dot_dimension_numbers<[1], [1], [0], [0], [0, 0, 1, 0], [], []>} : vector<16x32xf32>, vector<8x32xf32>, vector<16x8xf32> -> vector<16x8xf32>
    %c73 = arith.constant 73 : index
    %c0_24 = arith.constant 0 : index
    %65 = vector.load %arg2[%c73, %c0_24] : memref<128x128xf32, #tpu.memory_space<vmem>>, vector<1x8xf32>
    %66 = vector.broadcast %65 : vector<1x8xf32> to vector<16x8xf32>
    %67 = arith.addf %64, %66 : vector<16x8xf32>
    %cst_25 = arith.constant dense<0.000000e+00> : vector<16x16xf32>
    %68 = tpu.matmul %57, %62, %cst_25 {dimension_numbers = #tpu.dot_dimension_numbers<[1], [1], [0], [0], [0, 0, 1, 0], [], []>} : vector<16x8xf32>, vector<16x8xf32>, vector<16x16xf32> -> vector<16x16xf32>
    %69 = arith.addf %68, %49 : vector<16x16xf32>
    %cst_26 = arith.constant dense<0xFF800000> : vector<16xf32>
    %70 = vector.multi_reduction <maximumf>, %69, %cst_26 [1] : vector<16x16xf32> to vector<16xf32>
    %71 = vector.shape_cast %70 : vector<16xf32> to vector<16x1xf32>
    %72 = vector.broadcast %71 : vector<16x1xf32> to vector<16x16xf32>
    %73 = arith.subf %69, %72 : vector<16x16xf32>
    %74 = math.exp %73 : vector<16x16xf32>
    %cst_27 = arith.constant dense<0.000000e+00> : vector<16xf32>
    %75 = vector.multi_reduction <add>, %74, %cst_27 [1] : vector<16x16xf32> to vector<16xf32>
    %76 = vector.shape_cast %75 : vector<16xf32> to vector<16x1xf32>
    %77 = tpu.reciprocal %76 {approx = true} : vector<16x1xf32> -> vector<16x1xf32>
    %78 = vector.broadcast %77 : vector<16x1xf32> to vector<16x16xf32>
    %79 = arith.mulf %74, %78 : vector<16x16xf32>
    %cst_28 = arith.constant dense<0.000000e+00> : vector<16x8xf32>
    %80 = tpu.matmul %79, %67, %cst_28 {dimension_numbers = #tpu.dot_dimension_numbers<[1], [0], [0], [1], [0, 0, 1, 1], [], []>} : vector<16x16xf32>, vector<16x8xf32>, vector<16x8xf32> -> vector<16x8xf32>
    %c104 = arith.constant 104 : index
    %c0_29 = arith.constant 0 : index
    %81 = vector.load %arg1[%c104, %c0_29] : memref<616x128xf32, #tpu.memory_space<vmem>>, vector<8x32xf32>
    %cst_30 = arith.constant dense<0.000000e+00> : vector<16x32xf32>
    %82 = tpu.matmul %80, %81, %cst_30 {dimension_numbers = #tpu.dot_dimension_numbers<[1], [0], [0], [1], [0, 0, 1, 1], [], []>} : vector<16x8xf32>, vector<8x32xf32>, vector<16x32xf32> -> vector<16x32xf32>
    %83 = arith.addf %52, %82 : vector<16x32xf32>
    %c16 = arith.constant 16 : index
    %c0_31 = arith.constant 0 : index
    %84 = vector.load %arg1[%c16, %c0_31] : memref<616x128xf32, #tpu.memory_space<vmem>>, vector<8x32xf32>
    %cst_32 = arith.constant dense<0.000000e+00> : vector<16x8xf32>
    %85 = tpu.matmul %12, %84, %cst_32 {dimension_numbers = #tpu.dot_dimension_numbers<[1], [1], [0], [0], [0, 0, 1, 0], [], []>} : vector<16x32xf32>, vector<8x32xf32>, vector<16x8xf32> -> vector<16x8xf32>
    %c66 = arith.constant 66 : index
    %c0_33 = arith.constant 0 : index
    %86 = vector.load %arg2[%c66, %c0_33] : memref<128x128xf32, #tpu.memory_space<vmem>>, vector<1x8xf32>
    %87 = vector.broadcast %86 : vector<1x8xf32> to vector<16x8xf32>
    %88 = arith.addf %85, %87 : vector<16x8xf32>
    %c48 = arith.constant 48 : index
    %c0_34 = arith.constant 0 : index
    %89 = vector.load %arg1[%c48, %c0_34] : memref<616x128xf32, #tpu.memory_space<vmem>>, vector<8x32xf32>
    %cst_35 = arith.constant dense<0.000000e+00> : vector<16x8xf32>
    %90 = tpu.matmul %12, %89, %cst_35 {dimension_numbers = #tpu.dot_dimension_numbers<[1], [1], [0], [0], [0, 0, 1, 0], [], []>} : vector<16x32xf32>, vector<8x32xf32>, vector<16x8xf32> -> vector<16x8xf32>
    %c70 = arith.constant 70 : index
    %c0_36 = arith.constant 0 : index
    %91 = vector.load %arg2[%c70, %c0_36] : memref<128x128xf32, #tpu.memory_space<vmem>>, vector<1x8xf32>
    %92 = vector.broadcast %91 : vector<1x8xf32> to vector<16x8xf32>
    %93 = arith.addf %90, %92 : vector<16x8xf32>
    %c80 = arith.constant 80 : index
    %c0_37 = arith.constant 0 : index
    %94 = vector.load %arg1[%c80, %c0_37] : memref<616x128xf32, #tpu.memory_space<vmem>>, vector<8x32xf32>
    %cst_38 = arith.constant dense<0.000000e+00> : vector<16x8xf32>
    %95 = tpu.matmul %12, %94, %cst_38 {dimension_numbers = #tpu.dot_dimension_numbers<[1], [1], [0], [0], [0, 0, 1, 0], [], []>} : vector<16x32xf32>, vector<8x32xf32>, vector<16x8xf32> -> vector<16x8xf32>
    %c74 = arith.constant 74 : index
    %c0_39 = arith.constant 0 : index
    %96 = vector.load %arg2[%c74, %c0_39] : memref<128x128xf32, #tpu.memory_space<vmem>>, vector<1x8xf32>
    %97 = vector.broadcast %96 : vector<1x8xf32> to vector<16x8xf32>
    %98 = arith.addf %95, %97 : vector<16x8xf32>
    %cst_40 = arith.constant dense<0.000000e+00> : vector<16x16xf32>
    %99 = tpu.matmul %88, %93, %cst_40 {dimension_numbers = #tpu.dot_dimension_numbers<[1], [1], [0], [0], [0, 0, 1, 0], [], []>} : vector<16x8xf32>, vector<16x8xf32>, vector<16x16xf32> -> vector<16x16xf32>
    %100 = arith.addf %99, %49 : vector<16x16xf32>
    %cst_41 = arith.constant dense<0xFF800000> : vector<16xf32>
    %101 = vector.multi_reduction <maximumf>, %100, %cst_41 [1] : vector<16x16xf32> to vector<16xf32>
    %102 = vector.shape_cast %101 : vector<16xf32> to vector<16x1xf32>
    %103 = vector.broadcast %102 : vector<16x1xf32> to vector<16x16xf32>
    %104 = arith.subf %100, %103 : vector<16x16xf32>
    %105 = math.exp %104 : vector<16x16xf32>
    %cst_42 = arith.constant dense<0.000000e+00> : vector<16xf32>
    %106 = vector.multi_reduction <add>, %105, %cst_42 [1] : vector<16x16xf32> to vector<16xf32>
    %107 = vector.shape_cast %106 : vector<16xf32> to vector<16x1xf32>
    %108 = tpu.reciprocal %107 {approx = true} : vector<16x1xf32> -> vector<16x1xf32>
    %109 = vector.broadcast %108 : vector<16x1xf32> to vector<16x16xf32>
    %110 = arith.mulf %105, %109 : vector<16x16xf32>
    %cst_43 = arith.constant dense<0.000000e+00> : vector<16x8xf32>
    %111 = tpu.matmul %110, %98, %cst_43 {dimension_numbers = #tpu.dot_dimension_numbers<[1], [0], [0], [1], [0, 0, 1, 1], [], []>} : vector<16x16xf32>, vector<16x8xf32>, vector<16x8xf32> -> vector<16x8xf32>
    %c112 = arith.constant 112 : index
    %c0_44 = arith.constant 0 : index
    %112 = vector.load %arg1[%c112, %c0_44] : memref<616x128xf32, #tpu.memory_space<vmem>>, vector<8x32xf32>
    %cst_45 = arith.constant dense<0.000000e+00> : vector<16x32xf32>
    %113 = tpu.matmul %111, %112, %cst_45 {dimension_numbers = #tpu.dot_dimension_numbers<[1], [0], [0], [1], [0, 0, 1, 1], [], []>} : vector<16x8xf32>, vector<8x32xf32>, vector<16x32xf32> -> vector<16x32xf32>
    %114 = arith.addf %83, %113 : vector<16x32xf32>
    %c24 = arith.constant 24 : index
    %c0_46 = arith.constant 0 : index
    %115 = vector.load %arg1[%c24, %c0_46] : memref<616x128xf32, #tpu.memory_space<vmem>>, vector<8x32xf32>
    %cst_47 = arith.constant dense<0.000000e+00> : vector<16x8xf32>
    %116 = tpu.matmul %12, %115, %cst_47 {dimension_numbers = #tpu.dot_dimension_numbers<[1], [1], [0], [0], [0, 0, 1, 0], [], []>} : vector<16x32xf32>, vector<8x32xf32>, vector<16x8xf32> -> vector<16x8xf32>
    %c67 = arith.constant 67 : index
    %c0_48 = arith.constant 0 : index
    %117 = vector.load %arg2[%c67, %c0_48] : memref<128x128xf32, #tpu.memory_space<vmem>>, vector<1x8xf32>
    %118 = vector.broadcast %117 : vector<1x8xf32> to vector<16x8xf32>
    %119 = arith.addf %116, %118 : vector<16x8xf32>
    %c56 = arith.constant 56 : index
    %c0_49 = arith.constant 0 : index
    %120 = vector.load %arg1[%c56, %c0_49] : memref<616x128xf32, #tpu.memory_space<vmem>>, vector<8x32xf32>
    %cst_50 = arith.constant dense<0.000000e+00> : vector<16x8xf32>
    %121 = tpu.matmul %12, %120, %cst_50 {dimension_numbers = #tpu.dot_dimension_numbers<[1], [1], [0], [0], [0, 0, 1, 0], [], []>} : vector<16x32xf32>, vector<8x32xf32>, vector<16x8xf32> -> vector<16x8xf32>
    %c71 = arith.constant 71 : index
    %c0_51 = arith.constant 0 : index
    %122 = vector.load %arg2[%c71, %c0_51] : memref<128x128xf32, #tpu.memory_space<vmem>>, vector<1x8xf32>
    %123 = vector.broadcast %122 : vector<1x8xf32> to vector<16x8xf32>
    %124 = arith.addf %121, %123 : vector<16x8xf32>
    %c88 = arith.constant 88 : index
    %c0_52 = arith.constant 0 : index
    %125 = vector.load %arg1[%c88, %c0_52] : memref<616x128xf32, #tpu.memory_space<vmem>>, vector<8x32xf32>
    %cst_53 = arith.constant dense<0.000000e+00> : vector<16x8xf32>
    %126 = tpu.matmul %12, %125, %cst_53 {dimension_numbers = #tpu.dot_dimension_numbers<[1], [1], [0], [0], [0, 0, 1, 0], [], []>} : vector<16x32xf32>, vector<8x32xf32>, vector<16x8xf32> -> vector<16x8xf32>
    %c75 = arith.constant 75 : index
    %c0_54 = arith.constant 0 : index
    %127 = vector.load %arg2[%c75, %c0_54] : memref<128x128xf32, #tpu.memory_space<vmem>>, vector<1x8xf32>
    %128 = vector.broadcast %127 : vector<1x8xf32> to vector<16x8xf32>
    %129 = arith.addf %126, %128 : vector<16x8xf32>
    %cst_55 = arith.constant dense<0.000000e+00> : vector<16x16xf32>
    %130 = tpu.matmul %119, %124, %cst_55 {dimension_numbers = #tpu.dot_dimension_numbers<[1], [1], [0], [0], [0, 0, 1, 0], [], []>} : vector<16x8xf32>, vector<16x8xf32>, vector<16x16xf32> -> vector<16x16xf32>
    %131 = arith.addf %130, %49 : vector<16x16xf32>
    %cst_56 = arith.constant dense<0xFF800000> : vector<16xf32>
    %132 = vector.multi_reduction <maximumf>, %131, %cst_56 [1] : vector<16x16xf32> to vector<16xf32>
    %133 = vector.shape_cast %132 : vector<16xf32> to vector<16x1xf32>
    %134 = vector.broadcast %133 : vector<16x1xf32> to vector<16x16xf32>
    %135 = arith.subf %131, %134 : vector<16x16xf32>
    %136 = math.exp %135 : vector<16x16xf32>
    %cst_57 = arith.constant dense<0.000000e+00> : vector<16xf32>
    %137 = vector.multi_reduction <add>, %136, %cst_57 [1] : vector<16x16xf32> to vector<16xf32>
    %138 = vector.shape_cast %137 : vector<16xf32> to vector<16x1xf32>
    %139 = tpu.reciprocal %138 {approx = true} : vector<16x1xf32> -> vector<16x1xf32>
    %140 = vector.broadcast %139 : vector<16x1xf32> to vector<16x16xf32>
    %141 = arith.mulf %136, %140 : vector<16x16xf32>
    %cst_58 = arith.constant dense<0.000000e+00> : vector<16x8xf32>
    %142 = tpu.matmul %141, %129, %cst_58 {dimension_numbers = #tpu.dot_dimension_numbers<[1], [0], [0], [1], [0, 0, 1, 1], [], []>} : vector<16x16xf32>, vector<16x8xf32>, vector<16x8xf32> -> vector<16x8xf32>
    %c120 = arith.constant 120 : index
    %c0_59 = arith.constant 0 : index
    %143 = vector.load %arg1[%c120, %c0_59] : memref<616x128xf32, #tpu.memory_space<vmem>>, vector<8x32xf32>
    %cst_60 = arith.constant dense<0.000000e+00> : vector<16x32xf32>
    %144 = tpu.matmul %142, %143, %cst_60 {dimension_numbers = #tpu.dot_dimension_numbers<[1], [0], [0], [1], [0, 0, 1, 1], [], []>} : vector<16x8xf32>, vector<8x32xf32>, vector<16x32xf32> -> vector<16x32xf32>
    %145 = arith.addf %114, %144 : vector<16x32xf32>
    %c32 = arith.constant 32 : index
    %c0_61 = arith.constant 0 : index
    %146 = vector.load %arg1[%c32, %c0_61] : memref<616x128xf32, #tpu.memory_space<vmem>>, vector<8x32xf32>
    %cst_62 = arith.constant dense<0.000000e+00> : vector<16x8xf32>
    %147 = tpu.matmul %12, %146, %cst_62 {dimension_numbers = #tpu.dot_dimension_numbers<[1], [1], [0], [0], [0, 0, 1, 0], [], []>} : vector<16x32xf32>, vector<8x32xf32>, vector<16x8xf32> -> vector<16x8xf32>
    %c68 = arith.constant 68 : index
    %c0_63 = arith.constant 0 : index
    %148 = vector.load %arg2[%c68, %c0_63] : memref<128x128xf32, #tpu.memory_space<vmem>>, vector<1x8xf32>
    %149 = vector.broadcast %148 : vector<1x8xf32> to vector<16x8xf32>
    %150 = arith.addf %147, %149 : vector<16x8xf32>
    %c64 = arith.constant 64 : index
    %c0_64 = arith.constant 0 : index
    %151 = vector.load %arg1[%c64, %c0_64] : memref<616x128xf32, #tpu.memory_space<vmem>>, vector<8x32xf32>
    %cst_65 = arith.constant dense<0.000000e+00> : vector<16x8xf32>
    %152 = tpu.matmul %12, %151, %cst_65 {dimension_numbers = #tpu.dot_dimension_numbers<[1], [1], [0], [0], [0, 0, 1, 0], [], []>} : vector<16x32xf32>, vector<8x32xf32>, vector<16x8xf32> -> vector<16x8xf32>
    %c72_66 = arith.constant 72 : index
    %c0_67 = arith.constant 0 : index
    %153 = vector.load %arg2[%c72_66, %c0_67] : memref<128x128xf32, #tpu.memory_space<vmem>>, vector<1x8xf32>
    %154 = vector.broadcast %153 : vector<1x8xf32> to vector<16x8xf32>
    %155 = arith.addf %152, %154 : vector<16x8xf32>
    %c96 = arith.constant 96 : index
    %c0_68 = arith.constant 0 : index
    %156 = vector.load %arg1[%c96, %c0_68] : memref<616x128xf32, #tpu.memory_space<vmem>>, vector<8x32xf32>
    %cst_69 = arith.constant dense<0.000000e+00> : vector<16x8xf32>
    %157 = tpu.matmul %12, %156, %cst_69 {dimension_numbers = #tpu.dot_dimension_numbers<[1], [1], [0], [0], [0, 0, 1, 0], [], []>} : vector<16x32xf32>, vector<8x32xf32>, vector<16x8xf32> -> vector<16x8xf32>
    %c76 = arith.constant 76 : index
    %c0_70 = arith.constant 0 : index
    %158 = vector.load %arg2[%c76, %c0_70] : memref<128x128xf32, #tpu.memory_space<vmem>>, vector<1x8xf32>
    %159 = vector.broadcast %158 : vector<1x8xf32> to vector<16x8xf32>
    %160 = arith.addf %157, %159 : vector<16x8xf32>
    %cst_71 = arith.constant dense<0.000000e+00> : vector<16x16xf32>
    %161 = tpu.matmul %150, %155, %cst_71 {dimension_numbers = #tpu.dot_dimension_numbers<[1], [1], [0], [0], [0, 0, 1, 0], [], []>} : vector<16x8xf32>, vector<16x8xf32>, vector<16x16xf32> -> vector<16x16xf32>
    %162 = arith.addf %161, %49 : vector<16x16xf32>
    %cst_72 = arith.constant dense<0xFF800000> : vector<16xf32>
    %163 = vector.multi_reduction <maximumf>, %162, %cst_72 [1] : vector<16x16xf32> to vector<16xf32>
    %164 = vector.shape_cast %163 : vector<16xf32> to vector<16x1xf32>
    %165 = vector.broadcast %164 : vector<16x1xf32> to vector<16x16xf32>
    %166 = arith.subf %162, %165 : vector<16x16xf32>
    %167 = math.exp %166 : vector<16x16xf32>
    %cst_73 = arith.constant dense<0.000000e+00> : vector<16xf32>
    %168 = vector.multi_reduction <add>, %167, %cst_73 [1] : vector<16x16xf32> to vector<16xf32>
    %169 = vector.shape_cast %168 : vector<16xf32> to vector<16x1xf32>
    %170 = tpu.reciprocal %169 {approx = true} : vector<16x1xf32> -> vector<16x1xf32>
    %171 = vector.broadcast %170 : vector<16x1xf32> to vector<16x16xf32>
    %172 = arith.mulf %167, %171 : vector<16x16xf32>
    %cst_74 = arith.constant dense<0.000000e+00> : vector<16x8xf32>
    %173 = tpu.matmul %172, %160, %cst_74 {dimension_numbers = #tpu.dot_dimension_numbers<[1], [0], [0], [1], [0, 0, 1, 1], [], []>} : vector<16x16xf32>, vector<16x8xf32>, vector<16x8xf32> -> vector<16x8xf32>
    %c128 = arith.constant 128 : index
    %c0_75 = arith.constant 0 : index
    %174 = vector.load %arg1[%c128, %c0_75] : memref<616x128xf32, #tpu.memory_space<vmem>>, vector<8x32xf32>
    %cst_76 = arith.constant dense<0.000000e+00> : vector<16x32xf32>
    %175 = tpu.matmul %173, %174, %cst_76 {dimension_numbers = #tpu.dot_dimension_numbers<[1], [0], [0], [1], [0, 0, 1, 1], [], []>} : vector<16x8xf32>, vector<8x32xf32>, vector<16x32xf32> -> vector<16x32xf32>
    %176 = arith.addf %145, %175 : vector<16x32xf32>
    %177 = arith.addf %12, %176 : vector<16x32xf32>
    %cst_77 = arith.constant dense<0.000000e+00> : vector<16xf32>
    %178 = vector.multi_reduction <add>, %177, %cst_77 [1] : vector<16x32xf32> to vector<16xf32>
    %179 = vector.shape_cast %178 : vector<16xf32> to vector<16x1xf32>
    %cst_78 = arith.constant 3.200000e+01 : f32
    %180 = vector.broadcast %cst_78 : f32 to vector<16x1xf32>
    %181 = arith.divf %179, %180 : vector<16x1xf32>
    %182 = vector.broadcast %181 : vector<16x1xf32> to vector<16x32xf32>
    %183 = arith.subf %177, %182 : vector<16x32xf32>
    %184 = arith.mulf %183, %183 : vector<16x32xf32>
    %cst_79 = arith.constant dense<0.000000e+00> : vector<16xf32>
    %185 = vector.multi_reduction <add>, %184, %cst_79 [1] : vector<16x32xf32> to vector<16xf32>
    %186 = vector.shape_cast %185 : vector<16xf32> to vector<16x1xf32>
    %cst_80 = arith.constant 3.200000e+01 : f32
    %187 = vector.broadcast %cst_80 : f32 to vector<16x1xf32>
    %188 = arith.divf %186, %187 : vector<16x1xf32>
    %cst_81 = arith.constant 9.99999974E-6 : f32
    %189 = vector.broadcast %cst_81 : f32 to vector<16x1xf32>
    %190 = arith.addf %188, %189 : vector<16x1xf32>
    %191 = math.rsqrt %190 : vector<16x1xf32>
    %192 = vector.broadcast %191 : vector<16x1xf32> to vector<16x32xf32>
    %193 = arith.mulf %183, %192 : vector<16x32xf32>
    %c78 = arith.constant 78 : index
    %c0_82 = arith.constant 0 : index
    %194 = vector.load %arg2[%c78, %c0_82] : memref<128x128xf32, #tpu.memory_space<vmem>>, vector<1x32xf32>
    %195 = vector.broadcast %194 : vector<1x32xf32> to vector<16x32xf32>
    %196 = arith.mulf %193, %195 : vector<16x32xf32>
    %c79 = arith.constant 79 : index
    %c0_83 = arith.constant 0 : index
    %197 = vector.load %arg2[%c79, %c0_83] : memref<128x128xf32, #tpu.memory_space<vmem>>, vector<1x32xf32>
    %198 = vector.broadcast %197 : vector<1x32xf32> to vector<16x32xf32>
    %199 = arith.addf %196, %198 : vector<16x32xf32>
    %c136 = arith.constant 136 : index
    %c0_84 = arith.constant 0 : index
    %200 = vector.load %arg1[%c136, %c0_84] : memref<616x128xf32, #tpu.memory_space<vmem>>, vector<32x64xf32>
    %cst_85 = arith.constant dense<0.000000e+00> : vector<16x64xf32>
    %201 = tpu.matmul %199, %200, %cst_85 {dimension_numbers = #tpu.dot_dimension_numbers<[1], [0], [0], [1], [0, 0, 1, 1], [], []>} : vector<16x32xf32>, vector<32x64xf32>, vector<16x64xf32> -> vector<16x64xf32>
    %c80_86 = arith.constant 80 : index
    %c0_87 = arith.constant 0 : index
    %202 = vector.load %arg2[%c80_86, %c0_87] : memref<128x128xf32, #tpu.memory_space<vmem>>, vector<1x64xf32>
    %203 = vector.broadcast %202 : vector<1x64xf32> to vector<16x64xf32>
    %204 = arith.addf %201, %203 : vector<16x64xf32>
    %cst_88 = arith.constant 0.000000e+00 : f32
    %205 = vector.broadcast %cst_88 : f32 to vector<16x64xf32>
    %206 = arith.maximumf %204, %205 : vector<16x64xf32>
    %c168 = arith.constant 168 : index
    %c0_89 = arith.constant 0 : index
    %207 = vector.load %arg1[%c168, %c0_89] : memref<616x128xf32, #tpu.memory_space<vmem>>, vector<64x32xf32>
    %cst_90 = arith.constant dense<0.000000e+00> : vector<16x32xf32>
    %208 = tpu.matmul %206, %207, %cst_90 {dimension_numbers = #tpu.dot_dimension_numbers<[1], [0], [0], [1], [0, 0, 1, 1], [], []>} : vector<16x64xf32>, vector<64x32xf32>, vector<16x32xf32> -> vector<16x32xf32>
    %c81 = arith.constant 81 : index
    %c0_91 = arith.constant 0 : index
    %209 = vector.load %arg2[%c81, %c0_91] : memref<128x128xf32, #tpu.memory_space<vmem>>, vector<1x32xf32>
    %210 = vector.broadcast %209 : vector<1x32xf32> to vector<16x32xf32>
    %211 = arith.addf %208, %210 : vector<16x32xf32>
    %212 = arith.addf %199, %211 : vector<16x32xf32>
    %cst_92 = arith.constant dense<0.000000e+00> : vector<16xf32>
    %213 = vector.multi_reduction <add>, %212, %cst_92 [1] : vector<16x32xf32> to vector<16xf32>
    %214 = vector.shape_cast %213 : vector<16xf32> to vector<16x1xf32>
    %cst_93 = arith.constant 3.200000e+01 : f32
    %215 = vector.broadcast %cst_93 : f32 to vector<16x1xf32>
    %216 = arith.divf %214, %215 : vector<16x1xf32>
    %217 = vector.broadcast %216 : vector<16x1xf32> to vector<16x32xf32>
    %218 = arith.subf %212, %217 : vector<16x32xf32>
    %219 = arith.mulf %218, %218 : vector<16x32xf32>
    %cst_94 = arith.constant dense<0.000000e+00> : vector<16xf32>
    %220 = vector.multi_reduction <add>, %219, %cst_94 [1] : vector<16x32xf32> to vector<16xf32>
    %221 = vector.shape_cast %220 : vector<16xf32> to vector<16x1xf32>
    %cst_95 = arith.constant 3.200000e+01 : f32
    %222 = vector.broadcast %cst_95 : f32 to vector<16x1xf32>
    %223 = arith.divf %221, %222 : vector<16x1xf32>
    %cst_96 = arith.constant 9.99999974E-6 : f32
    %224 = vector.broadcast %cst_96 : f32 to vector<16x1xf32>
    %225 = arith.addf %223, %224 : vector<16x1xf32>
    %226 = math.rsqrt %225 : vector<16x1xf32>
    %227 = vector.broadcast %226 : vector<16x1xf32> to vector<16x32xf32>
    %228 = arith.mulf %218, %227 : vector<16x32xf32>
    %c82 = arith.constant 82 : index
    %c0_97 = arith.constant 0 : index
    %229 = vector.load %arg2[%c82, %c0_97] : memref<128x128xf32, #tpu.memory_space<vmem>>, vector<1x32xf32>
    %230 = vector.broadcast %229 : vector<1x32xf32> to vector<16x32xf32>
    %231 = arith.mulf %228, %230 : vector<16x32xf32>
    %c83 = arith.constant 83 : index
    %c0_98 = arith.constant 0 : index
    %232 = vector.load %arg2[%c83, %c0_98] : memref<128x128xf32, #tpu.memory_space<vmem>>, vector<1x32xf32>
    %233 = vector.broadcast %232 : vector<1x32xf32> to vector<16x32xf32>
    %234 = arith.addf %231, %233 : vector<16x32xf32>
    %cst_99 = arith.constant dense<0.000000e+00> : vector<16xf32>
    %235 = vector.multi_reduction <add>, %234, %cst_99 [1] : vector<16x32xf32> to vector<16xf32>
    %236 = vector.shape_cast %235 : vector<16xf32> to vector<16x1xf32>
    %cst_100 = arith.constant 3.200000e+01 : f32
    %237 = vector.broadcast %cst_100 : f32 to vector<16x1xf32>
    %238 = arith.divf %236, %237 : vector<16x1xf32>
    %239 = vector.broadcast %238 : vector<16x1xf32> to vector<16x32xf32>
    %240 = arith.subf %234, %239 : vector<16x32xf32>
    %241 = arith.mulf %240, %240 : vector<16x32xf32>
    %cst_101 = arith.constant dense<0.000000e+00> : vector<16xf32>
    %242 = vector.multi_reduction <add>, %241, %cst_101 [1] : vector<16x32xf32> to vector<16xf32>
    %243 = vector.shape_cast %242 : vector<16xf32> to vector<16x1xf32>
    %cst_102 = arith.constant 3.200000e+01 : f32
    %244 = vector.broadcast %cst_102 : f32 to vector<16x1xf32>
    %245 = arith.divf %243, %244 : vector<16x1xf32>
    %cst_103 = arith.constant 9.99999974E-6 : f32
    %246 = vector.broadcast %cst_103 : f32 to vector<16x1xf32>
    %247 = arith.addf %245, %246 : vector<16x1xf32>
    %248 = math.rsqrt %247 : vector<16x1xf32>
    %249 = vector.broadcast %248 : vector<16x1xf32> to vector<16x32xf32>
    %250 = arith.mulf %240, %249 : vector<16x32xf32>
    %c84 = arith.constant 84 : index
    %c0_104 = arith.constant 0 : index
    %251 = vector.load %arg2[%c84, %c0_104] : memref<128x128xf32, #tpu.memory_space<vmem>>, vector<1x32xf32>
    %252 = vector.broadcast %251 : vector<1x32xf32> to vector<16x32xf32>
    %253 = arith.mulf %250, %252 : vector<16x32xf32>
    %c85 = arith.constant 85 : index
    %c0_105 = arith.constant 0 : index
    %254 = vector.load %arg2[%c85, %c0_105] : memref<128x128xf32, #tpu.memory_space<vmem>>, vector<1x32xf32>
    %255 = vector.broadcast %254 : vector<1x32xf32> to vector<16x32xf32>
    %256 = arith.addf %253, %255 : vector<16x32xf32>
    %257 = tpu.iota {dimensions = array<i32: 0>} : vector<16x16xi32>
    %258 = tpu.iota {dimensions = array<i32: 1>} : vector<16x16xi32>
    %c0_i32_106 = arith.constant 0 : i32
    %259 = vector.broadcast %c0_i32_106 : i32 to vector<16x16xi32>
    %260 = arith.cmpi sge, %257, %259 : vector<16x16xi32>
    %c8_i32_107 = arith.constant 8 : i32
    %261 = vector.broadcast %c8_i32_107 : i32 to vector<16x16xi32>
    %262 = arith.cmpi slt, %257, %261 : vector<16x16xi32>
    %263 = arith.andi %260, %262 : vector<16x16xi1>
    %c0_i32_108 = arith.constant 0 : i32
    %264 = vector.broadcast %c0_i32_108 : i32 to vector<16x16xi32>
    %265 = arith.cmpi sge, %258, %264 : vector<16x16xi32>
    %266 = arith.andi %263, %265 : vector<16x16xi1>
    %c8_i32_109 = arith.constant 8 : i32
    %267 = vector.broadcast %c8_i32_109 : i32 to vector<16x16xi32>
    %268 = arith.cmpi slt, %258, %267 : vector<16x16xi32>
    %269 = arith.andi %266, %268 : vector<16x16xi1>
    %c8_i32_110 = arith.constant 8 : i32
    %270 = vector.broadcast %c8_i32_110 : i32 to vector<16x16xi32>
    %271 = arith.cmpi sge, %257, %270 : vector<16x16xi32>
    %c16_i32_111 = arith.constant 16 : i32
    %272 = vector.broadcast %c16_i32_111 : i32 to vector<16x16xi32>
    %273 = arith.cmpi slt, %257, %272 : vector<16x16xi32>
    %274 = arith.andi %271, %273 : vector<16x16xi1>
    %c8_i32_112 = arith.constant 8 : i32
    %275 = vector.broadcast %c8_i32_112 : i32 to vector<16x16xi32>
    %276 = arith.cmpi sge, %258, %275 : vector<16x16xi32>
    %277 = arith.andi %274, %276 : vector<16x16xi1>
    %c16_i32_113 = arith.constant 16 : i32
    %278 = vector.broadcast %c16_i32_113 : i32 to vector<16x16xi32>
    %279 = arith.cmpi slt, %258, %278 : vector<16x16xi32>
    %280 = arith.andi %277, %279 : vector<16x16xi1>
    %281 = arith.ori %269, %280 : vector<16x16xi1>
    %282 = arith.cmpi sle, %258, %257 : vector<16x16xi32>
    %283 = arith.andi %281, %282 : vector<16x16xi1>
    %cst_114 = arith.constant 0.000000e+00 : f32
    %cst_115 = arith.constant -1.000000e+30 : f32
    %284 = vector.broadcast %cst_114 : f32 to vector<16x16xf32>
    %285 = vector.broadcast %cst_115 : f32 to vector<16x16xf32>
    %286 = arith.select %283, %284, %285 : vector<16x16xi1>, vector<16x16xf32>
    %c98 = arith.constant 98 : index
    %c0_116 = arith.constant 0 : index
    %287 = vector.load %arg2[%c98, %c0_116] : memref<128x128xf32, #tpu.memory_space<vmem>>, vector<1x32xf32>
    %288 = vector.shape_cast %287 : vector<1x32xf32> to vector<1x32xf32>
    %289 = vector.broadcast %288 : vector<1x32xf32> to vector<16x32xf32>
    %c232 = arith.constant 232 : index
    %c0_117 = arith.constant 0 : index
    %290 = vector.load %arg1[%c232, %c0_117] : memref<616x128xf32, #tpu.memory_space<vmem>>, vector<8x32xf32>
    %cst_118 = arith.constant dense<0.000000e+00> : vector<16x8xf32>
    %291 = tpu.matmul %19, %290, %cst_118 {dimension_numbers = #tpu.dot_dimension_numbers<[1], [1], [0], [0], [0, 0, 1, 0], [], []>} : vector<16x32xf32>, vector<8x32xf32>, vector<16x8xf32> -> vector<16x8xf32>
    %c86 = arith.constant 86 : index
    %c0_119 = arith.constant 0 : index
    %292 = vector.load %arg2[%c86, %c0_119] : memref<128x128xf32, #tpu.memory_space<vmem>>, vector<1x8xf32>
    %293 = vector.broadcast %292 : vector<1x8xf32> to vector<16x8xf32>
    %294 = arith.addf %291, %293 : vector<16x8xf32>
    %c264 = arith.constant 264 : index
    %c0_120 = arith.constant 0 : index
    %295 = vector.load %arg1[%c264, %c0_120] : memref<616x128xf32, #tpu.memory_space<vmem>>, vector<8x32xf32>
    %cst_121 = arith.constant dense<0.000000e+00> : vector<16x8xf32>
    %296 = tpu.matmul %19, %295, %cst_121 {dimension_numbers = #tpu.dot_dimension_numbers<[1], [1], [0], [0], [0, 0, 1, 0], [], []>} : vector<16x32xf32>, vector<8x32xf32>, vector<16x8xf32> -> vector<16x8xf32>
    %c90 = arith.constant 90 : index
    %c0_122 = arith.constant 0 : index
    %297 = vector.load %arg2[%c90, %c0_122] : memref<128x128xf32, #tpu.memory_space<vmem>>, vector<1x8xf32>
    %298 = vector.broadcast %297 : vector<1x8xf32> to vector<16x8xf32>
    %299 = arith.addf %296, %298 : vector<16x8xf32>
    %c296 = arith.constant 296 : index
    %c0_123 = arith.constant 0 : index
    %300 = vector.load %arg1[%c296, %c0_123] : memref<616x128xf32, #tpu.memory_space<vmem>>, vector<8x32xf32>
    %cst_124 = arith.constant dense<0.000000e+00> : vector<16x8xf32>
    %301 = tpu.matmul %19, %300, %cst_124 {dimension_numbers = #tpu.dot_dimension_numbers<[1], [1], [0], [0], [0, 0, 1, 0], [], []>} : vector<16x32xf32>, vector<8x32xf32>, vector<16x8xf32> -> vector<16x8xf32>
    %c94 = arith.constant 94 : index
    %c0_125 = arith.constant 0 : index
    %302 = vector.load %arg2[%c94, %c0_125] : memref<128x128xf32, #tpu.memory_space<vmem>>, vector<1x8xf32>
    %303 = vector.broadcast %302 : vector<1x8xf32> to vector<16x8xf32>
    %304 = arith.addf %301, %303 : vector<16x8xf32>
    %cst_126 = arith.constant dense<0.000000e+00> : vector<16x16xf32>
    %305 = tpu.matmul %294, %299, %cst_126 {dimension_numbers = #tpu.dot_dimension_numbers<[1], [1], [0], [0], [0, 0, 1, 0], [], []>} : vector<16x8xf32>, vector<16x8xf32>, vector<16x16xf32> -> vector<16x16xf32>
    %306 = arith.addf %305, %286 : vector<16x16xf32>
    %cst_127 = arith.constant dense<0xFF800000> : vector<16xf32>
    %307 = vector.multi_reduction <maximumf>, %306, %cst_127 [1] : vector<16x16xf32> to vector<16xf32>
    %308 = vector.shape_cast %307 : vector<16xf32> to vector<16x1xf32>
    %309 = vector.broadcast %308 : vector<16x1xf32> to vector<16x16xf32>
    %310 = arith.subf %306, %309 : vector<16x16xf32>
    %311 = math.exp %310 : vector<16x16xf32>
    %cst_128 = arith.constant dense<0.000000e+00> : vector<16xf32>
    %312 = vector.multi_reduction <add>, %311, %cst_128 [1] : vector<16x16xf32> to vector<16xf32>
    %313 = vector.shape_cast %312 : vector<16xf32> to vector<16x1xf32>
    %314 = tpu.reciprocal %313 {approx = true} : vector<16x1xf32> -> vector<16x1xf32>
    %315 = vector.broadcast %314 : vector<16x1xf32> to vector<16x16xf32>
    %316 = arith.mulf %311, %315 : vector<16x16xf32>
    %cst_129 = arith.constant dense<0.000000e+00> : vector<16x8xf32>
    %317 = tpu.matmul %316, %304, %cst_129 {dimension_numbers = #tpu.dot_dimension_numbers<[1], [0], [0], [1], [0, 0, 1, 1], [], []>} : vector<16x16xf32>, vector<16x8xf32>, vector<16x8xf32> -> vector<16x8xf32>
    %c328 = arith.constant 328 : index
    %c0_130 = arith.constant 0 : index
    %318 = vector.load %arg1[%c328, %c0_130] : memref<616x128xf32, #tpu.memory_space<vmem>>, vector<8x32xf32>
    %cst_131 = arith.constant dense<0.000000e+00> : vector<16x32xf32>
    %319 = tpu.matmul %317, %318, %cst_131 {dimension_numbers = #tpu.dot_dimension_numbers<[1], [0], [0], [1], [0, 0, 1, 1], [], []>} : vector<16x8xf32>, vector<8x32xf32>, vector<16x32xf32> -> vector<16x32xf32>
    %320 = arith.addf %289, %319 : vector<16x32xf32>
    %c240 = arith.constant 240 : index
    %c0_132 = arith.constant 0 : index
    %321 = vector.load %arg1[%c240, %c0_132] : memref<616x128xf32, #tpu.memory_space<vmem>>, vector<8x32xf32>
    %cst_133 = arith.constant dense<0.000000e+00> : vector<16x8xf32>
    %322 = tpu.matmul %19, %321, %cst_133 {dimension_numbers = #tpu.dot_dimension_numbers<[1], [1], [0], [0], [0, 0, 1, 0], [], []>} : vector<16x32xf32>, vector<8x32xf32>, vector<16x8xf32> -> vector<16x8xf32>
    %c87 = arith.constant 87 : index
    %c0_134 = arith.constant 0 : index
    %323 = vector.load %arg2[%c87, %c0_134] : memref<128x128xf32, #tpu.memory_space<vmem>>, vector<1x8xf32>
    %324 = vector.broadcast %323 : vector<1x8xf32> to vector<16x8xf32>
    %325 = arith.addf %322, %324 : vector<16x8xf32>
    %c272 = arith.constant 272 : index
    %c0_135 = arith.constant 0 : index
    %326 = vector.load %arg1[%c272, %c0_135] : memref<616x128xf32, #tpu.memory_space<vmem>>, vector<8x32xf32>
    %cst_136 = arith.constant dense<0.000000e+00> : vector<16x8xf32>
    %327 = tpu.matmul %19, %326, %cst_136 {dimension_numbers = #tpu.dot_dimension_numbers<[1], [1], [0], [0], [0, 0, 1, 0], [], []>} : vector<16x32xf32>, vector<8x32xf32>, vector<16x8xf32> -> vector<16x8xf32>
    %c91 = arith.constant 91 : index
    %c0_137 = arith.constant 0 : index
    %328 = vector.load %arg2[%c91, %c0_137] : memref<128x128xf32, #tpu.memory_space<vmem>>, vector<1x8xf32>
    %329 = vector.broadcast %328 : vector<1x8xf32> to vector<16x8xf32>
    %330 = arith.addf %327, %329 : vector<16x8xf32>
    %c304 = arith.constant 304 : index
    %c0_138 = arith.constant 0 : index
    %331 = vector.load %arg1[%c304, %c0_138] : memref<616x128xf32, #tpu.memory_space<vmem>>, vector<8x32xf32>
    %cst_139 = arith.constant dense<0.000000e+00> : vector<16x8xf32>
    %332 = tpu.matmul %19, %331, %cst_139 {dimension_numbers = #tpu.dot_dimension_numbers<[1], [1], [0], [0], [0, 0, 1, 0], [], []>} : vector<16x32xf32>, vector<8x32xf32>, vector<16x8xf32> -> vector<16x8xf32>
    %c95 = arith.constant 95 : index
    %c0_140 = arith.constant 0 : index
    %333 = vector.load %arg2[%c95, %c0_140] : memref<128x128xf32, #tpu.memory_space<vmem>>, vector<1x8xf32>
    %334 = vector.broadcast %333 : vector<1x8xf32> to vector<16x8xf32>
    %335 = arith.addf %332, %334 : vector<16x8xf32>
    %cst_141 = arith.constant dense<0.000000e+00> : vector<16x16xf32>
    %336 = tpu.matmul %325, %330, %cst_141 {dimension_numbers = #tpu.dot_dimension_numbers<[1], [1], [0], [0], [0, 0, 1, 0], [], []>} : vector<16x8xf32>, vector<16x8xf32>, vector<16x16xf32> -> vector<16x16xf32>
    %337 = arith.addf %336, %286 : vector<16x16xf32>
    %cst_142 = arith.constant dense<0xFF800000> : vector<16xf32>
    %338 = vector.multi_reduction <maximumf>, %337, %cst_142 [1] : vector<16x16xf32> to vector<16xf32>
    %339 = vector.shape_cast %338 : vector<16xf32> to vector<16x1xf32>
    %340 = vector.broadcast %339 : vector<16x1xf32> to vector<16x16xf32>
    %341 = arith.subf %337, %340 : vector<16x16xf32>
    %342 = math.exp %341 : vector<16x16xf32>
    %cst_143 = arith.constant dense<0.000000e+00> : vector<16xf32>
    %343 = vector.multi_reduction <add>, %342, %cst_143 [1] : vector<16x16xf32> to vector<16xf32>
    %344 = vector.shape_cast %343 : vector<16xf32> to vector<16x1xf32>
    %345 = tpu.reciprocal %344 {approx = true} : vector<16x1xf32> -> vector<16x1xf32>
    %346 = vector.broadcast %345 : vector<16x1xf32> to vector<16x16xf32>
    %347 = arith.mulf %342, %346 : vector<16x16xf32>
    %cst_144 = arith.constant dense<0.000000e+00> : vector<16x8xf32>
    %348 = tpu.matmul %347, %335, %cst_144 {dimension_numbers = #tpu.dot_dimension_numbers<[1], [0], [0], [1], [0, 0, 1, 1], [], []>} : vector<16x16xf32>, vector<16x8xf32>, vector<16x8xf32> -> vector<16x8xf32>
    %c336 = arith.constant 336 : index
    %c0_145 = arith.constant 0 : index
    %349 = vector.load %arg1[%c336, %c0_145] : memref<616x128xf32, #tpu.memory_space<vmem>>, vector<8x32xf32>
    %cst_146 = arith.constant dense<0.000000e+00> : vector<16x32xf32>
    %350 = tpu.matmul %348, %349, %cst_146 {dimension_numbers = #tpu.dot_dimension_numbers<[1], [0], [0], [1], [0, 0, 1, 1], [], []>} : vector<16x8xf32>, vector<8x32xf32>, vector<16x32xf32> -> vector<16x32xf32>
    %351 = arith.addf %320, %350 : vector<16x32xf32>
    %c248 = arith.constant 248 : index
    %c0_147 = arith.constant 0 : index
    %352 = vector.load %arg1[%c248, %c0_147] : memref<616x128xf32, #tpu.memory_space<vmem>>, vector<8x32xf32>
    %cst_148 = arith.constant dense<0.000000e+00> : vector<16x8xf32>
    %353 = tpu.matmul %19, %352, %cst_148 {dimension_numbers = #tpu.dot_dimension_numbers<[1], [1], [0], [0], [0, 0, 1, 0], [], []>} : vector<16x32xf32>, vector<8x32xf32>, vector<16x8xf32> -> vector<16x8xf32>
    %c88_149 = arith.constant 88 : index
    %c0_150 = arith.constant 0 : index
    %354 = vector.load %arg2[%c88_149, %c0_150] : memref<128x128xf32, #tpu.memory_space<vmem>>, vector<1x8xf32>
    %355 = vector.broadcast %354 : vector<1x8xf32> to vector<16x8xf32>
    %356 = arith.addf %353, %355 : vector<16x8xf32>
    %c280 = arith.constant 280 : index
    %c0_151 = arith.constant 0 : index
    %357 = vector.load %arg1[%c280, %c0_151] : memref<616x128xf32, #tpu.memory_space<vmem>>, vector<8x32xf32>
    %cst_152 = arith.constant dense<0.000000e+00> : vector<16x8xf32>
    %358 = tpu.matmul %19, %357, %cst_152 {dimension_numbers = #tpu.dot_dimension_numbers<[1], [1], [0], [0], [0, 0, 1, 0], [], []>} : vector<16x32xf32>, vector<8x32xf32>, vector<16x8xf32> -> vector<16x8xf32>
    %c92 = arith.constant 92 : index
    %c0_153 = arith.constant 0 : index
    %359 = vector.load %arg2[%c92, %c0_153] : memref<128x128xf32, #tpu.memory_space<vmem>>, vector<1x8xf32>
    %360 = vector.broadcast %359 : vector<1x8xf32> to vector<16x8xf32>
    %361 = arith.addf %358, %360 : vector<16x8xf32>
    %c312 = arith.constant 312 : index
    %c0_154 = arith.constant 0 : index
    %362 = vector.load %arg1[%c312, %c0_154] : memref<616x128xf32, #tpu.memory_space<vmem>>, vector<8x32xf32>
    %cst_155 = arith.constant dense<0.000000e+00> : vector<16x8xf32>
    %363 = tpu.matmul %19, %362, %cst_155 {dimension_numbers = #tpu.dot_dimension_numbers<[1], [1], [0], [0], [0, 0, 1, 0], [], []>} : vector<16x32xf32>, vector<8x32xf32>, vector<16x8xf32> -> vector<16x8xf32>
    %c96_156 = arith.constant 96 : index
    %c0_157 = arith.constant 0 : index
    %364 = vector.load %arg2[%c96_156, %c0_157] : memref<128x128xf32, #tpu.memory_space<vmem>>, vector<1x8xf32>
    %365 = vector.broadcast %364 : vector<1x8xf32> to vector<16x8xf32>
    %366 = arith.addf %363, %365 : vector<16x8xf32>
    %cst_158 = arith.constant dense<0.000000e+00> : vector<16x16xf32>
    %367 = tpu.matmul %356, %361, %cst_158 {dimension_numbers = #tpu.dot_dimension_numbers<[1], [1], [0], [0], [0, 0, 1, 0], [], []>} : vector<16x8xf32>, vector<16x8xf32>, vector<16x16xf32> -> vector<16x16xf32>
    %368 = arith.addf %367, %286 : vector<16x16xf32>
    %cst_159 = arith.constant dense<0xFF800000> : vector<16xf32>
    %369 = vector.multi_reduction <maximumf>, %368, %cst_159 [1] : vector<16x16xf32> to vector<16xf32>
    %370 = vector.shape_cast %369 : vector<16xf32> to vector<16x1xf32>
    %371 = vector.broadcast %370 : vector<16x1xf32> to vector<16x16xf32>
    %372 = arith.subf %368, %371 : vector<16x16xf32>
    %373 = math.exp %372 : vector<16x16xf32>
    %cst_160 = arith.constant dense<0.000000e+00> : vector<16xf32>
    %374 = vector.multi_reduction <add>, %373, %cst_160 [1] : vector<16x16xf32> to vector<16xf32>
    %375 = vector.shape_cast %374 : vector<16xf32> to vector<16x1xf32>
    %376 = tpu.reciprocal %375 {approx = true} : vector<16x1xf32> -> vector<16x1xf32>
    %377 = vector.broadcast %376 : vector<16x1xf32> to vector<16x16xf32>
    %378 = arith.mulf %373, %377 : vector<16x16xf32>
    %cst_161 = arith.constant dense<0.000000e+00> : vector<16x8xf32>
    %379 = tpu.matmul %378, %366, %cst_161 {dimension_numbers = #tpu.dot_dimension_numbers<[1], [0], [0], [1], [0, 0, 1, 1], [], []>} : vector<16x16xf32>, vector<16x8xf32>, vector<16x8xf32> -> vector<16x8xf32>
    %c344 = arith.constant 344 : index
    %c0_162 = arith.constant 0 : index
    %380 = vector.load %arg1[%c344, %c0_162] : memref<616x128xf32, #tpu.memory_space<vmem>>, vector<8x32xf32>
    %cst_163 = arith.constant dense<0.000000e+00> : vector<16x32xf32>
    %381 = tpu.matmul %379, %380, %cst_163 {dimension_numbers = #tpu.dot_dimension_numbers<[1], [0], [0], [1], [0, 0, 1, 1], [], []>} : vector<16x8xf32>, vector<8x32xf32>, vector<16x32xf32> -> vector<16x32xf32>
    %382 = arith.addf %351, %381 : vector<16x32xf32>
    %c256 = arith.constant 256 : index
    %c0_164 = arith.constant 0 : index
    %383 = vector.load %arg1[%c256, %c0_164] : memref<616x128xf32, #tpu.memory_space<vmem>>, vector<8x32xf32>
    %cst_165 = arith.constant dense<0.000000e+00> : vector<16x8xf32>
    %384 = tpu.matmul %19, %383, %cst_165 {dimension_numbers = #tpu.dot_dimension_numbers<[1], [1], [0], [0], [0, 0, 1, 0], [], []>} : vector<16x32xf32>, vector<8x32xf32>, vector<16x8xf32> -> vector<16x8xf32>
    %c89 = arith.constant 89 : index
    %c0_166 = arith.constant 0 : index
    %385 = vector.load %arg2[%c89, %c0_166] : memref<128x128xf32, #tpu.memory_space<vmem>>, vector<1x8xf32>
    %386 = vector.broadcast %385 : vector<1x8xf32> to vector<16x8xf32>
    %387 = arith.addf %384, %386 : vector<16x8xf32>
    %c288 = arith.constant 288 : index
    %c0_167 = arith.constant 0 : index
    %388 = vector.load %arg1[%c288, %c0_167] : memref<616x128xf32, #tpu.memory_space<vmem>>, vector<8x32xf32>
    %cst_168 = arith.constant dense<0.000000e+00> : vector<16x8xf32>
    %389 = tpu.matmul %19, %388, %cst_168 {dimension_numbers = #tpu.dot_dimension_numbers<[1], [1], [0], [0], [0, 0, 1, 0], [], []>} : vector<16x32xf32>, vector<8x32xf32>, vector<16x8xf32> -> vector<16x8xf32>
    %c93 = arith.constant 93 : index
    %c0_169 = arith.constant 0 : index
    %390 = vector.load %arg2[%c93, %c0_169] : memref<128x128xf32, #tpu.memory_space<vmem>>, vector<1x8xf32>
    %391 = vector.broadcast %390 : vector<1x8xf32> to vector<16x8xf32>
    %392 = arith.addf %389, %391 : vector<16x8xf32>
    %c320 = arith.constant 320 : index
    %c0_170 = arith.constant 0 : index
    %393 = vector.load %arg1[%c320, %c0_170] : memref<616x128xf32, #tpu.memory_space<vmem>>, vector<8x32xf32>
    %cst_171 = arith.constant dense<0.000000e+00> : vector<16x8xf32>
    %394 = tpu.matmul %19, %393, %cst_171 {dimension_numbers = #tpu.dot_dimension_numbers<[1], [1], [0], [0], [0, 0, 1, 0], [], []>} : vector<16x32xf32>, vector<8x32xf32>, vector<16x8xf32> -> vector<16x8xf32>
    %c97 = arith.constant 97 : index
    %c0_172 = arith.constant 0 : index
    %395 = vector.load %arg2[%c97, %c0_172] : memref<128x128xf32, #tpu.memory_space<vmem>>, vector<1x8xf32>
    %396 = vector.broadcast %395 : vector<1x8xf32> to vector<16x8xf32>
    %397 = arith.addf %394, %396 : vector<16x8xf32>
    %cst_173 = arith.constant dense<0.000000e+00> : vector<16x16xf32>
    %398 = tpu.matmul %387, %392, %cst_173 {dimension_numbers = #tpu.dot_dimension_numbers<[1], [1], [0], [0], [0, 0, 1, 0], [], []>} : vector<16x8xf32>, vector<16x8xf32>, vector<16x16xf32> -> vector<16x16xf32>
    %399 = arith.addf %398, %286 : vector<16x16xf32>
    %cst_174 = arith.constant dense<0xFF800000> : vector<16xf32>
    %400 = vector.multi_reduction <maximumf>, %399, %cst_174 [1] : vector<16x16xf32> to vector<16xf32>
    %401 = vector.shape_cast %400 : vector<16xf32> to vector<16x1xf32>
    %402 = vector.broadcast %401 : vector<16x1xf32> to vector<16x16xf32>
    %403 = arith.subf %399, %402 : vector<16x16xf32>
    %404 = math.exp %403 : vector<16x16xf32>
    %cst_175 = arith.constant dense<0.000000e+00> : vector<16xf32>
    %405 = vector.multi_reduction <add>, %404, %cst_175 [1] : vector<16x16xf32> to vector<16xf32>
    %406 = vector.shape_cast %405 : vector<16xf32> to vector<16x1xf32>
    %407 = tpu.reciprocal %406 {approx = true} : vector<16x1xf32> -> vector<16x1xf32>
    %408 = vector.broadcast %407 : vector<16x1xf32> to vector<16x16xf32>
    %409 = arith.mulf %404, %408 : vector<16x16xf32>
    %cst_176 = arith.constant dense<0.000000e+00> : vector<16x8xf32>
    %410 = tpu.matmul %409, %397, %cst_176 {dimension_numbers = #tpu.dot_dimension_numbers<[1], [0], [0], [1], [0, 0, 1, 1], [], []>} : vector<16x16xf32>, vector<16x8xf32>, vector<16x8xf32> -> vector<16x8xf32>
    %c352 = arith.constant 352 : index
    %c0_177 = arith.constant 0 : index
    %411 = vector.load %arg1[%c352, %c0_177] : memref<616x128xf32, #tpu.memory_space<vmem>>, vector<8x32xf32>
    %cst_178 = arith.constant dense<0.000000e+00> : vector<16x32xf32>
    %412 = tpu.matmul %410, %411, %cst_178 {dimension_numbers = #tpu.dot_dimension_numbers<[1], [0], [0], [1], [0, 0, 1, 1], [], []>} : vector<16x8xf32>, vector<8x32xf32>, vector<16x32xf32> -> vector<16x32xf32>
    %413 = arith.addf %382, %412 : vector<16x32xf32>
    %414 = arith.addf %19, %413 : vector<16x32xf32>
    %cst_179 = arith.constant dense<0.000000e+00> : vector<16xf32>
    %415 = vector.multi_reduction <add>, %414, %cst_179 [1] : vector<16x32xf32> to vector<16xf32>
    %416 = vector.shape_cast %415 : vector<16xf32> to vector<16x1xf32>
    %cst_180 = arith.constant 3.200000e+01 : f32
    %417 = vector.broadcast %cst_180 : f32 to vector<16x1xf32>
    %418 = arith.divf %416, %417 : vector<16x1xf32>
    %419 = vector.broadcast %418 : vector<16x1xf32> to vector<16x32xf32>
    %420 = arith.subf %414, %419 : vector<16x32xf32>
    %421 = arith.mulf %420, %420 : vector<16x32xf32>
    %cst_181 = arith.constant dense<0.000000e+00> : vector<16xf32>
    %422 = vector.multi_reduction <add>, %421, %cst_181 [1] : vector<16x32xf32> to vector<16xf32>
    %423 = vector.shape_cast %422 : vector<16xf32> to vector<16x1xf32>
    %cst_182 = arith.constant 3.200000e+01 : f32
    %424 = vector.broadcast %cst_182 : f32 to vector<16x1xf32>
    %425 = arith.divf %423, %424 : vector<16x1xf32>
    %cst_183 = arith.constant 9.99999974E-6 : f32
    %426 = vector.broadcast %cst_183 : f32 to vector<16x1xf32>
    %427 = arith.addf %425, %426 : vector<16x1xf32>
    %428 = math.rsqrt %427 : vector<16x1xf32>
    %429 = vector.broadcast %428 : vector<16x1xf32> to vector<16x32xf32>
    %430 = arith.mulf %420, %429 : vector<16x32xf32>
    %c99 = arith.constant 99 : index
    %c0_184 = arith.constant 0 : index
    %431 = vector.load %arg2[%c99, %c0_184] : memref<128x128xf32, #tpu.memory_space<vmem>>, vector<1x32xf32>
    %432 = vector.broadcast %431 : vector<1x32xf32> to vector<16x32xf32>
    %433 = arith.mulf %430, %432 : vector<16x32xf32>
    %c100 = arith.constant 100 : index
    %c0_185 = arith.constant 0 : index
    %434 = vector.load %arg2[%c100, %c0_185] : memref<128x128xf32, #tpu.memory_space<vmem>>, vector<1x32xf32>
    %435 = vector.broadcast %434 : vector<1x32xf32> to vector<16x32xf32>
    %436 = arith.addf %433, %435 : vector<16x32xf32>
    %437 = tpu.iota {dimensions = array<i32: 0>} : vector<16x16xi32>
    %438 = tpu.iota {dimensions = array<i32: 1>} : vector<16x16xi32>
    %c0_i32_186 = arith.constant 0 : i32
    %439 = vector.broadcast %c0_i32_186 : i32 to vector<16x16xi32>
    %440 = arith.cmpi sge, %437, %439 : vector<16x16xi32>
    %c8_i32_187 = arith.constant 8 : i32
    %441 = vector.broadcast %c8_i32_187 : i32 to vector<16x16xi32>
    %442 = arith.cmpi slt, %437, %441 : vector<16x16xi32>
    %443 = arith.andi %440, %442 : vector<16x16xi1>
    %c0_i32_188 = arith.constant 0 : i32
    %444 = vector.broadcast %c0_i32_188 : i32 to vector<16x16xi32>
    %445 = arith.cmpi sge, %438, %444 : vector<16x16xi32>
    %446 = arith.andi %443, %445 : vector<16x16xi1>
    %c8_i32_189 = arith.constant 8 : i32
    %447 = vector.broadcast %c8_i32_189 : i32 to vector<16x16xi32>
    %448 = arith.cmpi slt, %438, %447 : vector<16x16xi32>
    %449 = arith.andi %446, %448 : vector<16x16xi1>
    %c8_i32_190 = arith.constant 8 : i32
    %450 = vector.broadcast %c8_i32_190 : i32 to vector<16x16xi32>
    %451 = arith.cmpi sge, %437, %450 : vector<16x16xi32>
    %c16_i32_191 = arith.constant 16 : i32
    %452 = vector.broadcast %c16_i32_191 : i32 to vector<16x16xi32>
    %453 = arith.cmpi slt, %437, %452 : vector<16x16xi32>
    %454 = arith.andi %451, %453 : vector<16x16xi1>
    %c8_i32_192 = arith.constant 8 : i32
    %455 = vector.broadcast %c8_i32_192 : i32 to vector<16x16xi32>
    %456 = arith.cmpi sge, %438, %455 : vector<16x16xi32>
    %457 = arith.andi %454, %456 : vector<16x16xi1>
    %c16_i32_193 = arith.constant 16 : i32
    %458 = vector.broadcast %c16_i32_193 : i32 to vector<16x16xi32>
    %459 = arith.cmpi slt, %438, %458 : vector<16x16xi32>
    %460 = arith.andi %457, %459 : vector<16x16xi1>
    %461 = arith.ori %449, %460 : vector<16x16xi1>
    %cst_194 = arith.constant 0.000000e+00 : f32
    %cst_195 = arith.constant -1.000000e+30 : f32
    %462 = vector.broadcast %cst_194 : f32 to vector<16x16xf32>
    %463 = vector.broadcast %cst_195 : f32 to vector<16x16xf32>
    %464 = arith.select %461, %462, %463 : vector<16x16xi1>, vector<16x16xf32>
    %c113 = arith.constant 113 : index
    %c0_196 = arith.constant 0 : index
    %465 = vector.load %arg2[%c113, %c0_196] : memref<128x128xf32, #tpu.memory_space<vmem>>, vector<1x32xf32>
    %466 = vector.shape_cast %465 : vector<1x32xf32> to vector<1x32xf32>
    %467 = vector.broadcast %466 : vector<1x32xf32> to vector<16x32xf32>
    %c360 = arith.constant 360 : index
    %c0_197 = arith.constant 0 : index
    %468 = vector.load %arg1[%c360, %c0_197] : memref<616x128xf32, #tpu.memory_space<vmem>>, vector<8x32xf32>
    %cst_198 = arith.constant dense<0.000000e+00> : vector<16x8xf32>
    %469 = tpu.matmul %436, %468, %cst_198 {dimension_numbers = #tpu.dot_dimension_numbers<[1], [1], [0], [0], [0, 0, 1, 0], [], []>} : vector<16x32xf32>, vector<8x32xf32>, vector<16x8xf32> -> vector<16x8xf32>
    %c101 = arith.constant 101 : index
    %c0_199 = arith.constant 0 : index
    %470 = vector.load %arg2[%c101, %c0_199] : memref<128x128xf32, #tpu.memory_space<vmem>>, vector<1x8xf32>
    %471 = vector.broadcast %470 : vector<1x8xf32> to vector<16x8xf32>
    %472 = arith.addf %469, %471 : vector<16x8xf32>
    %c392 = arith.constant 392 : index
    %c0_200 = arith.constant 0 : index
    %473 = vector.load %arg1[%c392, %c0_200] : memref<616x128xf32, #tpu.memory_space<vmem>>, vector<8x32xf32>
    %cst_201 = arith.constant dense<0.000000e+00> : vector<16x8xf32>
    %474 = tpu.matmul %256, %473, %cst_201 {dimension_numbers = #tpu.dot_dimension_numbers<[1], [1], [0], [0], [0, 0, 1, 0], [], []>} : vector<16x32xf32>, vector<8x32xf32>, vector<16x8xf32> -> vector<16x8xf32>
    %c105 = arith.constant 105 : index
    %c0_202 = arith.constant 0 : index
    %475 = vector.load %arg2[%c105, %c0_202] : memref<128x128xf32, #tpu.memory_space<vmem>>, vector<1x8xf32>
    %476 = vector.broadcast %475 : vector<1x8xf32> to vector<16x8xf32>
    %477 = arith.addf %474, %476 : vector<16x8xf32>
    %c424 = arith.constant 424 : index
    %c0_203 = arith.constant 0 : index
    %478 = vector.load %arg1[%c424, %c0_203] : memref<616x128xf32, #tpu.memory_space<vmem>>, vector<8x32xf32>
    %cst_204 = arith.constant dense<0.000000e+00> : vector<16x8xf32>
    %479 = tpu.matmul %256, %478, %cst_204 {dimension_numbers = #tpu.dot_dimension_numbers<[1], [1], [0], [0], [0, 0, 1, 0], [], []>} : vector<16x32xf32>, vector<8x32xf32>, vector<16x8xf32> -> vector<16x8xf32>
    %c109 = arith.constant 109 : index
    %c0_205 = arith.constant 0 : index
    %480 = vector.load %arg2[%c109, %c0_205] : memref<128x128xf32, #tpu.memory_space<vmem>>, vector<1x8xf32>
    %481 = vector.broadcast %480 : vector<1x8xf32> to vector<16x8xf32>
    %482 = arith.addf %479, %481 : vector<16x8xf32>
    %cst_206 = arith.constant dense<0.000000e+00> : vector<16x16xf32>
    %483 = tpu.matmul %472, %477, %cst_206 {dimension_numbers = #tpu.dot_dimension_numbers<[1], [1], [0], [0], [0, 0, 1, 0], [], []>} : vector<16x8xf32>, vector<16x8xf32>, vector<16x16xf32> -> vector<16x16xf32>
    %484 = arith.addf %483, %464 : vector<16x16xf32>
    %cst_207 = arith.constant dense<0xFF800000> : vector<16xf32>
    %485 = vector.multi_reduction <maximumf>, %484, %cst_207 [1] : vector<16x16xf32> to vector<16xf32>
    %486 = vector.shape_cast %485 : vector<16xf32> to vector<16x1xf32>
    %487 = vector.broadcast %486 : vector<16x1xf32> to vector<16x16xf32>
    %488 = arith.subf %484, %487 : vector<16x16xf32>
    %489 = math.exp %488 : vector<16x16xf32>
    %cst_208 = arith.constant dense<0.000000e+00> : vector<16xf32>
    %490 = vector.multi_reduction <add>, %489, %cst_208 [1] : vector<16x16xf32> to vector<16xf32>
    %491 = vector.shape_cast %490 : vector<16xf32> to vector<16x1xf32>
    %492 = tpu.reciprocal %491 {approx = true} : vector<16x1xf32> -> vector<16x1xf32>
    %493 = vector.broadcast %492 : vector<16x1xf32> to vector<16x16xf32>
    %494 = arith.mulf %489, %493 : vector<16x16xf32>
    %cst_209 = arith.constant dense<0.000000e+00> : vector<16x8xf32>
    %495 = tpu.matmul %494, %482, %cst_209 {dimension_numbers = #tpu.dot_dimension_numbers<[1], [0], [0], [1], [0, 0, 1, 1], [], []>} : vector<16x16xf32>, vector<16x8xf32>, vector<16x8xf32> -> vector<16x8xf32>
    %c456 = arith.constant 456 : index
    %c0_210 = arith.constant 0 : index
    %496 = vector.load %arg1[%c456, %c0_210] : memref<616x128xf32, #tpu.memory_space<vmem>>, vector<8x32xf32>
    %cst_211 = arith.constant dense<0.000000e+00> : vector<16x32xf32>
    %497 = tpu.matmul %495, %496, %cst_211 {dimension_numbers = #tpu.dot_dimension_numbers<[1], [0], [0], [1], [0, 0, 1, 1], [], []>} : vector<16x8xf32>, vector<8x32xf32>, vector<16x32xf32> -> vector<16x32xf32>
    %498 = arith.addf %467, %497 : vector<16x32xf32>
    %c368 = arith.constant 368 : index
    %c0_212 = arith.constant 0 : index
    %499 = vector.load %arg1[%c368, %c0_212] : memref<616x128xf32, #tpu.memory_space<vmem>>, vector<8x32xf32>
    %cst_213 = arith.constant dense<0.000000e+00> : vector<16x8xf32>
    %500 = tpu.matmul %436, %499, %cst_213 {dimension_numbers = #tpu.dot_dimension_numbers<[1], [1], [0], [0], [0, 0, 1, 0], [], []>} : vector<16x32xf32>, vector<8x32xf32>, vector<16x8xf32> -> vector<16x8xf32>
    %c102 = arith.constant 102 : index
    %c0_214 = arith.constant 0 : index
    %501 = vector.load %arg2[%c102, %c0_214] : memref<128x128xf32, #tpu.memory_space<vmem>>, vector<1x8xf32>
    %502 = vector.broadcast %501 : vector<1x8xf32> to vector<16x8xf32>
    %503 = arith.addf %500, %502 : vector<16x8xf32>
    %c400 = arith.constant 400 : index
    %c0_215 = arith.constant 0 : index
    %504 = vector.load %arg1[%c400, %c0_215] : memref<616x128xf32, #tpu.memory_space<vmem>>, vector<8x32xf32>
    %cst_216 = arith.constant dense<0.000000e+00> : vector<16x8xf32>
    %505 = tpu.matmul %256, %504, %cst_216 {dimension_numbers = #tpu.dot_dimension_numbers<[1], [1], [0], [0], [0, 0, 1, 0], [], []>} : vector<16x32xf32>, vector<8x32xf32>, vector<16x8xf32> -> vector<16x8xf32>
    %c106 = arith.constant 106 : index
    %c0_217 = arith.constant 0 : index
    %506 = vector.load %arg2[%c106, %c0_217] : memref<128x128xf32, #tpu.memory_space<vmem>>, vector<1x8xf32>
    %507 = vector.broadcast %506 : vector<1x8xf32> to vector<16x8xf32>
    %508 = arith.addf %505, %507 : vector<16x8xf32>
    %c432 = arith.constant 432 : index
    %c0_218 = arith.constant 0 : index
    %509 = vector.load %arg1[%c432, %c0_218] : memref<616x128xf32, #tpu.memory_space<vmem>>, vector<8x32xf32>
    %cst_219 = arith.constant dense<0.000000e+00> : vector<16x8xf32>
    %510 = tpu.matmul %256, %509, %cst_219 {dimension_numbers = #tpu.dot_dimension_numbers<[1], [1], [0], [0], [0, 0, 1, 0], [], []>} : vector<16x32xf32>, vector<8x32xf32>, vector<16x8xf32> -> vector<16x8xf32>
    %c110 = arith.constant 110 : index
    %c0_220 = arith.constant 0 : index
    %511 = vector.load %arg2[%c110, %c0_220] : memref<128x128xf32, #tpu.memory_space<vmem>>, vector<1x8xf32>
    %512 = vector.broadcast %511 : vector<1x8xf32> to vector<16x8xf32>
    %513 = arith.addf %510, %512 : vector<16x8xf32>
    %cst_221 = arith.constant dense<0.000000e+00> : vector<16x16xf32>
    %514 = tpu.matmul %503, %508, %cst_221 {dimension_numbers = #tpu.dot_dimension_numbers<[1], [1], [0], [0], [0, 0, 1, 0], [], []>} : vector<16x8xf32>, vector<16x8xf32>, vector<16x16xf32> -> vector<16x16xf32>
    %515 = arith.addf %514, %464 : vector<16x16xf32>
    %cst_222 = arith.constant dense<0xFF800000> : vector<16xf32>
    %516 = vector.multi_reduction <maximumf>, %515, %cst_222 [1] : vector<16x16xf32> to vector<16xf32>
    %517 = vector.shape_cast %516 : vector<16xf32> to vector<16x1xf32>
    %518 = vector.broadcast %517 : vector<16x1xf32> to vector<16x16xf32>
    %519 = arith.subf %515, %518 : vector<16x16xf32>
    %520 = math.exp %519 : vector<16x16xf32>
    %cst_223 = arith.constant dense<0.000000e+00> : vector<16xf32>
    %521 = vector.multi_reduction <add>, %520, %cst_223 [1] : vector<16x16xf32> to vector<16xf32>
    %522 = vector.shape_cast %521 : vector<16xf32> to vector<16x1xf32>
    %523 = tpu.reciprocal %522 {approx = true} : vector<16x1xf32> -> vector<16x1xf32>
    %524 = vector.broadcast %523 : vector<16x1xf32> to vector<16x16xf32>
    %525 = arith.mulf %520, %524 : vector<16x16xf32>
    %cst_224 = arith.constant dense<0.000000e+00> : vector<16x8xf32>
    %526 = tpu.matmul %525, %513, %cst_224 {dimension_numbers = #tpu.dot_dimension_numbers<[1], [0], [0], [1], [0, 0, 1, 1], [], []>} : vector<16x16xf32>, vector<16x8xf32>, vector<16x8xf32> -> vector<16x8xf32>
    %c464 = arith.constant 464 : index
    %c0_225 = arith.constant 0 : index
    %527 = vector.load %arg1[%c464, %c0_225] : memref<616x128xf32, #tpu.memory_space<vmem>>, vector<8x32xf32>
    %cst_226 = arith.constant dense<0.000000e+00> : vector<16x32xf32>
    %528 = tpu.matmul %526, %527, %cst_226 {dimension_numbers = #tpu.dot_dimension_numbers<[1], [0], [0], [1], [0, 0, 1, 1], [], []>} : vector<16x8xf32>, vector<8x32xf32>, vector<16x32xf32> -> vector<16x32xf32>
    %529 = arith.addf %498, %528 : vector<16x32xf32>
    %c376 = arith.constant 376 : index
    %c0_227 = arith.constant 0 : index
    %530 = vector.load %arg1[%c376, %c0_227] : memref<616x128xf32, #tpu.memory_space<vmem>>, vector<8x32xf32>
    %cst_228 = arith.constant dense<0.000000e+00> : vector<16x8xf32>
    %531 = tpu.matmul %436, %530, %cst_228 {dimension_numbers = #tpu.dot_dimension_numbers<[1], [1], [0], [0], [0, 0, 1, 0], [], []>} : vector<16x32xf32>, vector<8x32xf32>, vector<16x8xf32> -> vector<16x8xf32>
    %c103 = arith.constant 103 : index
    %c0_229 = arith.constant 0 : index
    %532 = vector.load %arg2[%c103, %c0_229] : memref<128x128xf32, #tpu.memory_space<vmem>>, vector<1x8xf32>
    %533 = vector.broadcast %532 : vector<1x8xf32> to vector<16x8xf32>
    %534 = arith.addf %531, %533 : vector<16x8xf32>
    %c408 = arith.constant 408 : index
    %c0_230 = arith.constant 0 : index
    %535 = vector.load %arg1[%c408, %c0_230] : memref<616x128xf32, #tpu.memory_space<vmem>>, vector<8x32xf32>
    %cst_231 = arith.constant dense<0.000000e+00> : vector<16x8xf32>
    %536 = tpu.matmul %256, %535, %cst_231 {dimension_numbers = #tpu.dot_dimension_numbers<[1], [1], [0], [0], [0, 0, 1, 0], [], []>} : vector<16x32xf32>, vector<8x32xf32>, vector<16x8xf32> -> vector<16x8xf32>
    %c107 = arith.constant 107 : index
    %c0_232 = arith.constant 0 : index
    %537 = vector.load %arg2[%c107, %c0_232] : memref<128x128xf32, #tpu.memory_space<vmem>>, vector<1x8xf32>
    %538 = vector.broadcast %537 : vector<1x8xf32> to vector<16x8xf32>
    %539 = arith.addf %536, %538 : vector<16x8xf32>
    %c440 = arith.constant 440 : index
    %c0_233 = arith.constant 0 : index
    %540 = vector.load %arg1[%c440, %c0_233] : memref<616x128xf32, #tpu.memory_space<vmem>>, vector<8x32xf32>
    %cst_234 = arith.constant dense<0.000000e+00> : vector<16x8xf32>
    %541 = tpu.matmul %256, %540, %cst_234 {dimension_numbers = #tpu.dot_dimension_numbers<[1], [1], [0], [0], [0, 0, 1, 0], [], []>} : vector<16x32xf32>, vector<8x32xf32>, vector<16x8xf32> -> vector<16x8xf32>
    %c111 = arith.constant 111 : index
    %c0_235 = arith.constant 0 : index
    %542 = vector.load %arg2[%c111, %c0_235] : memref<128x128xf32, #tpu.memory_space<vmem>>, vector<1x8xf32>
    %543 = vector.broadcast %542 : vector<1x8xf32> to vector<16x8xf32>
    %544 = arith.addf %541, %543 : vector<16x8xf32>
    %cst_236 = arith.constant dense<0.000000e+00> : vector<16x16xf32>
    %545 = tpu.matmul %534, %539, %cst_236 {dimension_numbers = #tpu.dot_dimension_numbers<[1], [1], [0], [0], [0, 0, 1, 0], [], []>} : vector<16x8xf32>, vector<16x8xf32>, vector<16x16xf32> -> vector<16x16xf32>
    %546 = arith.addf %545, %464 : vector<16x16xf32>
    %cst_237 = arith.constant dense<0xFF800000> : vector<16xf32>
    %547 = vector.multi_reduction <maximumf>, %546, %cst_237 [1] : vector<16x16xf32> to vector<16xf32>
    %548 = vector.shape_cast %547 : vector<16xf32> to vector<16x1xf32>
    %549 = vector.broadcast %548 : vector<16x1xf32> to vector<16x16xf32>
    %550 = arith.subf %546, %549 : vector<16x16xf32>
    %551 = math.exp %550 : vector<16x16xf32>
    %cst_238 = arith.constant dense<0.000000e+00> : vector<16xf32>
    %552 = vector.multi_reduction <add>, %551, %cst_238 [1] : vector<16x16xf32> to vector<16xf32>
    %553 = vector.shape_cast %552 : vector<16xf32> to vector<16x1xf32>
    %554 = tpu.reciprocal %553 {approx = true} : vector<16x1xf32> -> vector<16x1xf32>
    %555 = vector.broadcast %554 : vector<16x1xf32> to vector<16x16xf32>
    %556 = arith.mulf %551, %555 : vector<16x16xf32>
    %cst_239 = arith.constant dense<0.000000e+00> : vector<16x8xf32>
    %557 = tpu.matmul %556, %544, %cst_239 {dimension_numbers = #tpu.dot_dimension_numbers<[1], [0], [0], [1], [0, 0, 1, 1], [], []>} : vector<16x16xf32>, vector<16x8xf32>, vector<16x8xf32> -> vector<16x8xf32>
    %c472 = arith.constant 472 : index
    %c0_240 = arith.constant 0 : index
    %558 = vector.load %arg1[%c472, %c0_240] : memref<616x128xf32, #tpu.memory_space<vmem>>, vector<8x32xf32>
    %cst_241 = arith.constant dense<0.000000e+00> : vector<16x32xf32>
    %559 = tpu.matmul %557, %558, %cst_241 {dimension_numbers = #tpu.dot_dimension_numbers<[1], [0], [0], [1], [0, 0, 1, 1], [], []>} : vector<16x8xf32>, vector<8x32xf32>, vector<16x32xf32> -> vector<16x32xf32>
    %560 = arith.addf %529, %559 : vector<16x32xf32>
    %c384 = arith.constant 384 : index
    %c0_242 = arith.constant 0 : index
    %561 = vector.load %arg1[%c384, %c0_242] : memref<616x128xf32, #tpu.memory_space<vmem>>, vector<8x32xf32>
    %cst_243 = arith.constant dense<0.000000e+00> : vector<16x8xf32>
    %562 = tpu.matmul %436, %561, %cst_243 {dimension_numbers = #tpu.dot_dimension_numbers<[1], [1], [0], [0], [0, 0, 1, 0], [], []>} : vector<16x32xf32>, vector<8x32xf32>, vector<16x8xf32> -> vector<16x8xf32>
    %c104_244 = arith.constant 104 : index
    %c0_245 = arith.constant 0 : index
    %563 = vector.load %arg2[%c104_244, %c0_245] : memref<128x128xf32, #tpu.memory_space<vmem>>, vector<1x8xf32>
    %564 = vector.broadcast %563 : vector<1x8xf32> to vector<16x8xf32>
    %565 = arith.addf %562, %564 : vector<16x8xf32>
    %c416 = arith.constant 416 : index
    %c0_246 = arith.constant 0 : index
    %566 = vector.load %arg1[%c416, %c0_246] : memref<616x128xf32, #tpu.memory_space<vmem>>, vector<8x32xf32>
    %cst_247 = arith.constant dense<0.000000e+00> : vector<16x8xf32>
    %567 = tpu.matmul %256, %566, %cst_247 {dimension_numbers = #tpu.dot_dimension_numbers<[1], [1], [0], [0], [0, 0, 1, 0], [], []>} : vector<16x32xf32>, vector<8x32xf32>, vector<16x8xf32> -> vector<16x8xf32>
    %c108 = arith.constant 108 : index
    %c0_248 = arith.constant 0 : index
    %568 = vector.load %arg2[%c108, %c0_248] : memref<128x128xf32, #tpu.memory_space<vmem>>, vector<1x8xf32>
    %569 = vector.broadcast %568 : vector<1x8xf32> to vector<16x8xf32>
    %570 = arith.addf %567, %569 : vector<16x8xf32>
    %c448 = arith.constant 448 : index
    %c0_249 = arith.constant 0 : index
    %571 = vector.load %arg1[%c448, %c0_249] : memref<616x128xf32, #tpu.memory_space<vmem>>, vector<8x32xf32>
    %cst_250 = arith.constant dense<0.000000e+00> : vector<16x8xf32>
    %572 = tpu.matmul %256, %571, %cst_250 {dimension_numbers = #tpu.dot_dimension_numbers<[1], [1], [0], [0], [0, 0, 1, 0], [], []>} : vector<16x32xf32>, vector<8x32xf32>, vector<16x8xf32> -> vector<16x8xf32>
    %c112_251 = arith.constant 112 : index
    %c0_252 = arith.constant 0 : index
    %573 = vector.load %arg2[%c112_251, %c0_252] : memref<128x128xf32, #tpu.memory_space<vmem>>, vector<1x8xf32>
    %574 = vector.broadcast %573 : vector<1x8xf32> to vector<16x8xf32>
    %575 = arith.addf %572, %574 : vector<16x8xf32>
    %cst_253 = arith.constant dense<0.000000e+00> : vector<16x16xf32>
    %576 = tpu.matmul %565, %570, %cst_253 {dimension_numbers = #tpu.dot_dimension_numbers<[1], [1], [0], [0], [0, 0, 1, 0], [], []>} : vector<16x8xf32>, vector<16x8xf32>, vector<16x16xf32> -> vector<16x16xf32>
    %577 = arith.addf %576, %464 : vector<16x16xf32>
    %cst_254 = arith.constant dense<0xFF800000> : vector<16xf32>
    %578 = vector.multi_reduction <maximumf>, %577, %cst_254 [1] : vector<16x16xf32> to vector<16xf32>
    %579 = vector.shape_cast %578 : vector<16xf32> to vector<16x1xf32>
    %580 = vector.broadcast %579 : vector<16x1xf32> to vector<16x16xf32>
    %581 = arith.subf %577, %580 : vector<16x16xf32>
    %582 = math.exp %581 : vector<16x16xf32>
    %cst_255 = arith.constant dense<0.000000e+00> : vector<16xf32>
    %583 = vector.multi_reduction <add>, %582, %cst_255 [1] : vector<16x16xf32> to vector<16xf32>
    %584 = vector.shape_cast %583 : vector<16xf32> to vector<16x1xf32>
    %585 = tpu.reciprocal %584 {approx = true} : vector<16x1xf32> -> vector<16x1xf32>
    %586 = vector.broadcast %585 : vector<16x1xf32> to vector<16x16xf32>
    %587 = arith.mulf %582, %586 : vector<16x16xf32>
    %cst_256 = arith.constant dense<0.000000e+00> : vector<16x8xf32>
    %588 = tpu.matmul %587, %575, %cst_256 {dimension_numbers = #tpu.dot_dimension_numbers<[1], [0], [0], [1], [0, 0, 1, 1], [], []>} : vector<16x16xf32>, vector<16x8xf32>, vector<16x8xf32> -> vector<16x8xf32>
    %c480 = arith.constant 480 : index
    %c0_257 = arith.constant 0 : index
    %589 = vector.load %arg1[%c480, %c0_257] : memref<616x128xf32, #tpu.memory_space<vmem>>, vector<8x32xf32>
    %cst_258 = arith.constant dense<0.000000e+00> : vector<16x32xf32>
    %590 = tpu.matmul %588, %589, %cst_258 {dimension_numbers = #tpu.dot_dimension_numbers<[1], [0], [0], [1], [0, 0, 1, 1], [], []>} : vector<16x8xf32>, vector<8x32xf32>, vector<16x32xf32> -> vector<16x32xf32>
    %591 = arith.addf %560, %590 : vector<16x32xf32>
    %592 = arith.addf %436, %591 : vector<16x32xf32>
    %cst_259 = arith.constant dense<0.000000e+00> : vector<16xf32>
    %593 = vector.multi_reduction <add>, %592, %cst_259 [1] : vector<16x32xf32> to vector<16xf32>
    %594 = vector.shape_cast %593 : vector<16xf32> to vector<16x1xf32>
    %cst_260 = arith.constant 3.200000e+01 : f32
    %595 = vector.broadcast %cst_260 : f32 to vector<16x1xf32>
    %596 = arith.divf %594, %595 : vector<16x1xf32>
    %597 = vector.broadcast %596 : vector<16x1xf32> to vector<16x32xf32>
    %598 = arith.subf %592, %597 : vector<16x32xf32>
    %599 = arith.mulf %598, %598 : vector<16x32xf32>
    %cst_261 = arith.constant dense<0.000000e+00> : vector<16xf32>
    %600 = vector.multi_reduction <add>, %599, %cst_261 [1] : vector<16x32xf32> to vector<16xf32>
    %601 = vector.shape_cast %600 : vector<16xf32> to vector<16x1xf32>
    %cst_262 = arith.constant 3.200000e+01 : f32
    %602 = vector.broadcast %cst_262 : f32 to vector<16x1xf32>
    %603 = arith.divf %601, %602 : vector<16x1xf32>
    %cst_263 = arith.constant 9.99999974E-6 : f32
    %604 = vector.broadcast %cst_263 : f32 to vector<16x1xf32>
    %605 = arith.addf %603, %604 : vector<16x1xf32>
    %606 = math.rsqrt %605 : vector<16x1xf32>
    %607 = vector.broadcast %606 : vector<16x1xf32> to vector<16x32xf32>
    %608 = arith.mulf %598, %607 : vector<16x32xf32>
    %c114 = arith.constant 114 : index
    %c0_264 = arith.constant 0 : index
    %609 = vector.load %arg2[%c114, %c0_264] : memref<128x128xf32, #tpu.memory_space<vmem>>, vector<1x32xf32>
    %610 = vector.broadcast %609 : vector<1x32xf32> to vector<16x32xf32>
    %611 = arith.mulf %608, %610 : vector<16x32xf32>
    %c115 = arith.constant 115 : index
    %c0_265 = arith.constant 0 : index
    %612 = vector.load %arg2[%c115, %c0_265] : memref<128x128xf32, #tpu.memory_space<vmem>>, vector<1x32xf32>
    %613 = vector.broadcast %612 : vector<1x32xf32> to vector<16x32xf32>
    %614 = arith.addf %611, %613 : vector<16x32xf32>
    %c488 = arith.constant 488 : index
    %c0_266 = arith.constant 0 : index
    %615 = vector.load %arg1[%c488, %c0_266] : memref<616x128xf32, #tpu.memory_space<vmem>>, vector<32x64xf32>
    %cst_267 = arith.constant dense<0.000000e+00> : vector<16x64xf32>
    %616 = tpu.matmul %614, %615, %cst_267 {dimension_numbers = #tpu.dot_dimension_numbers<[1], [0], [0], [1], [0, 0, 1, 1], [], []>} : vector<16x32xf32>, vector<32x64xf32>, vector<16x64xf32> -> vector<16x64xf32>
    %c116 = arith.constant 116 : index
    %c0_268 = arith.constant 0 : index
    %617 = vector.load %arg2[%c116, %c0_268] : memref<128x128xf32, #tpu.memory_space<vmem>>, vector<1x64xf32>
    %618 = vector.broadcast %617 : vector<1x64xf32> to vector<16x64xf32>
    %619 = arith.addf %616, %618 : vector<16x64xf32>
    %cst_269 = arith.constant 0.000000e+00 : f32
    %620 = vector.broadcast %cst_269 : f32 to vector<16x64xf32>
    %621 = arith.maximumf %619, %620 : vector<16x64xf32>
    %c520 = arith.constant 520 : index
    %c0_270 = arith.constant 0 : index
    %622 = vector.load %arg1[%c520, %c0_270] : memref<616x128xf32, #tpu.memory_space<vmem>>, vector<64x32xf32>
    %cst_271 = arith.constant dense<0.000000e+00> : vector<16x32xf32>
    %623 = tpu.matmul %621, %622, %cst_271 {dimension_numbers = #tpu.dot_dimension_numbers<[1], [0], [0], [1], [0, 0, 1, 1], [], []>} : vector<16x64xf32>, vector<64x32xf32>, vector<16x32xf32> -> vector<16x32xf32>
    %c117 = arith.constant 117 : index
    %c0_272 = arith.constant 0 : index
    %624 = vector.load %arg2[%c117, %c0_272] : memref<128x128xf32, #tpu.memory_space<vmem>>, vector<1x32xf32>
    %625 = vector.broadcast %624 : vector<1x32xf32> to vector<16x32xf32>
    %626 = arith.addf %623, %625 : vector<16x32xf32>
    %627 = arith.addf %614, %626 : vector<16x32xf32>
    %cst_273 = arith.constant dense<0.000000e+00> : vector<16xf32>
    %628 = vector.multi_reduction <add>, %627, %cst_273 [1] : vector<16x32xf32> to vector<16xf32>
    %629 = vector.shape_cast %628 : vector<16xf32> to vector<16x1xf32>
    %cst_274 = arith.constant 3.200000e+01 : f32
    %630 = vector.broadcast %cst_274 : f32 to vector<16x1xf32>
    %631 = arith.divf %629, %630 : vector<16x1xf32>
    %632 = vector.broadcast %631 : vector<16x1xf32> to vector<16x32xf32>
    %633 = arith.subf %627, %632 : vector<16x32xf32>
    %634 = arith.mulf %633, %633 : vector<16x32xf32>
    %cst_275 = arith.constant dense<0.000000e+00> : vector<16xf32>
    %635 = vector.multi_reduction <add>, %634, %cst_275 [1] : vector<16x32xf32> to vector<16xf32>
    %636 = vector.shape_cast %635 : vector<16xf32> to vector<16x1xf32>
    %cst_276 = arith.constant 3.200000e+01 : f32
    %637 = vector.broadcast %cst_276 : f32 to vector<16x1xf32>
    %638 = arith.divf %636, %637 : vector<16x1xf32>
    %cst_277 = arith.constant 9.99999974E-6 : f32
    %639 = vector.broadcast %cst_277 : f32 to vector<16x1xf32>
    %640 = arith.addf %638, %639 : vector<16x1xf32>
    %641 = math.rsqrt %640 : vector<16x1xf32>
    %642 = vector.broadcast %641 : vector<16x1xf32> to vector<16x32xf32>
    %643 = arith.mulf %633, %642 : vector<16x32xf32>
    %c118 = arith.constant 118 : index
    %c0_278 = arith.constant 0 : index
    %644 = vector.load %arg2[%c118, %c0_278] : memref<128x128xf32, #tpu.memory_space<vmem>>, vector<1x32xf32>
    %645 = vector.broadcast %644 : vector<1x32xf32> to vector<16x32xf32>
    %646 = arith.mulf %643, %645 : vector<16x32xf32>
    %c119 = arith.constant 119 : index
    %c0_279 = arith.constant 0 : index
    %647 = vector.load %arg2[%c119, %c0_279] : memref<128x128xf32, #tpu.memory_space<vmem>>, vector<1x32xf32>
    %648 = vector.broadcast %647 : vector<1x32xf32> to vector<16x32xf32>
    %649 = arith.addf %646, %648 : vector<16x32xf32>
    %cst_280 = arith.constant dense<0.000000e+00> : vector<16xf32>
    %650 = vector.multi_reduction <add>, %649, %cst_280 [1] : vector<16x32xf32> to vector<16xf32>
    %651 = vector.shape_cast %650 : vector<16xf32> to vector<16x1xf32>
    %cst_281 = arith.constant 3.200000e+01 : f32
    %652 = vector.broadcast %cst_281 : f32 to vector<16x1xf32>
    %653 = arith.divf %651, %652 : vector<16x1xf32>
    %654 = vector.broadcast %653 : vector<16x1xf32> to vector<16x32xf32>
    %655 = arith.subf %649, %654 : vector<16x32xf32>
    %656 = arith.mulf %655, %655 : vector<16x32xf32>
    %cst_282 = arith.constant dense<0.000000e+00> : vector<16xf32>
    %657 = vector.multi_reduction <add>, %656, %cst_282 [1] : vector<16x32xf32> to vector<16xf32>
    %658 = vector.shape_cast %657 : vector<16xf32> to vector<16x1xf32>
    %cst_283 = arith.constant 3.200000e+01 : f32
    %659 = vector.broadcast %cst_283 : f32 to vector<16x1xf32>
    %660 = arith.divf %658, %659 : vector<16x1xf32>
    %cst_284 = arith.constant 9.99999974E-6 : f32
    %661 = vector.broadcast %cst_284 : f32 to vector<16x1xf32>
    %662 = arith.addf %660, %661 : vector<16x1xf32>
    %663 = math.rsqrt %662 : vector<16x1xf32>
    %664 = vector.broadcast %663 : vector<16x1xf32> to vector<16x32xf32>
    %665 = arith.mulf %655, %664 : vector<16x32xf32>
    %c120_285 = arith.constant 120 : index
    %c0_286 = arith.constant 0 : index
    %666 = vector.load %arg2[%c120_285, %c0_286] : memref<128x128xf32, #tpu.memory_space<vmem>>, vector<1x32xf32>
    %667 = vector.broadcast %666 : vector<1x32xf32> to vector<16x32xf32>
    %668 = arith.mulf %665, %667 : vector<16x32xf32>
    %c121 = arith.constant 121 : index
    %c0_287 = arith.constant 0 : index
    %669 = vector.load %arg2[%c121, %c0_287] : memref<128x128xf32, #tpu.memory_space<vmem>>, vector<1x32xf32>
    %670 = vector.broadcast %669 : vector<1x32xf32> to vector<16x32xf32>
    %671 = arith.addf %668, %670 : vector<16x32xf32>
    %c584 = arith.constant 584 : index
    %c0_288 = arith.constant 0 : index
    %672 = vector.load %arg1[%c584, %c0_288] : memref<616x128xf32, #tpu.memory_space<vmem>>, vector<32x8xf32>
    %cst_289 = arith.constant dense<0.000000e+00> : vector<16x8xf32>
    %673 = tpu.matmul %671, %672, %cst_289 {dimension_numbers = #tpu.dot_dimension_numbers<[1], [0], [0], [1], [0, 0, 1, 1], [], []>} : vector<16x32xf32>, vector<32x8xf32>, vector<16x8xf32> -> vector<16x8xf32>
    %c122 = arith.constant 122 : index
    %c0_290 = arith.constant 0 : index
    %674 = vector.load %arg2[%c122, %c0_290] : memref<128x128xf32, #tpu.memory_space<vmem>>, vector<1x8xf32>
    %675 = vector.broadcast %674 : vector<1x8xf32> to vector<16x8xf32>
    %676 = arith.addf %673, %675 : vector<16x8xf32>
    %c0_291 = arith.constant 0 : index
    %c0_292 = arith.constant 0 : index
    %677 = vector.load %arg3[%c0_291, %c0_292] : memref<16x8xf32, #tpu.memory_space<vmem>>, vector<16x8xf32>
    tpu.vector_store %arg3[%c0_291, %c0_292], %676 {strides = array<i32>} : memref<16x8xf32, #tpu.memory_space<vmem>>, vector<16x8xf32>,
    return
  }
}

</mosaic_0001>

<llo_original>
// kernel: transam_forward.1
$region0: #{transam_forward.1}
  #allocation0 [shape = 'u32[]', space=smem, size = 0x4, offset = 0x4, fixed_abs, tag = 'smem constant byte address 0x4 - core index']
  #allocation1 [shape = 'u32[144,128]{1,0:T(1,128)}', space=vmem, size = 0x12000, scoped, tag = 'internal scratch']
  %s0 = inlined_call_operand.vmem [shape: f32[32,8], index: 0, kind: input, shape index: {}]
  %s1 = inlined_call_operand.hbm [shape: f32[616,128], index: 1, kind: input, shape index: {}]
  %s2 = inlined_call_operand.vmem [shape: f32[128,128], index: 2, kind: input, shape index: {}]
  %s3 = inlined_call_operand.vmem [shape: f32[16,8], index: 3, kind: output, shape index: {}]
  %s4 = sld [smem:[#allocation0]]
  $region26: #{transam_forward.1} parent=0
    _
  %s6 = ssub.s32 1, %s4
  %s7 = scalar_select 0, %s6, %s4
  $region1: #{transam_forward.1} parent=0
    #allocation2 [shape = 'u8[315392]{0}', space=vmem, size = 0x4d000, scoped, tag = 'input window, operand 1, single buffered']
    #allocation3 [shape = 's32[1]{0}', space=sflag, size = 0x4, scoped, tag = 'scoped memory for transam_forward.1']
    %8 = vsyncpa [#allocation3], 0
    // Predicated region
    $region2: #{transam_forward.1} parent=1 // pred_check
      _
    $region3: #{transam_forward.1} parent=1 // pred_check_branch
      %10 = sbr.rel (0) target = $region5
    $region4: #{transam_forward.1} parent=1 // pred_region
      _
    $region5: #{transam_forward.1} parent=1 // pred_fallthru
      _
    // Predicated region
    $region6: #{transam_forward.1} parent=1 // pred_check
      _
    $region7: #{transam_forward.1} parent=1 // pred_check_branch
      %12 = sbr.rel (0) target = $region9
    $region8: #{transam_forward.1} parent=1 // pred_region
      %s14 = ssub.s32 9856, 9856
      %15 = vsyncadd [#allocation3], %s14
      %s16 = sshll.u32 [#allocation2], 4
      %s17 = int_to_ptr.vmem [resolvable:$true] %s16
      %22 = dma.hbm_to_vmem [thread:$0]  %s1, 9856, %s17, [#allocation3], 128, 128, 8
    $region9: #{transam_forward.1} parent=1 // pred_fallthru
      _
    // Predicated region
    $region10: #{transam_forward.1} parent=1 // pred_check
      _
    $region11: #{transam_forward.1} parent=1 // pred_check_branch
      %24 = sbr.rel (0) target = $region13
    $region12: #{transam_forward.1} parent=1 // pred_region
      _
    $region13: #{transam_forward.1} parent=1 // pred_fallthru
      _
    // Predicated region
    $region14: #{transam_forward.1} parent=1 // pred_check
      _
    $region15: #{transam_forward.1} parent=1 // pred_check_branch
      %26 = sbr.rel (0) target = $region17
    $region16: #{transam_forward.1} parent=1 // pred_region
      %27 = dma.done [#allocation3], 9856
    $region17: #{transam_forward.1} parent=1 // pred_fallthru
      _
    %v28 = vld [vmem:[%s0] sm:$0xff]
    %v29 = vld [vmem:[%s0 + $0x8] sm:$0xff]
    %v30 = vld [vmem:[%s0 + $0x10] sm:$0xff]
    %v31 = vld [vmem:[%s0 + $0x18] sm:$0xff]
    %v32 = vld [vmem:[#allocation2] sm:$0xff]
    %v33 = vld [vmem:[%s2] sm:$0x1]
    %v34 = vlaneseq
    %v35 = vshrl.u32 %v34, 7
    %v36 = vsub.s32 0, %v35
    %v37 = vrot.slane %v33, %v36
    %vm38 = vcmask 64512
    %v40 = vsel %vm38, %v28, 0
    %v43 = vsel %vm38, %v29, 0
    %v46 = vsel %vm38, %v30, 0
    %v49 = vsel %vm38, %v31, 0
    %51 = vmatprep.subr.mxu0 0.0
    %52 = vmatpush1.msra.mxu0 0.0
    %53 = vmatprep.subr.mxu0 0.0
    %54 = vmatpush1.msra.mxu0 0.0
    %55 = vmatprep.subr.mxu0 0.0
    %56 = vmatpush1.msra.mxu0 0.0
    %57 = vmatprep.subr.mxu0 0.0
    %58 = vmatpush1.msra.mxu0 0.0
    %59 = vmatprep.subr.mxu0 0.0
    %60 = vmatpush1.msra.mxu0 0.0
    %61 = vmatprep.subr.mxu0 0.0
    %62 = vmatpush1.msra.mxu0 0.0
    %63 = vmatprep.subr.mxu0 0.0
    %64 = vmatpush1.msra.mxu0 0.0
    %65 = vmatprep.subr.mxu0 0.0
    %66 = vmatpush1.msra.mxu0 0.0
    %67 = vmatprep.subr.mxu0 0.0
    %68 = vmatpush1.msra.mxu0 0.0
    %69 = vmatprep.subr.mxu0 0.0
    %70 = vmatpush1.msra.mxu0 0.0
    %71 = vmatprep.subr.mxu0 0.0
    %72 = vmatpush1.msra.mxu0 0.0
    %73 = vmatprep.subr.mxu0 0.0
    %74 = vmatpush1.msra.mxu0 0.0
    %75 = vmatprep.subr.mxu0 0.0
    %76 = vmatpush1.msra.mxu0 0.0
    %77 = vmatprep.subr.mxu0 0.0
    %78 = vmatpush1.msra.mxu0 0.0
    %79 = vmatprep.subr.mxu0 0.0
    %80 = vmatpush1.msra.mxu0 0.0
    %81 = vmatprep.subr.mxu0 0.0
    %82 = vmatpush1.msra.mxu0 %v32
    %83 = vmatprep.subr.mxu0 0.0
    %84 = vmatpush2.msra.mxu0 0.0
    %85 = vmatprep.subr.mxu0 0.0
    %86 = vmatpush2.msra.mxu0 0.0
    %87 = vmatprep.subr.mxu0 0.0
    %88 = vmatpush2.msra.mxu0 0.0
    %89 = vmatprep.subr.mxu0 0.0
    %90 = vmatpush2.msra.mxu0 0.0
    %91 = vmatprep.subr.mxu0 0.0
    %92 = vmatpush2.msra.mxu0 0.0
    %93 = vmatprep.subr.mxu0 0.0
    %94 = vmatpush2.msra.mxu0 0.0
    %95 = vmatprep.subr.mxu0 0.0
    %96 = vmatpush2.msra.mxu0 0.0
    %97 = vmatprep.subr.mxu0 0.0
    %98 = vmatpush2.msra.mxu0 0.0
    %99 = vmatprep.subr.mxu0 0.0
    %100 = vmatpush2.msra.mxu0 0.0
    %101 = vmatprep.subr.mxu0 0.0
    %102 = vmatpush2.msra.mxu0 0.0
    %103 = vmatprep.subr.mxu0 0.0
    %104 = vmatpush2.msra.mxu0 0.0
    %105 = vmatprep.subr.mxu0 0.0
    %106 = vmatpush2.msra.mxu0 0.0
    %107 = vmatprep.subr.mxu0 0.0
    %108 = vmatpush2.msra.mxu0 0.0
    %109 = vmatprep.subr.mxu0 0.0
    %110 = vmatpush2.msra.mxu0 0.0
    %111 = vmatprep.subr.mxu0 0.0
    %112 = vmatpush2.msra.mxu0 0.0
    %113 = vmatprep.subr.mxu0 0.0
    %114 = vmatpush2.msra.mxu0 0.0
    %115 = vmatprep.mubr.f32.mxu0 0.0
    %116 = vmatmul.mubr.f32.gmra.mxu0 %v40
    %v117 = vpop.f32.mrf.mxu0
    %v118 = vadd.f32 %v37, %v117
    %v119 = vpop.f32.mrf.mxu0
    %120 = vmatprep.mubr.f32.mxu0 0.0
    %121 = vmatmul.mubr.f32.gmra.mxu0 %v43
    %v122 = vpop.f32.mrf.mxu0
    %v123 = vadd.f32 %v37, %v122
    %v124 = vpop.f32.mrf.mxu0
    %125 = vmatprep.mubr.f32.mxu0 0.0
    %126 = vmatmul.mubr.f32.gmra.mxu0 %v46
    %v127 = vpop.f32.mrf.mxu0
    %v128 = vadd.f32 %v37, %v127
    %v129 = vpop.f32.mrf.mxu0
    %130 = vmatprep.mubr.f32.mxu0 0.0
    %131 = vmatmul.mubr.f32.gmra.mxu0 %v49
    %v132 = vpop.f32.mrf.mxu0
    %v133 = vadd.f32 %v37, %v132
    %v134 = vpop.f32.mrf.mxu0
    %135 = vdwg.mxu0
    %v136 = vld [vmem:[%s2 + $0x1] sm:$0xff]
    %v137 = vadd.f32 %v118, %v136
    %v138 = vadd.f32 %v123, %v136
    %v139 = vadd.f32 %v128, %v136
    %v140 = vadd.f32 %v133, %v136
    %v141 = vlaneseq
    %v142 = vshrl.u32 %v141, 7
    %v143 = vadd.s32 %v142, 8
    %v144 = vlaneseq
    %v145 = vand.u32 %v144, 127
    %vm146 = vcmp.ge.s32.totalorder %v142, 0
    %vm147 = vcmp.ge.s32.totalorder %v143, 0
    %vm148 = vcmp.lt.s32.totalorder %v142, 8
    %vm149 = vcmp.lt.s32.totalorder %v143, 8
    %vm150 = vmand %vm146, %vm148
    %vm151 = vmand %vm147, %vm149
    %vm152 = vcmp.ge.s32.totalorder %v145, 0
    %vm153 = vmand %vm150, %vm152
    %vm154 = vmand %vm151, %vm152
    %vm155 = vcmp.lt.s32.totalorder %v145, 8
    %vm156 = vmand %vm153, %vm155
    %vm157 = vmand %vm154, %vm155
    %vm158 = vcmp.ge.s32.totalorder %v142, 8
    %vm159 = vcmp.ge.s32.totalorder %v143, 8
    %vm160 = vcmp.lt.s32.totalorder %v142, 16
    %vm161 = vcmp.lt.s32.totalorder %v143, 16
    %vm162 = vmand %vm158, %vm160
    %vm163 = vmand %vm159, %vm161
    %vm164 = vcmp.ge.s32.totalorder %v145, 8
    %vm165 = vmand %vm162, %vm164
    %vm166 = vmand %vm163, %vm164
    %vm167 = vcmp.lt.s32.totalorder %v145, 16
    %vm168 = vmand %vm165, %vm167
    %vm169 = vmand %vm166, %vm167
    %vm170 = vmor %vm156, %vm168
    %vm171 = vmor %vm157, %vm169
    %vm172 = vcmp.le.s32.totalorder %v145, %v142
    %vm173 = vcmp.le.s32.totalorder %v145, %v143
    %vm174 = vmand %vm170, %vm172
    %vm175 = vmand %vm171, %vm173
    %v176 = vsel %vm174, 0.0, -1e+30
    %v177 = vsel %vm175, 0.0, -1e+30
    %v178 = vld [vmem:[%s2 + $0x4d] sm:$0x1]
    %v179 = vlaneseq
    %v180 = vshrl.u32 %v179, 7
    %v181 = vsub.s32 0, %v180
    %v182 = vrot.slane %v178, %v181
    %v183 = vld [vmem:[#allocation2 + $0x8] sm:$0xff]
    %v184 = vld [vmem:[%s2 + $0x41] sm:$0x1]
    %v185 = vlaneseq
    %v186 = vshrl.u32 %v185, 7
    %v187 = vsub.s32 0, %v186
    %v188 = vrot.slane %v184, %v187
    %vm189 = vcmask 261120
    %v191 = vsel %vm189, %v137, 0
    %v194 = vsel %vm189, %v138, 0
    %v197 = vsel %vm189, %v183, 0
    %199 = vmatprep.subr.mxu0 0.0
    %200 = vmatpush1.xpose.msra.mxu0 0.0
    %201 = vmatprep.subr.mxu0 0.0
    %202 = vmatpush1.xpose.msra.mxu0 0.0
    %203 = vmatprep.subr.mxu0 0.0
    %204 = vmatpush1.xpose.msra.mxu0 0.0
    %205 = vmatprep.subr.mxu0 0.0
    %206 = vmatpush1.xpose.msra.mxu0 0.0
    %207 = vmatprep.subr.mxu0 0.0
    %208 = vmatpush1.xpose.msra.mxu0 0.0
    %209 = vmatprep.subr.mxu0 0.0
    %210 = vmatpush1.xpose.msra.mxu0 0.0
    %211 = vmatprep.subr.mxu0 0.0
    %212 = vmatpush1.xpose.msra.mxu0 0.0
    %213 = vmatprep.subr.mxu0 0.0
    %214 = vmatpush1.xpose.msra.mxu0 0.0
    %215 = vmatprep.subr.mxu0 0.0
    %216 = vmatpush1.xpose.msra.mxu0 0.0
    %217 = vmatprep.subr.mxu0 0.0
    %218 = vmatpush1.xpose.msra.mxu0 0.0
    %219 = vmatprep.subr.mxu0 0.0
    %220 = vmatpush1.xpose.msra.mxu0 0.0
    %221 = vmatprep.subr.mxu0 0.0
    %222 = vmatpush1.xpose.msra.mxu0 0.0
    %223 = vmatprep.subr.mxu0 0.0
    %224 = vmatpush1.xpose.msra.mxu0 0.0
    %225 = vmatprep.subr.mxu0 0.0
    %226 = vmatpush1.xpose.msra.mxu0 0.0
    %227 = vmatprep.subr.mxu0 0.0
    %228 = vmatpush1.xpose.msra.mxu0 0.0
    %229 = vmatprep.subr.mxu0 0.0
    %230 = vmatpush1.xpose.msra.mxu0 %v197
    %231 = vmatprep.subr.mxu0 0.0
    %232 = vmatpush2.xpose.msra.mxu0 0.0
    %233 = vmatprep.subr.mxu0 0.0
    %234 = vmatpush2.xpose.msra.mxu0 0.0
    %235 = vmatprep.subr.mxu0 0.0
    %236 = vmatpush2.xpose.msra.mxu0 0.0
    %237 = vmatprep.subr.mxu0 0.0
    %238 = vmatpush2.xpose.msra.mxu0 0.0
    %239 = vmatprep.subr.mxu0 0.0
    %240 = vmatpush2.xpose.msra.mxu0 0.0
    %241 = vmatprep.subr.mxu0 0.0
    %242 = vmatpush2.xpose.msra.mxu0 0.0
    %243 = vmatprep.subr.mxu0 0.0
    %244 = vmatpush2.xpose.msra.mxu0 0.0
    %245 = vmatprep.subr.mxu0 0.0
    %246 = vmatpush2.xpose.msra.mxu0 0.0
    %247 = vmatprep.subr.mxu0 0.0
    %248 = vmatpush2.xpose.msra.mxu0 0.0
    %249 = vmatprep.subr.mxu0 0.0
    %250 = vmatpush2.xpose.msra.mxu0 0.0
    %251 = vmatprep.subr.mxu0 0.0
    %252 = vmatpush2.xpose.msra.mxu0 0.0
    %253 = vmatprep.subr.mxu0 0.0
    %254 = vmatpush2.xpose.msra.mxu0 0.0
    %255 = vmatprep.subr.mxu0 0.0
    %256 = vmatpush2.xpose.msra.mxu0 0.0
    %257 = vmatprep.subr.mxu0 0.0
    %258 = vmatpush2.xpose.msra.mxu0 0.0
    %259 = vmatprep.subr.mxu0 0.0
    %260 = vmatpush2.xpose.msra.mxu0 0.0
    %261 = vmatprep.subr.mxu0 0.0
    %262 = vmatpush2.xpose.msra.mxu0 0.0
    %263 = vmatprep.mubr.f32.mxu0 0.0
    %264 = vmatmul.mubr.f32.gmra.mxu0 %v191
    %v265 = vpop.f32.mrf.mxu0
    %v266 = vadd.f32 %v188, %v265
    %v267 = vpop.f32.mrf.mxu0
    %268 = vmatprep.mubr.f32.mxu0 0.0
    %269 = vmatmul.mubr.f32.gmra.mxu0 %v194
    %v270 = vpop.f32.mrf.mxu0
    %v271 = vadd.f32 %v188, %v270
    %v272 = vpop.f32.mrf.mxu0
    %273 = vdwg.mxu0
    %v274 = vld [vmem:[#allocation2 + $0x28] sm:$0xff]
    %v275 = vld [vmem:[%s2 + $0x45] sm:$0x1]
    %v276 = vlaneseq
    %v277 = vshrl.u32 %v276, 7
    %v278 = vsub.s32 0, %v277
    %v279 = vrot.slane %v275, %v278
    %v281 = vsel %vm189, %v274, 0
    %283 = vmatprep.subr.mxu0 0.0
    %284 = vmatpush1.xpose.msra.mxu0 0.0
    %285 = vmatprep.subr.mxu0 0.0
    %286 = vmatpush1.xpose.msra.mxu0 0.0
    %287 = vmatprep.subr.mxu0 0.0
    %288 = vmatpush1.xpose.msra.mxu0 0.0
    %289 = vmatprep.subr.mxu0 0.0
    %290 = vmatpush1.xpose.msra.mxu0 0.0
    %291 = vmatprep.subr.mxu0 0.0
    %292 = vmatpush1.xpose.msra.mxu0 0.0
    %293 = vmatprep.subr.mxu0 0.0
    %294 = vmatpush1.xpose.msra.mxu0 0.0
    %295 = vmatprep.subr.mxu0 0.0
    %296 = vmatpush1.xpose.msra.mxu0 0.0
    %297 = vmatprep.subr.mxu0 0.0
    %298 = vmatpush1.xpose.msra.mxu0 0.0
    %299 = vmatprep.subr.mxu0 0.0
    %300 = vmatpush1.xpose.msra.mxu0 0.0
    %301 = vmatprep.subr.mxu0 0.0
    %302 = vmatpush1.xpose.msra.mxu0 0.0
    %303 = vmatprep.subr.mxu0 0.0
    %304 = vmatpush1.xpose.msra.mxu0 0.0
    %305 = vmatprep.subr.mxu0 0.0
    %306 = vmatpush1.xpose.msra.mxu0 0.0
    %307 = vmatprep.subr.mxu0 0.0
    %308 = vmatpush1.xpose.msra.mxu0 0.0
    %309 = vmatprep.subr.mxu0 0.0
    %310 = vmatpush1.xpose.msra.mxu0 0.0
    %311 = vmatprep.subr.mxu0 0.0
    %312 = vmatpush1.xpose.msra.mxu0 0.0
    %313 = vmatprep.subr.mxu0 0.0
    %314 = vmatpush1.xpose.msra.mxu0 %v281
    %315 = vmatprep.subr.mxu0 0.0
    %316 = vmatpush2.xpose.msra.mxu0 0.0
    %317 = vmatprep.subr.mxu0 0.0
    %318 = vmatpush2.xpose.msra.mxu0 0.0
    %319 = vmatprep.subr.mxu0 0.0
    %320 = vmatpush2.xpose.msra.mxu0 0.0
    %321 = vmatprep.subr.mxu0 0.0
    %322 = vmatpush2.xpose.msra.mxu0 0.0
    %323 = vmatprep.subr.mxu0 0.0
    %324 = vmatpush2.xpose.msra.mxu0 0.0
    %325 = vmatprep.subr.mxu0 0.0
    %326 = vmatpush2.xpose.msra.mxu0 0.0
    %327 = vmatprep.subr.mxu0 0.0
    %328 = vmatpush2.xpose.msra.mxu0 0.0
    %329 = vmatprep.subr.mxu0 0.0
    %330 = vmatpush2.xpose.msra.mxu0 0.0
    %331 = vmatprep.subr.mxu0 0.0
    %332 = vmatpush2.xpose.msra.mxu0 0.0
    %333 = vmatprep.subr.mxu0 0.0
    %334 = vmatpush2.xpose.msra.mxu0 0.0
    %335 = vmatprep.subr.mxu0 0.0
    %336 = vmatpush2.xpose.msra.mxu0 0.0
    %337 = vmatprep.subr.mxu0 0.0
    %338 = vmatpush2.xpose.msra.mxu0 0.0
    %339 = vmatprep.subr.mxu0 0.0
    %340 = vmatpush2.xpose.msra.mxu0 0.0
    %341 = vmatprep.subr.mxu0 0.0
    %342 = vmatpush2.xpose.msra.mxu0 0.0
    %343 = vmatprep.subr.mxu0 0.0
    %344 = vmatpush2.xpose.msra.mxu0 0.0
    %345 = vmatprep.subr.mxu0 0.0
    %346 = vmatpush2.xpose.msra.mxu0 0.0
    %347 = vmatprep.mubr.f32.mxu0 0.0
    %348 = vmatmul.mubr.f32.gmra.mxu0 %v191
    %v349 = vpop.f32.mrf.mxu0
    %v350 = vadd.f32 %v279, %v349
    %v351 = vpop.f32.mrf.mxu0
    %352 = vmatprep.mubr.f32.mxu0 0.0
    %353 = vmatmul.mubr.f32.gmra.mxu0 %v194
    %v354 = vpop.f32.mrf.mxu0
    %v355 = vadd.f32 %v279, %v354
    %v356 = vpop.f32.mrf.mxu0
    %357 = vdwg.mxu0
    %v358 = vld [vmem:[#allocation2 + $0x48] sm:$0xff]
    %v359 = vld [vmem:[%s2 + $0x49] sm:$0x1]
    %v360 = vlaneseq
    %v361 = vshrl.u32 %v360, 7
    %v362 = vsub.s32 0, %v361
    %v363 = vrot.slane %v359, %v362
    %v365 = vsel %vm189, %v358, 0
    %367 = vmatprep.subr.mxu0 0.0
    %368 = vmatpush1.xpose.msra.mxu0 0.0
    %369 = vmatprep.subr.mxu0 0.0
    %370 = vmatpush1.xpose.msra.mxu0 0.0
    %371 = vmatprep.subr.mxu0 0.0
    %372 = vmatpush1.xpose.msra.mxu0 0.0
    %373 = vmatprep.subr.mxu0 0.0
    %374 = vmatpush1.xpose.msra.mxu0 0.0
    %375 = vmatprep.subr.mxu0 0.0
    %376 = vmatpush1.xpose.msra.mxu0 0.0
    %377 = vmatprep.subr.mxu0 0.0
    %378 = vmatpush1.xpose.msra.mxu0 0.0
    %379 = vmatprep.subr.mxu0 0.0
    %380 = vmatpush1.xpose.msra.mxu0 0.0
    %381 = vmatprep.subr.mxu0 0.0
    %382 = vmatpush1.xpose.msra.mxu0 0.0
    %383 = vmatprep.subr.mxu0 0.0
    %384 = vmatpush1.xpose.msra.mxu0 0.0
    %385 = vmatprep.subr.mxu0 0.0
    %386 = vmatpush1.xpose.msra.mxu0 0.0
    %387 = vmatprep.subr.mxu0 0.0
    %388 = vmatpush1.xpose.msra.mxu0 0.0
    %389 = vmatprep.subr.mxu0 0.0
    %390 = vmatpush1.xpose.msra.mxu0 0.0
    %391 = vmatprep.subr.mxu0 0.0
    %392 = vmatpush1.xpose.msra.mxu0 0.0
    %393 = vmatprep.subr.mxu0 0.0
    %394 = vmatpush1.xpose.msra.mxu0 0.0
    %395 = vmatprep.subr.mxu0 0.0
    %396 = vmatpush1.xpose.msra.mxu0 0.0
    %397 = vmatprep.subr.mxu0 0.0
    %398 = vmatpush1.xpose.msra.mxu0 %v365
    %399 = vmatprep.subr.mxu0 0.0
    %400 = vmatpush2.xpose.msra.mxu0 0.0
    %401 = vmatprep.subr.mxu0 0.0
    %402 = vmatpush2.xpose.msra.mxu0 0.0
    %403 = vmatprep.subr.mxu0 0.0
    %404 = vmatpush2.xpose.msra.mxu0 0.0
    %405 = vmatprep.subr.mxu0 0.0
    %406 = vmatpush2.xpose.msra.mxu0 0.0
    %407 = vmatprep.subr.mxu0 0.0
    %408 = vmatpush2.xpose.msra.mxu0 0.0
    %409 = vmatprep.subr.mxu0 0.0
    %410 = vmatpush2.xpose.msra.mxu0 0.0
    %411 = vmatprep.subr.mxu0 0.0
    %412 = vmatpush2.xpose.msra.mxu0 0.0
    %413 = vmatprep.subr.mxu0 0.0
    %414 = vmatpush2.xpose.msra.mxu0 0.0
    %415 = vmatprep.subr.mxu0 0.0
    %416 = vmatpush2.xpose.msra.mxu0 0.0
    %417 = vmatprep.subr.mxu0 0.0
    %418 = vmatpush2.xpose.msra.mxu0 0.0
    %419 = vmatprep.subr.mxu0 0.0
    %420 = vmatpush2.xpose.msra.mxu0 0.0
    %421 = vmatprep.subr.mxu0 0.0
    %422 = vmatpush2.xpose.msra.mxu0 0.0
    %423 = vmatprep.subr.mxu0 0.0
    %424 = vmatpush2.xpose.msra.mxu0 0.0
    %425 = vmatprep.subr.mxu0 0.0
    %426 = vmatpush2.xpose.msra.mxu0 0.0
    %427 = vmatprep.subr.mxu0 0.0
    %428 = vmatpush2.xpose.msra.mxu0 0.0
    %429 = vmatprep.subr.mxu0 0.0
    %430 = vmatpush2.xpose.msra.mxu0 0.0
    %431 = vmatprep.mubr.f32.mxu0 0.0
    %432 = vmatmul.mubr.f32.gmra.mxu0 %v191
    %v433 = vpop.f32.mrf.mxu0
    %v434 = vadd.f32 %v363, %v433
    %v435 = vpop.f32.mrf.mxu0
    %436 = vmatprep.mubr.f32.mxu0 0.0
    %437 = vmatmul.mubr.f32.gmra.mxu0 %v194
    %v438 = vpop.f32.mrf.mxu0
    %v439 = vadd.f32 %v363, %v438
    %v440 = vpop.f32.mrf.mxu0
    %441 = vdwg.mxu0
    %v443 = vsel %vm38, %v266, 0
    %v446 = vsel %vm38, %v271, 0
    %v449 = vsel %vm38, %v350, 0
    %v452 = vsel %vm38, %v355, 0
    %454 = vmatprep.subr.mxu0 0.0
    %455 = vmatpush1.xpose.msra.mxu0 0.0
    %456 = vmatprep.subr.mxu0 0.0
    %457 = vmatpush1.xpose.msra.mxu0 0.0
    %458 = vmatprep.subr.mxu0 0.0
    %459 = vmatpush1.xpose.msra.mxu0 0.0
    %460 = vmatprep.subr.mxu0 0.0
    %461 = vmatpush1.xpose.msra.mxu0 0.0
    %462 = vmatprep.subr.mxu0 0.0
    %463 = vmatpush1.xpose.msra.mxu0 0.0
    %464 = vmatprep.subr.mxu0 0.0
    %465 = vmatpush1.xpose.msra.mxu0 0.0
    %466 = vmatprep.subr.mxu0 0.0
    %467 = vmatpush1.xpose.msra.mxu0 0.0
    %468 = vmatprep.subr.mxu0 0.0
    %469 = vmatpush1.xpose.msra.mxu0 0.0
    %470 = vmatprep.subr.mxu0 0.0
    %471 = vmatpush1.xpose.msra.mxu0 0.0
    %472 = vmatprep.subr.mxu0 0.0
    %473 = vmatpush1.xpose.msra.mxu0 0.0
    %474 = vmatprep.subr.mxu0 0.0
    %475 = vmatpush1.xpose.msra.mxu0 0.0
    %476 = vmatprep.subr.mxu0 0.0
    %477 = vmatpush1.xpose.msra.mxu0 0.0
    %478 = vmatprep.subr.mxu0 0.0
    %479 = vmatpush1.xpose.msra.mxu0 0.0
    %480 = vmatprep.subr.mxu0 0.0
    %481 = vmatpush1.xpose.msra.mxu0 0.0
    %482 = vmatprep.subr.mxu0 0.0
    %483 = vmatpush1.xpose.msra.mxu0 %v452
    %484 = vmatprep.subr.mxu0 0.0
    %485 = vmatpush1.xpose.msra.mxu0 %v449
    %486 = vmatprep.subr.mxu0 0.0
    %487 = vmatpush2.xpose.msra.mxu0 0.0
    %488 = vmatprep.subr.mxu0 0.0
    %489 = vmatpush2.xpose.msra.mxu0 0.0
    %490 = vmatprep.subr.mxu0 0.0
    %491 = vmatpush2.xpose.msra.mxu0 0.0
    %492 = vmatprep.subr.mxu0 0.0
    %493 = vmatpush2.xpose.msra.mxu0 0.0
    %494 = vmatprep.subr.mxu0 0.0
    %495 = vmatpush2.xpose.msra.mxu0 0.0
    %496 = vmatprep.subr.mxu0 0.0
    %497 = vmatpush2.xpose.msra.mxu0 0.0
    %498 = vmatprep.subr.mxu0 0.0
    %499 = vmatpush2.xpose.msra.mxu0 0.0
    %500 = vmatprep.subr.mxu0 0.0
    %501 = vmatpush2.xpose.msra.mxu0 0.0
    %502 = vmatprep.subr.mxu0 0.0
    %503 = vmatpush2.xpose.msra.mxu0 0.0
    %504 = vmatprep.subr.mxu0 0.0
    %505 = vmatpush2.xpose.msra.mxu0 0.0
    %506 = vmatprep.subr.mxu0 0.0
    %507 = vmatpush2.xpose.msra.mxu0 0.0
    %508 = vmatprep.subr.mxu0 0.0
    %509 = vmatpush2.xpose.msra.mxu0 0.0
    %510 = vmatprep.subr.mxu0 0.0
    %511 = vmatpush2.xpose.msra.mxu0 0.0
    %512 = vmatprep.subr.mxu0 0.0
    %513 = vmatpush2.xpose.msra.mxu0 0.0
    %514 = vmatprep.subr.mxu0 0.0
    %515 = vmatpush2.xpose.msra.mxu0 0.0
    %516 = vmatprep.subr.mxu0 0.0
    %517 = vmatpush2.xpose.msra.mxu0 0.0
    %518 = vmatprep.mubr.f32.mxu0 0.0
    %519 = vmatmul.mubr.f32.gmra.mxu0 %v443
    %v520 = vpop.f32.mrf.mxu0
    %v521 = vadd.f32 %v176, %v520
    %v522 = vpop.f32.mrf.mxu0
    %523 = vmatprep.mubr.f32.mxu0 0.0
    %524 = vmatmul.mubr.f32.gmra.mxu0 %v446
    %v525 = vpop.f32.mrf.mxu0
    %v526 = vadd.f32 %v177, %v525
    %v527 = vpop.f32.mrf.mxu0
    %528 = vdwg.mxu0
    %vm529 = vcmask 130048
    %v530 = vsel %vm529, %v521, -inf
    %531 = vmax.xlane.f32.xlu0 %v530
    %v532 = vpop.xlane.xlu0 %531
    %v533 = vsel %vm529, %v526, -inf
    %534 = vmax.xlane.f32.xlu0 %v533
    %v535 = vpop.xlane.xlu0 %534
    %v536 = vsub.f32 %v521, %v532
    %v537 = vsub.f32 %v526, %v535
    %v538 = vmul.f32 %v536, 1.442695
    %v539 = vpow.pop %v538
    %v540 = vmul.f32 %v537, 1.442695
    %v541 = vpow.pop %v540
    %v542 = vsel %vm529, %v539, 0.0
    %543 = vadd.xlane.f32.xlu0 %v542
    %v544 = vpop.xlane.xlu0 %543
    %v545 = vsel %vm529, %v541, 0.0
    %546 = vadd.xlane.f32.xlu0 %v545
    %v547 = vpop.xlane.xlu0 %546
    %v548 = vrcp.pop %v544
    %v549 = vrcp.pop %v547
    %v550 = vmul.f32 %v539, %v548
    %v551 = vmul.f32 %v541, %v549
    %v553 = vsel %vm529, %v550, 0
    %v556 = vsel %vm529, %v551, 0
    %558 = vmatprep.subr.mxu0 0.0
    %559 = vmatpush1.msra.mxu0 0.0
    %560 = vmatprep.subr.mxu0 0.0
    %561 = vmatpush1.msra.mxu0 0.0
    %562 = vmatprep.subr.mxu0 0.0
    %563 = vmatpush1.msra.mxu0 0.0
    %564 = vmatprep.subr.mxu0 0.0
    %565 = vmatpush1.msra.mxu0 0.0
    %566 = vmatprep.subr.mxu0 0.0
    %567 = vmatpush1.msra.mxu0 0.0
    %568 = vmatprep.subr.mxu0 0.0
    %569 = vmatpush1.msra.mxu0 0.0
    %570 = vmatprep.subr.mxu0 0.0
    %571 = vmatpush1.msra.mxu0 0.0
    %572 = vmatprep.subr.mxu0 0.0
    %573 = vmatpush1.msra.mxu0 0.0
    %574 = vmatprep.subr.mxu0 0.0
    %575 = vmatpush1.msra.mxu0 0.0
    %576 = vmatprep.subr.mxu0 0.0
    %577 = vmatpush1.msra.mxu0 0.0
    %578 = vmatprep.subr.mxu0 0.0
    %579 = vmatpush1.msra.mxu0 0.0
    %580 = vmatprep.subr.mxu0 0.0
    %581 = vmatpush1.msra.mxu0 0.0
    %582 = vmatprep.subr.mxu0 0.0
    %583 = vmatpush1.msra.mxu0 0.0
    %584 = vmatprep.subr.mxu0 0.0
    %585 = vmatpush1.msra.mxu0 0.0
    %586 = vmatprep.subr.mxu0 0.0
    %587 = vmatpush1.msra.mxu0 %v439
    %588 = vmatprep.subr.mxu0 0.0
    %589 = vmatpush1.msra.mxu0 %v434
    %590 = vmatprep.subr.mxu0 0.0
    %591 = vmatpush2.msra.mxu0 0.0
    %592 = vmatprep.subr.mxu0 0.0
    %593 = vmatpush2.msra.mxu0 0.0
    %594 = vmatprep.subr.mxu0 0.0
    %595 = vmatpush2.msra.mxu0 0.0
    %596 = vmatprep.subr.mxu0 0.0
    %597 = vmatpush2.msra.mxu0 0.0
    %598 = vmatprep.subr.mxu0 0.0
    %599 = vmatpush2.msra.mxu0 0.0
    %600 = vmatprep.subr.mxu0 0.0
    %601 = vmatpush2.msra.mxu0 0.0
    %602 = vmatprep.subr.mxu0 0.0
    %603 = vmatpush2.msra.mxu0 0.0
    %604 = vmatprep.subr.mxu0 0.0
    %605 = vmatpush2.msra.mxu0 0.0
    %606 = vmatprep.subr.mxu0 0.0
    %607 = vmatpush2.msra.mxu0 0.0
    %608 = vmatprep.subr.mxu0 0.0
    %609 = vmatpush2.msra.mxu0 0.0
    %610 = vmatprep.subr.mxu0 0.0
    %611 = vmatpush2.msra.mxu0 0.0
    %612 = vmatprep.subr.mxu0 0.0
    %613 = vmatpush2.msra.mxu0 0.0
    %614 = vmatprep.subr.mxu0 0.0
    %615 = vmatpush2.msra.mxu0 0.0
    %616 = vmatprep.subr.mxu0 0.0
    %617 = vmatpush2.msra.mxu0 0.0
    %618 = vmatprep.subr.mxu0 0.0
    %619 = vmatpush2.msra.mxu0 0.0
    %620 = vmatprep.subr.mxu0 0.0
    %621 = vmatpush2.msra.mxu0 0.0
    %622 = vmatprep.mubr.f32.mxu0 0.0
    %623 = vmatmul.mubr.f32.gmra.mxu0 %v553
    %v624 = vpop.f32.mrf.mxu0
    %v625 = vadd.f32 0.0, %v624
    %v626 = vpop.f32.mrf.mxu0
    %627 = vmatprep.mubr.f32.mxu0 0.0
    %628 = vmatmul.mubr.f32.gmra.mxu0 %v556
    %v629 = vpop.f32.mrf.mxu0
    %v630 = vadd.f32 0.0, %v629
    %v631 = vpop.f32.mrf.mxu0
    %632 = vdwg.mxu0
    %v633 = vld [vmem:[#allocation2 + $0x68] sm:$0xff]
    %v635 = vsel %vm38, %v625, 0
    %v638 = vsel %vm38, %v630, 0
    %640 = vmatprep.subr.mxu0 0.0
    %641 = vmatpush1.msra.mxu0 0.0
    %642 = vmatprep.subr.mxu0 0.0
    %643 = vmatpush1.msra.mxu0 0.0
    %644 = vmatprep.subr.mxu0 0.0
    %645 = vmatpush1.msra.mxu0 0.0
    %646 = vmatprep.subr.mxu0 0.0
    %647 = vmatpush1.msra.mxu0 0.0
    %648 = vmatprep.subr.mxu0 0.0
    %649 = vmatpush1.msra.mxu0 0.0
    %650 = vmatprep.subr.mxu0 0.0
    %651 = vmatpush1.msra.mxu0 0.0
    %652 = vmatprep.subr.mxu0 0.0
    %653 = vmatpush1.msra.mxu0 0.0
    %654 = vmatprep.subr.mxu0 0.0
    %655 = vmatpush1.msra.mxu0 0.0
    %656 = vmatprep.subr.mxu0 0.0
    %657 = vmatpush1.msra.mxu0 0.0
    %658 = vmatprep.subr.mxu0 0.0
    %659 = vmatpush1.msra.mxu0 0.0
    %660 = vmatprep.subr.mxu0 0.0
    %661 = vmatpush1.msra.mxu0 0.0
    %662 = vmatprep.subr.mxu0 0.0
    %663 = vmatpush1.msra.mxu0 0.0
    %664 = vmatprep.subr.mxu0 0.0
    %665 = vmatpush1.msra.mxu0 0.0
    %666 = vmatprep.subr.mxu0 0.0
    %667 = vmatpush1.msra.mxu0 0.0
    %668 = vmatprep.subr.mxu0 0.0
    %669 = vmatpush1.msra.mxu0 0.0
    %670 = vmatprep.subr.mxu0 0.0
    %671 = vmatpush1.msra.mxu0 %v633
    %672 = vmatprep.subr.mxu0 0.0
    %673 = vmatpush2.msra.mxu0 0.0
    %674 = vmatprep.subr.mxu0 0.0
    %675 = vmatpush2.msra.mxu0 0.0
    %676 = vmatprep.subr.mxu0 0.0
    %677 = vmatpush2.msra.mxu0 0.0
    %678 = vmatprep.subr.mxu0 0.0
    %679 = vmatpush2.msra.mxu0 0.0
    %680 = vmatprep.subr.mxu0 0.0
    %681 = vmatpush2.msra.mxu0 0.0
    %682 = vmatprep.subr.mxu0 0.0
    %683 = vmatpush2.msra.mxu0 0.0
    %684 = vmatprep.subr.mxu0 0.0
    %685 = vmatpush2.msra.mxu0 0.0
    %686 = vmatprep.subr.mxu0 0.0
    %687 = vmatpush2.msra.mxu0 0.0
    %688 = vmatprep.subr.mxu0 0.0
    %689 = vmatpush2.msra.mxu0 0.0
    %690 = vmatprep.subr.mxu0 0.0
    %691 = vmatpush2.msra.mxu0 0.0
    %692 = vmatprep.subr.mxu0 0.0
    %693 = vmatpush2.msra.mxu0 0.0
    %694 = vmatprep.subr.mxu0 0.0
    %695 = vmatpush2.msra.mxu0 0.0
    %696 = vmatprep.subr.mxu0 0.0
    %697 = vmatpush2.msra.mxu0 0.0
    %698 = vmatprep.subr.mxu0 0.0
    %699 = vmatpush2.msra.mxu0 0.0
    %700 = vmatprep.subr.mxu0 0.0
    %701 = vmatpush2.msra.mxu0 0.0
    %702 = vmatprep.subr.mxu0 0.0
    %703 = vmatpush2.msra.mxu0 0.0
    %704 = vmatprep.mubr.f32.mxu0 0.0
    %705 = vmatmul.mubr.f32.gmra.mxu0 %v635
    %v706 = vpop.f32.mrf.mxu0
    %v707 = vadd.f32 0.0, %v706
    %v708 = vpop.f32.mrf.mxu0
    %709 = vmatprep.mubr.f32.mxu0 0.0
    %710 = vmatmul.mubr.f32.gmra.mxu0 %v638
    %v711 = vpop.f32.mrf.mxu0
    %v712 = vadd.f32 0.0, %v711
    %v713 = vpop.f32.mrf.mxu0
    %714 = vdwg.mxu0
    %v715 = vadd.f32 %v182, %v707
    %v716 = vadd.f32 %v182, %v712
    %v717 = vld [vmem:[#allocation2 + $0x10] sm:$0xff]
    %v718 = vld [vmem:[%s2 + $0x42] sm:$0x1]
    %v719 = vlaneseq
    %v720 = vshrl.u32 %v719, 7
    %v721 = vsub.s32 0, %v720
    %v722 = vrot.slane %v718, %v721
    %v724 = vsel %vm189, %v717, 0
    %726 = vmatprep.subr.mxu0 0.0
    %727 = vmatpush1.xpose.msra.mxu0 0.0
    %728 = vmatprep.subr.mxu0 0.0
    %729 = vmatpush1.xpose.msra.mxu0 0.0
    %730 = vmatprep.subr.mxu0 0.0
    %731 = vmatpush1.xpose.msra.mxu0 0.0
    %732 = vmatprep.subr.mxu0 0.0
    %733 = vmatpush1.xpose.msra.mxu0 0.0
    %734 = vmatprep.subr.mxu0 0.0
    %735 = vmatpush1.xpose.msra.mxu0 0.0
    %736 = vmatprep.subr.mxu0 0.0
    %737 = vmatpush1.xpose.msra.mxu0 0.0
    %738 = vmatprep.subr.mxu0 0.0
    %739 = vmatpush1.xpose.msra.mxu0 0.0
    %740 = vmatprep.subr.mxu0 0.0
    %741 = vmatpush1.xpose.msra.mxu0 0.0
    %742 = vmatprep.subr.mxu0 0.0
    %743 = vmatpush1.xpose.msra.mxu0 0.0
    %744 = vmatprep.subr.mxu0 0.0
    %745 = vmatpush1.xpose.msra.mxu0 0.0
    %746 = vmatprep.subr.mxu0 0.0
    %747 = vmatpush1.xpose.msra.mxu0 0.0
    %748 = vmatprep.subr.mxu0 0.0
    %749 = vmatpush1.xpose.msra.mxu0 0.0
    %750 = vmatprep.subr.mxu0 0.0
    %751 = vmatpush1.xpose.msra.mxu0 0.0
    %752 = vmatprep.subr.mxu0 0.0
    %753 = vmatpush1.xpose.msra.mxu0 0.0
    %754 = vmatprep.subr.mxu0 0.0
    %755 = vmatpush1.xpose.msra.mxu0 0.0
    %756 = vmatprep.subr.mxu0 0.0
    %757 = vmatpush1.xpose.msra.mxu0 %v724
    %758 = vmatprep.subr.mxu0 0.0
    %759 = vmatpush2.xpose.msra.mxu0 0.0
    %760 = vmatprep.subr.mxu0 0.0
    %761 = vmatpush2.xpose.msra.mxu0 0.0
    %762 = vmatprep.subr.mxu0 0.0
    %763 = vmatpush2.xpose.msra.mxu0 0.0
    %764 = vmatprep.subr.mxu0 0.0
    %765 = vmatpush2.xpose.msra.mxu0 0.0
    %766 = vmatprep.subr.mxu0 0.0
    %767 = vmatpush2.xpose.msra.mxu0 0.0
    %768 = vmatprep.subr.mxu0 0.0
    %769 = vmatpush2.xpose.msra.mxu0 0.0
    %770 = vmatprep.subr.mxu0 0.0
    %771 = vmatpush2.xpose.msra.mxu0 0.0
    %772 = vmatprep.subr.mxu0 0.0
    %773 = vmatpush2.xpose.msra.mxu0 0.0
    %774 = vmatprep.subr.mxu0 0.0
    %775 = vmatpush2.xpose.msra.mxu0 0.0
    %776 = vmatprep.subr.mxu0 0.0
    %777 = vmatpush2.xpose.msra.mxu0 0.0
    %778 = vmatprep.subr.mxu0 0.0
    %779 = vmatpush2.xpose.msra.mxu0 0.0
    %780 = vmatprep.subr.mxu0 0.0
    %781 = vmatpush2.xpose.msra.mxu0 0.0
    %782 = vmatprep.subr.mxu0 0.0
    %783 = vmatpush2.xpose.msra.mxu0 0.0
    %784 = vmatprep.subr.mxu0 0.0
    %785 = vmatpush2.xpose.msra.mxu0 0.0
    %786 = vmatprep.subr.mxu0 0.0
    %787 = vmatpush2.xpose.msra.mxu0 0.0
    %788 = vmatprep.subr.mxu0 0.0
    %789 = vmatpush2.xpose.msra.mxu0 0.0
    %790 = vmatprep.mubr.f32.mxu0 0.0
    %791 = vmatmul.mubr.f32.gmra.mxu0 %v191
    %v792 = vpop.f32.mrf.mxu0
    %v793 = vadd.f32 %v722, %v792
    %v794 = vpop.f32.mrf.mxu0
    %795 = vmatprep.mubr.f32.mxu0 0.0
    %796 = vmatmul.mubr.f32.gmra.mxu0 %v194
    %v797 = vpop.f32.mrf.mxu0
    %v798 = vadd.f32 %v722, %v797
    %v799 = vpop.f32.mrf.mxu0
    %800 = vdwg.mxu0
    %v801 = vld [vmem:[#allocation2 + $0x30] sm:$0xff]
    %v802 = vld [vmem:[%s2 + $0x46] sm:$0x1]
    %v803 = vlaneseq
    %v804 = vshrl.u32 %v803, 7
    %v805 = vsub.s32 0, %v804
    %v806 = vrot.slane %v802, %v805
    %v808 = vsel %vm189, %v801, 0
    %810 = vmatprep.subr.mxu0 0.0
    %811 = vmatpush1.xpose.msra.mxu0 0.0
    %812 = vmatprep.subr.mxu0 0.0
    %813 = vmatpush1.xpose.msra.mxu0 0.0
    %814 = vmatprep.subr.mxu0 0.0
    %815 = vmatpush1.xpose.msra.mxu0 0.0
    %816 = vmatprep.subr.mxu0 0.0
    %817 = vmatpush1.xpose.msra.mxu0 0.0
    %818 = vmatprep.subr.mxu0 0.0
    %819 = vmatpush1.xpose.msra.mxu0 0.0
    %820 = vmatprep.subr.mxu0 0.0
    %821 = vmatpush1.xpose.msra.mxu0 0.0
    %822 = vmatprep.subr.mxu0 0.0
    %823 = vmatpush1.xpose.msra.mxu0 0.0
    %824 = vmatprep.subr.mxu0 0.0
    %825 = vmatpush1.xpose.msra.mxu0 0.0
    %826 = vmatprep.subr.mxu0 0.0
    %827 = vmatpush1.xpose.msra.mxu0 0.0
    %828 = vmatprep.subr.mxu0 0.0
    %829 = vmatpush1.xpose.msra.mxu0 0.0
    %830 = vmatprep.subr.mxu0 0.0
    %831 = vmatpush1.xpose.msra.mxu0 0.0
    %832 = vmatprep.subr.mxu0 0.0
    %833 = vmatpush1.xpose.msra.mxu0 0.0
    %834 = vmatprep.subr.mxu0 0.0
    %835 = vmatpush1.xpose.msra.mxu0 0.0
    %836 = vmatprep.subr.mxu0 0.0
    %837 = vmatpush1.xpose.msra.mxu0 0.0
    %838 = vmatprep.subr.mxu0 0.0
    %839 = vmatpush1.xpose.msra.mxu0 0.0
    %840 = vmatprep.subr.mxu0 0.0
    %841 = vmatpush1.xpose.msra.mxu0 %v808
    %842 = vmatprep.subr.mxu0 0.0
    %843 = vmatpush2.xpose.msra.mxu0 0.0
    %844 = vmatprep.subr.mxu0 0.0
    %845 = vmatpush2.xpose.msra.mxu0 0.0
    %846 = vmatprep.subr.mxu0 0.0
    %847 = vmatpush2.xpose.msra.mxu0 0.0
    %848 = vmatprep.subr.mxu0 0.0
    %849 = vmatpush2.xpose.msra.mxu0 0.0
    %850 = vmatprep.subr.mxu0 0.0
    %851 = vmatpush2.xpose.msra.mxu0 0.0
    %852 = vmatprep.subr.mxu0 0.0
    %853 = vmatpush2.xpose.msra.mxu0 0.0
    %854 = vmatprep.subr.mxu0 0.0
    %855 = vmatpush2.xpose.msra.mxu0 0.0
    %856 = vmatprep.subr.mxu0 0.0
    %857 = vmatpush2.xpose.msra.mxu0 0.0
    %858 = vmatprep.subr.mxu0 0.0
    %859 = vmatpush2.xpose.msra.mxu0 0.0
    %860 = vmatprep.subr.mxu0 0.0
    %861 = vmatpush2.xpose.msra.mxu0 0.0
    %862 = vmatprep.subr.mxu0 0.0
    %863 = vmatpush2.xpose.msra.mxu0 0.0
    %864 = vmatprep.subr.mxu0 0.0
    %865 = vmatpush2.xpose.msra.mxu0 0.0
    %866 = vmatprep.subr.mxu0 0.0
    %867 = vmatpush2.xpose.msra.mxu0 0.0
    %868 = vmatprep.subr.mxu0 0.0
    %869 = vmatpush2.xpose.msra.mxu0 0.0
    %870 = vmatprep.subr.mxu0 0.0
    %871 = vmatpush2.xpose.msra.mxu0 0.0
    %872 = vmatprep.subr.mxu0 0.0
    %873 = vmatpush2.xpose.msra.mxu0 0.0
    %874 = vmatprep.mubr.f32.mxu0 0.0
    %875 = vmatmul.mubr.f32.gmra.mxu0 %v191
    %v876 = vpop.f32.mrf.mxu0
    %v877 = vadd.f32 %v806, %v876
    %v878 = vpop.f32.mrf.mxu0
    %879 = vmatprep.mubr.f32.mxu0 0.0
    %880 = vmatmul.mubr.f32.gmra.mxu0 %v194
    %v881 = vpop.f32.mrf.mxu0
    %v882 = vadd.f32 %v806, %v881
    %v883 = vpop.f32.mrf.mxu0
    %884 = vdwg.mxu0
    %v885 = vld [vmem:[#allocation2 + $0x50] sm:$0xff]
    %v886 = vld [vmem:[%s2 + $0x4a] sm:$0x1]
    %v887 = vlaneseq
    %v888 = vshrl.u32 %v887, 7
    %v889 = vsub.s32 0, %v888
    %v890 = vrot.slane %v886, %v889
    %v892 = vsel %vm189, %v885, 0
    %894 = vmatprep.subr.mxu0 0.0
    %895 = vmatpush1.xpose.msra.mxu0 0.0
    %896 = vmatprep.subr.mxu0 0.0
    %897 = vmatpush1.xpose.msra.mxu0 0.0
    %898 = vmatprep.subr.mxu0 0.0
    %899 = vmatpush1.xpose.msra.mxu0 0.0
    %900 = vmatprep.subr.mxu0 0.0
    %901 = vmatpush1.xpose.msra.mxu0 0.0
    %902 = vmatprep.subr.mxu0 0.0
    %903 = vmatpush1.xpose.msra.mxu0 0.0
    %904 = vmatprep.subr.mxu0 0.0
    %905 = vmatpush1.xpose.msra.mxu0 0.0
    %906 = vmatprep.subr.mxu0 0.0
    %907 = vmatpush1.xpose.msra.mxu0 0.0
    %908 = vmatprep.subr.mxu0 0.0
    %909 = vmatpush1.xpose.msra.mxu0 0.0
    %910 = vmatprep.subr.mxu0 0.0
    %911 = vmatpush1.xpose.msra.mxu0 0.0
    %912 = vmatprep.subr.mxu0 0.0
    %913 = vmatpush1.xpose.msra.mxu0 0.0
    %914 = vmatprep.subr.mxu0 0.0
    %915 = vmatpush1.xpose.msra.mxu0 0.0
    %916 = vmatprep.subr.mxu0 0.0
    %917 = vmatpush1.xpose.msra.mxu0 0.0
    %918 = vmatprep.subr.mxu0 0.0
    %919 = vmatpush1.xpose.msra.mxu0 0.0
    %920 = vmatprep.subr.mxu0 0.0
    %921 = vmatpush1.xpose.msra.mxu0 0.0
    %922 = vmatprep.subr.mxu0 0.0
    %923 = vmatpush1.xpose.msra.mxu0 0.0
    %924 = vmatprep.subr.mxu0 0.0
    %925 = vmatpush1.xpose.msra.mxu0 %v892
    %926 = vmatprep.subr.mxu0 0.0
    %927 = vmatpush2.xpose.msra.mxu0 0.0
    %928 = vmatprep.subr.mxu0 0.0
    %929 = vmatpush2.xpose.msra.mxu0 0.0
    %930 = vmatprep.subr.mxu0 0.0
    %931 = vmatpush2.xpose.msra.mxu0 0.0
    %932 = vmatprep.subr.mxu0 0.0
    %933 = vmatpush2.xpose.msra.mxu0 0.0
    %934 = vmatprep.subr.mxu0 0.0
    %935 = vmatpush2.xpose.msra.mxu0 0.0
    %936 = vmatprep.subr.mxu0 0.0
    %937 = vmatpush2.xpose.msra.mxu0 0.0
    %938 = vmatprep.subr.mxu0 0.0
    %939 = vmatpush2.xpose.msra.mxu0 0.0
    %940 = vmatprep.subr.mxu0 0.0
    %941 = vmatpush2.xpose.msra.mxu0 0.0
    %942 = vmatprep.subr.mxu0 0.0
    %943 = vmatpush2.xpose.msra.mxu0 0.0
    %944 = vmatprep.subr.mxu0 0.0
    %945 = vmatpush2.xpose.msra.mxu0 0.0
    %946 = vmatprep.subr.mxu0 0.0
    %947 = vmatpush2.xpose.msra.mxu0 0.0
    %948 = vmatprep.subr.mxu0 0.0
    %949 = vmatpush2.xpose.msra.mxu0 0.0
    %950 = vmatprep.subr.mxu0 0.0
    %951 = vmatpush2.xpose.msra.mxu0 0.0
    %952 = vmatprep.subr.mxu0 0.0
    %953 = vmatpush2.xpose.msra.mxu0 0.0
    %954 = vmatprep.subr.mxu0 0.0
    %955 = vmatpush2.xpose.msra.mxu0 0.0
    %956 = vmatprep.subr.mxu0 0.0
    %957 = vmatpush2.xpose.msra.mxu0 0.0
    %958 = vmatprep.mubr.f32.mxu0 0.0
    %959 = vmatmul.mubr.f32.gmra.mxu0 %v191
    %v960 = vpop.f32.mrf.mxu0
    %v961 = vadd.f32 %v890, %v960
    %v962 = vpop.f32.mrf.mxu0
    %963 = vmatprep.mubr.f32.mxu0 0.0
    %964 = vmatmul.mubr.f32.gmra.mxu0 %v194
    %v965 = vpop.f32.mrf.mxu0
    %v966 = vadd.f32 %v890, %v965
    %v967 = vpop.f32.mrf.mxu0
    %968 = vdwg.mxu0
    %v970 = vsel %vm38, %v793, 0
    %v973 = vsel %vm38, %v798, 0
    %v976 = vsel %vm38, %v877, 0
    %v979 = vsel %vm38, %v882, 0
    %981 = vmatprep.subr.mxu0 0.0
    %982 = vmatpush1.xpose.msra.mxu0 0.0
    %983 = vmatprep.subr.mxu0 0.0
    %984 = vmatpush1.xpose.msra.mxu0 0.0
    %985 = vmatprep.subr.mxu0 0.0
    %986 = vmatpush1.xpose.msra.mxu0 0.0
    %987 = vmatprep.subr.mxu0 0.0
    %988 = vmatpush1.xpose.msra.mxu0 0.0
    %989 = vmatprep.subr.mxu0 0.0
    %990 = vmatpush1.xpose.msra.mxu0 0.0
    %991 = vmatprep.subr.mxu0 0.0
    %992 = vmatpush1.xpose.msra.mxu0 0.0
    %993 = vmatprep.subr.mxu0 0.0
    %994 = vmatpush1.xpose.msra.mxu0 0.0
    %995 = vmatprep.subr.mxu0 0.0
    %996 = vmatpush1.xpose.msra.mxu0 0.0
    %997 = vmatprep.subr.mxu0 0.0
    %998 = vmatpush1.xpose.msra.mxu0 0.0
    %999 = vmatprep.subr.mxu0 0.0
    %1000 = vmatpush1.xpose.msra.mxu0 0.0
    %1001 = vmatprep.subr.mxu0 0.0
    %1002 = vmatpush1.xpose.msra.mxu0 0.0
    %1003 = vmatprep.subr.mxu0 0.0
    %1004 = vmatpush1.xpose.msra.mxu0 0.0
    %1005 = vmatprep.subr.mxu0 0.0
    %1006 = vmatpush1.xpose.msra.mxu0 0.0
    %1007 = vmatprep.subr.mxu0 0.0
    %1008 = vmatpush1.xpose.msra.mxu0 0.0
    %1009 = vmatprep.subr.mxu0 0.0
    %1010 = vmatpush1.xpose.msra.mxu0 %v979
    %1011 = vmatprep.subr.mxu0 0.0
    %1012 = vmatpush1.xpose.msra.mxu0 %v976
    %1013 = vmatprep.subr.mxu0 0.0
    %1014 = vmatpush2.xpose.msra.mxu0 0.0
    %1015 = vmatprep.subr.mxu0 0.0
    %1016 = vmatpush2.xpose.msra.mxu0 0.0
    %1017 = vmatprep.subr.mxu0 0.0
    %1018 = vmatpush2.xpose.msra.mxu0 0.0
    %1019 = vmatprep.subr.mxu0 0.0
    %1020 = vmatpush2.xpose.msra.mxu0 0.0
    %1021 = vmatprep.subr.mxu0 0.0
    %1022 = vmatpush2.xpose.msra.mxu0 0.0
    %1023 = vmatprep.subr.mxu0 0.0
    %1024 = vmatpush2.xpose.msra.mxu0 0.0
    %1025 = vmatprep.subr.mxu0 0.0
    %1026 = vmatpush2.xpose.msra.mxu0 0.0
    %1027 = vmatprep.subr.mxu0 0.0
    %1028 = vmatpush2.xpose.msra.mxu0 0.0
    %1029 = vmatprep.subr.mxu0 0.0
    %1030 = vmatpush2.xpose.msra.mxu0 0.0
    %1031 = vmatprep.subr.mxu0 0.0
    %1032 = vmatpush2.xpose.msra.mxu0 0.0
    %1033 = vmatprep.subr.mxu0 0.0
    %1034 = vmatpush2.xpose.msra.mxu0 0.0
    %1035 = vmatprep.subr.mxu0 0.0
    %1036 = vmatpush2.xpose.msra.mxu0 0.0
    %1037 = vmatprep.subr.mxu0 0.0
    %1038 = vmatpush2.xpose.msra.mxu0 0.0
    %1039 = vmatprep.subr.mxu0 0.0
    %1040 = vmatpush2.xpose.msra.mxu0 0.0
    %1041 = vmatprep.subr.mxu0 0.0
    %1042 = vmatpush2.xpose.msra.mxu0 0.0
    %1043 = vmatprep.subr.mxu0 0.0
    %1044 = vmatpush2.xpose.msra.mxu0 0.0
    %1045 = vmatprep.mubr.f32.mxu0 0.0
    %1046 = vmatmul.mubr.f32.gmra.mxu0 %v970
    %v1047 = vpop.f32.mrf.mxu0
    %v1048 = vadd.f32 %v176, %v1047
    %v1049 = vpop.f32.mrf.mxu0
    %1050 = vmatprep.mubr.f32.mxu0 0.0
    %1051 = vmatmul.mubr.f32.gmra.mxu0 %v973
    %v1052 = vpop.f32.mrf.mxu0
    %v1053 = vadd.f32 %v177, %v1052
    %v1054 = vpop.f32.mrf.mxu0
    %1055 = vdwg.mxu0
    %v1056 = vsel %vm529, %v1048, -inf
    %1057 = vmax.xlane.f32.xlu0 %v1056
    %v1058 = vpop.xlane.xlu0 %1057
    %v1059 = vsel %vm529, %v1053, -inf
    %1060 = vmax.xlane.f32.xlu0 %v1059
    %v1061 = vpop.xlane.xlu0 %1060
    %v1062 = vsub.f32 %v1048, %v1058
    %v1063 = vsub.f32 %v1053, %v1061
    %v1064 = vmul.f32 %v1062, 1.442695
    %v1065 = vpow.pop %v1064
    %v1066 = vmul.f32 %v1063, 1.442695
    %v1067 = vpow.pop %v1066
    %v1068 = vsel %vm529, %v1065, 0.0
    %1069 = vadd.xlane.f32.xlu0 %v1068
    %v1070 = vpop.xlane.xlu0 %1069
    %v1071 = vsel %vm529, %v1067, 0.0
    %1072 = vadd.xlane.f32.xlu0 %v1071
    %v1073 = vpop.xlane.xlu0 %1072
    %v1074 = vrcp.pop %v1070
    %v1075 = vrcp.pop %v1073
    %v1076 = vmul.f32 %v1065, %v1074
    %v1077 = vmul.f32 %v1067, %v1075
    %v1079 = vsel %vm529, %v1076, 0
    %v1082 = vsel %vm529, %v1077, 0
    %1084 = vmatprep.subr.mxu0 0.0
    %1085 = vmatpush1.msra.mxu0 0.0
    %1086 = vmatprep.subr.mxu0 0.0
    %1087 = vmatpush1.msra.mxu0 0.0
    %1088 = vmatprep.subr.mxu0 0.0
    %1089 = vmatpush1.msra.mxu0 0.0
    %1090 = vmatprep.subr.mxu0 0.0
    %1091 = vmatpush1.msra.mxu0 0.0
    %1092 = vmatprep.subr.mxu0 0.0
    %1093 = vmatpush1.msra.mxu0 0.0
    %1094 = vmatprep.subr.mxu0 0.0
    %1095 = vmatpush1.msra.mxu0 0.0
    %1096 = vmatprep.subr.mxu0 0.0
    %1097 = vmatpush1.msra.mxu0 0.0
    %1098 = vmatprep.subr.mxu0 0.0
    %1099 = vmatpush1.msra.mxu0 0.0
    %1100 = vmatprep.subr.mxu0 0.0
    %1101 = vmatpush1.msra.mxu0 0.0
    %1102 = vmatprep.subr.mxu0 0.0
    %1103 = vmatpush1.msra.mxu0 0.0
    %1104 = vmatprep.subr.mxu0 0.0
    %1105 = vmatpush1.msra.mxu0 0.0
    %1106 = vmatprep.subr.mxu0 0.0
    %1107 = vmatpush1.msra.mxu0 0.0
    %1108 = vmatprep.subr.mxu0 0.0
    %1109 = vmatpush1.msra.mxu0 0.0
    %1110 = vmatprep.subr.mxu0 0.0
    %1111 = vmatpush1.msra.mxu0 0.0
    %1112 = vmatprep.subr.mxu0 0.0
    %1113 = vmatpush1.msra.mxu0 %v966
    %1114 = vmatprep.subr.mxu0 0.0
    %1115 = vmatpush1.msra.mxu0 %v961
    %1116 = vmatprep.subr.mxu0 0.0
    %1117 = vmatpush2.msra.mxu0 0.0
    %1118 = vmatprep.subr.mxu0 0.0
    %1119 = vmatpush2.msra.mxu0 0.0
    %1120 = vmatprep.subr.mxu0 0.0
    %1121 = vmatpush2.msra.mxu0 0.0
    %1122 = vmatprep.subr.mxu0 0.0
    %1123 = vmatpush2.msra.mxu0 0.0
    %1124 = vmatprep.subr.mxu0 0.0
    %1125 = vmatpush2.msra.mxu0 0.0
    %1126 = vmatprep.subr.mxu0 0.0
    %1127 = vmatpush2.msra.mxu0 0.0
    %1128 = vmatprep.subr.mxu0 0.0
    %1129 = vmatpush2.msra.mxu0 0.0
    %1130 = vmatprep.subr.mxu0 0.0
    %1131 = vmatpush2.msra.mxu0 0.0
    %1132 = vmatprep.subr.mxu0 0.0
    %1133 = vmatpush2.msra.mxu0 0.0
    %1134 = vmatprep.subr.mxu0 0.0
    %1135 = vmatpush2.msra.mxu0 0.0
    %1136 = vmatprep.subr.mxu0 0.0
    %1137 = vmatpush2.msra.mxu0 0.0
    %1138 = vmatprep.subr.mxu0 0.0
    %1139 = vmatpush2.msra.mxu0 0.0
    %1140 = vmatprep.subr.mxu0 0.0
    %1141 = vmatpush2.msra.mxu0 0.0
    %1142 = vmatprep.subr.mxu0 0.0
    %1143 = vmatpush2.msra.mxu0 0.0
    %1144 = vmatprep.subr.mxu0 0.0
    %1145 = vmatpush2.msra.mxu0 0.0
    %1146 = vmatprep.subr.mxu0 0.0
    %1147 = vmatpush2.msra.mxu0 0.0
    %1148 = vmatprep.mubr.f32.mxu0 0.0
    %1149 = vmatmul.mubr.f32.gmra.mxu0 %v1079
    %v1150 = vpop.f32.mrf.mxu0
    %v1151 = vadd.f32 0.0, %v1150
    %v1152 = vpop.f32.mrf.mxu0
    %1153 = vmatprep.mubr.f32.mxu0 0.0
    %1154 = vmatmul.mubr.f32.gmra.mxu0 %v1082
    %v1155 = vpop.f32.mrf.mxu0
    %v1156 = vadd.f32 0.0, %v1155
    %v1157 = vpop.f32.mrf.mxu0
    %1158 = vdwg.mxu0
    %v1159 = vld [vmem:[#allocation2 + $0x70] sm:$0xff]
    %v1161 = vsel %vm38, %v1151, 0
    %v1164 = vsel %vm38, %v1156, 0
    %1166 = vmatprep.subr.mxu0 0.0
    %1167 = vmatpush1.msra.mxu0 0.0
    %1168 = vmatprep.subr.mxu0 0.0
    %1169 = vmatpush1.msra.mxu0 0.0
    %1170 = vmatprep.subr.mxu0 0.0
    %1171 = vmatpush1.msra.mxu0 0.0
    %1172 = vmatprep.subr.mxu0 0.0
    %1173 = vmatpush1.msra.mxu0 0.0
    %1174 = vmatprep.subr.mxu0 0.0
    %1175 = vmatpush1.msra.mxu0 0.0
    %1176 = vmatprep.subr.mxu0 0.0
    %1177 = vmatpush1.msra.mxu0 0.0
    %1178 = vmatprep.subr.mxu0 0.0
    %1179 = vmatpush1.msra.mxu0 0.0
    %1180 = vmatprep.subr.mxu0 0.0
    %1181 = vmatpush1.msra.mxu0 0.0
    %1182 = vmatprep.subr.mxu0 0.0
    %1183 = vmatpush1.msra.mxu0 0.0
    %1184 = vmatprep.subr.mxu0 0.0
    %1185 = vmatpush1.msra.mxu0 0.0
    %1186 = vmatprep.subr.mxu0 0.0
    %1187 = vmatpush1.msra.mxu0 0.0
    %1188 = vmatprep.subr.mxu0 0.0
    %1189 = vmatpush1.msra.mxu0 0.0
    %1190 = vmatprep.subr.mxu0 0.0
    %1191 = vmatpush1.msra.mxu0 0.0
    %1192 = vmatprep.subr.mxu0 0.0
    %1193 = vmatpush1.msra.mxu0 0.0
    %1194 = vmatprep.subr.mxu0 0.0
    %1195 = vmatpush1.msra.mxu0 0.0
    %1196 = vmatprep.subr.mxu0 0.0
    %1197 = vmatpush1.msra.mxu0 %v1159
    %1198 = vmatprep.subr.mxu0 0.0
    %1199 = vmatpush2.msra.mxu0 0.0
    %1200 = vmatprep.subr.mxu0 0.0
    %1201 = vmatpush2.msra.mxu0 0.0
    %1202 = vmatprep.subr.mxu0 0.0
    %1203 = vmatpush2.msra.mxu0 0.0
    %1204 = vmatprep.subr.mxu0 0.0
    %1205 = vmatpush2.msra.mxu0 0.0
    %1206 = vmatprep.subr.mxu0 0.0
    %1207 = vmatpush2.msra.mxu0 0.0
    %1208 = vmatprep.subr.mxu0 0.0
    %1209 = vmatpush2.msra.mxu0 0.0
    %1210 = vmatprep.subr.mxu0 0.0
    %1211 = vmatpush2.msra.mxu0 0.0
    %1212 = vmatprep.subr.mxu0 0.0
    %1213 = vmatpush2.msra.mxu0 0.0
    %1214 = vmatprep.subr.mxu0 0.0
    %1215 = vmatpush2.msra.mxu0 0.0
    %1216 = vmatprep.subr.mxu0 0.0
    %1217 = vmatpush2.msra.mxu0 0.0
    %1218 = vmatprep.subr.mxu0 0.0
    %1219 = vmatpush2.msra.mxu0 0.0
    %1220 = vmatprep.subr.mxu0 0.0
    %1221 = vmatpush2.msra.mxu0 0.0
    %1222 = vmatprep.subr.mxu0 0.0
    %1223 = vmatpush2.msra.mxu0 0.0
    %1224 = vmatprep.subr.mxu0 0.0
    %1225 = vmatpush2.msra.mxu0 0.0
    %1226 = vmatprep.subr.mxu0 0.0
    %1227 = vmatpush2.msra.mxu0 0.0
    %1228 = vmatprep.subr.mxu0 0.0
    %1229 = vmatpush2.msra.mxu0 0.0
    %1230 = vmatprep.mubr.f32.mxu0 0.0
    %1231 = vmatmul.mubr.f32.gmra.mxu0 %v1161
    %v1232 = vpop.f32.mrf.mxu0
    %v1233 = vadd.f32 0.0, %v1232
    %v1234 = vpop.f32.mrf.mxu0
    %1235 = vmatprep.mubr.f32.mxu0 0.0
    %1236 = vmatmul.mubr.f32.gmra.mxu0 %v1164
    %v1237 = vpop.f32.mrf.mxu0
    %v1238 = vadd.f32 0.0, %v1237
    %v1239 = vpop.f32.mrf.mxu0
    %1240 = vdwg.mxu0
    %v1241 = vadd.f32 %v715, %v1233
    %v1242 = vadd.f32 %v716, %v1238
    %v1243 = vld [vmem:[#allocation2 + $0x18] sm:$0xff]
    %v1244 = vld [vmem:[%s2 + $0x43] sm:$0x1]
    %v1245 = vlaneseq
    %v1246 = vshrl.u32 %v1245, 7
    %v1247 = vsub.s32 0, %v1246
    %v1248 = vrot.slane %v1244, %v1247
    %v1250 = vsel %vm189, %v1243, 0
    %1252 = vmatprep.subr.mxu0 0.0
    %1253 = vmatpush1.xpose.msra.mxu0 0.0
    %1254 = vmatprep.subr.mxu0 0.0
    %1255 = vmatpush1.xpose.msra.mxu0 0.0
    %1256 = vmatprep.subr.mxu0 0.0
    %1257 = vmatpush1.xpose.msra.mxu0 0.0
    %1258 = vmatprep.subr.mxu0 0.0
    %1259 = vmatpush1.xpose.msra.mxu0 0.0
    %1260 = vmatprep.subr.mxu0 0.0
    %1261 = vmatpush1.xpose.msra.mxu0 0.0
    %1262 = vmatprep.subr.mxu0 0.0
    %1263 = vmatpush1.xpose.msra.mxu0 0.0
    %1264 = vmatprep.subr.mxu0 0.0
    %1265 = vmatpush1.xpose.msra.mxu0 0.0
    %1266 = vmatprep.subr.mxu0 0.0
    %1267 = vmatpush1.xpose.msra.mxu0 0.0
    %1268 = vmatprep.subr.mxu0 0.0
    %1269 = vmatpush1.xpose.msra.mxu0 0.0
    %1270 = vmatprep.subr.mxu0 0.0
    %1271 = vmatpush1.xpose.msra.mxu0 0.0
    %1272 = vmatprep.subr.mxu0 0.0
    %1273 = vmatpush1.xpose.msra.mxu0 0.0
    %1274 = vmatprep.subr.mxu0 0.0
    %1275 = vmatpush1.xpose.msra.mxu0 0.0
    %1276 = vmatprep.subr.mxu0 0.0
    %1277 = vmatpush1.xpose.msra.mxu0 0.0
    %1278 = vmatprep.subr.mxu0 0.0
    %1279 = vmatpush1.xpose.msra.mxu0 0.0
    %1280 = vmatprep.subr.mxu0 0.0
    %1281 = vmatpush1.xpose.msra.mxu0 0.0
    %1282 = vmatprep.subr.mxu0 0.0
    %1283 = vmatpush1.xpose.msra.mxu0 %v1250
    %1284 = vmatprep.subr.mxu0 0.0
    %1285 = vmatpush2.xpose.msra.mxu0 0.0
    %1286 = vmatprep.subr.mxu0 0.0
    %1287 = vmatpush2.xpose.msra.mxu0 0.0
    %1288 = vmatprep.subr.mxu0 0.0
    %1289 = vmatpush2.xpose.msra.mxu0 0.0
    %1290 = vmatprep.subr.mxu0 0.0
    %1291 = vmatpush2.xpose.msra.mxu0 0.0
    %1292 = vmatprep.subr.mxu0 0.0
    %1293 = vmatpush2.xpose.msra.mxu0 0.0
    %1294 = vmatprep.subr.mxu0 0.0
    %1295 = vmatpush2.xpose.msra.mxu0 0.0
    %1296 = vmatprep.subr.mxu0 0.0
    %1297 = vmatpush2.xpose.msra.mxu0 0.0
    %1298 = vmatprep.subr.mxu0 0.0
    %1299 = vmatpush2.xpose.msra.mxu0 0.0
    %1300 = vmatprep.subr.mxu0 0.0
    %1301 = vmatpush2.xpose.msra.mxu0 0.0
    %1302 = vmatprep.subr.mxu0 0.0
    %1303 = vmatpush2.xpose.msra.mxu0 0.0
    %1304 = vmatprep.subr.mxu0 0.0
    %1305 = vmatpush2.xpose.msra.mxu0 0.0
    %1306 = vmatprep.subr.mxu0 0.0
    %1307 = vmatpush2.xpose.msra.mxu0 0.0
    %1308 = vmatprep.subr.mxu0 0.0
    %1309 = vmatpush2.xpose.msra.mxu0 0.0
    %1310 = vmatprep.subr.mxu0 0.0
    %1311 = vmatpush2.xpose.msra.mxu0 0.0
    %1312 = vmatprep.subr.mxu0 0.0
    %1313 = vmatpush2.xpose.msra.mxu0 0.0
    %1314 = vmatprep.subr.mxu0 0.0
    %1315 = vmatpush2.xpose.msra.mxu0 0.0
    %1316 = vmatprep.mubr.f32.mxu0 0.0
    %1317 = vmatmul.mubr.f32.gmra.mxu0 %v191
    %v1318 = vpop.f32.mrf.mxu0
    %v1319 = vadd.f32 %v1248, %v1318
    %v1320 = vpop.f32.mrf.mxu0
    %1321 = vmatprep.mubr.f32.mxu0 0.0
    %1322 = vmatmul.mubr.f32.gmra.mxu0 %v194
    %v1323 = vpop.f32.mrf.mxu0
    %v1324 = vadd.f32 %v1248, %v1323
    %v1325 = vpop.f32.mrf.mxu0
    %1326 = vdwg.mxu0
    %v1327 = vld [vmem:[#allocation2 + $0x38] sm:$0xff]
    %v1328 = vld [vmem:[%s2 + $0x47] sm:$0x1]
    %v1329 = vlaneseq
    %v1330 = vshrl.u32 %v1329, 7
    %v1331 = vsub.s32 0, %v1330
    %v1332 = vrot.slane %v1328, %v1331
    %v1334 = vsel %vm189, %v1327, 0
    %1336 = vmatprep.subr.mxu0 0.0
    %1337 = vmatpush1.xpose.msra.mxu0 0.0
    %1338 = vmatprep.subr.mxu0 0.0
    %1339 = vmatpush1.xpose.msra.mxu0 0.0
    %1340 = vmatprep.subr.mxu0 0.0
    %1341 = vmatpush1.xpose.msra.mxu0 0.0
    %1342 = vmatprep.subr.mxu0 0.0
    %1343 = vmatpush1.xpose.msra.mxu0 0.0
    %1344 = vmatprep.subr.mxu0 0.0
    %1345 = vmatpush1.xpose.msra.mxu0 0.0
    %1346 = vmatprep.subr.mxu0 0.0
    %1347 = vmatpush1.xpose.msra.mxu0 0.0
    %1348 = vmatprep.subr.mxu0 0.0
    %1349 = vmatpush1.xpose.msra.mxu0 0.0
    %1350 = vmatprep.subr.mxu0 0.0
    %1351 = vmatpush1.xpose.msra.mxu0 0.0
    %1352 = vmatprep.subr.mxu0 0.0
    %1353 = vmatpush1.xpose.msra.mxu0 0.0
    %1354 = vmatprep.subr.mxu0 0.0
    %1355 = vmatpush1.xpose.msra.mxu0 0.0
    %1356 = vmatprep.subr.mxu0 0.0
    %1357 = vmatpush1.xpose.msra.mxu0 0.0
    %1358 = vmatprep.subr.mxu0 0.0
    %1359 = vmatpush1.xpose.msra.mxu0 0.0
    %1360 = vmatprep.subr.mxu0 0.0
    %1361 = vmatpush1.xpose.msra.mxu0 0.0
    %1362 = vmatprep.subr.mxu0 0.0
    %1363 = vmatpush1.xpose.msra.mxu0 0.0
    %1364 = vmatprep.subr.mxu0 0.0
    %1365 = vmatpush1.xpose.msra.mxu0 0.0
    %1366 = vmatprep.subr.mxu0 0.0
    %1367 = vmatpush1.xpose.msra.mxu0 %v1334
    %1368 = vmatprep.subr.mxu0 0.0
    %1369 = vmatpush2.xpose.msra.mxu0 0.0
    %1370 = vmatprep.subr.mxu0 0.0
    %1371 = vmatpush2.xpose.msra.mxu0 0.0
    %1372 = vmatprep.subr.mxu0 0.0
    %1373 = vmatpush2.xpose.msra.mxu0 0.0
    %1374 = vmatprep.subr.mxu0 0.0
    %1375 = vmatpush2.xpose.msra.mxu0 0.0
    %1376 = vmatprep.subr.mxu0 0.0
    %1377 = vmatpush2.xpose.msra.mxu0 0.0
    %1378 = vmatprep.subr.mxu0 0.0
    %1379 = vmatpush2.xpose.msra.mxu0 0.0
    %1380 = vmatprep.subr.mxu0 0.0
    %1381 = vmatpush2.xpose.msra.mxu0 0.0
    %1382 = vmatprep.subr.mxu0 0.0
    %1383 = vmatpush2.xpose.msra.mxu0 0.0
    %1384 = vmatprep.subr.mxu0 0.0
    %1385 = vmatpush2.xpose.msra.mxu0 0.0
    %1386 = vmatprep.subr.mxu0 0.0
    %1387 = vmatpush2.xpose.msra.mxu0 0.0
    %1388 = vmatprep.subr.mxu0 0.0
    %1389 = vmatpush2.xpose.msra.mxu0 0.0
    %1390 = vmatprep.subr.mxu0 0.0
    %1391 = vmatpush2.xpose.msra.mxu0 0.0
    %1392 = vmatprep.subr.mxu0 0.0
    %1393 = vmatpush2.xpose.msra.mxu0 0.0
    %1394 = vmatprep.subr.mxu0 0.0
    %1395 = vmatpush2.xpose.msra.mxu0 0.0
    %1396 = vmatprep.subr.mxu0 0.0
    %1397 = vmatpush2.xpose.msra.mxu0 0.0
    %1398 = vmatprep.subr.mxu0 0.0
    %1399 = vmatpush2.xpose.msra.mxu0 0.0
    %1400 = vmatprep.mubr.f32.mxu0 0.0
    %1401 = vmatmul.mubr.f32.gmra.mxu0 %v191
    %v1402 = vpop.f32.mrf.mxu0
    %v1403 = vadd.f32 %v1332, %v1402
    %v1404 = vpop.f32.mrf.mxu0
    %1405 = vmatprep.mubr.f32.mxu0 0.0
    %1406 = vmatmul.mubr.f32.gmra.mxu0 %v194
    %v1407 = vpop.f32.mrf.mxu0
    %v1408 = vadd.f32 %v1332, %v1407
    %v1409 = vpop.f32.mrf.mxu0
    %1410 = vdwg.mxu0
    %v1411 = vld [vmem:[#allocation2 + $0x58] sm:$0xff]
    %v1412 = vld [vmem:[%s2 + $0x4b] sm:$0x1]
    %v1413 = vlaneseq
    %v1414 = vshrl.u32 %v1413, 7
    %v1415 = vsub.s32 0, %v1414
    %v1416 = vrot.slane %v1412, %v1415
    %v1418 = vsel %vm189, %v1411, 0
    %1420 = vmatprep.subr.mxu0 0.0
    %1421 = vmatpush1.xpose.msra.mxu0 0.0
    %1422 = vmatprep.subr.mxu0 0.0
    %1423 = vmatpush1.xpose.msra.mxu0 0.0
    %1424 = vmatprep.subr.mxu0 0.0
    %1425 = vmatpush1.xpose.msra.mxu0 0.0
    %1426 = vmatprep.subr.mxu0 0.0
    %1427 = vmatpush1.xpose.msra.mxu0 0.0
    %1428 = vmatprep.subr.mxu0 0.0
    %1429 = vmatpush1.xpose.msra.mxu0 0.0
    %1430 = vmatprep.subr.mxu0 0.0
    %1431 = vmatpush1.xpose.msra.mxu0 0.0
    %1432 = vmatprep.subr.mxu0 0.0
    %1433 = vmatpush1.xpose.msra.mxu0 0.0
    %1434 = vmatprep.subr.mxu0 0.0
    %1435 = vmatpush1.xpose.msra.mxu0 0.0
    %1436 = vmatprep.subr.mxu0 0.0
    %1437 = vmatpush1.xpose.msra.mxu0 0.0
    %1438 = vmatprep.subr.mxu0 0.0
    %1439 = vmatpush1.xpose.msra.mxu0 0.0
    %1440 = vmatprep.subr.mxu0 0.0
    %1441 = vmatpush1.xpose.msra.mxu0 0.0
    %1442 = vmatprep.subr.mxu0 0.0
    %1443 = vmatpush1.xpose.msra.mxu0 0.0
    %1444 = vmatprep.subr.mxu0 0.0
    %1445 = vmatpush1.xpose.msra.mxu0 0.0
    %1446 = vmatprep.subr.mxu0 0.0
    %1447 = vmatpush1.xpose.msra.mxu0 0.0
    %1448 = vmatprep.subr.mxu0 0.0
    %1449 = vmatpush1.xpose.msra.mxu0 0.0
    %1450 = vmatprep.subr.mxu0 0.0
    %1451 = vmatpush1.xpose.msra.mxu0 %v1418
    %1452 = vmatprep.subr.mxu0 0.0
    %1453 = vmatpush2.xpose.msra.mxu0 0.0
    %1454 = vmatprep.subr.mxu0 0.0
    %1455 = vmatpush2.xpose.msra.mxu0 0.0
    %1456 = vmatprep.subr.mxu0 0.0
    %1457 = vmatpush2.xpose.msra.mxu0 0.0
    %1458 = vmatprep.subr.mxu0 0.0
    %1459 = vmatpush2.xpose.msra.mxu0 0.0
    %1460 = vmatprep.subr.mxu0 0.0
    %1461 = vmatpush2.xpose.msra.mxu0 0.0
    %1462 = vmatprep.subr.mxu0 0.0
    %1463 = vmatpush2.xpose.msra.mxu0 0.0
    %1464 = vmatprep.subr.mxu0 0.0
    %1465 = vmatpush2.xpose.msra.mxu0 0.0
    %1466 = vmatprep.subr.mxu0 0.0
    %1467 = vmatpush2.xpose.msra.mxu0 0.0
    %1468 = vmatprep.subr.mxu0 0.0
    %1469 = vmatpush2.xpose.msra.mxu0 0.0
    %1470 = vmatprep.subr.mxu0 0.0
    %1471 = vmatpush2.xpose.msra.mxu0 0.0
    %1472 = vmatprep.subr.mxu0 0.0
    %1473 = vmatpush2.xpose.msra.mxu0 0.0
    %1474 = vmatprep.subr.mxu0 0.0
    %1475 = vmatpush2.xpose.msra.mxu0 0.0
    %1476 = vmatprep.subr.mxu0 0.0
    %1477 = vmatpush2.xpose.msra.mxu0 0.0
    %1478 = vmatprep.subr.mxu0 0.0
    %1479 = vmatpush2.xpose.msra.mxu0 0.0
    %1480 = vmatprep.subr.mxu0 0.0
    %1481 = vmatpush2.xpose.msra.mxu0 0.0
    %1482 = vmatprep.subr.mxu0 0.0
    %1483 = vmatpush2.xpose.msra.mxu0 0.0
    %1484 = vmatprep.mubr.f32.mxu0 0.0
    %1485 = vmatmul.mubr.f32.gmra.mxu0 %v191
    %v1486 = vpop.f32.mrf.mxu0
    %v1487 = vadd.f32 %v1416, %v1486
    %v1488 = vpop.f32.mrf.mxu0
    %1489 = vmatprep.mubr.f32.mxu0 0.0
    %1490 = vmatmul.mubr.f32.gmra.mxu0 %v194
    %v1491 = vpop.f32.mrf.mxu0
    %v1492 = vadd.f32 %v1416, %v1491
    %v1493 = vpop.f32.mrf.mxu0
    %1494 = vdwg.mxu0
    %v1496 = vsel %vm38, %v1319, 0
    %v1499 = vsel %vm38, %v1324, 0
    %v1502 = vsel %vm38, %v1403, 0
    %v1505 = vsel %vm38, %v1408, 0
    %1507 = vmatprep.subr.mxu0 0.0
    %1508 = vmatpush1.xpose.msra.mxu0 0.0
    %1509 = vmatprep.subr.mxu0 0.0
    %1510 = vmatpush1.xpose.msra.mxu0 0.0
    %1511 = vmatprep.subr.mxu0 0.0
    %1512 = vmatpush1.xpose.msra.mxu0 0.0
    %1513 = vmatprep.subr.mxu0 0.0
    %1514 = vmatpush1.xpose.msra.mxu0 0.0
    %1515 = vmatprep.subr.mxu0 0.0
    %1516 = vmatpush1.xpose.msra.mxu0 0.0
    %1517 = vmatprep.subr.mxu0 0.0
    %1518 = vmatpush1.xpose.msra.mxu0 0.0
    %1519 = vmatprep.subr.mxu0 0.0
    %1520 = vmatpush1.xpose.msra.mxu0 0.0
    %1521 = vmatprep.subr.mxu0 0.0
    %1522 = vmatpush1.xpose.msra.mxu0 0.0
    %1523 = vmatprep.subr.mxu0 0.0
    %1524 = vmatpush1.xpose.msra.mxu0 0.0
    %1525 = vmatprep.subr.mxu0 0.0
    %1526 = vmatpush1.xpose.msra.mxu0 0.0
    %1527 = vmatprep.subr.mxu0 0.0
    %1528 = vmatpush1.xpose.msra.mxu0 0.0
    %1529 = vmatprep.subr.mxu0 0.0
    %1530 = vmatpush1.xpose.msra.mxu0 0.0
    %1531 = vmatprep.subr.mxu0 0.0
    %1532 = vmatpush1.xpose.msra.mxu0 0.0
    %1533 = vmatprep.subr.mxu0 0.0
    %1534 = vmatpush1.xpose.msra.mxu0 0.0
    %1535 = vmatprep.subr.mxu0 0.0
    %1536 = vmatpush1.xpose.msra.mxu0 %v1505
    %1537 = vmatprep.subr.mxu0 0.0
    %1538 = vmatpush1.xpose.msra.mxu0 %v1502
    %1539 = vmatprep.subr.mxu0 0.0
    %1540 = vmatpush2.xpose.msra.mxu0 0.0
    %1541 = vmatprep.subr.mxu0 0.0
    %1542 = vmatpush2.xpose.msra.mxu0 0.0
    %1543 = vmatprep.subr.mxu0 0.0
    %1544 = vmatpush2.xpose.msra.mxu0 0.0
    %1545 = vmatprep.subr.mxu0 0.0
    %1546 = vmatpush2.xpose.msra.mxu0 0.0
    %1547 = vmatprep.subr.mxu0 0.0
    %1548 = vmatpush2.xpose.msra.mxu0 0.0
    %1549 = vmatprep.subr.mxu0 0.0
    %1550 = vmatpush2.xpose.msra.mxu0 0.0
    %1551 = vmatprep.subr.mxu0 0.0
    %1552 = vmatpush2.xpose.msra.mxu0 0.0
    %1553 = vmatprep.subr.mxu0 0.0
    %1554 = vmatpush2.xpose.msra.mxu0 0.0
    %1555 = vmatprep.subr.mxu0 0.0
    %1556 = vmatpush2.xpose.msra.mxu0 0.0
    %1557 = vmatprep.subr.mxu0 0.0
    %1558 = vmatpush2.xpose.msra.mxu0 0.0
    %1559 = vmatprep.subr.mxu0 0.0
    %1560 = vmatpush2.xpose.msra.mxu0 0.0
    %1561 = vmatprep.subr.mxu0 0.0
    %1562 = vmatpush2.xpose.msra.mxu0 0.0
    %1563 = vmatprep.subr.mxu0 0.0
    %1564 = vmatpush2.xpose.msra.mxu0 0.0
    %1565 = vmatprep.subr.mxu0 0.0
    %1566 = vmatpush2.xpose.msra.mxu0 0.0
    %1567 = vmatprep.subr.mxu0 0.0
    %1568 = vmatpush2.xpose.msra.mxu0 0.0
    %1569 = vmatprep.subr.mxu0 0.0
    %1570 = vmatpush2.xpose.msra.mxu0 0.0
    %1571 = vmatprep.mubr.f32.mxu0 0.0
    %1572 = vmatmul.mubr.f32.gmra.mxu0 %v1496
    %v1573 = vpop.f32.mrf.mxu0
    %v1574 = vadd.f32 %v176, %v1573
    %v1575 = vpop.f32.mrf.mxu0
    %1576 = vmatprep.mubr.f32.mxu0 0.0
    %1577 = vmatmul.mubr.f32.gmra.mxu0 %v1499
    %v1578 = vpop.f32.mrf.mxu0
    %v1579 = vadd.f32 %v177, %v1578
    %v1580 = vpop.f32.mrf.mxu0
    %1581 = vdwg.mxu0
    %v1582 = vsel %vm529, %v1574, -inf
    %1583 = vmax.xlane.f32.xlu0 %v1582
    %v1584 = vpop.xlane.xlu0 %1583
    %v1585 = vsel %vm529, %v1579, -inf
    %1586 = vmax.xlane.f32.xlu0 %v1585
    %v1587 = vpop.xlane.xlu0 %1586
    %v1588 = vsub.f32 %v1574, %v1584
    %v1589 = vsub.f32 %v1579, %v1587
    %v1590 = vmul.f32 %v1588, 1.442695
    %v1591 = vpow.pop %v1590
    %v1592 = vmul.f32 %v1589, 1.442695
    %v1593 = vpow.pop %v1592
    %v1594 = vsel %vm529, %v1591, 0.0
    %1595 = vadd.xlane.f32.xlu0 %v1594
    %v1596 = vpop.xlane.xlu0 %1595
    %v1597 = vsel %vm529, %v1593, 0.0
    %1598 = vadd.xlane.f32.xlu0 %v1597
    %v1599 = vpop.xlane.xlu0 %1598
    %v1600 = vrcp.pop %v1596
    %v1601 = vrcp.pop %v1599
    %v1602 = vmul.f32 %v1591, %v1600
    %v1603 = vmul.f32 %v1593, %v1601
    %v1605 = vsel %vm529, %v1602, 0
    %v1608 = vsel %vm529, %v1603, 0
    %1610 = vmatprep.subr.mxu0 0.0
    %1611 = vmatpush1.msra.mxu0 0.0
    %1612 = vmatprep.subr.mxu0 0.0
    %1613 = vmatpush1.msra.mxu0 0.0
    %1614 = vmatprep.subr.mxu0 0.0
    %1615 = vmatpush1.msra.mxu0 0.0
    %1616 = vmatprep.subr.mxu0 0.0
    %1617 = vmatpush1.msra.mxu0 0.0
    %1618 = vmatprep.subr.mxu0 0.0
    %1619 = vmatpush1.msra.mxu0 0.0
    %1620 = vmatprep.subr.mxu0 0.0
    %1621 = vmatpush1.msra.mxu0 0.0
    %1622 = vmatprep.subr.mxu0 0.0
    %1623 = vmatpush1.msra.mxu0 0.0
    %1624 = vmatprep.subr.mxu0 0.0
    %1625 = vmatpush1.msra.mxu0 0.0
    %1626 = vmatprep.subr.mxu0 0.0
    %1627 = vmatpush1.msra.mxu0 0.0
    %1628 = vmatprep.subr.mxu0 0.0
    %1629 = vmatpush1.msra.mxu0 0.0
    %1630 = vmatprep.subr.mxu0 0.0
    %1631 = vmatpush1.msra.mxu0 0.0
    %1632 = vmatprep.subr.mxu0 0.0
    %1633 = vmatpush1.msra.mxu0 0.0
    %1634 = vmatprep.subr.mxu0 0.0
    %1635 = vmatpush1.msra.mxu0 0.0
    %1636 = vmatprep.subr.mxu0 0.0
    %1637 = vmatpush1.msra.mxu0 0.0
    %1638 = vmatprep.subr.mxu0 0.0
    %1639 = vmatpush1.msra.mxu0 %v1492
    %1640 = vmatprep.subr.mxu0 0.0
    %1641 = vmatpush1.msra.mxu0 %v1487
    %1642 = vmatprep.subr.mxu0 0.0
    %1643 = vmatpush2.msra.mxu0 0.0
    %1644 = vmatprep.subr.mxu0 0.0
    %1645 = vmatpush2.msra.mxu0 0.0
    %1646 = vmatprep.subr.mxu0 0.0
    %1647 = vmatpush2.msra.mxu0 0.0
    %1648 = vmatprep.subr.mxu0 0.0
    %1649 = vmatpush2.msra.mxu0 0.0
    %1650 = vmatprep.subr.mxu0 0.0
    %1651 = vmatpush2.msra.mxu0 0.0
    %1652 = vmatprep.subr.mxu0 0.0
    %1653 = vmatpush2.msra.mxu0 0.0
    %1654 = vmatprep.subr.mxu0 0.0
    %1655 = vmatpush2.msra.mxu0 0.0
    %1656 = vmatprep.subr.mxu0 0.0
    %1657 = vmatpush2.msra.mxu0 0.0
    %1658 = vmatprep.subr.mxu0 0.0
    %1659 = vmatpush2.msra.mxu0 0.0
    %1660 = vmatprep.subr.mxu0 0.0
    %1661 = vmatpush2.msra.mxu0 0.0
    %1662 = vmatprep.subr.mxu0 0.0
    %1663 = vmatpush2.msra.mxu0 0.0
    %1664 = vmatprep.subr.mxu0 0.0
    %1665 = vmatpush2.msra.mxu0 0.0
    %1666 = vmatprep.subr.mxu0 0.0
    %1667 = vmatpush2.msra.mxu0 0.0
    %1668 = vmatprep.subr.mxu0 0.0
    %1669 = vmatpush2.msra.mxu0 0.0
    %1670 = vmatprep.subr.mxu0 0.0
    %1671 = vmatpush2.msra.mxu0 0.0
    %1672 = vmatprep.subr.mxu0 0.0
    %1673 = vmatpush2.msra.mxu0 0.0
    %1674 = vmatprep.mubr.f32.mxu0 0.0
    %1675 = vmatmul.mubr.f32.gmra.mxu0 %v1605
    %v1676 = vpop.f32.mrf.mxu0
    %v1677 = vadd.f32 0.0, %v1676
    %v1678 = vpop.f32.mrf.mxu0
    %1679 = vmatprep.mubr.f32.mxu0 0.0
    %1680 = vmatmul.mubr.f32.gmra.mxu0 %v1608
    %v1681 = vpop.f32.mrf.mxu0
    %v1682 = vadd.f32 0.0, %v1681
    %v1683 = vpop.f32.mrf.mxu0
    %1684 = vdwg.mxu0
    %v1685 = vld [vmem:[#allocation2 + $0x78] sm:$0xff]
    %v1687 = vsel %vm38, %v1677, 0
    %v1690 = vsel %vm38, %v1682, 0
    %1692 = vmatprep.subr.mxu0 0.0
    %1693 = vmatpush1.msra.mxu0 0.0
    %1694 = vmatprep.subr.mxu0 0.0
    %1695 = vmatpush1.msra.mxu0 0.0
    %1696 = vmatprep.subr.mxu0 0.0
    %1697 = vmatpush1.msra.mxu0 0.0
    %1698 = vmatprep.subr.mxu0 0.0
    %1699 = vmatpush1.msra.mxu0 0.0
    %1700 = vmatprep.subr.mxu0 0.0
    %1701 = vmatpush1.msra.mxu0 0.0
    %1702 = vmatprep.subr.mxu0 0.0
    %1703 = vmatpush1.msra.mxu0 0.0
    %1704 = vmatprep.subr.mxu0 0.0
    %1705 = vmatpush1.msra.mxu0 0.0
    %1706 = vmatprep.subr.mxu0 0.0
    %1707 = vmatpush1.msra.mxu0 0.0
    %1708 = vmatprep.subr.mxu0 0.0
    %1709 = vmatpush1.msra.mxu0 0.0
    %1710 = vmatprep.subr.mxu0 0.0
    %1711 = vmatpush1.msra.mxu0 0.0
    %1712 = vmatprep.subr.mxu0 0.0
    %1713 = vmatpush1.msra.mxu0 0.0
    %1714 = vmatprep.subr.mxu0 0.0
    %1715 = vmatpush1.msra.mxu0 0.0
    %1716 = vmatprep.subr.mxu0 0.0
    %1717 = vmatpush1.msra.mxu0 0.0
    %1718 = vmatprep.subr.mxu0 0.0
    %1719 = vmatpush1.msra.mxu0 0.0
    %1720 = vmatprep.subr.mxu0 0.0
    %1721 = vmatpush1.msra.mxu0 0.0
    %1722 = vmatprep.subr.mxu0 0.0
    %1723 = vmatpush1.msra.mxu0 %v1685
    %1724 = vmatprep.subr.mxu0 0.0
    %1725 = vmatpush2.msra.mxu0 0.0
    %1726 = vmatprep.subr.mxu0 0.0
    %1727 = vmatpush2.msra.mxu0 0.0
    %1728 = vmatprep.subr.mxu0 0.0
    %1729 = vmatpush2.msra.mxu0 0.0
    %1730 = vmatprep.subr.mxu0 0.0
    %1731 = vmatpush2.msra.mxu0 0.0
    %1732 = vmatprep.subr.mxu0 0.0
    %1733 = vmatpush2.msra.mxu0 0.0
    %1734 = vmatprep.subr.mxu0 0.0
    %1735 = vmatpush2.msra.mxu0 0.0
    %1736 = vmatprep.subr.mxu0 0.0
    %1737 = vmatpush2.msra.mxu0 0.0
    %1738 = vmatprep.subr.mxu0 0.0
    %1739 = vmatpush2.msra.mxu0 0.0
    %1740 = vmatprep.subr.mxu0 0.0
    %1741 = vmatpush2.msra.mxu0 0.0
    %1742 = vmatprep.subr.mxu0 0.0
    %1743 = vmatpush2.msra.mxu0 0.0
    %1744 = vmatprep.subr.mxu0 0.0
    %1745 = vmatpush2.msra.mxu0 0.0
    %1746 = vmatprep.subr.mxu0 0.0
    %1747 = vmatpush2.msra.mxu0 0.0
    %1748 = vmatprep.subr.mxu0 0.0
    %1749 = vmatpush2.msra.mxu0 0.0
    %1750 = vmatprep.subr.mxu0 0.0
    %1751 = vmatpush2.msra.mxu0 0.0
    %1752 = vmatprep.subr.mxu0 0.0
    %1753 = vmatpush2.msra.mxu0 0.0
    %1754 = vmatprep.subr.mxu0 0.0
    %1755 = vmatpush2.msra.mxu0 0.0
    %1756 = vmatprep.mubr.f32.mxu0 0.0
    %1757 = vmatmul.mubr.f32.gmra.mxu0 %v1687
    %v1758 = vpop.f32.mrf.mxu0
    %v1759 = vadd.f32 0.0, %v1758
    %v1760 = vpop.f32.mrf.mxu0
    %1761 = vmatprep.mubr.f32.mxu0 0.0
    %1762 = vmatmul.mubr.f32.gmra.mxu0 %v1690
    %v1763 = vpop.f32.mrf.mxu0
    %v1764 = vadd.f32 0.0, %v1763
    %v1765 = vpop.f32.mrf.mxu0
    %1766 = vdwg.mxu0
    %v1767 = vadd.f32 %v1241, %v1759
    %v1768 = vadd.f32 %v1242, %v1764
    %v1769 = vld [vmem:[#allocation2 + $0x20] sm:$0xff]
    %v1770 = vld [vmem:[%s2 + $0x44] sm:$0x1]
    %v1771 = vlaneseq
    %v1772 = vshrl.u32 %v1771, 7
    %v1773 = vsub.s32 0, %v1772
    %v1774 = vrot.slane %v1770, %v1773
    %v1776 = vsel %vm189, %v1769, 0
    %1778 = vmatprep.subr.mxu0 0.0
    %1779 = vmatpush1.xpose.msra.mxu0 0.0
    %1780 = vmatprep.subr.mxu0 0.0
    %1781 = vmatpush1.xpose.msra.mxu0 0.0
    %1782 = vmatprep.subr.mxu0 0.0
    %1783 = vmatpush1.xpose.msra.mxu0 0.0
    %1784 = vmatprep.subr.mxu0 0.0
    %1785 = vmatpush1.xpose.msra.mxu0 0.0
    %1786 = vmatprep.subr.mxu0 0.0
    %1787 = vmatpush1.xpose.msra.mxu0 0.0
    %1788 = vmatprep.subr.mxu0 0.0
    %1789 = vmatpush1.xpose.msra.mxu0 0.0
    %1790 = vmatprep.subr.mxu0 0.0
    %1791 = vmatpush1.xpose.msra.mxu0 0.0
    %1792 = vmatprep.subr.mxu0 0.0
    %1793 = vmatpush1.xpose.msra.mxu0 0.0
    %1794 = vmatprep.subr.mxu0 0.0
    %1795 = vmatpush1.xpose.msra.mxu0 0.0
    %1796 = vmatprep.subr.mxu0 0.0
    %1797 = vmatpush1.xpose.msra.mxu0 0.0
    %1798 = vmatprep.subr.mxu0 0.0
    %1799 = vmatpush1.xpose.msra.mxu0 0.0
    %1800 = vmatprep.subr.mxu0 0.0
    %1801 = vmatpush1.xpose.msra.mxu0 0.0
    %1802 = vmatprep.subr.mxu0 0.0
    %1803 = vmatpush1.xpose.msra.mxu0 0.0
    %1804 = vmatprep.subr.mxu0 0.0
    %1805 = vmatpush1.xpose.msra.mxu0 0.0
    %1806 = vmatprep.subr.mxu0 0.0
    %1807 = vmatpush1.xpose.msra.mxu0 0.0
    %1808 = vmatprep.subr.mxu0 0.0
    %1809 = vmatpush1.xpose.msra.mxu0 %v1776
    %1810 = vmatprep.subr.mxu0 0.0
    %1811 = vmatpush2.xpose.msra.mxu0 0.0
    %1812 = vmatprep.subr.mxu0 0.0
    %1813 = vmatpush2.xpose.msra.mxu0 0.0
    %1814 = vmatprep.subr.mxu0 0.0
    %1815 = vmatpush2.xpose.msra.mxu0 0.0
    %1816 = vmatprep.subr.mxu0 0.0
    %1817 = vmatpush2.xpose.msra.mxu0 0.0
    %1818 = vmatprep.subr.mxu0 0.0
    %1819 = vmatpush2.xpose.msra.mxu0 0.0
    %1820 = vmatprep.subr.mxu0 0.0
    %1821 = vmatpush2.xpose.msra.mxu0 0.0
    %1822 = vmatprep.subr.mxu0 0.0
    %1823 = vmatpush2.xpose.msra.mxu0 0.0
    %1824 = vmatprep.subr.mxu0 0.0
    %1825 = vmatpush2.xpose.msra.mxu0 0.0
    %1826 = vmatprep.subr.mxu0 0.0
    %1827 = vmatpush2.xpose.msra.mxu0 0.0
    %1828 = vmatprep.subr.mxu0 0.0
    %1829 = vmatpush2.xpose.msra.mxu0 0.0
    %1830 = vmatprep.subr.mxu0 0.0
    %1831 = vmatpush2.xpose.msra.mxu0 0.0
    %1832 = vmatprep.subr.mxu0 0.0
    %1833 = vmatpush2.xpose.msra.mxu0 0.0
    %1834 = vmatprep.subr.mxu0 0.0
    %1835 = vmatpush2.xpose.msra.mxu0 0.0
    %1836 = vmatprep.subr.mxu0 0.0
    %1837 = vmatpush2.xpose.msra.mxu0 0.0
    %1838 = vmatprep.subr.mxu0 0.0
    %1839 = vmatpush2.xpose.msra.mxu0 0.0
    %1840 = vmatprep.subr.mxu0 0.0
    %1841 = vmatpush2.xpose.msra.mxu0 0.0
    %1842 = vmatprep.mubr.f32.mxu0 0.0
    %1843 = vmatmul.mubr.f32.gmra.mxu0 %v191
    %v1844 = vpop.f32.mrf.mxu0
    %v1845 = vadd.f32 %v1774, %v1844
    %v1846 = vpop.f32.mrf.mxu0
    %1847 = vmatprep.mubr.f32.mxu0 0.0
    %1848 = vmatmul.mubr.f32.gmra.mxu0 %v194
    %v1849 = vpop.f32.mrf.mxu0
    %v1850 = vadd.f32 %v1774, %v1849
    %v1851 = vpop.f32.mrf.mxu0
    %1852 = vdwg.mxu0
    %v1853 = vld [vmem:[#allocation2 + $0x40] sm:$0xff]
    %v1854 = vld [vmem:[%s2 + $0x48] sm:$0x1]
    %v1855 = vlaneseq
    %v1856 = vshrl.u32 %v1855, 7
    %v1857 = vsub.s32 0, %v1856
    %v1858 = vrot.slane %v1854, %v1857
    %v1860 = vsel %vm189, %v1853, 0
    %1862 = vmatprep.subr.mxu0 0.0
    %1863 = vmatpush1.xpose.msra.mxu0 0.0
    %1864 = vmatprep.subr.mxu0 0.0
    %1865 = vmatpush1.xpose.msra.mxu0 0.0
    %1866 = vmatprep.subr.mxu0 0.0
    %1867 = vmatpush1.xpose.msra.mxu0 0.0
    %1868 = vmatprep.subr.mxu0 0.0
    %1869 = vmatpush1.xpose.msra.mxu0 0.0
    %1870 = vmatprep.subr.mxu0 0.0
    %1871 = vmatpush1.xpose.msra.mxu0 0.0
    %1872 = vmatprep.subr.mxu0 0.0
    %1873 = vmatpush1.xpose.msra.mxu0 0.0
    %1874 = vmatprep.subr.mxu0 0.0
    %1875 = vmatpush1.xpose.msra.mxu0 0.0
    %1876 = vmatprep.subr.mxu0 0.0
    %1877 = vmatpush1.xpose.msra.mxu0 0.0
    %1878 = vmatprep.subr.mxu0 0.0
    %1879 = vmatpush1.xpose.msra.mxu0 0.0
    %1880 = vmatprep.subr.mxu0 0.0
    %1881 = vmatpush1.xpose.msra.mxu0 0.0
    %1882 = vmatprep.subr.mxu0 0.0
    %1883 = vmatpush1.xpose.msra.mxu0 0.0
    %1884 = vmatprep.subr.mxu0 0.0
    %1885 = vmatpush1.xpose.msra.mxu0 0.0
    %1886 = vmatprep.subr.mxu0 0.0
    %1887 = vmatpush1.xpose.msra.mxu0 0.0
    %1888 = vmatprep.subr.mxu0 0.0
    %1889 = vmatpush1.xpose.msra.mxu0 0.0
    %1890 = vmatprep.subr.mxu0 0.0
    %1891 = vmatpush1.xpose.msra.mxu0 0.0
    %1892 = vmatprep.subr.mxu0 0.0
    %1893 = vmatpush1.xpose.msra.mxu0 %v1860
    %1894 = vmatprep.subr.mxu0 0.0
    %1895 = vmatpush2.xpose.msra.mxu0 0.0
    %1896 = vmatprep.subr.mxu0 0.0
    %1897 = vmatpush2.xpose.msra.mxu0 0.0
    %1898 = vmatprep.subr.mxu0 0.0
    %1899 = vmatpush2.xpose.msra.mxu0 0.0
    %1900 = vmatprep.subr.mxu0 0.0
    %1901 = vmatpush2.xpose.msra.mxu0 0.0
    %1902 = vmatprep.subr.mxu0 0.0
    %1903 = vmatpush2.xpose.msra.mxu0 0.0
    %1904 = vmatprep.subr.mxu0 0.0
    %1905 = vmatpush2.xpose.msra.mxu0 0.0
    %1906 = vmatprep.subr.mxu0 0.0
    %1907 = vmatpush2.xpose.msra.mxu0 0.0
    %1908 = vmatprep.subr.mxu0 0.0
    %1909 = vmatpush2.xpose.msra.mxu0 0.0
    %1910 = vmatprep.subr.mxu0 0.0
    %1911 = vmatpush2.xpose.msra.mxu0 0.0
    %1912 = vmatprep.subr.mxu0 0.0
    %1913 = vmatpush2.xpose.msra.mxu0 0.0
    %1914 = vmatprep.subr.mxu0 0.0
    %1915 = vmatpush2.xpose.msra.mxu0 0.0
    %1916 = vmatprep.subr.mxu0 0.0
    %1917 = vmatpush2.xpose.msra.mxu0 0.0
    %1918 = vmatprep.subr.mxu0 0.0
    %1919 = vmatpush2.xpose.msra.mxu0 0.0
    %1920 = vmatprep.subr.mxu0 0.0
    %1921 = vmatpush2.xpose.msra.mxu0 0.0
    %1922 = vmatprep.subr.mxu0 0.0
    %1923 = vmatpush2.xpose.msra.mxu0 0.0
    %1924 = vmatprep.subr.mxu0 0.0
    %1925 = vmatpush2.xpose.msra.mxu0 0.0
    %1926 = vmatprep.mubr.f32.mxu0 0.0
    %1927 = vmatmul.mubr.f32.gmra.mxu0 %v191
    %v1928 = vpop.f32.mrf.mxu0
    %v1929 = vadd.f32 %v1858, %v1928
    %v1930 = vpop.f32.mrf.mxu0
    %1931 = vmatprep.mubr.f32.mxu0 0.0
    %1932 = vmatmul.mubr.f32.gmra.mxu0 %v194
    %v1933 = vpop.f32.mrf.mxu0
    %v1934 = vadd.f32 %v1858, %v1933
    %v1935 = vpop.f32.mrf.mxu0
    %1936 = vdwg.mxu0
    %v1937 = vld [vmem:[#allocation2 + $0x60] sm:$0xff]
    %v1938 = vld [vmem:[%s2 + $0x4c] sm:$0x1]
    %v1939 = vlaneseq
    %v1940 = vshrl.u32 %v1939, 7
    %v1941 = vsub.s32 0, %v1940
    %v1942 = vrot.slane %v1938, %v1941
    %v1944 = vsel %vm189, %v1937, 0
    %1946 = vmatprep.subr.mxu0 0.0
    %1947 = vmatpush1.xpose.msra.mxu0 0.0
    %1948 = vmatprep.subr.mxu0 0.0
    %1949 = vmatpush1.xpose.msra.mxu0 0.0
    %1950 = vmatprep.subr.mxu0 0.0
    %1951 = vmatpush1.xpose.msra.mxu0 0.0
    %1952 = vmatprep.subr.mxu0 0.0
    %1953 = vmatpush1.xpose.msra.mxu0 0.0
    %1954 = vmatprep.subr.mxu0 0.0
    %1955 = vmatpush1.xpose.msra.mxu0 0.0
    %1956 = vmatprep.subr.mxu0 0.0
    %1957 = vmatpush1.xpose.msra.mxu0 0.0
    %1958 = vmatprep.subr.mxu0 0.0
    %1959 = vmatpush1.xpose.msra.mxu0 0.0
    %1960 = vmatprep.subr.mxu0 0.0
    %1961 = vmatpush1.xpose.msra.mxu0 0.0
    %1962 = vmatprep.subr.mxu0 0.0
    %1963 = vmatpush1.xpose.msra.mxu0 0.0
    %1964 = vmatprep.subr.mxu0 0.0
    %1965 = vmatpush1.xpose.msra.mxu0 0.0
    %1966 = vmatprep.subr.mxu0 0.0
    %1967 = vmatpush1.xpose.msra.mxu0 0.0
    %1968 = vmatprep.subr.mxu0 0.0
    %1969 = vmatpush1.xpose.msra.mxu0 0.0
    %1970 = vmatprep.subr.mxu0 0.0
    %1971 = vmatpush1.xpose.msra.mxu0 0.0
    %1972 = vmatprep.subr.mxu0 0.0
    %1973 = vmatpush1.xpose.msra.mxu0 0.0
    %1974 = vmatprep.subr.mxu0 0.0
    %1975 = vmatpush1.xpose.msra.mxu0 0.0
    %1976 = vmatprep.subr.mxu0 0.0
    %1977 = vmatpush1.xpose.msra.mxu0 %v1944
    %1978 = vmatprep.subr.mxu0 0.0
    %1979 = vmatpush2.xpose.msra.mxu0 0.0
    %1980 = vmatprep.subr.mxu0 0.0
    %1981 = vmatpush2.xpose.msra.mxu0 0.0
    %1982 = vmatprep.subr.mxu0 0.0
    %1983 = vmatpush2.xpose.msra.mxu0 0.0
    %1984 = vmatprep.subr.mxu0 0.0
    %1985 = vmatpush2.xpose.msra.mxu0 0.0
    %1986 = vmatprep.subr.mxu0 0.0
    %1987 = vmatpush2.xpose.msra.mxu0 0.0
    %1988 = vmatprep.subr.mxu0 0.0
    %1989 = vmatpush2.xpose.msra.mxu0 0.0
    %1990 = vmatprep.subr.mxu0 0.0
    %1991 = vmatpush2.xpose.msra.mxu0 0.0
    %1992 = vmatprep.subr.mxu0 0.0
    %1993 = vmatpush2.xpose.msra.mxu0 0.0
    %1994 = vmatprep.subr.mxu0 0.0
    %1995 = vmatpush2.xpose.msra.mxu0 0.0
    %1996 = vmatprep.subr.mxu0 0.0
    %1997 = vmatpush2.xpose.msra.mxu0 0.0
    %1998 = vmatprep.subr.mxu0 0.0
    %1999 = vmatpush2.xpose.msra.mxu0 0.0
    %2000 = vmatprep.subr.mxu0 0.0
    %2001 = vmatpush2.xpose.msra.mxu0 0.0
    %2002 = vmatprep.subr.mxu0 0.0
    %2003 = vmatpush2.xpose.msra.mxu0 0.0
    %2004 = vmatprep.subr.mxu0 0.0
    %2005 = vmatpush2.xpose.msra.mxu0 0.0
    %2006 = vmatprep.subr.mxu0 0.0
    %2007 = vmatpush2.xpose.msra.mxu0 0.0
    %2008 = vmatprep.subr.mxu0 0.0
    %2009 = vmatpush2.xpose.msra.mxu0 0.0
    %2010 = vmatprep.mubr.f32.mxu0 0.0
    %2011 = vmatmul.mubr.f32.gmra.mxu0 %v191
    %v2012 = vpop.f32.mrf.mxu0
    %v2013 = vadd.f32 %v1942, %v2012
    %v2014 = vpop.f32.mrf.mxu0
    %2015 = vmatprep.mubr.f32.mxu0 0.0
    %2016 = vmatmul.mubr.f32.gmra.mxu0 %v194
    %v2017 = vpop.f32.mrf.mxu0
    %v2018 = vadd.f32 %v1942, %v2017
    %v2019 = vpop.f32.mrf.mxu0
    %2020 = vdwg.mxu0
    %v2022 = vsel %vm38, %v1845, 0
    %v2025 = vsel %vm38, %v1850, 0
    %v2028 = vsel %vm38, %v1929, 0
    %v2031 = vsel %vm38, %v1934, 0
    %2033 = vmatprep.subr.mxu0 0.0
    %2034 = vmatpush1.xpose.msra.mxu0 0.0
    %2035 = vmatprep.subr.mxu0 0.0
    %2036 = vmatpush1.xpose.msra.mxu0 0.0
    %2037 = vmatprep.subr.mxu0 0.0
    %2038 = vmatpush1.xpose.msra.mxu0 0.0
    %2039 = vmatprep.subr.mxu0 0.0
    %2040 = vmatpush1.xpose.msra.mxu0 0.0
    %2041 = vmatprep.subr.mxu0 0.0
    %2042 = vmatpush1.xpose.msra.mxu0 0.0
    %2043 = vmatprep.subr.mxu0 0.0
    %2044 = vmatpush1.xpose.msra.mxu0 0.0
    %2045 = vmatprep.subr.mxu0 0.0
    %2046 = vmatpush1.xpose.msra.mxu0 0.0
    %2047 = vmatprep.subr.mxu0 0.0
    %2048 = vmatpush1.xpose.msra.mxu0 0.0
    %2049 = vmatprep.subr.mxu0 0.0
    %2050 = vmatpush1.xpose.msra.mxu0 0.0
    %2051 = vmatprep.subr.mxu0 0.0
    %2052 = vmatpush1.xpose.msra.mxu0 0.0
    %2053 = vmatprep.subr.mxu0 0.0
    %2054 = vmatpush1.xpose.msra.mxu0 0.0
    %2055 = vmatprep.subr.mxu0 0.0
    %2056 = vmatpush1.xpose.msra.mxu0 0.0
    %2057 = vmatprep.subr.mxu0 0.0
    %2058 = vmatpush1.xpose.msra.mxu0 0.0
    %2059 = vmatprep.subr.mxu0 0.0
    %2060 = vmatpush1.xpose.msra.mxu0 0.0
    %2061 = vmatprep.subr.mxu0 0.0
    %2062 = vmatpush1.xpose.msra.mxu0 %v2031
    %2063 = vmatprep.subr.mxu0 0.0
    %2064 = vmatpush1.xpose.msra.mxu0 %v2028
    %2065 = vmatprep.subr.mxu0 0.0
    %2066 = vmatpush2.xpose.msra.mxu0 0.0
    %2067 = vmatprep.subr.mxu0 0.0
    %2068 = vmatpush2.xpose.msra.mxu0 0.0
    %2069 = vmatprep.subr.mxu0 0.0
    %2070 = vmatpush2.xpose.msra.mxu0 0.0
    %2071 = vmatprep.subr.mxu0 0.0
    %2072 = vmatpush2.xpose.msra.mxu0 0.0
    %2073 = vmatprep.subr.mxu0 0.0
    %2074 = vmatpush2.xpose.msra.mxu0 0.0
    %2075 = vmatprep.subr.mxu0 0.0
    %2076 = vmatpush2.xpose.msra.mxu0 0.0
    %2077 = vmatprep.subr.mxu0 0.0
    %2078 = vmatpush2.xpose.msra.mxu0 0.0
    %2079 = vmatprep.subr.mxu0 0.0
    %2080 = vmatpush2.xpose.msra.mxu0 0.0
    %2081 = vmatprep.subr.mxu0 0.0
    %2082 = vmatpush2.xpose.msra.mxu0 0.0
    %2083 = vmatprep.subr.mxu0 0.0
    %2084 = vmatpush2.xpose.msra.mxu0 0.0
    %2085 = vmatprep.subr.mxu0 0.0
    %2086 = vmatpush2.xpose.msra.mxu0 0.0
    %2087 = vmatprep.subr.mxu0 0.0
    %2088 = vmatpush2.xpose.msra.mxu0 0.0
    %2089 = vmatprep.subr.mxu0 0.0
    %2090 = vmatpush2.xpose.msra.mxu0 0.0
    %2091 = vmatprep.subr.mxu0 0.0
    %2092 = vmatpush2.xpose.msra.mxu0 0.0
    %2093 = vmatprep.subr.mxu0 0.0
    %2094 = vmatpush2.xpose.msra.mxu0 0.0
    %2095 = vmatprep.subr.mxu0 0.0
    %2096 = vmatpush2.xpose.msra.mxu0 0.0
    %2097 = vmatprep.mubr.f32.mxu0 0.0
    %2098 = vmatmul.mubr.f32.gmra.mxu0 %v2022
    %v2099 = vpop.f32.mrf.mxu0
    %v2100 = vadd.f32 %v176, %v2099
    %v2101 = vpop.f32.mrf.mxu0
    %2102 = vmatprep.mubr.f32.mxu0 0.0
    %2103 = vmatmul.mubr.f32.gmra.mxu0 %v2025
    %v2104 = vpop.f32.mrf.mxu0
    %v2105 = vadd.f32 %v177, %v2104
    %v2106 = vpop.f32.mrf.mxu0
    %2107 = vdwg.mxu0
    %v2108 = vsel %vm529, %v2100, -inf
    %2109 = vmax.xlane.f32.xlu0 %v2108
    %v2110 = vpop.xlane.xlu0 %2109
    %v2111 = vsel %vm529, %v2105, -inf
    %2112 = vmax.xlane.f32.xlu0 %v2111
    %v2113 = vpop.xlane.xlu0 %2112
    %v2114 = vsub.f32 %v2100, %v2110
    %v2115 = vsub.f32 %v2105, %v2113
    %v2116 = vmul.f32 %v2114, 1.442695
    %v2117 = vpow.pop %v2116
    %v2118 = vmul.f32 %v2115, 1.442695
    %v2119 = vpow.pop %v2118
    %v2120 = vsel %vm529, %v2117, 0.0
    %2121 = vadd.xlane.f32.xlu0 %v2120
    %v2122 = vpop.xlane.xlu0 %2121
    %v2123 = vsel %vm529, %v2119, 0.0
    %2124 = vadd.xlane.f32.xlu0 %v2123
    %v2125 = vpop.xlane.xlu0 %2124
    %v2126 = vrcp.pop %v2122
    %v2127 = vrcp.pop %v2125
    %v2128 = vmul.f32 %v2117, %v2126
    %v2129 = vmul.f32 %v2119, %v2127
    %v2131 = vsel %vm529, %v2128, 0
    %v2134 = vsel %vm529, %v2129, 0
    %2136 = vmatprep.subr.mxu0 0.0
    %2137 = vmatpush1.msra.mxu0 0.0
    %2138 = vmatprep.subr.mxu0 0.0
    %2139 = vmatpush1.msra.mxu0 0.0
    %2140 = vmatprep.subr.mxu0 0.0
    %2141 = vmatpush1.msra.mxu0 0.0
    %2142 = vmatprep.subr.mxu0 0.0
    %2143 = vmatpush1.msra.mxu0 0.0
    %2144 = vmatprep.subr.mxu0 0.0
    %2145 = vmatpush1.msra.mxu0 0.0
    %2146 = vmatprep.subr.mxu0 0.0
    %2147 = vmatpush1.msra.mxu0 0.0
    %2148 = vmatprep.subr.mxu0 0.0
    %2149 = vmatpush1.msra.mxu0 0.0
    %2150 = vmatprep.subr.mxu0 0.0
    %2151 = vmatpush1.msra.mxu0 0.0
    %2152 = vmatprep.subr.mxu0 0.0
    %2153 = vmatpush1.msra.mxu0 0.0
    %2154 = vmatprep.subr.mxu0 0.0
    %2155 = vmatpush1.msra.mxu0 0.0
    %2156 = vmatprep.subr.mxu0 0.0
    %2157 = vmatpush1.msra.mxu0 0.0
    %2158 = vmatprep.subr.mxu0 0.0
    %2159 = vmatpush1.msra.mxu0 0.0
    %2160 = vmatprep.subr.mxu0 0.0
    %2161 = vmatpush1.msra.mxu0 0.0
    %2162 = vmatprep.subr.mxu0 0.0
    %2163 = vmatpush1.msra.mxu0 0.0
    %2164 = vmatprep.subr.mxu0 0.0
    %2165 = vmatpush1.msra.mxu0 %v2018
    %2166 = vmatprep.subr.mxu0 0.0
    %2167 = vmatpush1.msra.mxu0 %v2013
    %2168 = vmatprep.subr.mxu0 0.0
    %2169 = vmatpush2.msra.mxu0 0.0
    %2170 = vmatprep.subr.mxu0 0.0
    %2171 = vmatpush2.msra.mxu0 0.0
    %2172 = vmatprep.subr.mxu0 0.0
    %2173 = vmatpush2.msra.mxu0 0.0
    %2174 = vmatprep.subr.mxu0 0.0
    %2175 = vmatpush2.msra.mxu0 0.0
    %2176 = vmatprep.subr.mxu0 0.0
    %2177 = vmatpush2.msra.mxu0 0.0
    %2178 = vmatprep.subr.mxu0 0.0
    %2179 = vmatpush2.msra.mxu0 0.0
    %2180 = vmatprep.subr.mxu0 0.0
    %2181 = vmatpush2.msra.mxu0 0.0
    %2182 = vmatprep.subr.mxu0 0.0
    %2183 = vmatpush2.msra.mxu0 0.0
    %2184 = vmatprep.subr.mxu0 0.0
    %2185 = vmatpush2.msra.mxu0 0.0
    %2186 = vmatprep.subr.mxu0 0.0
    %2187 = vmatpush2.msra.mxu0 0.0
    %2188 = vmatprep.subr.mxu0 0.0
    %2189 = vmatpush2.msra.mxu0 0.0
    %2190 = vmatprep.subr.mxu0 0.0
    %2191 = vmatpush2.msra.mxu0 0.0
    %2192 = vmatprep.subr.mxu0 0.0
    %2193 = vmatpush2.msra.mxu0 0.0
    %2194 = vmatprep.subr.mxu0 0.0
    %2195 = vmatpush2.msra.mxu0 0.0
    %2196 = vmatprep.subr.mxu0 0.0
    %2197 = vmatpush2.msra.mxu0 0.0
    %2198 = vmatprep.subr.mxu0 0.0
    %2199 = vmatpush2.msra.mxu0 0.0
    %2200 = vmatprep.mubr.f32.mxu0 0.0
    %2201 = vmatmul.mubr.f32.gmra.mxu0 %v2131
    %v2202 = vpop.f32.mrf.mxu0
    %v2203 = vadd.f32 0.0, %v2202
    %v2204 = vpop.f32.mrf.mxu0
    %2205 = vmatprep.mubr.f32.mxu0 0.0
    %2206 = vmatmul.mubr.f32.gmra.mxu0 %v2134
    %v2207 = vpop.f32.mrf.mxu0
    %v2208 = vadd.f32 0.0, %v2207
    %v2209 = vpop.f32.mrf.mxu0
    %2210 = vdwg.mxu0
    %v2211 = vld [vmem:[#allocation2 + $0x80] sm:$0xff]
    %v2213 = vsel %vm38, %v2203, 0
    %v2216 = vsel %vm38, %v2208, 0
    %2218 = vmatprep.subr.mxu0 0.0
    %2219 = vmatpush1.msra.mxu0 0.0
    %2220 = vmatprep.subr.mxu0 0.0
    %2221 = vmatpush1.msra.mxu0 0.0
    %2222 = vmatprep.subr.mxu0 0.0
    %2223 = vmatpush1.msra.mxu0 0.0
    %2224 = vmatprep.subr.mxu0 0.0
    %2225 = vmatpush1.msra.mxu0 0.0
    %2226 = vmatprep.subr.mxu0 0.0
    %2227 = vmatpush1.msra.mxu0 0.0
    %2228 = vmatprep.subr.mxu0 0.0
    %2229 = vmatpush1.msra.mxu0 0.0
    %2230 = vmatprep.subr.mxu0 0.0
    %2231 = vmatpush1.msra.mxu0 0.0
    %2232 = vmatprep.subr.mxu0 0.0
    %2233 = vmatpush1.msra.mxu0 0.0
    %2234 = vmatprep.subr.mxu0 0.0
    %2235 = vmatpush1.msra.mxu0 0.0
    %2236 = vmatprep.subr.mxu0 0.0
    %2237 = vmatpush1.msra.mxu0 0.0
    %2238 = vmatprep.subr.mxu0 0.0
    %2239 = vmatpush1.msra.mxu0 0.0
    %2240 = vmatprep.subr.mxu0 0.0
    %2241 = vmatpush1.msra.mxu0 0.0
    %2242 = vmatprep.subr.mxu0 0.0
    %2243 = vmatpush1.msra.mxu0 0.0
    %2244 = vmatprep.subr.mxu0 0.0
    %2245 = vmatpush1.msra.mxu0 0.0
    %2246 = vmatprep.subr.mxu0 0.0
    %2247 = vmatpush1.msra.mxu0 0.0
    %2248 = vmatprep.subr.mxu0 0.0
    %2249 = vmatpush1.msra.mxu0 %v2211
    %2250 = vmatprep.subr.mxu0 0.0
    %2251 = vmatpush2.msra.mxu0 0.0
    %2252 = vmatprep.subr.mxu0 0.0
    %2253 = vmatpush2.msra.mxu0 0.0
    %2254 = vmatprep.subr.mxu0 0.0
    %2255 = vmatpush2.msra.mxu0 0.0
    %2256 = vmatprep.subr.mxu0 0.0
    %2257 = vmatpush2.msra.mxu0 0.0
    %2258 = vmatprep.subr.mxu0 0.0
    %2259 = vmatpush2.msra.mxu0 0.0
    %2260 = vmatprep.subr.mxu0 0.0
    %2261 = vmatpush2.msra.mxu0 0.0
    %2262 = vmatprep.subr.mxu0 0.0
    %2263 = vmatpush2.msra.mxu0 0.0
    %2264 = vmatprep.subr.mxu0 0.0
    %2265 = vmatpush2.msra.mxu0 0.0
    %2266 = vmatprep.subr.mxu0 0.0
    %2267 = vmatpush2.msra.mxu0 0.0
    %2268 = vmatprep.subr.mxu0 0.0
    %2269 = vmatpush2.msra.mxu0 0.0
    %2270 = vmatprep.subr.mxu0 0.0
    %2271 = vmatpush2.msra.mxu0 0.0
    %2272 = vmatprep.subr.mxu0 0.0
    %2273 = vmatpush2.msra.mxu0 0.0
    %2274 = vmatprep.subr.mxu0 0.0
    %2275 = vmatpush2.msra.mxu0 0.0
    %2276 = vmatprep.subr.mxu0 0.0
    %2277 = vmatpush2.msra.mxu0 0.0
    %2278 = vmatprep.subr.mxu0 0.0
    %2279 = vmatpush2.msra.mxu0 0.0
    %2280 = vmatprep.subr.mxu0 0.0
    %2281 = vmatpush2.msra.mxu0 0.0
    %2282 = vmatprep.mubr.f32.mxu0 0.0
    %2283 = vmatmul.mubr.f32.gmra.mxu0 %v2213
    %v2284 = vpop.f32.mrf.mxu0
    %v2285 = vadd.f32 0.0, %v2284
    %v2286 = vpop.f32.mrf.mxu0
    %2287 = vmatprep.mubr.f32.mxu0 0.0
    %2288 = vmatmul.mubr.f32.gmra.mxu0 %v2216
    %v2289 = vpop.f32.mrf.mxu0
    %v2290 = vadd.f32 0.0, %v2289
    %v2291 = vpop.f32.mrf.mxu0
    %2292 = vdwg.mxu0
    %v2293 = vadd.f32 %v1767, %v2285
    %v2294 = vadd.f32 %v1768, %v2290
    %v2295 = vadd.f32 %v137, %v2293
    %v2296 = vadd.f32 %v138, %v2294
    %v2297 = vsel %vm189, %v2295, 0.0
    %2298 = vadd.xlane.f32.xlu0 %v2297
    %v2299 = vpop.xlane.xlu0 %2298
    %v2300 = vsel %vm189, %v2296, 0.0
    %2301 = vadd.xlane.f32.xlu0 %v2300
    %v2302 = vpop.xlane.xlu0 %2301
    %v2303 = vrcp.pop 32.0
    %v2304 = vmul.f32 %v2299, %v2303
    %v2305 = vmul.f32 %v2302, %v2303
    %v2306 = vsub.f32 %v2295, %v2304
    %v2307 = vsub.f32 %v2296, %v2305
    %v2308 = vmul.f32 %v2306, %v2306
    %v2309 = vmul.f32 %v2307, %v2307
    %v2310 = vsel %vm189, %v2308, 0.0
    %2311 = vadd.xlane.f32.xlu0 %v2310
    %v2312 = vpop.xlane.xlu0 %2311
    %v2313 = vsel %vm189, %v2309, 0.0
    %2314 = vadd.xlane.f32.xlu0 %v2313
    %v2315 = vpop.xlane.xlu0 %2314
    %v2316 = vmul.f32 %v2312, %v2303
    %v2317 = vmul.f32 %v2315, %v2303
    %v2318 = vadd.f32 %v2316, 1e-05
    %v2319 = vadd.f32 %v2317, 1e-05
    %v2320 = vrsqrt.pop %v2318
    %v2321 = vrsqrt.pop %v2319
    %v2322 = vmul.f32 %v2306, %v2320
    %v2323 = vmul.f32 %v2307, %v2321
    %v2324 = vld [vmem:[%s2 + $0x4e] sm:$0x1]
    %v2325 = vlaneseq
    %v2326 = vshrl.u32 %v2325, 7
    %v2327 = vsub.s32 0, %v2326
    %v2328 = vrot.slane %v2324, %v2327
    %v2329 = vmul.f32 %v2322, %v2328
    %v2330 = vmul.f32 %v2323, %v2328
    %v2331 = vld [vmem:[%s2 + $0x4f] sm:$0x1]
    %v2332 = vlaneseq
    %v2333 = vshrl.u32 %v2332, 7
    %v2334 = vsub.s32 0, %v2333
    %v2335 = vrot.slane %v2331, %v2334
    %v2336 = vadd.f32 %v2329, %v2335
    %v2337 = vadd.f32 %v2330, %v2335
    %v2338 = vld [vmem:[#allocation2 + $0x88] sm:$0xff]
    %v2339 = vld [vmem:[#allocation2 + $0x90] sm:$0xff]
    %v2340 = vld [vmem:[#allocation2 + $0x98] sm:$0xff]
    %v2341 = vld [vmem:[#allocation2 + $0xa0] sm:$0xff]
    %v2342 = vld [vmem:[%s2 + $0x50] sm:$0x1]
    %v2343 = vlaneseq
    %v2344 = vshrl.u32 %v2343, 7
    %v2345 = vsub.s32 0, %v2344
    %v2346 = vrot.slane %v2342, %v2345
    %v2348 = vsel %vm189, %v2336, 0
    %v2351 = vsel %vm189, %v2337, 0
    %2353 = vmatprep.subr.mxu0 0.0
    %2354 = vmatpush1.msra.mxu0 0.0
    %2355 = vmatprep.subr.mxu0 0.0
    %2356 = vmatpush1.msra.mxu0 0.0
    %2357 = vmatprep.subr.mxu0 0.0
    %2358 = vmatpush1.msra.mxu0 0.0
    %2359 = vmatprep.subr.mxu0 0.0
    %2360 = vmatpush1.msra.mxu0 0.0
    %2361 = vmatprep.subr.mxu0 0.0
    %2362 = vmatpush1.msra.mxu0 0.0
    %2363 = vmatprep.subr.mxu0 0.0
    %2364 = vmatpush1.msra.mxu0 0.0
    %2365 = vmatprep.subr.mxu0 0.0
    %2366 = vmatpush1.msra.mxu0 0.0
    %2367 = vmatprep.subr.mxu0 0.0
    %2368 = vmatpush1.msra.mxu0 0.0
    %2369 = vmatprep.subr.mxu0 0.0
    %2370 = vmatpush1.msra.mxu0 0.0
    %2371 = vmatprep.subr.mxu0 0.0
    %2372 = vmatpush1.msra.mxu0 0.0
    %2373 = vmatprep.subr.mxu0 0.0
    %2374 = vmatpush1.msra.mxu0 0.0
    %2375 = vmatprep.subr.mxu0 0.0
    %2376 = vmatpush1.msra.mxu0 0.0
    %2377 = vmatprep.subr.mxu0 0.0
    %2378 = vmatpush1.msra.mxu0 %v2341
    %2379 = vmatprep.subr.mxu0 0.0
    %2380 = vmatpush1.msra.mxu0 %v2340
    %2381 = vmatprep.subr.mxu0 0.0
    %2382 = vmatpush1.msra.mxu0 %v2339
    %2383 = vmatprep.subr.mxu0 0.0
    %2384 = vmatpush1.msra.mxu0 %v2338
    %2385 = vmatprep.subr.mxu0 0.0
    %2386 = vmatpush2.msra.mxu0 0.0
    %2387 = vmatprep.subr.mxu0 0.0
    %2388 = vmatpush2.msra.mxu0 0.0
    %2389 = vmatprep.subr.mxu0 0.0
    %2390 = vmatpush2.msra.mxu0 0.0
    %2391 = vmatprep.subr.mxu0 0.0
    %2392 = vmatpush2.msra.mxu0 0.0
    %2393 = vmatprep.subr.mxu0 0.0
    %2394 = vmatpush2.msra.mxu0 0.0
    %2395 = vmatprep.subr.mxu0 0.0
    %2396 = vmatpush2.msra.mxu0 0.0
    %2397 = vmatprep.subr.mxu0 0.0
    %2398 = vmatpush2.msra.mxu0 0.0
    %2399 = vmatprep.subr.mxu0 0.0
    %2400 = vmatpush2.msra.mxu0 0.0
    %2401 = vmatprep.subr.mxu0 0.0
    %2402 = vmatpush2.msra.mxu0 0.0
    %2403 = vmatprep.subr.mxu0 0.0
    %2404 = vmatpush2.msra.mxu0 0.0
    %2405 = vmatprep.subr.mxu0 0.0
    %2406 = vmatpush2.msra.mxu0 0.0
    %2407 = vmatprep.subr.mxu0 0.0
    %2408 = vmatpush2.msra.mxu0 0.0
    %2409 = vmatprep.subr.mxu0 0.0
    %2410 = vmatpush2.msra.mxu0 0.0
    %2411 = vmatprep.subr.mxu0 0.0
    %2412 = vmatpush2.msra.mxu0 0.0
    %2413 = vmatprep.subr.mxu0 0.0
    %2414 = vmatpush2.msra.mxu0 0.0
    %2415 = vmatprep.subr.mxu0 0.0
    %2416 = vmatpush2.msra.mxu0 0.0
    %2417 = vmatprep.mubr.f32.mxu0 0.0
    %2418 = vmatmul.mubr.f32.gmra.mxu0 %v2348
    %v2419 = vpop.f32.mrf.mxu0
    %v2420 = vadd.f32 %v2346, %v2419
    %v2421 = vpop.f32.mrf.mxu0
    %2422 = vmatprep.mubr.f32.mxu0 0.0
    %2423 = vmatmul.mubr.f32.gmra.mxu0 %v2351
    %v2424 = vpop.f32.mrf.mxu0
    %v2425 = vadd.f32 %v2346, %v2424
    %v2426 = vpop.f32.mrf.mxu0
    %2427 = vdwg.mxu0
    %v2428 = vmax.f32 %v2420, 0.0
    %v2429 = vmax.f32 %v2425, 0.0
    %v2430 = vld [vmem:[#allocation2 + $0xa8] sm:$0xff]
    %v2431 = vld [vmem:[#allocation2 + $0xb0] sm:$0xff]
    %v2432 = vld [vmem:[#allocation2 + $0xb8] sm:$0xff]
    %v2433 = vld [vmem:[#allocation2 + $0xc0] sm:$0xff]
    %v2434 = vld [vmem:[#allocation2 + $0xc8] sm:$0xff]
    %v2435 = vld [vmem:[#allocation2 + $0xd0] sm:$0xff]
    %v2436 = vld [vmem:[#allocation2 + $0xd8] sm:$0xff]
    %v2437 = vld [vmem:[#allocation2 + $0xe0] sm:$0xff]
    %v2438 = vld [vmem:[%s2 + $0x51] sm:$0x1]
    %v2439 = vlaneseq
    %v2440 = vshrl.u32 %v2439, 7
    %v2441 = vsub.s32 0, %v2440
    %v2442 = vrot.slane %v2438, %v2441
    %vm2443 = vcmask 523264
    %v2445 = vsel %vm2443, %v2428, 0
    %v2448 = vsel %vm2443, %v2429, 0
    %2450 = vmatprep.subr.mxu0 0.0
    %2451 = vmatpush1.msra.mxu0 0.0
    %2452 = vmatprep.subr.mxu0 0.0
    %2453 = vmatpush1.msra.mxu0 0.0
    %2454 = vmatprep.subr.mxu0 0.0
    %2455 = vmatpush1.msra.mxu0 0.0
    %2456 = vmatprep.subr.mxu0 0.0
    %2457 = vmatpush1.msra.mxu0 0.0
    %2458 = vmatprep.subr.mxu0 0.0
    %2459 = vmatpush1.msra.mxu0 0.0
    %2460 = vmatprep.subr.mxu0 0.0
    %2461 = vmatpush1.msra.mxu0 0.0
    %2462 = vmatprep.subr.mxu0 0.0
    %2463 = vmatpush1.msra.mxu0 0.0
    %2464 = vmatprep.subr.mxu0 0.0
    %2465 = vmatpush1.msra.mxu0 0.0
    %2466 = vmatprep.subr.mxu0 0.0
    %2467 = vmatpush1.msra.mxu0 %v2437
    %2468 = vmatprep.subr.mxu0 0.0
    %2469 = vmatpush1.msra.mxu0 %v2436
    %2470 = vmatprep.subr.mxu0 0.0
    %2471 = vmatpush1.msra.mxu0 %v2435
    %2472 = vmatprep.subr.mxu0 0.0
    %2473 = vmatpush1.msra.mxu0 %v2434
    %2474 = vmatprep.subr.mxu0 0.0
    %2475 = vmatpush1.msra.mxu0 %v2433
    %2476 = vmatprep.subr.mxu0 0.0
    %2477 = vmatpush1.msra.mxu0 %v2432
    %2478 = vmatprep.subr.mxu0 0.0
    %2479 = vmatpush1.msra.mxu0 %v2431
    %2480 = vmatprep.subr.mxu0 0.0
    %2481 = vmatpush1.msra.mxu0 %v2430
    %2482 = vmatprep.subr.mxu0 0.0
    %2483 = vmatpush2.msra.mxu0 0.0
    %2484 = vmatprep.subr.mxu0 0.0
    %2485 = vmatpush2.msra.mxu0 0.0
    %2486 = vmatprep.subr.mxu0 0.0
    %2487 = vmatpush2.msra.mxu0 0.0
    %2488 = vmatprep.subr.mxu0 0.0
    %2489 = vmatpush2.msra.mxu0 0.0
    %2490 = vmatprep.subr.mxu0 0.0
    %2491 = vmatpush2.msra.mxu0 0.0
    %2492 = vmatprep.subr.mxu0 0.0
    %2493 = vmatpush2.msra.mxu0 0.0
    %2494 = vmatprep.subr.mxu0 0.0
    %2495 = vmatpush2.msra.mxu0 0.0
    %2496 = vmatprep.subr.mxu0 0.0
    %2497 = vmatpush2.msra.mxu0 0.0
    %2498 = vmatprep.subr.mxu0 0.0
    %2499 = vmatpush2.msra.mxu0 0.0
    %2500 = vmatprep.subr.mxu0 0.0
    %2501 = vmatpush2.msra.mxu0 0.0
    %2502 = vmatprep.subr.mxu0 0.0
    %2503 = vmatpush2.msra.mxu0 0.0
    %2504 = vmatprep.subr.mxu0 0.0
    %2505 = vmatpush2.msra.mxu0 0.0
    %2506 = vmatprep.subr.mxu0 0.0
    %2507 = vmatpush2.msra.mxu0 0.0
    %2508 = vmatprep.subr.mxu0 0.0
    %2509 = vmatpush2.msra.mxu0 0.0
    %2510 = vmatprep.subr.mxu0 0.0
    %2511 = vmatpush2.msra.mxu0 0.0
    %2512 = vmatprep.subr.mxu0 0.0
    %2513 = vmatpush2.msra.mxu0 0.0
    %2514 = vmatprep.mubr.f32.mxu0 0.0
    %2515 = vmatmul.mubr.f32.gmra.mxu0 %v2445
    %v2516 = vpop.f32.mrf.mxu0
    %v2517 = vadd.f32 %v2442, %v2516
    %v2518 = vpop.f32.mrf.mxu0
    %2519 = vmatprep.mubr.f32.mxu0 0.0
    %2520 = vmatmul.mubr.f32.gmra.mxu0 %v2448
    %v2521 = vpop.f32.mrf.mxu0
    %v2522 = vadd.f32 %v2442, %v2521
    %v2523 = vpop.f32.mrf.mxu0
    %2524 = vdwg.mxu0
    %v2525 = vadd.f32 %v2336, %v2517
    %v2526 = vadd.f32 %v2337, %v2522
    %v2527 = vsel %vm189, %v2525, 0.0
    %2528 = vadd.xlane.f32.xlu0 %v2527
    %v2529 = vpop.xlane.xlu0 %2528
    %v2530 = vsel %vm189, %v2526, 0.0
    %2531 = vadd.xlane.f32.xlu0 %v2530
    %v2532 = vpop.xlane.xlu0 %2531
    %v2533 = vmul.f32 %v2529, %v2303
    %v2534 = vmul.f32 %v2532, %v2303
    %v2535 = vsub.f32 %v2525, %v2533
    %v2536 = vsub.f32 %v2526, %v2534
    %v2537 = vmul.f32 %v2535, %v2535
    %v2538 = vmul.f32 %v2536, %v2536
    %v2539 = vsel %vm189, %v2537, 0.0
    %2540 = vadd.xlane.f32.xlu0 %v2539
    %v2541 = vpop.xlane.xlu0 %2540
    %v2542 = vsel %vm189, %v2538, 0.0
    %2543 = vadd.xlane.f32.xlu0 %v2542
    %v2544 = vpop.xlane.xlu0 %2543
    %v2545 = vmul.f32 %v2541, %v2303
    %v2546 = vmul.f32 %v2544, %v2303
    %v2547 = vadd.f32 %v2545, 1e-05
    %v2548 = vadd.f32 %v2546, 1e-05
    %v2549 = vrsqrt.pop %v2547
    %v2550 = vrsqrt.pop %v2548
    %v2551 = vmul.f32 %v2535, %v2549
    %v2552 = vmul.f32 %v2536, %v2550
    %v2553 = vld [vmem:[%s2 + $0x52] sm:$0x1]
    %v2554 = vlaneseq
    %v2555 = vshrl.u32 %v2554, 7
    %v2556 = vsub.s32 0, %v2555
    %v2557 = vrot.slane %v2553, %v2556
    %v2558 = vmul.f32 %v2551, %v2557
    %v2559 = vmul.f32 %v2552, %v2557
    %v2560 = vld [vmem:[%s2 + $0x53] sm:$0x1]
    %v2561 = vlaneseq
    %v2562 = vshrl.u32 %v2561, 7
    %v2563 = vsub.s32 0, %v2562
    %v2564 = vrot.slane %v2560, %v2563
    %v2565 = vadd.f32 %v2558, %v2564
    %v2566 = vadd.f32 %v2559, %v2564
    %v2567 = vsel %vm189, %v2565, 0.0
    %2568 = vadd.xlane.f32.xlu0 %v2567
    %v2569 = vpop.xlane.xlu0 %2568
    %v2570 = vsel %vm189, %v2566, 0.0
    %2571 = vadd.xlane.f32.xlu0 %v2570
    %v2572 = vpop.xlane.xlu0 %2571
    %v2573 = vmul.f32 %v2569, %v2303
    %v2574 = vmul.f32 %v2572, %v2303
    %v2575 = vsub.f32 %v2565, %v2573
    %v2576 = vsub.f32 %v2566, %v2574
    %v2577 = vmul.f32 %v2575, %v2575
    %v2578 = vmul.f32 %v2576, %v2576
    %v2579 = vsel %vm189, %v2577, 0.0
    %2580 = vadd.xlane.f32.xlu0 %v2579
    %v2581 = vpop.xlane.xlu0 %2580
    %v2582 = vsel %vm189, %v2578, 0.0
    %2583 = vadd.xlane.f32.xlu0 %v2582
    %v2584 = vpop.xlane.xlu0 %2583
    %v2585 = vmul.f32 %v2581, %v2303
    %v2586 = vmul.f32 %v2584, %v2303
    %v2587 = vadd.f32 %v2585, 1e-05
    %v2588 = vadd.f32 %v2586, 1e-05
    %v2589 = vrsqrt.pop %v2587
    %v2590 = vrsqrt.pop %v2588
    %v2591 = vmul.f32 %v2575, %v2589
    %v2592 = vmul.f32 %v2576, %v2590
    %v2593 = vld [vmem:[%s2 + $0x54] sm:$0x1]
    %v2594 = vlaneseq
    %v2595 = vshrl.u32 %v2594, 7
    %v2596 = vsub.s32 0, %v2595
    %v2597 = vrot.slane %v2593, %v2596
    %v2598 = vmul.f32 %v2591, %v2597
    %v2599 = vmul.f32 %v2592, %v2597
    %v2600 = vld [vmem:[%s2 + $0x55] sm:$0x1]
    %v2601 = vlaneseq
    %v2602 = vshrl.u32 %v2601, 7
    %v2603 = vsub.s32 0, %v2602
    %v2604 = vrot.slane %v2600, %v2603
    %v2605 = vadd.f32 %v2598, %v2604
    %v2606 = vadd.f32 %v2599, %v2604
    %v2607 = vld [vmem:[%s2 + $0x62] sm:$0x1]
    %v2608 = vlaneseq
    %v2609 = vshrl.u32 %v2608, 7
    %v2610 = vsub.s32 0, %v2609
    %v2611 = vrot.slane %v2607, %v2610
    %v2612 = vld [vmem:[#allocation2 + $0xe8] sm:$0xff]
    %v2613 = vld [vmem:[%s2 + $0x56] sm:$0x1]
    %v2614 = vlaneseq
    %v2615 = vshrl.u32 %v2614, 7
    %v2616 = vsub.s32 0, %v2615
    %v2617 = vrot.slane %v2613, %v2616
    %v2619 = vsel %vm189, %v139, 0
    %v2622 = vsel %vm189, %v140, 0
    %v2625 = vsel %vm189, %v2612, 0
    %2627 = vmatprep.subr.mxu0 0.0
    %2628 = vmatpush1.xpose.msra.mxu0 0.0
    %2629 = vmatprep.subr.mxu0 0.0
    %2630 = vmatpush1.xpose.msra.mxu0 0.0
    %2631 = vmatprep.subr.mxu0 0.0
    %2632 = vmatpush1.xpose.msra.mxu0 0.0
    %2633 = vmatprep.subr.mxu0 0.0
    %2634 = vmatpush1.xpose.msra.mxu0 0.0
    %2635 = vmatprep.subr.mxu0 0.0
    %2636 = vmatpush1.xpose.msra.mxu0 0.0
    %2637 = vmatprep.subr.mxu0 0.0
    %2638 = vmatpush1.xpose.msra.mxu0 0.0
    %2639 = vmatprep.subr.mxu0 0.0
    %2640 = vmatpush1.xpose.msra.mxu0 0.0
    %2641 = vmatprep.subr.mxu0 0.0
    %2642 = vmatpush1.xpose.msra.mxu0 0.0
    %2643 = vmatprep.subr.mxu0 0.0
    %2644 = vmatpush1.xpose.msra.mxu0 0.0
    %2645 = vmatprep.subr.mxu0 0.0
    %2646 = vmatpush1.xpose.msra.mxu0 0.0
    %2647 = vmatprep.subr.mxu0 0.0
    %2648 = vmatpush1.xpose.msra.mxu0 0.0
    %2649 = vmatprep.subr.mxu0 0.0
    %2650 = vmatpush1.xpose.msra.mxu0 0.0
    %2651 = vmatprep.subr.mxu0 0.0
    %2652 = vmatpush1.xpose.msra.mxu0 0.0
    %2653 = vmatprep.subr.mxu0 0.0
    %2654 = vmatpush1.xpose.msra.mxu0 0.0
    %2655 = vmatprep.subr.mxu0 0.0
    %2656 = vmatpush1.xpose.msra.mxu0 0.0
    %2657 = vmatprep.subr.mxu0 0.0
    %2658 = vmatpush1.xpose.msra.mxu0 %v2625
    %2659 = vmatprep.subr.mxu0 0.0
    %2660 = vmatpush2.xpose.msra.mxu0 0.0
    %2661 = vmatprep.subr.mxu0 0.0
    %2662 = vmatpush2.xpose.msra.mxu0 0.0
    %2663 = vmatprep.subr.mxu0 0.0
    %2664 = vmatpush2.xpose.msra.mxu0 0.0
    %2665 = vmatprep.subr.mxu0 0.0
    %2666 = vmatpush2.xpose.msra.mxu0 0.0
    %2667 = vmatprep.subr.mxu0 0.0
    %2668 = vmatpush2.xpose.msra.mxu0 0.0
    %2669 = vmatprep.subr.mxu0 0.0
    %2670 = vmatpush2.xpose.msra.mxu0 0.0
    %2671 = vmatprep.subr.mxu0 0.0
    %2672 = vmatpush2.xpose.msra.mxu0 0.0
    %2673 = vmatprep.subr.mxu0 0.0
    %2674 = vmatpush2.xpose.msra.mxu0 0.0
    %2675 = vmatprep.subr.mxu0 0.0
    %2676 = vmatpush2.xpose.msra.mxu0 0.0
    %2677 = vmatprep.subr.mxu0 0.0
    %2678 = vmatpush2.xpose.msra.mxu0 0.0
    %2679 = vmatprep.subr.mxu0 0.0
    %2680 = vmatpush2.xpose.msra.mxu0 0.0
    %2681 = vmatprep.subr.mxu0 0.0
    %2682 = vmatpush2.xpose.msra.mxu0 0.0
    %2683 = vmatprep.subr.mxu0 0.0
    %2684 = vmatpush2.xpose.msra.mxu0 0.0
    %2685 = vmatprep.subr.mxu0 0.0
    %2686 = vmatpush2.xpose.msra.mxu0 0.0
    %2687 = vmatprep.subr.mxu0 0.0
    %2688 = vmatpush2.xpose.msra.mxu0 0.0
    %2689 = vmatprep.subr.mxu0 0.0
    %2690 = vmatpush2.xpose.msra.mxu0 0.0
    %2691 = vmatprep.mubr.f32.mxu0 0.0
    %2692 = vmatmul.mubr.f32.gmra.mxu0 %v2619
    %v2693 = vpop.f32.mrf.mxu0
    %v2694 = vadd.f32 %v2617, %v2693
    %v2695 = vpop.f32.mrf.mxu0
    %2696 = vmatprep.mubr.f32.mxu0 0.0
    %2697 = vmatmul.mubr.f32.gmra.mxu0 %v2622
    %v2698 = vpop.f32.mrf.mxu0
    %v2699 = vadd.f32 %v2617, %v2698
    %v2700 = vpop.f32.mrf.mxu0
    %2701 = vdwg.mxu0
    %v2702 = vld [vmem:[#allocation2 + $0x108] sm:$0xff]
    %v2703 = vld [vmem:[%s2 + $0x5a] sm:$0x1]
    %v2704 = vlaneseq
    %v2705 = vshrl.u32 %v2704, 7
    %v2706 = vsub.s32 0, %v2705
    %v2707 = vrot.slane %v2703, %v2706
    %v2709 = vsel %vm189, %v2702, 0
    %2711 = vmatprep.subr.mxu0 0.0
    %2712 = vmatpush1.xpose.msra.mxu0 0.0
    %2713 = vmatprep.subr.mxu0 0.0
    %2714 = vmatpush1.xpose.msra.mxu0 0.0
    %2715 = vmatprep.subr.mxu0 0.0
    %2716 = vmatpush1.xpose.msra.mxu0 0.0
    %2717 = vmatprep.subr.mxu0 0.0
    %2718 = vmatpush1.xpose.msra.mxu0 0.0
    %2719 = vmatprep.subr.mxu0 0.0
    %2720 = vmatpush1.xpose.msra.mxu0 0.0
    %2721 = vmatprep.subr.mxu0 0.0
    %2722 = vmatpush1.xpose.msra.mxu0 0.0
    %2723 = vmatprep.subr.mxu0 0.0
    %2724 = vmatpush1.xpose.msra.mxu0 0.0
    %2725 = vmatprep.subr.mxu0 0.0
    %2726 = vmatpush1.xpose.msra.mxu0 0.0
    %2727 = vmatprep.subr.mxu0 0.0
    %2728 = vmatpush1.xpose.msra.mxu0 0.0
    %2729 = vmatprep.subr.mxu0 0.0
    %2730 = vmatpush1.xpose.msra.mxu0 0.0
    %2731 = vmatprep.subr.mxu0 0.0
    %2732 = vmatpush1.xpose.msra.mxu0 0.0
    %2733 = vmatprep.subr.mxu0 0.0
    %2734 = vmatpush1.xpose.msra.mxu0 0.0
    %2735 = vmatprep.subr.mxu0 0.0
    %2736 = vmatpush1.xpose.msra.mxu0 0.0
    %2737 = vmatprep.subr.mxu0 0.0
    %2738 = vmatpush1.xpose.msra.mxu0 0.0
    %2739 = vmatprep.subr.mxu0 0.0
    %2740 = vmatpush1.xpose.msra.mxu0 0.0
    %2741 = vmatprep.subr.mxu0 0.0
    %2742 = vmatpush1.xpose.msra.mxu0 %v2709
    %2743 = vmatprep.subr.mxu0 0.0
    %2744 = vmatpush2.xpose.msra.mxu0 0.0
    %2745 = vmatprep.subr.mxu0 0.0
    %2746 = vmatpush2.xpose.msra.mxu0 0.0
    %2747 = vmatprep.subr.mxu0 0.0
    %2748 = vmatpush2.xpose.msra.mxu0 0.0
    %2749 = vmatprep.subr.mxu0 0.0
    %2750 = vmatpush2.xpose.msra.mxu0 0.0
    %2751 = vmatprep.subr.mxu0 0.0
    %2752 = vmatpush2.xpose.msra.mxu0 0.0
    %2753 = vmatprep.subr.mxu0 0.0
    %2754 = vmatpush2.xpose.msra.mxu0 0.0
    %2755 = vmatprep.subr.mxu0 0.0
    %2756 = vmatpush2.xpose.msra.mxu0 0.0
    %2757 = vmatprep.subr.mxu0 0.0
    %2758 = vmatpush2.xpose.msra.mxu0 0.0
    %2759 = vmatprep.subr.mxu0 0.0
    %2760 = vmatpush2.xpose.msra.mxu0 0.0
    %2761 = vmatprep.subr.mxu0 0.0
    %2762 = vmatpush2.xpose.msra.mxu0 0.0
    %2763 = vmatprep.subr.mxu0 0.0
    %2764 = vmatpush2.xpose.msra.mxu0 0.0
    %2765 = vmatprep.subr.mxu0 0.0
    %2766 = vmatpush2.xpose.msra.mxu0 0.0
    %2767 = vmatprep.subr.mxu0 0.0
    %2768 = vmatpush2.xpose.msra.mxu0 0.0
    %2769 = vmatprep.subr.mxu0 0.0
    %2770 = vmatpush2.xpose.msra.mxu0 0.0
    %2771 = vmatprep.subr.mxu0 0.0
    %2772 = vmatpush2.xpose.msra.mxu0 0.0
    %2773 = vmatprep.subr.mxu0 0.0
    %2774 = vmatpush2.xpose.msra.mxu0 0.0
    %2775 = vmatprep.mubr.f32.mxu0 0.0
    %2776 = vmatmul.mubr.f32.gmra.mxu0 %v2619
    %v2777 = vpop.f32.mrf.mxu0
    %v2778 = vadd.f32 %v2707, %v2777
    %v2779 = vpop.f32.mrf.mxu0
    %2780 = vmatprep.mubr.f32.mxu0 0.0
    %2781 = vmatmul.mubr.f32.gmra.mxu0 %v2622
    %v2782 = vpop.f32.mrf.mxu0
    %v2783 = vadd.f32 %v2707, %v2782
    %v2784 = vpop.f32.mrf.mxu0
    %2785 = vdwg.mxu0
    %v2786 = vld [vmem:[#allocation2 + $0x128] sm:$0xff]
    %v2787 = vld [vmem:[%s2 + $0x5e] sm:$0x1]
    %v2788 = vlaneseq
    %v2789 = vshrl.u32 %v2788, 7
    %v2790 = vsub.s32 0, %v2789
    %v2791 = vrot.slane %v2787, %v2790
    %v2793 = vsel %vm189, %v2786, 0
    %2795 = vmatprep.subr.mxu0 0.0
    %2796 = vmatpush1.xpose.msra.mxu0 0.0
    %2797 = vmatprep.subr.mxu0 0.0
    %2798 = vmatpush1.xpose.msra.mxu0 0.0
    %2799 = vmatprep.subr.mxu0 0.0
    %2800 = vmatpush1.xpose.msra.mxu0 0.0
    %2801 = vmatprep.subr.mxu0 0.0
    %2802 = vmatpush1.xpose.msra.mxu0 0.0
    %2803 = vmatprep.subr.mxu0 0.0
    %2804 = vmatpush1.xpose.msra.mxu0 0.0
    %2805 = vmatprep.subr.mxu0 0.0
    %2806 = vmatpush1.xpose.msra.mxu0 0.0
    %2807 = vmatprep.subr.mxu0 0.0
    %2808 = vmatpush1.xpose.msra.mxu0 0.0
    %2809 = vmatprep.subr.mxu0 0.0
    %2810 = vmatpush1.xpose.msra.mxu0 0.0
    %2811 = vmatprep.subr.mxu0 0.0
    %2812 = vmatpush1.xpose.msra.mxu0 0.0
    %2813 = vmatprep.subr.mxu0 0.0
    %2814 = vmatpush1.xpose.msra.mxu0 0.0
    %2815 = vmatprep.subr.mxu0 0.0
    %2816 = vmatpush1.xpose.msra.mxu0 0.0
    %2817 = vmatprep.subr.mxu0 0.0
    %2818 = vmatpush1.xpose.msra.mxu0 0.0
    %2819 = vmatprep.subr.mxu0 0.0
    %2820 = vmatpush1.xpose.msra.mxu0 0.0
    %2821 = vmatprep.subr.mxu0 0.0
    %2822 = vmatpush1.xpose.msra.mxu0 0.0
    %2823 = vmatprep.subr.mxu0 0.0
    %2824 = vmatpush1.xpose.msra.mxu0 0.0
    %2825 = vmatprep.subr.mxu0 0.0
    %2826 = vmatpush1.xpose.msra.mxu0 %v2793
    %2827 = vmatprep.subr.mxu0 0.0
    %2828 = vmatpush2.xpose.msra.mxu0 0.0
    %2829 = vmatprep.subr.mxu0 0.0
    %2830 = vmatpush2.xpose.msra.mxu0 0.0
    %2831 = vmatprep.subr.mxu0 0.0
    %2832 = vmatpush2.xpose.msra.mxu0 0.0
    %2833 = vmatprep.subr.mxu0 0.0
    %2834 = vmatpush2.xpose.msra.mxu0 0.0
    %2835 = vmatprep.subr.mxu0 0.0
    %2836 = vmatpush2.xpose.msra.mxu0 0.0
    %2837 = vmatprep.subr.mxu0 0.0
    %2838 = vmatpush2.xpose.msra.mxu0 0.0
    %2839 = vmatprep.subr.mxu0 0.0
    %2840 = vmatpush2.xpose.msra.mxu0 0.0
    %2841 = vmatprep.subr.mxu0 0.0
    %2842 = vmatpush2.xpose.msra.mxu0 0.0
    %2843 = vmatprep.subr.mxu0 0.0
    %2844 = vmatpush2.xpose.msra.mxu0 0.0
    %2845 = vmatprep.subr.mxu0 0.0
    %2846 = vmatpush2.xpose.msra.mxu0 0.0
    %2847 = vmatprep.subr.mxu0 0.0
    %2848 = vmatpush2.xpose.msra.mxu0 0.0
    %2849 = vmatprep.subr.mxu0 0.0
    %2850 = vmatpush2.xpose.msra.mxu0 0.0
    %2851 = vmatprep.subr.mxu0 0.0
    %2852 = vmatpush2.xpose.msra.mxu0 0.0
    %2853 = vmatprep.subr.mxu0 0.0
    %2854 = vmatpush2.xpose.msra.mxu0 0.0
    %2855 = vmatprep.subr.mxu0 0.0
    %2856 = vmatpush2.xpose.msra.mxu0 0.0
    %2857 = vmatprep.subr.mxu0 0.0
    %2858 = vmatpush2.xpose.msra.mxu0 0.0
    %2859 = vmatprep.mubr.f32.mxu0 0.0
    %2860 = vmatmul.mubr.f32.gmra.mxu0 %v2619
    %v2861 = vpop.f32.mrf.mxu0
    %v2862 = vadd.f32 %v2791, %v2861
    %v2863 = vpop.f32.mrf.mxu0
    %2864 = vmatprep.mubr.f32.mxu0 0.0
    %2865 = vmatmul.mubr.f32.gmra.mxu0 %v2622
    %v2866 = vpop.f32.mrf.mxu0
    %v2867 = vadd.f32 %v2791, %v2866
    %v2868 = vpop.f32.mrf.mxu0
    %2869 = vdwg.mxu0
    %v2871 = vsel %vm38, %v2694, 0
    %v2874 = vsel %vm38, %v2699, 0
    %v2877 = vsel %vm38, %v2778, 0
    %v2880 = vsel %vm38, %v2783, 0
    %2882 = vmatprep.subr.mxu0 0.0
    %2883 = vmatpush1.xpose.msra.mxu0 0.0
    %2884 = vmatprep.subr.mxu0 0.0
    %2885 = vmatpush1.xpose.msra.mxu0 0.0
    %2886 = vmatprep.subr.mxu0 0.0
    %2887 = vmatpush1.xpose.msra.mxu0 0.0
    %2888 = vmatprep.subr.mxu0 0.0
    %2889 = vmatpush1.xpose.msra.mxu0 0.0
    %2890 = vmatprep.subr.mxu0 0.0
    %2891 = vmatpush1.xpose.msra.mxu0 0.0
    %2892 = vmatprep.subr.mxu0 0.0
    %2893 = vmatpush1.xpose.msra.mxu0 0.0
    %2894 = vmatprep.subr.mxu0 0.0
    %2895 = vmatpush1.xpose.msra.mxu0 0.0
    %2896 = vmatprep.subr.mxu0 0.0
    %2897 = vmatpush1.xpose.msra.mxu0 0.0
    %2898 = vmatprep.subr.mxu0 0.0
    %2899 = vmatpush1.xpose.msra.mxu0 0.0
    %2900 = vmatprep.subr.mxu0 0.0
    %2901 = vmatpush1.xpose.msra.mxu0 0.0
    %2902 = vmatprep.subr.mxu0 0.0
    %2903 = vmatpush1.xpose.msra.mxu0 0.0
    %2904 = vmatprep.subr.mxu0 0.0
    %2905 = vmatpush1.xpose.msra.mxu0 0.0
    %2906 = vmatprep.subr.mxu0 0.0
    %2907 = vmatpush1.xpose.msra.mxu0 0.0
    %2908 = vmatprep.subr.mxu0 0.0
    %2909 = vmatpush1.xpose.msra.mxu0 0.0
    %2910 = vmatprep.subr.mxu0 0.0
    %2911 = vmatpush1.xpose.msra.mxu0 %v2880
    %2912 = vmatprep.subr.mxu0 0.0
    %2913 = vmatpush1.xpose.msra.mxu0 %v2877
    %2914 = vmatprep.subr.mxu0 0.0
    %2915 = vmatpush2.xpose.msra.mxu0 0.0
    %2916 = vmatprep.subr.mxu0 0.0
    %2917 = vmatpush2.xpose.msra.mxu0 0.0
    %2918 = vmatprep.subr.mxu0 0.0
    %2919 = vmatpush2.xpose.msra.mxu0 0.0
    %2920 = vmatprep.subr.mxu0 0.0
    %2921 = vmatpush2.xpose.msra.mxu0 0.0
    %2922 = vmatprep.subr.mxu0 0.0
    %2923 = vmatpush2.xpose.msra.mxu0 0.0
    %2924 = vmatprep.subr.mxu0 0.0
    %2925 = vmatpush2.xpose.msra.mxu0 0.0
    %2926 = vmatprep.subr.mxu0 0.0
    %2927 = vmatpush2.xpose.msra.mxu0 0.0
    %2928 = vmatprep.subr.mxu0 0.0
    %2929 = vmatpush2.xpose.msra.mxu0 0.0
    %2930 = vmatprep.subr.mxu0 0.0
    %2931 = vmatpush2.xpose.msra.mxu0 0.0
    %2932 = vmatprep.subr.mxu0 0.0
    %2933 = vmatpush2.xpose.msra.mxu0 0.0
    %2934 = vmatprep.subr.mxu0 0.0
    %2935 = vmatpush2.xpose.msra.mxu0 0.0
    %2936 = vmatprep.subr.mxu0 0.0
    %2937 = vmatpush2.xpose.msra.mxu0 0.0
    %2938 = vmatprep.subr.mxu0 0.0
    %2939 = vmatpush2.xpose.msra.mxu0 0.0
    %2940 = vmatprep.subr.mxu0 0.0
    %2941 = vmatpush2.xpose.msra.mxu0 0.0
    %2942 = vmatprep.subr.mxu0 0.0
    %2943 = vmatpush2.xpose.msra.mxu0 0.0
    %2944 = vmatprep.subr.mxu0 0.0
    %2945 = vmatpush2.xpose.msra.mxu0 0.0
    %2946 = vmatprep.mubr.f32.mxu0 0.0
    %2947 = vmatmul.mubr.f32.gmra.mxu0 %v2871
    %v2948 = vpop.f32.mrf.mxu0
    %v2949 = vadd.f32 %v176, %v2948
    %v2950 = vpop.f32.mrf.mxu0
    %2951 = vmatprep.mubr.f32.mxu0 0.0
    %2952 = vmatmul.mubr.f32.gmra.mxu0 %v2874
    %v2953 = vpop.f32.mrf.mxu0
    %v2954 = vadd.f32 %v177, %v2953
    %v2955 = vpop.f32.mrf.mxu0
    %2956 = vdwg.mxu0
    %v2957 = vsel %vm529, %v2949, -inf
    %2958 = vmax.xlane.f32.xlu0 %v2957
    %v2959 = vpop.xlane.xlu0 %2958
    %v2960 = vsel %vm529, %v2954, -inf
    %2961 = vmax.xlane.f32.xlu0 %v2960
    %v2962 = vpop.xlane.xlu0 %2961
    %v2963 = vsub.f32 %v2949, %v2959
    %v2964 = vsub.f32 %v2954, %v2962
    %v2965 = vmul.f32 %v2963, 1.442695
    %v2966 = vpow.pop %v2965
    %v2967 = vmul.f32 %v2964, 1.442695
    %v2968 = vpow.pop %v2967
    %v2969 = vsel %vm529, %v2966, 0.0
    %2970 = vadd.xlane.f32.xlu0 %v2969
    %v2971 = vpop.xlane.xlu0 %2970
    %v2972 = vsel %vm529, %v2968, 0.0
    %2973 = vadd.xlane.f32.xlu0 %v2972
    %v2974 = vpop.xlane.xlu0 %2973
    %v2975 = vrcp.pop %v2971
    %v2976 = vrcp.pop %v2974
    %v2977 = vmul.f32 %v2966, %v2975
    %v2978 = vmul.f32 %v2968, %v2976
    %v2980 = vsel %vm529, %v2977, 0
    %v2983 = vsel %vm529, %v2978, 0
    %2985 = vmatprep.subr.mxu0 0.0
    %2986 = vmatpush1.msra.mxu0 0.0
    %2987 = vmatprep.subr.mxu0 0.0
    %2988 = vmatpush1.msra.mxu0 0.0
    %2989 = vmatprep.subr.mxu0 0.0
    %2990 = vmatpush1.msra.mxu0 0.0
    %2991 = vmatprep.subr.mxu0 0.0
    %2992 = vmatpush1.msra.mxu0 0.0
    %2993 = vmatprep.subr.mxu0 0.0
    %2994 = vmatpush1.msra.mxu0 0.0
    %2995 = vmatprep.subr.mxu0 0.0
    %2996 = vmatpush1.msra.mxu0 0.0
    %2997 = vmatprep.subr.mxu0 0.0
    %2998 = vmatpush1.msra.mxu0 0.0
    %2999 = vmatprep.subr.mxu0 0.0
    %3000 = vmatpush1.msra.mxu0 0.0
    %3001 = vmatprep.subr.mxu0 0.0
    %3002 = vmatpush1.msra.mxu0 0.0
    %3003 = vmatprep.subr.mxu0 0.0
    %3004 = vmatpush1.msra.mxu0 0.0
    %3005 = vmatprep.subr.mxu0 0.0
    %3006 = vmatpush1.msra.mxu0 0.0
    %3007 = vmatprep.subr.mxu0 0.0
    %3008 = vmatpush1.msra.mxu0 0.0
    %3009 = vmatprep.subr.mxu0 0.0
    %3010 = vmatpush1.msra.mxu0 0.0
    %3011 = vmatprep.subr.mxu0 0.0
    %3012 = vmatpush1.msra.mxu0 0.0
    %3013 = vmatprep.subr.mxu0 0.0
    %3014 = vmatpush1.msra.mxu0 %v2867
    %3015 = vmatprep.subr.mxu0 0.0
    %3016 = vmatpush1.msra.mxu0 %v2862
    %3017 = vmatprep.subr.mxu0 0.0
    %3018 = vmatpush2.msra.mxu0 0.0
    %3019 = vmatprep.subr.mxu0 0.0
    %3020 = vmatpush2.msra.mxu0 0.0
    %3021 = vmatprep.subr.mxu0 0.0
    %3022 = vmatpush2.msra.mxu0 0.0
    %3023 = vmatprep.subr.mxu0 0.0
    %3024 = vmatpush2.msra.mxu0 0.0
    %3025 = vmatprep.subr.mxu0 0.0
    %3026 = vmatpush2.msra.mxu0 0.0
    %3027 = vmatprep.subr.mxu0 0.0
    %3028 = vmatpush2.msra.mxu0 0.0
    %3029 = vmatprep.subr.mxu0 0.0
    %3030 = vmatpush2.msra.mxu0 0.0
    %3031 = vmatprep.subr.mxu0 0.0
    %3032 = vmatpush2.msra.mxu0 0.0
    %3033 = vmatprep.subr.mxu0 0.0
    %3034 = vmatpush2.msra.mxu0 0.0
    %3035 = vmatprep.subr.mxu0 0.0
    %3036 = vmatpush2.msra.mxu0 0.0
    %3037 = vmatprep.subr.mxu0 0.0
    %3038 = vmatpush2.msra.mxu0 0.0
    %3039 = vmatprep.subr.mxu0 0.0
    %3040 = vmatpush2.msra.mxu0 0.0
    %3041 = vmatprep.subr.mxu0 0.0
    %3042 = vmatpush2.msra.mxu0 0.0
    %3043 = vmatprep.subr.mxu0 0.0
    %3044 = vmatpush2.msra.mxu0 0.0
    %3045 = vmatprep.subr.mxu0 0.0
    %3046 = vmatpush2.msra.mxu0 0.0
    %3047 = vmatprep.subr.mxu0 0.0
    %3048 = vmatpush2.msra.mxu0 0.0
    %3049 = vmatprep.mubr.f32.mxu0 0.0
    %3050 = vmatmul.mubr.f32.gmra.mxu0 %v2980
    %v3051 = vpop.f32.mrf.mxu0
    %v3052 = vadd.f32 0.0, %v3051
    %v3053 = vpop.f32.mrf.mxu0
    %3054 = vmatprep.mubr.f32.mxu0 0.0
    %3055 = vmatmul.mubr.f32.gmra.mxu0 %v2983
    %v3056 = vpop.f32.mrf.mxu0
    %v3057 = vadd.f32 0.0, %v3056
    %v3058 = vpop.f32.mrf.mxu0
    %3059 = vdwg.mxu0
    %v3060 = vld [vmem:[#allocation2 + $0x148] sm:$0xff]
    %v3062 = vsel %vm38, %v3052, 0
    %v3065 = vsel %vm38, %v3057, 0
    %3067 = vmatprep.subr.mxu0 0.0
    %3068 = vmatpush1.msra.mxu0 0.0
    %3069 = vmatprep.subr.mxu0 0.0
    %3070 = vmatpush1.msra.mxu0 0.0
    %3071 = vmatprep.subr.mxu0 0.0
    %3072 = vmatpush1.msra.mxu0 0.0
    %3073 = vmatprep.subr.mxu0 0.0
    %3074 = vmatpush1.msra.mxu0 0.0
    %3075 = vmatprep.subr.mxu0 0.0
    %3076 = vmatpush1.msra.mxu0 0.0
    %3077 = vmatprep.subr.mxu0 0.0
    %3078 = vmatpush1.msra.mxu0 0.0
    %3079 = vmatprep.subr.mxu0 0.0
    %3080 = vmatpush1.msra.mxu0 0.0
    %3081 = vmatprep.subr.mxu0 0.0
    %3082 = vmatpush1.msra.mxu0 0.0
    %3083 = vmatprep.subr.mxu0 0.0
    %3084 = vmatpush1.msra.mxu0 0.0
    %3085 = vmatprep.subr.mxu0 0.0
    %3086 = vmatpush1.msra.mxu0 0.0
    %3087 = vmatprep.subr.mxu0 0.0
    %3088 = vmatpush1.msra.mxu0 0.0
    %3089 = vmatprep.subr.mxu0 0.0
    %3090 = vmatpush1.msra.mxu0 0.0
    %3091 = vmatprep.subr.mxu0 0.0
    %3092 = vmatpush1.msra.mxu0 0.0
    %3093 = vmatprep.subr.mxu0 0.0
    %3094 = vmatpush1.msra.mxu0 0.0
    %3095 = vmatprep.subr.mxu0 0.0
    %3096 = vmatpush1.msra.mxu0 0.0
    %3097 = vmatprep.subr.mxu0 0.0
    %3098 = vmatpush1.msra.mxu0 %v3060
    %3099 = vmatprep.subr.mxu0 0.0
    %3100 = vmatpush2.msra.mxu0 0.0
    %3101 = vmatprep.subr.mxu0 0.0
    %3102 = vmatpush2.msra.mxu0 0.0
    %3103 = vmatprep.subr.mxu0 0.0
    %3104 = vmatpush2.msra.mxu0 0.0
    %3105 = vmatprep.subr.mxu0 0.0
    %3106 = vmatpush2.msra.mxu0 0.0
    %3107 = vmatprep.subr.mxu0 0.0
    %3108 = vmatpush2.msra.mxu0 0.0
    %3109 = vmatprep.subr.mxu0 0.0
    %3110 = vmatpush2.msra.mxu0 0.0
    %3111 = vmatprep.subr.mxu0 0.0
    %3112 = vmatpush2.msra.mxu0 0.0
    %3113 = vmatprep.subr.mxu0 0.0
    %3114 = vmatpush2.msra.mxu0 0.0
    %3115 = vmatprep.subr.mxu0 0.0
    %3116 = vmatpush2.msra.mxu0 0.0
    %3117 = vmatprep.subr.mxu0 0.0
    %3118 = vmatpush2.msra.mxu0 0.0
    %3119 = vmatprep.subr.mxu0 0.0
    %3120 = vmatpush2.msra.mxu0 0.0
    %3121 = vmatprep.subr.mxu0 0.0
    %3122 = vmatpush2.msra.mxu0 0.0
    %3123 = vmatprep.subr.mxu0 0.0
    %3124 = vmatpush2.msra.mxu0 0.0
    %3125 = vmatprep.subr.mxu0 0.0
    %3126 = vmatpush2.msra.mxu0 0.0
    %3127 = vmatprep.subr.mxu0 0.0
    %3128 = vmatpush2.msra.mxu0 0.0
    %3129 = vmatprep.subr.mxu0 0.0
    %3130 = vmatpush2.msra.mxu0 0.0
    %3131 = vmatprep.mubr.f32.mxu0 0.0
    %3132 = vmatmul.mubr.f32.gmra.mxu0 %v3062
    %v3133 = vpop.f32.mrf.mxu0
    %v3134 = vadd.f32 0.0, %v3133
    %v3135 = vpop.f32.mrf.mxu0
    %3136 = vmatprep.mubr.f32.mxu0 0.0
    %3137 = vmatmul.mubr.f32.gmra.mxu0 %v3065
    %v3138 = vpop.f32.mrf.mxu0
    %v3139 = vadd.f32 0.0, %v3138
    %v3140 = vpop.f32.mrf.mxu0
    %3141 = vdwg.mxu0
    %v3142 = vadd.f32 %v2611, %v3134
    %v3143 = vadd.f32 %v2611, %v3139
    %v3144 = vld [vmem:[#allocation2 + $0xf0] sm:$0xff]
    %v3145 = vld [vmem:[%s2 + $0x57] sm:$0x1]
    %v3146 = vlaneseq
    %v3147 = vshrl.u32 %v3146, 7
    %v3148 = vsub.s32 0, %v3147
    %v3149 = vrot.slane %v3145, %v3148
    %v3151 = vsel %vm189, %v3144, 0
    %3153 = vmatprep.subr.mxu0 0.0
    %3154 = vmatpush1.xpose.msra.mxu0 0.0
    %3155 = vmatprep.subr.mxu0 0.0
    %3156 = vmatpush1.xpose.msra.mxu0 0.0
    %3157 = vmatprep.subr.mxu0 0.0
    %3158 = vmatpush1.xpose.msra.mxu0 0.0
    %3159 = vmatprep.subr.mxu0 0.0
    %3160 = vmatpush1.xpose.msra.mxu0 0.0
    %3161 = vmatprep.subr.mxu0 0.0
    %3162 = vmatpush1.xpose.msra.mxu0 0.0
    %3163 = vmatprep.subr.mxu0 0.0
    %3164 = vmatpush1.xpose.msra.mxu0 0.0
    %3165 = vmatprep.subr.mxu0 0.0
    %3166 = vmatpush1.xpose.msra.mxu0 0.0
    %3167 = vmatprep.subr.mxu0 0.0
    %3168 = vmatpush1.xpose.msra.mxu0 0.0
    %3169 = vmatprep.subr.mxu0 0.0
    %3170 = vmatpush1.xpose.msra.mxu0 0.0
    %3171 = vmatprep.subr.mxu0 0.0
    %3172 = vmatpush1.xpose.msra.mxu0 0.0
    %3173 = vmatprep.subr.mxu0 0.0
    %3174 = vmatpush1.xpose.msra.mxu0 0.0
    %3175 = vmatprep.subr.mxu0 0.0
    %3176 = vmatpush1.xpose.msra.mxu0 0.0
    %3177 = vmatprep.subr.mxu0 0.0
    %3178 = vmatpush1.xpose.msra.mxu0 0.0
    %3179 = vmatprep.subr.mxu0 0.0
    %3180 = vmatpush1.xpose.msra.mxu0 0.0
    %3181 = vmatprep.subr.mxu0 0.0
    %3182 = vmatpush1.xpose.msra.mxu0 0.0
    %3183 = vmatprep.subr.mxu0 0.0
    %3184 = vmatpush1.xpose.msra.mxu0 %v3151
    %3185 = vmatprep.subr.mxu0 0.0
    %3186 = vmatpush2.xpose.msra.mxu0 0.0
    %3187 = vmatprep.subr.mxu0 0.0
    %3188 = vmatpush2.xpose.msra.mxu0 0.0
    %3189 = vmatprep.subr.mxu0 0.0
    %3190 = vmatpush2.xpose.msra.mxu0 0.0
    %3191 = vmatprep.subr.mxu0 0.0
    %3192 = vmatpush2.xpose.msra.mxu0 0.0
    %3193 = vmatprep.subr.mxu0 0.0
    %3194 = vmatpush2.xpose.msra.mxu0 0.0
    %3195 = vmatprep.subr.mxu0 0.0
    %3196 = vmatpush2.xpose.msra.mxu0 0.0
    %3197 = vmatprep.subr.mxu0 0.0
    %3198 = vmatpush2.xpose.msra.mxu0 0.0
    %3199 = vmatprep.subr.mxu0 0.0
    %3200 = vmatpush2.xpose.msra.mxu0 0.0
    %3201 = vmatprep.subr.mxu0 0.0
    %3202 = vmatpush2.xpose.msra.mxu0 0.0
    %3203 = vmatprep.subr.mxu0 0.0
    %3204 = vmatpush2.xpose.msra.mxu0 0.0
    %3205 = vmatprep.subr.mxu0 0.0
    %3206 = vmatpush2.xpose.msra.mxu0 0.0
    %3207 = vmatprep.subr.mxu0 0.0
    %3208 = vmatpush2.xpose.msra.mxu0 0.0
    %3209 = vmatprep.subr.mxu0 0.0
    %3210 = vmatpush2.xpose.msra.mxu0 0.0
    %3211 = vmatprep.subr.mxu0 0.0
    %3212 = vmatpush2.xpose.msra.mxu0 0.0
    %3213 = vmatprep.subr.mxu0 0.0
    %3214 = vmatpush2.xpose.msra.mxu0 0.0
    %3215 = vmatprep.subr.mxu0 0.0
    %3216 = vmatpush2.xpose.msra.mxu0 0.0
    %3217 = vmatprep.mubr.f32.mxu0 0.0
    %3218 = vmatmul.mubr.f32.gmra.mxu0 %v2619
    %v3219 = vpop.f32.mrf.mxu0
    %v3220 = vadd.f32 %v3149, %v3219
    %v3221 = vpop.f32.mrf.mxu0
    %3222 = vmatprep.mubr.f32.mxu0 0.0
    %3223 = vmatmul.mubr.f32.gmra.mxu0 %v2622
    %v3224 = vpop.f32.mrf.mxu0
    %v3225 = vadd.f32 %v3149, %v3224
    %v3226 = vpop.f32.mrf.mxu0
    %3227 = vdwg.mxu0
    %v3228 = vld [vmem:[#allocation2 + $0x110] sm:$0xff]
    %v3229 = vld [vmem:[%s2 + $0x5b] sm:$0x1]
    %v3230 = vlaneseq
    %v3231 = vshrl.u32 %v3230, 7
    %v3232 = vsub.s32 0, %v3231
    %v3233 = vrot.slane %v3229, %v3232
    %v3235 = vsel %vm189, %v3228, 0
    %3237 = vmatprep.subr.mxu0 0.0
    %3238 = vmatpush1.xpose.msra.mxu0 0.0
    %3239 = vmatprep.subr.mxu0 0.0
    %3240 = vmatpush1.xpose.msra.mxu0 0.0
    %3241 = vmatprep.subr.mxu0 0.0
    %3242 = vmatpush1.xpose.msra.mxu0 0.0
    %3243 = vmatprep.subr.mxu0 0.0
    %3244 = vmatpush1.xpose.msra.mxu0 0.0
    %3245 = vmatprep.subr.mxu0 0.0
    %3246 = vmatpush1.xpose.msra.mxu0 0.0
    %3247 = vmatprep.subr.mxu0 0.0
    %3248 = vmatpush1.xpose.msra.mxu0 0.0
    %3249 = vmatprep.subr.mxu0 0.0
    %3250 = vmatpush1.xpose.msra.mxu0 0.0
    %3251 = vmatprep.subr.mxu0 0.0
    %3252 = vmatpush1.xpose.msra.mxu0 0.0
    %3253 = vmatprep.subr.mxu0 0.0
    %3254 = vmatpush1.xpose.msra.mxu0 0.0
    %3255 = vmatprep.subr.mxu0 0.0
    %3256 = vmatpush1.xpose.msra.mxu0 0.0
    %3257 = vmatprep.subr.mxu0 0.0
    %3258 = vmatpush1.xpose.msra.mxu0 0.0
    %3259 = vmatprep.subr.mxu0 0.0
    %3260 = vmatpush1.xpose.msra.mxu0 0.0
    %3261 = vmatprep.subr.mxu0 0.0
    %3262 = vmatpush1.xpose.msra.mxu0 0.0
    %3263 = vmatprep.subr.mxu0 0.0
    %3264 = vmatpush1.xpose.msra.mxu0 0.0
    %3265 = vmatprep.subr.mxu0 0.0
    %3266 = vmatpush1.xpose.msra.mxu0 0.0
    %3267 = vmatprep.subr.mxu0 0.0
    %3268 = vmatpush1.xpose.msra.mxu0 %v3235
    %3269 = vmatprep.subr.mxu0 0.0
    %3270 = vmatpush2.xpose.msra.mxu0 0.0
    %3271 = vmatprep.subr.mxu0 0.0
    %3272 = vmatpush2.xpose.msra.mxu0 0.0
    %3273 = vmatprep.subr.mxu0 0.0
    %3274 = vmatpush2.xpose.msra.mxu0 0.0
    %3275 = vmatprep.subr.mxu0 0.0
    %3276 = vmatpush2.xpose.msra.mxu0 0.0
    %3277 = vmatprep.subr.mxu0 0.0
    %3278 = vmatpush2.xpose.msra.mxu0 0.0
    %3279 = vmatprep.subr.mxu0 0.0
    %3280 = vmatpush2.xpose.msra.mxu0 0.0
    %3281 = vmatprep.subr.mxu0 0.0
    %3282 = vmatpush2.xpose.msra.mxu0 0.0
    %3283 = vmatprep.subr.mxu0 0.0
    %3284 = vmatpush2.xpose.msra.mxu0 0.0
    %3285 = vmatprep.subr.mxu0 0.0
    %3286 = vmatpush2.xpose.msra.mxu0 0.0
    %3287 = vmatprep.subr.mxu0 0.0
    %3288 = vmatpush2.xpose.msra.mxu0 0.0
    %3289 = vmatprep.subr.mxu0 0.0
    %3290 = vmatpush2.xpose.msra.mxu0 0.0
    %3291 = vmatprep.subr.mxu0 0.0
    %3292 = vmatpush2.xpose.msra.mxu0 0.0
    %3293 = vmatprep.subr.mxu0 0.0
    %3294 = vmatpush2.xpose.msra.mxu0 0.0
    %3295 = vmatprep.subr.mxu0 0.0
    %3296 = vmatpush2.xpose.msra.mxu0 0.0
    %3297 = vmatprep.subr.mxu0 0.0
    %3298 = vmatpush2.xpose.msra.mxu0 0.0
    %3299 = vmatprep.subr.mxu0 0.0
    %3300 = vmatpush2.xpose.msra.mxu0 0.0
    %3301 = vmatprep.mubr.f32.mxu0 0.0
    %3302 = vmatmul.mubr.f32.gmra.mxu0 %v2619
    %v3303 = vpop.f32.mrf.mxu0
    %v3304 = vadd.f32 %v3233, %v3303
    %v3305 = vpop.f32.mrf.mxu0
    %3306 = vmatprep.mubr.f32.mxu0 0.0
    %3307 = vmatmul.mubr.f32.gmra.mxu0 %v2622
    %v3308 = vpop.f32.mrf.mxu0
    %v3309 = vadd.f32 %v3233, %v3308
    %v3310 = vpop.f32.mrf.mxu0
    %3311 = vdwg.mxu0
    %v3312 = vld [vmem:[#allocation2 + $0x130] sm:$0xff]
    %v3313 = vld [vmem:[%s2 + $0x5f] sm:$0x1]
    %v3314 = vlaneseq
    %v3315 = vshrl.u32 %v3314, 7
    %v3316 = vsub.s32 0, %v3315
    %v3317 = vrot.slane %v3313, %v3316
    %v3319 = vsel %vm189, %v3312, 0
    %3321 = vmatprep.subr.mxu0 0.0
    %3322 = vmatpush1.xpose.msra.mxu0 0.0
    %3323 = vmatprep.subr.mxu0 0.0
    %3324 = vmatpush1.xpose.msra.mxu0 0.0
    %3325 = vmatprep.subr.mxu0 0.0
    %3326 = vmatpush1.xpose.msra.mxu0 0.0
    %3327 = vmatprep.subr.mxu0 0.0
    %3328 = vmatpush1.xpose.msra.mxu0 0.0
    %3329 = vmatprep.subr.mxu0 0.0
    %3330 = vmatpush1.xpose.msra.mxu0 0.0
    %3331 = vmatprep.subr.mxu0 0.0
    %3332 = vmatpush1.xpose.msra.mxu0 0.0
    %3333 = vmatprep.subr.mxu0 0.0
    %3334 = vmatpush1.xpose.msra.mxu0 0.0
    %3335 = vmatprep.subr.mxu0 0.0
    %3336 = vmatpush1.xpose.msra.mxu0 0.0
    %3337 = vmatprep.subr.mxu0 0.0
    %3338 = vmatpush1.xpose.msra.mxu0 0.0
    %3339 = vmatprep.subr.mxu0 0.0
    %3340 = vmatpush1.xpose.msra.mxu0 0.0
    %3341 = vmatprep.subr.mxu0 0.0
    %3342 = vmatpush1.xpose.msra.mxu0 0.0
    %3343 = vmatprep.subr.mxu0 0.0
    %3344 = vmatpush1.xpose.msra.mxu0 0.0
    %3345 = vmatprep.subr.mxu0 0.0
    %3346 = vmatpush1.xpose.msra.mxu0 0.0
    %3347 = vmatprep.subr.mxu0 0.0
    %3348 = vmatpush1.xpose.msra.mxu0 0.0
    %3349 = vmatprep.subr.mxu0 0.0
    %3350 = vmatpush1.xpose.msra.mxu0 0.0
    %3351 = vmatprep.subr.mxu0 0.0
    %3352 = vmatpush1.xpose.msra.mxu0 %v3319
    %3353 = vmatprep.subr.mxu0 0.0
    %3354 = vmatpush2.xpose.msra.mxu0 0.0
    %3355 = vmatprep.subr.mxu0 0.0
    %3356 = vmatpush2.xpose.msra.mxu0 0.0
    %3357 = vmatprep.subr.mxu0 0.0
    %3358 = vmatpush2.xpose.msra.mxu0 0.0
    %3359 = vmatprep.subr.mxu0 0.0
    %3360 = vmatpush2.xpose.msra.mxu0 0.0
    %3361 = vmatprep.subr.mxu0 0.0
    %3362 = vmatpush2.xpose.msra.mxu0 0.0
    %3363 = vmatprep.subr.mxu0 0.0
    %3364 = vmatpush2.xpose.msra.mxu0 0.0
    %3365 = vmatprep.subr.mxu0 0.0
    %3366 = vmatpush2.xpose.msra.mxu0 0.0
    %3367 = vmatprep.subr.mxu0 0.0
    %3368 = vmatpush2.xpose.msra.mxu0 0.0
    %3369 = vmatprep.subr.mxu0 0.0
    %3370 = vmatpush2.xpose.msra.mxu0 0.0
    %3371 = vmatprep.subr.mxu0 0.0
    %3372 = vmatpush2.xpose.msra.mxu0 0.0
    %3373 = vmatprep.subr.mxu0 0.0
    %3374 = vmatpush2.xpose.msra.mxu0 0.0
    %3375 = vmatprep.subr.mxu0 0.0
    %3376 = vmatpush2.xpose.msra.mxu0 0.0
    %3377 = vmatprep.subr.mxu0 0.0
    %3378 = vmatpush2.xpose.msra.mxu0 0.0
    %3379 = vmatprep.subr.mxu0 0.0
    %3380 = vmatpush2.xpose.msra.mxu0 0.0
    %3381 = vmatprep.subr.mxu0 0.0
    %3382 = vmatpush2.xpose.msra.mxu0 0.0
    %3383 = vmatprep.subr.mxu0 0.0
    %3384 = vmatpush2.xpose.msra.mxu0 0.0
    %3385 = vmatprep.mubr.f32.mxu0 0.0
    %3386 = vmatmul.mubr.f32.gmra.mxu0 %v2619
    %v3387 = vpop.f32.mrf.mxu0
    %v3388 = vadd.f32 %v3317, %v3387
    %v3389 = vpop.f32.mrf.mxu0
    %3390 = vmatprep.mubr.f32.mxu0 0.0
    %3391 = vmatmul.mubr.f32.gmra.mxu0 %v2622
    %v3392 = vpop.f32.mrf.mxu0
    %v3393 = vadd.f32 %v3317, %v3392
    %v3394 = vpop.f32.mrf.mxu0
    %3395 = vdwg.mxu0
    %v3397 = vsel %vm38, %v3220, 0
    %v3400 = vsel %vm38, %v3225, 0
    %v3403 = vsel %vm38, %v3304, 0
    %v3406 = vsel %vm38, %v3309, 0
    %3408 = vmatprep.subr.mxu0 0.0
    %3409 = vmatpush1.xpose.msra.mxu0 0.0
    %3410 = vmatprep.subr.mxu0 0.0
    %3411 = vmatpush1.xpose.msra.mxu0 0.0
    %3412 = vmatprep.subr.mxu0 0.0
    %3413 = vmatpush1.xpose.msra.mxu0 0.0
    %3414 = vmatprep.subr.mxu0 0.0
    %3415 = vmatpush1.xpose.msra.mxu0 0.0
    %3416 = vmatprep.subr.mxu0 0.0
    %3417 = vmatpush1.xpose.msra.mxu0 0.0
    %3418 = vmatprep.subr.mxu0 0.0
    %3419 = vmatpush1.xpose.msra.mxu0 0.0
    %3420 = vmatprep.subr.mxu0 0.0
    %3421 = vmatpush1.xpose.msra.mxu0 0.0
    %3422 = vmatprep.subr.mxu0 0.0
    %3423 = vmatpush1.xpose.msra.mxu0 0.0
    %3424 = vmatprep.subr.mxu0 0.0
    %3425 = vmatpush1.xpose.msra.mxu0 0.0
    %3426 = vmatprep.subr.mxu0 0.0
    %3427 = vmatpush1.xpose.msra.mxu0 0.0
    %3428 = vmatprep.subr.mxu0 0.0
    %3429 = vmatpush1.xpose.msra.mxu0 0.0
    %3430 = vmatprep.subr.mxu0 0.0
    %3431 = vmatpush1.xpose.msra.mxu0 0.0
    %3432 = vmatprep.subr.mxu0 0.0
    %3433 = vmatpush1.xpose.msra.mxu0 0.0
    %3434 = vmatprep.subr.mxu0 0.0
    %3435 = vmatpush1.xpose.msra.mxu0 0.0
    %3436 = vmatprep.subr.mxu0 0.0
    %3437 = vmatpush1.xpose.msra.mxu0 %v3406
    %3438 = vmatprep.subr.mxu0 0.0
    %3439 = vmatpush1.xpose.msra.mxu0 %v3403
    %3440 = vmatprep.subr.mxu0 0.0
    %3441 = vmatpush2.xpose.msra.mxu0 0.0
    %3442 = vmatprep.subr.mxu0 0.0
    %3443 = vmatpush2.xpose.msra.mxu0 0.0
    %3444 = vmatprep.subr.mxu0 0.0
    %3445 = vmatpush2.xpose.msra.mxu0 0.0
    %3446 = vmatprep.subr.mxu0 0.0
    %3447 = vmatpush2.xpose.msra.mxu0 0.0
    %3448 = vmatprep.subr.mxu0 0.0
    %3449 = vmatpush2.xpose.msra.mxu0 0.0
    %3450 = vmatprep.subr.mxu0 0.0
    %3451 = vmatpush2.xpose.msra.mxu0 0.0
    %3452 = vmatprep.subr.mxu0 0.0
    %3453 = vmatpush2.xpose.msra.mxu0 0.0
    %3454 = vmatprep.subr.mxu0 0.0
    %3455 = vmatpush2.xpose.msra.mxu0 0.0
    %3456 = vmatprep.subr.mxu0 0.0
    %3457 = vmatpush2.xpose.msra.mxu0 0.0
    %3458 = vmatprep.subr.mxu0 0.0
    %3459 = vmatpush2.xpose.msra.mxu0 0.0
    %3460 = vmatprep.subr.mxu0 0.0
    %3461 = vmatpush2.xpose.msra.mxu0 0.0
    %3462 = vmatprep.subr.mxu0 0.0
    %3463 = vmatpush2.xpose.msra.mxu0 0.0
    %3464 = vmatprep.subr.mxu0 0.0
    %3465 = vmatpush2.xpose.msra.mxu0 0.0
    %3466 = vmatprep.subr.mxu0 0.0
    %3467 = vmatpush2.xpose.msra.mxu0 0.0
    %3468 = vmatprep.subr.mxu0 0.0
    %3469 = vmatpush2.xpose.msra.mxu0 0.0
    %3470 = vmatprep.subr.mxu0 0.0
    %3471 = vmatpush2.xpose.msra.mxu0 0.0
    %3472 = vmatprep.mubr.f32.mxu0 0.0
    %3473 = vmatmul.mubr.f32.gmra.mxu0 %v3397
    %v3474 = vpop.f32.mrf.mxu0
    %v3475 = vadd.f32 %v176, %v3474
    %v3476 = vpop.f32.mrf.mxu0
    %3477 = vmatprep.mubr.f32.mxu0 0.0
    %3478 = vmatmul.mubr.f32.gmra.mxu0 %v3400
    %v3479 = vpop.f32.mrf.mxu0
    %v3480 = vadd.f32 %v177, %v3479
    %v3481 = vpop.f32.mrf.mxu0
    %3482 = vdwg.mxu0
    %v3483 = vsel %vm529, %v3475, -inf
    %3484 = vmax.xlane.f32.xlu0 %v3483
    %v3485 = vpop.xlane.xlu0 %3484
    %v3486 = vsel %vm529, %v3480, -inf
    %3487 = vmax.xlane.f32.xlu0 %v3486
    %v3488 = vpop.xlane.xlu0 %3487
    %v3489 = vsub.f32 %v3475, %v3485
    %v3490 = vsub.f32 %v3480, %v3488
    %v3491 = vmul.f32 %v3489, 1.442695
    %v3492 = vpow.pop %v3491
    %v3493 = vmul.f32 %v3490, 1.442695
    %v3494 = vpow.pop %v3493
    %v3495 = vsel %vm529, %v3492, 0.0
    %3496 = vadd.xlane.f32.xlu0 %v3495
    %v3497 = vpop.xlane.xlu0 %3496
    %v3498 = vsel %vm529, %v3494, 0.0
    %3499 = vadd.xlane.f32.xlu0 %v3498
    %v3500 = vpop.xlane.xlu0 %3499
    %v3501 = vrcp.pop %v3497
    %v3502 = vrcp.pop %v3500
    %v3503 = vmul.f32 %v3492, %v3501
    %v3504 = vmul.f32 %v3494, %v3502
    %v3506 = vsel %vm529, %v3503, 0
    %v3509 = vsel %vm529, %v3504, 0
    %3511 = vmatprep.subr.mxu0 0.0
    %3512 = vmatpush1.msra.mxu0 0.0
    %3513 = vmatprep.subr.mxu0 0.0
    %3514 = vmatpush1.msra.mxu0 0.0
    %3515 = vmatprep.subr.mxu0 0.0
    %3516 = vmatpush1.msra.mxu0 0.0
    %3517 = vmatprep.subr.mxu0 0.0
    %3518 = vmatpush1.msra.mxu0 0.0
    %3519 = vmatprep.subr.mxu0 0.0
    %3520 = vmatpush1.msra.mxu0 0.0
    %3521 = vmatprep.subr.mxu0 0.0
    %3522 = vmatpush1.msra.mxu0 0.0
    %3523 = vmatprep.subr.mxu0 0.0
    %3524 = vmatpush1.msra.mxu0 0.0
    %3525 = vmatprep.subr.mxu0 0.0
    %3526 = vmatpush1.msra.mxu0 0.0
    %3527 = vmatprep.subr.mxu0 0.0
    %3528 = vmatpush1.msra.mxu0 0.0
    %3529 = vmatprep.subr.mxu0 0.0
    %3530 = vmatpush1.msra.mxu0 0.0
    %3531 = vmatprep.subr.mxu0 0.0
    %3532 = vmatpush1.msra.mxu0 0.0
    %3533 = vmatprep.subr.mxu0 0.0
    %3534 = vmatpush1.msra.mxu0 0.0
    %3535 = vmatprep.subr.mxu0 0.0
    %3536 = vmatpush1.msra.mxu0 0.0
    %3537 = vmatprep.subr.mxu0 0.0
    %3538 = vmatpush1.msra.mxu0 0.0
    %3539 = vmatprep.subr.mxu0 0.0
    %3540 = vmatpush1.msra.mxu0 %v3393
    %3541 = vmatprep.subr.mxu0 0.0
    %3542 = vmatpush1.msra.mxu0 %v3388
    %3543 = vmatprep.subr.mxu0 0.0
    %3544 = vmatpush2.msra.mxu0 0.0
    %3545 = vmatprep.subr.mxu0 0.0
    %3546 = vmatpush2.msra.mxu0 0.0
    %3547 = vmatprep.subr.mxu0 0.0
    %3548 = vmatpush2.msra.mxu0 0.0
    %3549 = vmatprep.subr.mxu0 0.0
    %3550 = vmatpush2.msra.mxu0 0.0
    %3551 = vmatprep.subr.mxu0 0.0
    %3552 = vmatpush2.msra.mxu0 0.0
    %3553 = vmatprep.subr.mxu0 0.0
    %3554 = vmatpush2.msra.mxu0 0.0
    %3555 = vmatprep.subr.mxu0 0.0
    %3556 = vmatpush2.msra.mxu0 0.0
    %3557 = vmatprep.subr.mxu0 0.0
    %3558 = vmatpush2.msra.mxu0 0.0
    %3559 = vmatprep.subr.mxu0 0.0
    %3560 = vmatpush2.msra.mxu0 0.0
    %3561 = vmatprep.subr.mxu0 0.0
    %3562 = vmatpush2.msra.mxu0 0.0
    %3563 = vmatprep.subr.mxu0 0.0
    %3564 = vmatpush2.msra.mxu0 0.0
    %3565 = vmatprep.subr.mxu0 0.0
    %3566 = vmatpush2.msra.mxu0 0.0
    %3567 = vmatprep.subr.mxu0 0.0
    %3568 = vmatpush2.msra.mxu0 0.0
    %3569 = vmatprep.subr.mxu0 0.0
    %3570 = vmatpush2.msra.mxu0 0.0
    %3571 = vmatprep.subr.mxu0 0.0
    %3572 = vmatpush2.msra.mxu0 0.0
    %3573 = vmatprep.subr.mxu0 0.0
    %3574 = vmatpush2.msra.mxu0 0.0
    %3575 = vmatprep.mubr.f32.mxu0 0.0
    %3576 = vmatmul.mubr.f32.gmra.mxu0 %v3506
    %v3577 = vpop.f32.mrf.mxu0
    %v3578 = vadd.f32 0.0, %v3577
    %v3579 = vpop.f32.mrf.mxu0
    %3580 = vmatprep.mubr.f32.mxu0 0.0
    %3581 = vmatmul.mubr.f32.gmra.mxu0 %v3509
    %v3582 = vpop.f32.mrf.mxu0
    %v3583 = vadd.f32 0.0, %v3582
    %v3584 = vpop.f32.mrf.mxu0
    %3585 = vdwg.mxu0
    %v3586 = vld [vmem:[#allocation2 + $0x150] sm:$0xff]
    %v3588 = vsel %vm38, %v3578, 0
    %v3591 = vsel %vm38, %v3583, 0
    %3593 = vmatprep.subr.mxu0 0.0
    %3594 = vmatpush1.msra.mxu0 0.0
    %3595 = vmatprep.subr.mxu0 0.0
    %3596 = vmatpush1.msra.mxu0 0.0
    %3597 = vmatprep.subr.mxu0 0.0
    %3598 = vmatpush1.msra.mxu0 0.0
    %3599 = vmatprep.subr.mxu0 0.0
    %3600 = vmatpush1.msra.mxu0 0.0
    %3601 = vmatprep.subr.mxu0 0.0
    %3602 = vmatpush1.msra.mxu0 0.0
    %3603 = vmatprep.subr.mxu0 0.0
    %3604 = vmatpush1.msra.mxu0 0.0
    %3605 = vmatprep.subr.mxu0 0.0
    %3606 = vmatpush1.msra.mxu0 0.0
    %3607 = vmatprep.subr.mxu0 0.0
    %3608 = vmatpush1.msra.mxu0 0.0
    %3609 = vmatprep.subr.mxu0 0.0
    %3610 = vmatpush1.msra.mxu0 0.0
    %3611 = vmatprep.subr.mxu0 0.0
    %3612 = vmatpush1.msra.mxu0 0.0
    %3613 = vmatprep.subr.mxu0 0.0
    %3614 = vmatpush1.msra.mxu0 0.0
    %3615 = vmatprep.subr.mxu0 0.0
    %3616 = vmatpush1.msra.mxu0 0.0
    %3617 = vmatprep.subr.mxu0 0.0
    %3618 = vmatpush1.msra.mxu0 0.0
    %3619 = vmatprep.subr.mxu0 0.0
    %3620 = vmatpush1.msra.mxu0 0.0
    %3621 = vmatprep.subr.mxu0 0.0
    %3622 = vmatpush1.msra.mxu0 0.0
    %3623 = vmatprep.subr.mxu0 0.0
    %3624 = vmatpush1.msra.mxu0 %v3586
    %3625 = vmatprep.subr.mxu0 0.0
    %3626 = vmatpush2.msra.mxu0 0.0
    %3627 = vmatprep.subr.mxu0 0.0
    %3628 = vmatpush2.msra.mxu0 0.0
    %3629 = vmatprep.subr.mxu0 0.0
    %3630 = vmatpush2.msra.mxu0 0.0
    %3631 = vmatprep.subr.mxu0 0.0
    %3632 = vmatpush2.msra.mxu0 0.0
    %3633 = vmatprep.subr.mxu0 0.0
    %3634 = vmatpush2.msra.mxu0 0.0
    %3635 = vmatprep.subr.mxu0 0.0
    %3636 = vmatpush2.msra.mxu0 0.0
    %3637 = vmatprep.subr.mxu0 0.0
    %3638 = vmatpush2.msra.mxu0 0.0
    %3639 = vmatprep.subr.mxu0 0.0
    %3640 = vmatpush2.msra.mxu0 0.0
    %3641 = vmatprep.subr.mxu0 0.0
    %3642 = vmatpush2.msra.mxu0 0.0
    %3643 = vmatprep.subr.mxu0 0.0
    %3644 = vmatpush2.msra.mxu0 0.0
    %3645 = vmatprep.subr.mxu0 0.0
    %3646 = vmatpush2.msra.mxu0 0.0
    %3647 = vmatprep.subr.mxu0 0.0
    %3648 = vmatpush2.msra.mxu0 0.0
    %3649 = vmatprep.subr.mxu0 0.0
    %3650 = vmatpush2.msra.mxu0 0.0
    %3651 = vmatprep.subr.mxu0 0.0
    %3652 = vmatpush2.msra.mxu0 0.0
    %3653 = vmatprep.subr.mxu0 0.0
    %3654 = vmatpush2.msra.mxu0 0.0
    %3655 = vmatprep.subr.mxu0 0.0
    %3656 = vmatpush2.msra.mxu0 0.0
    %3657 = vmatprep.mubr.f32.mxu0 0.0
    %3658 = vmatmul.mubr.f32.gmra.mxu0 %v3588
    %v3659 = vpop.f32.mrf.mxu0
    %v3660 = vadd.f32 0.0, %v3659
    %v3661 = vpop.f32.mrf.mxu0
    %3662 = vmatprep.mubr.f32.mxu0 0.0
    %3663 = vmatmul.mubr.f32.gmra.mxu0 %v3591
    %v3664 = vpop.f32.mrf.mxu0
    %v3665 = vadd.f32 0.0, %v3664
    %v3666 = vpop.f32.mrf.mxu0
    %3667 = vdwg.mxu0
    %v3668 = vadd.f32 %v3142, %v3660
    %v3669 = vadd.f32 %v3143, %v3665
    %v3670 = vld [vmem:[#allocation2 + $0xf8] sm:$0xff]
    %v3671 = vld [vmem:[%s2 + $0x58] sm:$0x1]
    %v3672 = vlaneseq
    %v3673 = vshrl.u32 %v3672, 7
    %v3674 = vsub.s32 0, %v3673
    %v3675 = vrot.slane %v3671, %v3674
    %v3677 = vsel %vm189, %v3670, 0
    %3679 = vmatprep.subr.mxu0 0.0
    %3680 = vmatpush1.xpose.msra.mxu0 0.0
    %3681 = vmatprep.subr.mxu0 0.0
    %3682 = vmatpush1.xpose.msra.mxu0 0.0
    %3683 = vmatprep.subr.mxu0 0.0
    %3684 = vmatpush1.xpose.msra.mxu0 0.0
    %3685 = vmatprep.subr.mxu0 0.0
    %3686 = vmatpush1.xpose.msra.mxu0 0.0
    %3687 = vmatprep.subr.mxu0 0.0
    %3688 = vmatpush1.xpose.msra.mxu0 0.0
    %3689 = vmatprep.subr.mxu0 0.0
    %3690 = vmatpush1.xpose.msra.mxu0 0.0
    %3691 = vmatprep.subr.mxu0 0.0
    %3692 = vmatpush1.xpose.msra.mxu0 0.0
    %3693 = vmatprep.subr.mxu0 0.0
    %3694 = vmatpush1.xpose.msra.mxu0 0.0
    %3695 = vmatprep.subr.mxu0 0.0
    %3696 = vmatpush1.xpose.msra.mxu0 0.0
    %3697 = vmatprep.subr.mxu0 0.0
    %3698 = vmatpush1.xpose.msra.mxu0 0.0
    %3699 = vmatprep.subr.mxu0 0.0
    %3700 = vmatpush1.xpose.msra.mxu0 0.0
    %3701 = vmatprep.subr.mxu0 0.0
    %3702 = vmatpush1.xpose.msra.mxu0 0.0
    %3703 = vmatprep.subr.mxu0 0.0
    %3704 = vmatpush1.xpose.msra.mxu0 0.0
    %3705 = vmatprep.subr.mxu0 0.0
    %3706 = vmatpush1.xpose.msra.mxu0 0.0
    %3707 = vmatprep.subr.mxu0 0.0
    %3708 = vmatpush1.xpose.msra.mxu0 0.0
    %3709 = vmatprep.subr.mxu0 0.0
    %3710 = vmatpush1.xpose.msra.mxu0 %v3677
    %3711 = vmatprep.subr.mxu0 0.0
    %3712 = vmatpush2.xpose.msra.mxu0 0.0
    %3713 = vmatprep.subr.mxu0 0.0
    %3714 = vmatpush2.xpose.msra.mxu0 0.0
    %3715 = vmatprep.subr.mxu0 0.0
    %3716 = vmatpush2.xpose.msra.mxu0 0.0
    %3717 = vmatprep.subr.mxu0 0.0
    %3718 = vmatpush2.xpose.msra.mxu0 0.0
    %3719 = vmatprep.subr.mxu0 0.0
    %3720 = vmatpush2.xpose.msra.mxu0 0.0
    %3721 = vmatprep.subr.mxu0 0.0
    %3722 = vmatpush2.xpose.msra.mxu0 0.0
    %3723 = vmatprep.subr.mxu0 0.0
    %3724 = vmatpush2.xpose.msra.mxu0 0.0
    %3725 = vmatprep.subr.mxu0 0.0
    %3726 = vmatpush2.xpose.msra.mxu0 0.0
    %3727 = vmatprep.subr.mxu0 0.0
    %3728 = vmatpush2.xpose.msra.mxu0 0.0
    %3729 = vmatprep.subr.mxu0 0.0
    %3730 = vmatpush2.xpose.msra.mxu0 0.0
    %3731 = vmatprep.subr.mxu0 0.0
    %3732 = vmatpush2.xpose.msra.mxu0 0.0
    %3733 = vmatprep.subr.mxu0 0.0
    %3734 = vmatpush2.xpose.msra.mxu0 0.0
    %3735 = vmatprep.subr.mxu0 0.0
    %3736 = vmatpush2.xpose.msra.mxu0 0.0
    %3737 = vmatprep.subr.mxu0 0.0
    %3738 = vmatpush2.xpose.msra.mxu0 0.0
    %3739 = vmatprep.subr.mxu0 0.0
    %3740 = vmatpush2.xpose.msra.mxu0 0.0
    %3741 = vmatprep.subr.mxu0 0.0
    %3742 = vmatpush2.xpose.msra.mxu0 0.0
    %3743 = vmatprep.mubr.f32.mxu0 0.0
    %3744 = vmatmul.mubr.f32.gmra.mxu0 %v2619
    %v3745 = vpop.f32.mrf.mxu0
    %v3746 = vadd.f32 %v3675, %v3745
    %v3747 = vpop.f32.mrf.mxu0
    %3748 = vmatprep.mubr.f32.mxu0 0.0
    %3749 = vmatmul.mubr.f32.gmra.mxu0 %v2622
    %v3750 = vpop.f32.mrf.mxu0
    %v3751 = vadd.f32 %v3675, %v3750
    %v3752 = vpop.f32.mrf.mxu0
    %3753 = vdwg.mxu0
    %v3754 = vld [vmem:[#allocation2 + $0x118] sm:$0xff]
    %v3755 = vld [vmem:[%s2 + $0x5c] sm:$0x1]
    %v3756 = vlaneseq
    %v3757 = vshrl.u32 %v3756, 7
    %v3758 = vsub.s32 0, %v3757
    %v3759 = vrot.slane %v3755, %v3758
    %v3761 = vsel %vm189, %v3754, 0
    %3763 = vmatprep.subr.mxu0 0.0
    %3764 = vmatpush1.xpose.msra.mxu0 0.0
    %3765 = vmatprep.subr.mxu0 0.0
    %3766 = vmatpush1.xpose.msra.mxu0 0.0
    %3767 = vmatprep.subr.mxu0 0.0
    %3768 = vmatpush1.xpose.msra.mxu0 0.0
    %3769 = vmatprep.subr.mxu0 0.0
    %3770 = vmatpush1.xpose.msra.mxu0 0.0
    %3771 = vmatprep.subr.mxu0 0.0
    %3772 = vmatpush1.xpose.msra.mxu0 0.0
    %3773 = vmatprep.subr.mxu0 0.0
    %3774 = vmatpush1.xpose.msra.mxu0 0.0
    %3775 = vmatprep.subr.mxu0 0.0
    %3776 = vmatpush1.xpose.msra.mxu0 0.0
    %3777 = vmatprep.subr.mxu0 0.0
    %3778 = vmatpush1.xpose.msra.mxu0 0.0
    %3779 = vmatprep.subr.mxu0 0.0
    %3780 = vmatpush1.xpose.msra.mxu0 0.0
    %3781 = vmatprep.subr.mxu0 0.0
    %3782 = vmatpush1.xpose.msra.mxu0 0.0
    %3783 = vmatprep.subr.mxu0 0.0
    %3784 = vmatpush1.xpose.msra.mxu0 0.0
    %3785 = vmatprep.subr.mxu0 0.0
    %3786 = vmatpush1.xpose.msra.mxu0 0.0
    %3787 = vmatprep.subr.mxu0 0.0
    %3788 = vmatpush1.xpose.msra.mxu0 0.0
    %3789 = vmatprep.subr.mxu0 0.0
    %3790 = vmatpush1.xpose.msra.mxu0 0.0
    %3791 = vmatprep.subr.mxu0 0.0
    %3792 = vmatpush1.xpose.msra.mxu0 0.0
    %3793 = vmatprep.subr.mxu0 0.0
    %3794 = vmatpush1.xpose.msra.mxu0 %v3761
    %3795 = vmatprep.subr.mxu0 0.0
    %3796 = vmatpush2.xpose.msra.mxu0 0.0
    %3797 = vmatprep.subr.mxu0 0.0
    %3798 = vmatpush2.xpose.msra.mxu0 0.0
    %3799 = vmatprep.subr.mxu0 0.0
    %3800 = vmatpush2.xpose.msra.mxu0 0.0
    %3801 = vmatprep.subr.mxu0 0.0
    %3802 = vmatpush2.xpose.msra.mxu0 0.0
    %3803 = vmatprep.subr.mxu0 0.0
    %3804 = vmatpush2.xpose.msra.mxu0 0.0
    %3805 = vmatprep.subr.mxu0 0.0
    %3806 = vmatpush2.xpose.msra.mxu0 0.0
    %3807 = vmatprep.subr.mxu0 0.0
    %3808 = vmatpush2.xpose.msra.mxu0 0.0
    %3809 = vmatprep.subr.mxu0 0.0
    %3810 = vmatpush2.xpose.msra.mxu0 0.0
    %3811 = vmatprep.subr.mxu0 0.0
    %3812 = vmatpush2.xpose.msra.mxu0 0.0
    %3813 = vmatprep.subr.mxu0 0.0
    %3814 = vmatpush2.xpose.msra.mxu0 0.0
    %3815 = vmatprep.subr.mxu0 0.0
    %3816 = vmatpush2.xpose.msra.mxu0 0.0
    %3817 = vmatprep.subr.mxu0 0.0
    %3818 = vmatpush2.xpose.msra.mxu0 0.0
    %3819 = vmatprep.subr.mxu0 0.0
    %3820 = vmatpush2.xpose.msra.mxu0 0.0
    %3821 = vmatprep.subr.mxu0 0.0
    %3822 = vmatpush2.xpose.msra.mxu0 0.0
    %3823 = vmatprep.subr.mxu0 0.0
    %3824 = vmatpush2.xpose.msra.mxu0 0.0
    %3825 = vmatprep.subr.mxu0 0.0
    %3826 = vmatpush2.xpose.msra.mxu0 0.0
    %3827 = vmatprep.mubr.f32.mxu0 0.0
    %3828 = vmatmul.mubr.f32.gmra.mxu0 %v2619
    %v3829 = vpop.f32.mrf.mxu0
    %v3830 = vadd.f32 %v3759, %v3829
    %v3831 = vpop.f32.mrf.mxu0
    %3832 = vmatprep.mubr.f32.mxu0 0.0
    %3833 = vmatmul.mubr.f32.gmra.mxu0 %v2622
    %v3834 = vpop.f32.mrf.mxu0
    %v3835 = vadd.f32 %v3759, %v3834
    %v3836 = vpop.f32.mrf.mxu0
    %3837 = vdwg.mxu0
    %v3838 = vld [vmem:[#allocation2 + $0x138] sm:$0xff]
    %v3839 = vld [vmem:[%s2 + $0x60] sm:$0x1]
    %v3840 = vlaneseq
    %v3841 = vshrl.u32 %v3840, 7
    %v3842 = vsub.s32 0, %v3841
    %v3843 = vrot.slane %v3839, %v3842
    %v3845 = vsel %vm189, %v3838, 0
    %3847 = vmatprep.subr.mxu0 0.0
    %3848 = vmatpush1.xpose.msra.mxu0 0.0
    %3849 = vmatprep.subr.mxu0 0.0
    %3850 = vmatpush1.xpose.msra.mxu0 0.0
    %3851 = vmatprep.subr.mxu0 0.0
    %3852 = vmatpush1.xpose.msra.mxu0 0.0
    %3853 = vmatprep.subr.mxu0 0.0
    %3854 = vmatpush1.xpose.msra.mxu0 0.0
    %3855 = vmatprep.subr.mxu0 0.0
    %3856 = vmatpush1.xpose.msra.mxu0 0.0
    %3857 = vmatprep.subr.mxu0 0.0
    %3858 = vmatpush1.xpose.msra.mxu0 0.0
    %3859 = vmatprep.subr.mxu0 0.0
    %3860 = vmatpush1.xpose.msra.mxu0 0.0
    %3861 = vmatprep.subr.mxu0 0.0
    %3862 = vmatpush1.xpose.msra.mxu0 0.0
    %3863 = vmatprep.subr.mxu0 0.0
    %3864 = vmatpush1.xpose.msra.mxu0 0.0
    %3865 = vmatprep.subr.mxu0 0.0
    %3866 = vmatpush1.xpose.msra.mxu0 0.0
    %3867 = vmatprep.subr.mxu0 0.0
    %3868 = vmatpush1.xpose.msra.mxu0 0.0
    %3869 = vmatprep.subr.mxu0 0.0
    %3870 = vmatpush1.xpose.msra.mxu0 0.0
    %3871 = vmatprep.subr.mxu0 0.0
    %3872 = vmatpush1.xpose.msra.mxu0 0.0
    %3873 = vmatprep.subr.mxu0 0.0
    %3874 = vmatpush1.xpose.msra.mxu0 0.0
    %3875 = vmatprep.subr.mxu0 0.0
    %3876 = vmatpush1.xpose.msra.mxu0 0.0
    %3877 = vmatprep.subr.mxu0 0.0
    %3878 = vmatpush1.xpose.msra.mxu0 %v3845
    %3879 = vmatprep.subr.mxu0 0.0
    %3880 = vmatpush2.xpose.msra.mxu0 0.0
    %3881 = vmatprep.subr.mxu0 0.0
    %3882 = vmatpush2.xpose.msra.mxu0 0.0
    %3883 = vmatprep.subr.mxu0 0.0
    %3884 = vmatpush2.xpose.msra.mxu0 0.0
    %3885 = vmatprep.subr.mxu0 0.0
    %3886 = vmatpush2.xpose.msra.mxu0 0.0
    %3887 = vmatprep.subr.mxu0 0.0
    %3888 = vmatpush2.xpose.msra.mxu0 0.0
    %3889 = vmatprep.subr.mxu0 0.0
    %3890 = vmatpush2.xpose.msra.mxu0 0.0
    %3891 = vmatprep.subr.mxu0 0.0
    %3892 = vmatpush2.xpose.msra.mxu0 0.0
    %3893 = vmatprep.subr.mxu0 0.0
    %3894 = vmatpush2.xpose.msra.mxu0 0.0
    %3895 = vmatprep.subr.mxu0 0.0
    %3896 = vmatpush2.xpose.msra.mxu0 0.0
    %3897 = vmatprep.subr.mxu0 0.0
    %3898 = vmatpush2.xpose.msra.mxu0 0.0
    %3899 = vmatprep.subr.mxu0 0.0
    %3900 = vmatpush2.xpose.msra.mxu0 0.0
    %3901 = vmatprep.subr.mxu0 0.0
    %3902 = vmatpush2.xpose.msra.mxu0 0.0
    %3903 = vmatprep.subr.mxu0 0.0
    %3904 = vmatpush2.xpose.msra.mxu0 0.0
    %3905 = vmatprep.subr.mxu0 0.0
    %3906 = vmatpush2.xpose.msra.mxu0 0.0
    %3907 = vmatprep.subr.mxu0 0.0
    %3908 = vmatpush2.xpose.msra.mxu0 0.0
    %3909 = vmatprep.subr.mxu0 0.0
    %3910 = vmatpush2.xpose.msra.mxu0 0.0
    %3911 = vmatprep.mubr.f32.mxu0 0.0
    %3912 = vmatmul.mubr.f32.gmra.mxu0 %v2619
    %v3913 = vpop.f32.mrf.mxu0
    %v3914 = vadd.f32 %v3843, %v3913
    %v3915 = vpop.f32.mrf.mxu0
    %3916 = vmatprep.mubr.f32.mxu0 0.0
    %3917 = vmatmul.mubr.f32.gmra.mxu0 %v2622
    %v3918 = vpop.f32.mrf.mxu0
    %v3919 = vadd.f32 %v3843, %v3918
    %v3920 = vpop.f32.mrf.mxu0
    %3921 = vdwg.mxu0
    %v3923 = vsel %vm38, %v3746, 0
    %v3926 = vsel %vm38, %v3751, 0
    %v3929 = vsel %vm38, %v3830, 0
    %v3932 = vsel %vm38, %v3835, 0
    %3934 = vmatprep.subr.mxu0 0.0
    %3935 = vmatpush1.xpose.msra.mxu0 0.0
    %3936 = vmatprep.subr.mxu0 0.0
    %3937 = vmatpush1.xpose.msra.mxu0 0.0
    %3938 = vmatprep.subr.mxu0 0.0
    %3939 = vmatpush1.xpose.msra.mxu0 0.0
    %3940 = vmatprep.subr.mxu0 0.0
    %3941 = vmatpush1.xpose.msra.mxu0 0.0
    %3942 = vmatprep.subr.mxu0 0.0
    %3943 = vmatpush1.xpose.msra.mxu0 0.0
    %3944 = vmatprep.subr.mxu0 0.0
    %3945 = vmatpush1.xpose.msra.mxu0 0.0
    %3946 = vmatprep.subr.mxu0 0.0
    %3947 = vmatpush1.xpose.msra.mxu0 0.0
    %3948 = vmatprep.subr.mxu0 0.0
    %3949 = vmatpush1.xpose.msra.mxu0 0.0
    %3950 = vmatprep.subr.mxu0 0.0
    %3951 = vmatpush1.xpose.msra.mxu0 0.0
    %3952 = vmatprep.subr.mxu0 0.0
    %3953 = vmatpush1.xpose.msra.mxu0 0.0
    %3954 = vmatprep.subr.mxu0 0.0
    %3955 = vmatpush1.xpose.msra.mxu0 0.0
    %3956 = vmatprep.subr.mxu0 0.0
    %3957 = vmatpush1.xpose.msra.mxu0 0.0
    %3958 = vmatprep.subr.mxu0 0.0
    %3959 = vmatpush1.xpose.msra.mxu0 0.0
    %3960 = vmatprep.subr.mxu0 0.0
    %3961 = vmatpush1.xpose.msra.mxu0 0.0
    %3962 = vmatprep.subr.mxu0 0.0
    %3963 = vmatpush1.xpose.msra.mxu0 %v3932
    %3964 = vmatprep.subr.mxu0 0.0
    %3965 = vmatpush1.xpose.msra.mxu0 %v3929
    %3966 = vmatprep.subr.mxu0 0.0
    %3967 = vmatpush2.xpose.msra.mxu0 0.0
    %3968 = vmatprep.subr.mxu0 0.0
    %3969 = vmatpush2.xpose.msra.mxu0 0.0
    %3970 = vmatprep.subr.mxu0 0.0
    %3971 = vmatpush2.xpose.msra.mxu0 0.0
    %3972 = vmatprep.subr.mxu0 0.0
    %3973 = vmatpush2.xpose.msra.mxu0 0.0
    %3974 = vmatprep.subr.mxu0 0.0
    %3975 = vmatpush2.xpose.msra.mxu0 0.0
    %3976 = vmatprep.subr.mxu0 0.0
    %3977 = vmatpush2.xpose.msra.mxu0 0.0
    %3978 = vmatprep.subr.mxu0 0.0
    %3979 = vmatpush2.xpose.msra.mxu0 0.0
    %3980 = vmatprep.subr.mxu0 0.0
    %3981 = vmatpush2.xpose.msra.mxu0 0.0
    %3982 = vmatprep.subr.mxu0 0.0
    %3983 = vmatpush2.xpose.msra.mxu0 0.0
    %3984 = vmatprep.subr.mxu0 0.0
    %3985 = vmatpush2.xpose.msra.mxu0 0.0
    %3986 = vmatprep.subr.mxu0 0.0
    %3987 = vmatpush2.xpose.msra.mxu0 0.0
    %3988 = vmatprep.subr.mxu0 0.0
    %3989 = vmatpush2.xpose.msra.mxu0 0.0
    %3990 = vmatprep.subr.mxu0 0.0
    %3991 = vmatpush2.xpose.msra.mxu0 0.0
    %3992 = vmatprep.subr.mxu0 0.0
    %3993 = vmatpush2.xpose.msra.mxu0 0.0
    %3994 = vmatprep.subr.mxu0 0.0
    %3995 = vmatpush2.xpose.msra.mxu0 0.0
    %3996 = vmatprep.subr.mxu0 0.0
    %3997 = vmatpush2.xpose.msra.mxu0 0.0
    %3998 = vmatprep.mubr.f32.mxu0 0.0
    %3999 = vmatmul.mubr.f32.gmra.mxu0 %v3923
    %v4000 = vpop.f32.mrf.mxu0
    %v4001 = vadd.f32 %v176, %v4000
    %v4002 = vpop.f32.mrf.mxu0
    %4003 = vmatprep.mubr.f32.mxu0 0.0
    %4004 = vmatmul.mubr.f32.gmra.mxu0 %v3926
    %v4005 = vpop.f32.mrf.mxu0
    %v4006 = vadd.f32 %v177, %v4005
    %v4007 = vpop.f32.mrf.mxu0
    %4008 = vdwg.mxu0
    %v4009 = vsel %vm529, %v4001, -inf
    %4010 = vmax.xlane.f32.xlu0 %v4009
    %v4011 = vpop.xlane.xlu0 %4010
    %v4012 = vsel %vm529, %v4006, -inf
    %4013 = vmax.xlane.f32.xlu0 %v4012
    %v4014 = vpop.xlane.xlu0 %4013
    %v4015 = vsub.f32 %v4001, %v4011
    %v4016 = vsub.f32 %v4006, %v4014
    %v4017 = vmul.f32 %v4015, 1.442695
    %v4018 = vpow.pop %v4017
    %v4019 = vmul.f32 %v4016, 1.442695
    %v4020 = vpow.pop %v4019
    %v4021 = vsel %vm529, %v4018, 0.0
    %4022 = vadd.xlane.f32.xlu0 %v4021
    %v4023 = vpop.xlane.xlu0 %4022
    %v4024 = vsel %vm529, %v4020, 0.0
    %4025 = vadd.xlane.f32.xlu0 %v4024
    %v4026 = vpop.xlane.xlu0 %4025
    %v4027 = vrcp.pop %v4023
    %v4028 = vrcp.pop %v4026
    %v4029 = vmul.f32 %v4018, %v4027
    %v4030 = vmul.f32 %v4020, %v4028
    %v4032 = vsel %vm529, %v4029, 0
    %v4035 = vsel %vm529, %v4030, 0
    %4037 = vmatprep.subr.mxu0 0.0
    %4038 = vmatpush1.msra.mxu0 0.0
    %4039 = vmatprep.subr.mxu0 0.0
    %4040 = vmatpush1.msra.mxu0 0.0
    %4041 = vmatprep.subr.mxu0 0.0
    %4042 = vmatpush1.msra.mxu0 0.0
    %4043 = vmatprep.subr.mxu0 0.0
    %4044 = vmatpush1.msra.mxu0 0.0
    %4045 = vmatprep.subr.mxu0 0.0
    %4046 = vmatpush1.msra.mxu0 0.0
    %4047 = vmatprep.subr.mxu0 0.0
    %4048 = vmatpush1.msra.mxu0 0.0
    %4049 = vmatprep.subr.mxu0 0.0
    %4050 = vmatpush1.msra.mxu0 0.0
    %4051 = vmatprep.subr.mxu0 0.0
    %4052 = vmatpush1.msra.mxu0 0.0
    %4053 = vmatprep.subr.mxu0 0.0
    %4054 = vmatpush1.msra.mxu0 0.0
    %4055 = vmatprep.subr.mxu0 0.0
    %4056 = vmatpush1.msra.mxu0 0.0
    %4057 = vmatprep.subr.mxu0 0.0
    %4058 = vmatpush1.msra.mxu0 0.0
    %4059 = vmatprep.subr.mxu0 0.0
    %4060 = vmatpush1.msra.mxu0 0.0
    %4061 = vmatprep.subr.mxu0 0.0
    %4062 = vmatpush1.msra.mxu0 0.0
    %4063 = vmatprep.subr.mxu0 0.0
    %4064 = vmatpush1.msra.mxu0 0.0
    %4065 = vmatprep.subr.mxu0 0.0
    %4066 = vmatpush1.msra.mxu0 %v3919
    %4067 = vmatprep.subr.mxu0 0.0
    %4068 = vmatpush1.msra.mxu0 %v3914
    %4069 = vmatprep.subr.mxu0 0.0
    %4070 = vmatpush2.msra.mxu0 0.0
    %4071 = vmatprep.subr.mxu0 0.0
    %4072 = vmatpush2.msra.mxu0 0.0
    %4073 = vmatprep.subr.mxu0 0.0
    %4074 = vmatpush2.msra.mxu0 0.0
    %4075 = vmatprep.subr.mxu0 0.0
    %4076 = vmatpush2.msra.mxu0 0.0
    %4077 = vmatprep.subr.mxu0 0.0
    %4078 = vmatpush2.msra.mxu0 0.0
    %4079 = vmatprep.subr.mxu0 0.0
    %4080 = vmatpush2.msra.mxu0 0.0
    %4081 = vmatprep.subr.mxu0 0.0
    %4082 = vmatpush2.msra.mxu0 0.0
    %4083 = vmatprep.subr.mxu0 0.0
    %4084 = vmatpush2.msra.mxu0 0.0
    %4085 = vmatprep.subr.mxu0 0.0
    %4086 = vmatpush2.msra.mxu0 0.0
    %4087 = vmatprep.subr.mxu0 0.0
    %4088 = vmatpush2.msra.mxu0 0.0
    %4089 = vmatprep.subr.mxu0 0.0
    %4090 = vmatpush2.msra.mxu0 0.0
    %4091 = vmatprep.subr.mxu0 0.0
    %4092 = vmatpush2.msra.mxu0 0.0
    %4093 = vmatprep.subr.mxu0 0.0
    %4094 = vmatpush2.msra.mxu0 0.0
    %4095 = vmatprep.subr.mxu0 0.0
    %4096 = vmatpush2.msra.mxu0 0.0
    %4097 = vmatprep.subr.mxu0 0.0
    %4098 = vmatpush2.msra.mxu0 0.0
    %4099 = vmatprep.subr.mxu0 0.0
    %4100 = vmatpush2.msra.mxu0 0.0
    %4101 = vmatprep.mubr.f32.mxu0 0.0
    %4102 = vmatmul.mubr.f32.gmra.mxu0 %v4032
    %v4103 = vpop.f32.mrf.mxu0
    %v4104 = vadd.f32 0.0, %v4103
    %v4105 = vpop.f32.mrf.mxu0
    %4106 = vmatprep.mubr.f32.mxu0 0.0
    %4107 = vmatmul.mubr.f32.gmra.mxu0 %v4035
    %v4108 = vpop.f32.mrf.mxu0
    %v4109 = vadd.f32 0.0, %v4108
    %v4110 = vpop.f32.mrf.mxu0
    %4111 = vdwg.mxu0
    %v4112 = vld [vmem:[#allocation2 + $0x158] sm:$0xff]
    %v4114 = vsel %vm38, %v4104, 0
    %v4117 = vsel %vm38, %v4109, 0
    %4119 = vmatprep.subr.mxu0 0.0
    %4120 = vmatpush1.msra.mxu0 0.0
    %4121 = vmatprep.subr.mxu0 0.0
    %4122 = vmatpush1.msra.mxu0 0.0
    %4123 = vmatprep.subr.mxu0 0.0
    %4124 = vmatpush1.msra.mxu0 0.0
    %4125 = vmatprep.subr.mxu0 0.0
    %4126 = vmatpush1.msra.mxu0 0.0
    %4127 = vmatprep.subr.mxu0 0.0
    %4128 = vmatpush1.msra.mxu0 0.0
    %4129 = vmatprep.subr.mxu0 0.0
    %4130 = vmatpush1.msra.mxu0 0.0
    %4131 = vmatprep.subr.mxu0 0.0
    %4132 = vmatpush1.msra.mxu0 0.0
    %4133 = vmatprep.subr.mxu0 0.0
    %4134 = vmatpush1.msra.mxu0 0.0
    %4135 = vmatprep.subr.mxu0 0.0
    %4136 = vmatpush1.msra.mxu0 0.0
    %4137 = vmatprep.subr.mxu0 0.0
    %4138 = vmatpush1.msra.mxu0 0.0
    %4139 = vmatprep.subr.mxu0 0.0
    %4140 = vmatpush1.msra.mxu0 0.0
    %4141 = vmatprep.subr.mxu0 0.0
    %4142 = vmatpush1.msra.mxu0 0.0
    %4143 = vmatprep.subr.mxu0 0.0
    %4144 = vmatpush1.msra.mxu0 0.0
    %4145 = vmatprep.subr.mxu0 0.0
    %4146 = vmatpush1.msra.mxu0 0.0
    %4147 = vmatprep.subr.mxu0 0.0
    %4148 = vmatpush1.msra.mxu0 0.0
    %4149 = vmatprep.subr.mxu0 0.0
    %4150 = vmatpush1.msra.mxu0 %v4112
    %4151 = vmatprep.subr.mxu0 0.0
    %4152 = vmatpush2.msra.mxu0 0.0
    %4153 = vmatprep.subr.mxu0 0.0
    %4154 = vmatpush2.msra.mxu0 0.0
    %4155 = vmatprep.subr.mxu0 0.0
    %4156 = vmatpush2.msra.mxu0 0.0
    %4157 = vmatprep.subr.mxu0 0.0
    %4158 = vmatpush2.msra.mxu0 0.0
    %4159 = vmatprep.subr.mxu0 0.0
    %4160 = vmatpush2.msra.mxu0 0.0
    %4161 = vmatprep.subr.mxu0 0.0
    %4162 = vmatpush2.msra.mxu0 0.0
    %4163 = vmatprep.subr.mxu0 0.0
    %4164 = vmatpush2.msra.mxu0 0.0
    %4165 = vmatprep.subr.mxu0 0.0
    %4166 = vmatpush2.msra.mxu0 0.0
    %4167 = vmatprep.subr.mxu0 0.0
    %4168 = vmatpush2.msra.mxu0 0.0
    %4169 = vmatprep.subr.mxu0 0.0
    %4170 = vmatpush2.msra.mxu0 0.0
    %4171 = vmatprep.subr.mxu0 0.0
    %4172 = vmatpush2.msra.mxu0 0.0
    %4173 = vmatprep.subr.mxu0 0.0
    %4174 = vmatpush2.msra.mxu0 0.0
    %4175 = vmatprep.subr.mxu0 0.0
    %4176 = vmatpush2.msra.mxu0 0.0
    %4177 = vmatprep.subr.mxu0 0.0
    %4178 = vmatpush2.msra.mxu0 0.0
    %4179 = vmatprep.subr.mxu0 0.0
    %4180 = vmatpush2.msra.mxu0 0.0
    %4181 = vmatprep.subr.mxu0 0.0
    %4182 = vmatpush2.msra.mxu0 0.0
    %4183 = vmatprep.mubr.f32.mxu0 0.0
    %4184 = vmatmul.mubr.f32.gmra.mxu0 %v4114
    %v4185 = vpop.f32.mrf.mxu0
    %v4186 = vadd.f32 0.0, %v4185
    %v4187 = vpop.f32.mrf.mxu0
    %4188 = vmatprep.mubr.f32.mxu0 0.0
    %4189 = vmatmul.mubr.f32.gmra.mxu0 %v4117
    %v4190 = vpop.f32.mrf.mxu0
    %v4191 = vadd.f32 0.0, %v4190
    %v4192 = vpop.f32.mrf.mxu0
    %4193 = vdwg.mxu0
    %v4194 = vadd.f32 %v3668, %v4186
    %v4195 = vadd.f32 %v3669, %v4191
    %v4196 = vld [vmem:[#allocation2 + $0x100] sm:$0xff]
    %v4197 = vld [vmem:[%s2 + $0x59] sm:$0x1]
    %v4198 = vlaneseq
    %v4199 = vshrl.u32 %v4198, 7
    %v4200 = vsub.s32 0, %v4199
    %v4201 = vrot.slane %v4197, %v4200
    %v4203 = vsel %vm189, %v4196, 0
    %4205 = vmatprep.subr.mxu0 0.0
    %4206 = vmatpush1.xpose.msra.mxu0 0.0
    %4207 = vmatprep.subr.mxu0 0.0
    %4208 = vmatpush1.xpose.msra.mxu0 0.0
    %4209 = vmatprep.subr.mxu0 0.0
    %4210 = vmatpush1.xpose.msra.mxu0 0.0
    %4211 = vmatprep.subr.mxu0 0.0
    %4212 = vmatpush1.xpose.msra.mxu0 0.0
    %4213 = vmatprep.subr.mxu0 0.0
    %4214 = vmatpush1.xpose.msra.mxu0 0.0
    %4215 = vmatprep.subr.mxu0 0.0
    %4216 = vmatpush1.xpose.msra.mxu0 0.0
    %4217 = vmatprep.subr.mxu0 0.0
    %4218 = vmatpush1.xpose.msra.mxu0 0.0
    %4219 = vmatprep.subr.mxu0 0.0
    %4220 = vmatpush1.xpose.msra.mxu0 0.0
    %4221 = vmatprep.subr.mxu0 0.0
    %4222 = vmatpush1.xpose.msra.mxu0 0.0
    %4223 = vmatprep.subr.mxu0 0.0
    %4224 = vmatpush1.xpose.msra.mxu0 0.0
    %4225 = vmatprep.subr.mxu0 0.0
    %4226 = vmatpush1.xpose.msra.mxu0 0.0
    %4227 = vmatprep.subr.mxu0 0.0
    %4228 = vmatpush1.xpose.msra.mxu0 0.0
    %4229 = vmatprep.subr.mxu0 0.0
    %4230 = vmatpush1.xpose.msra.mxu0 0.0
    %4231 = vmatprep.subr.mxu0 0.0
    %4232 = vmatpush1.xpose.msra.mxu0 0.0
    %4233 = vmatprep.subr.mxu0 0.0
    %4234 = vmatpush1.xpose.msra.mxu0 0.0
    %4235 = vmatprep.subr.mxu0 0.0
    %4236 = vmatpush1.xpose.msra.mxu0 %v4203
    %4237 = vmatprep.subr.mxu0 0.0
    %4238 = vmatpush2.xpose.msra.mxu0 0.0
    %4239 = vmatprep.subr.mxu0 0.0
    %4240 = vmatpush2.xpose.msra.mxu0 0.0
    %4241 = vmatprep.subr.mxu0 0.0
    %4242 = vmatpush2.xpose.msra.mxu0 0.0
    %4243 = vmatprep.subr.mxu0 0.0
    %4244 = vmatpush2.xpose.msra.mxu0 0.0
    %4245 = vmatprep.subr.mxu0 0.0
    %4246 = vmatpush2.xpose.msra.mxu0 0.0
    %4247 = vmatprep.subr.mxu0 0.0
    %4248 = vmatpush2.xpose.msra.mxu0 0.0
    %4249 = vmatprep.subr.mxu0 0.0
    %4250 = vmatpush2.xpose.msra.mxu0 0.0
    %4251 = vmatprep.subr.mxu0 0.0
    %4252 = vmatpush2.xpose.msra.mxu0 0.0
    %4253 = vmatprep.subr.mxu0 0.0
    %4254 = vmatpush2.xpose.msra.mxu0 0.0
    %4255 = vmatprep.subr.mxu0 0.0
    %4256 = vmatpush2.xpose.msra.mxu0 0.0
    %4257 = vmatprep.subr.mxu0 0.0
    %4258 = vmatpush2.xpose.msra.mxu0 0.0
    %4259 = vmatprep.subr.mxu0 0.0
    %4260 = vmatpush2.xpose.msra.mxu0 0.0
    %4261 = vmatprep.subr.mxu0 0.0
    %4262 = vmatpush2.xpose.msra.mxu0 0.0
    %4263 = vmatprep.subr.mxu0 0.0
    %4264 = vmatpush2.xpose.msra.mxu0 0.0
    %4265 = vmatprep.subr.mxu0 0.0
    %4266 = vmatpush2.xpose.msra.mxu0 0.0
    %4267 = vmatprep.subr.mxu0 0.0
    %4268 = vmatpush2.xpose.msra.mxu0 0.0
    %4269 = vmatprep.mubr.f32.mxu0 0.0
    %4270 = vmatmul.mubr.f32.gmra.mxu0 %v2619
    %v4271 = vpop.f32.mrf.mxu0
    %v4272 = vadd.f32 %v4201, %v4271
    %v4273 = vpop.f32.mrf.mxu0
    %4274 = vmatprep.mubr.f32.mxu0 0.0
    %4275 = vmatmul.mubr.f32.gmra.mxu0 %v2622
    %v4276 = vpop.f32.mrf.mxu0
    %v4277 = vadd.f32 %v4201, %v4276
    %v4278 = vpop.f32.mrf.mxu0
    %4279 = vdwg.mxu0
    %v4280 = vld [vmem:[#allocation2 + $0x120] sm:$0xff]
    %v4281 = vld [vmem:[%s2 + $0x5d] sm:$0x1]
    %v4282 = vlaneseq
    %v4283 = vshrl.u32 %v4282, 7
    %v4284 = vsub.s32 0, %v4283
    %v4285 = vrot.slane %v4281, %v4284
    %v4287 = vsel %vm189, %v4280, 0
    %4289 = vmatprep.subr.mxu0 0.0
    %4290 = vmatpush1.xpose.msra.mxu0 0.0
    %4291 = vmatprep.subr.mxu0 0.0
    %4292 = vmatpush1.xpose.msra.mxu0 0.0
    %4293 = vmatprep.subr.mxu0 0.0
    %4294 = vmatpush1.xpose.msra.mxu0 0.0
    %4295 = vmatprep.subr.mxu0 0.0
    %4296 = vmatpush1.xpose.msra.mxu0 0.0
    %4297 = vmatprep.subr.mxu0 0.0
    %4298 = vmatpush1.xpose.msra.mxu0 0.0
    %4299 = vmatprep.subr.mxu0 0.0
    %4300 = vmatpush1.xpose.msra.mxu0 0.0
    %4301 = vmatprep.subr.mxu0 0.0
    %4302 = vmatpush1.xpose.msra.mxu0 0.0
    %4303 = vmatprep.subr.mxu0 0.0
    %4304 = vmatpush1.xpose.msra.mxu0 0.0
    %4305 = vmatprep.subr.mxu0 0.0
    %4306 = vmatpush1.xpose.msra.mxu0 0.0
    %4307 = vmatprep.subr.mxu0 0.0
    %4308 = vmatpush1.xpose.msra.mxu0 0.0
    %4309 = vmatprep.subr.mxu0 0.0
    %4310 = vmatpush1.xpose.msra.mxu0 0.0
    %4311 = vmatprep.subr.mxu0 0.0
    %4312 = vmatpush1.xpose.msra.mxu0 0.0
    %4313 = vmatprep.subr.mxu0 0.0
    %4314 = vmatpush1.xpose.msra.mxu0 0.0
    %4315 = vmatprep.subr.mxu0 0.0
    %4316 = vmatpush1.xpose.msra.mxu0 0.0
    %4317 = vmatprep.subr.mxu0 0.0
    %4318 = vmatpush1.xpose.msra.mxu0 0.0
    %4319 = vmatprep.subr.mxu0 0.0
    %4320 = vmatpush1.xpose.msra.mxu0 %v4287
    %4321 = vmatprep.subr.mxu0 0.0
    %4322 = vmatpush2.xpose.msra.mxu0 0.0
    %4323 = vmatprep.subr.mxu0 0.0
    %4324 = vmatpush2.xpose.msra.mxu0 0.0
    %4325 = vmatprep.subr.mxu0 0.0
    %4326 = vmatpush2.xpose.msra.mxu0 0.0
    %4327 = vmatprep.subr.mxu0 0.0
    %4328 = vmatpush2.xpose.msra.mxu0 0.0
    %4329 = vmatprep.subr.mxu0 0.0
    %4330 = vmatpush2.xpose.msra.mxu0 0.0
    %4331 = vmatprep.subr.mxu0 0.0
    %4332 = vmatpush2.xpose.msra.mxu0 0.0
    %4333 = vmatprep.subr.mxu0 0.0
    %4334 = vmatpush2.xpose.msra.mxu0 0.0
    %4335 = vmatprep.subr.mxu0 0.0
    %4336 = vmatpush2.xpose.msra.mxu0 0.0
    %4337 = vmatprep.subr.mxu0 0.0
    %4338 = vmatpush2.xpose.msra.mxu0 0.0
    %4339 = vmatprep.subr.mxu0 0.0
    %4340 = vmatpush2.xpose.msra.mxu0 0.0
    %4341 = vmatprep.subr.mxu0 0.0
    %4342 = vmatpush2.xpose.msra.mxu0 0.0
    %4343 = vmatprep.subr.mxu0 0.0
    %4344 = vmatpush2.xpose.msra.mxu0 0.0
    %4345 = vmatprep.subr.mxu0 0.0
    %4346 = vmatpush2.xpose.msra.mxu0 0.0
    %4347 = vmatprep.subr.mxu0 0.0
    %4348 = vmatpush2.xpose.msra.mxu0 0.0
    %4349 = vmatprep.subr.mxu0 0.0
    %4350 = vmatpush2.xpose.msra.mxu0 0.0
    %4351 = vmatprep.subr.mxu0 0.0
    %4352 = vmatpush2.xpose.msra.mxu0 0.0
    %4353 = vmatprep.mubr.f32.mxu0 0.0
    %4354 = vmatmul.mubr.f32.gmra.mxu0 %v2619
    %v4355 = vpop.f32.mrf.mxu0
    %v4356 = vadd.f32 %v4285, %v4355
    %v4357 = vpop.f32.mrf.mxu0
    %4358 = vmatprep.mubr.f32.mxu0 0.0
    %4359 = vmatmul.mubr.f32.gmra.mxu0 %v2622
    %v4360 = vpop.f32.mrf.mxu0
    %v4361 = vadd.f32 %v4285, %v4360
    %v4362 = vpop.f32.mrf.mxu0
    %4363 = vdwg.mxu0
    %v4364 = vld [vmem:[#allocation2 + $0x140] sm:$0xff]
    %v4365 = vld [vmem:[%s2 + $0x61] sm:$0x1]
    %v4366 = vlaneseq
    %v4367 = vshrl.u32 %v4366, 7
    %v4368 = vsub.s32 0, %v4367
    %v4369 = vrot.slane %v4365, %v4368
    %v4371 = vsel %vm189, %v4364, 0
    %4373 = vmatprep.subr.mxu0 0.0
    %4374 = vmatpush1.xpose.msra.mxu0 0.0
    %4375 = vmatprep.subr.mxu0 0.0
    %4376 = vmatpush1.xpose.msra.mxu0 0.0
    %4377 = vmatprep.subr.mxu0 0.0
    %4378 = vmatpush1.xpose.msra.mxu0 0.0
    %4379 = vmatprep.subr.mxu0 0.0
    %4380 = vmatpush1.xpose.msra.mxu0 0.0
    %4381 = vmatprep.subr.mxu0 0.0
    %4382 = vmatpush1.xpose.msra.mxu0 0.0
    %4383 = vmatprep.subr.mxu0 0.0
    %4384 = vmatpush1.xpose.msra.mxu0 0.0
    %4385 = vmatprep.subr.mxu0 0.0
    %4386 = vmatpush1.xpose.msra.mxu0 0.0
    %4387 = vmatprep.subr.mxu0 0.0
    %4388 = vmatpush1.xpose.msra.mxu0 0.0
    %4389 = vmatprep.subr.mxu0 0.0
    %4390 = vmatpush1.xpose.msra.mxu0 0.0
    %4391 = vmatprep.subr.mxu0 0.0
    %4392 = vmatpush1.xpose.msra.mxu0 0.0
    %4393 = vmatprep.subr.mxu0 0.0
    %4394 = vmatpush1.xpose.msra.mxu0 0.0
    %4395 = vmatprep.subr.mxu0 0.0
    %4396 = vmatpush1.xpose.msra.mxu0 0.0
    %4397 = vmatprep.subr.mxu0 0.0
    %4398 = vmatpush1.xpose.msra.mxu0 0.0
    %4399 = vmatprep.subr.mxu0 0.0
    %4400 = vmatpush1.xpose.msra.mxu0 0.0
    %4401 = vmatprep.subr.mxu0 0.0
    %4402 = vmatpush1.xpose.msra.mxu0 0.0
    %4403 = vmatprep.subr.mxu0 0.0
    %4404 = vmatpush1.xpose.msra.mxu0 %v4371
    %4405 = vmatprep.subr.mxu0 0.0
    %4406 = vmatpush2.xpose.msra.mxu0 0.0
    %4407 = vmatprep.subr.mxu0 0.0
    %4408 = vmatpush2.xpose.msra.mxu0 0.0
    %4409 = vmatprep.subr.mxu0 0.0
    %4410 = vmatpush2.xpose.msra.mxu0 0.0
    %4411 = vmatprep.subr.mxu0 0.0
    %4412 = vmatpush2.xpose.msra.mxu0 0.0
    %4413 = vmatprep.subr.mxu0 0.0
    %4414 = vmatpush2.xpose.msra.mxu0 0.0
    %4415 = vmatprep.subr.mxu0 0.0
    %4416 = vmatpush2.xpose.msra.mxu0 0.0
    %4417 = vmatprep.subr.mxu0 0.0
    %4418 = vmatpush2.xpose.msra.mxu0 0.0
    %4419 = vmatprep.subr.mxu0 0.0
    %4420 = vmatpush2.xpose.msra.mxu0 0.0
    %4421 = vmatprep.subr.mxu0 0.0
    %4422 = vmatpush2.xpose.msra.mxu0 0.0
    %4423 = vmatprep.subr.mxu0 0.0
    %4424 = vmatpush2.xpose.msra.mxu0 0.0
    %4425 = vmatprep.subr.mxu0 0.0
    %4426 = vmatpush2.xpose.msra.mxu0 0.0
    %4427 = vmatprep.subr.mxu0 0.0
    %4428 = vmatpush2.xpose.msra.mxu0 0.0
    %4429 = vmatprep.subr.mxu0 0.0
    %4430 = vmatpush2.xpose.msra.mxu0 0.0
    %4431 = vmatprep.subr.mxu0 0.0
    %4432 = vmatpush2.xpose.msra.mxu0 0.0
    %4433 = vmatprep.subr.mxu0 0.0
    %4434 = vmatpush2.xpose.msra.mxu0 0.0
    %4435 = vmatprep.subr.mxu0 0.0
    %4436 = vmatpush2.xpose.msra.mxu0 0.0
    %4437 = vmatprep.mubr.f32.mxu0 0.0
    %4438 = vmatmul.mubr.f32.gmra.mxu0 %v2619
    %v4439 = vpop.f32.mrf.mxu0
    %v4440 = vadd.f32 %v4369, %v4439
    %v4441 = vpop.f32.mrf.mxu0
    %4442 = vmatprep.mubr.f32.mxu0 0.0
    %4443 = vmatmul.mubr.f32.gmra.mxu0 %v2622
    %v4444 = vpop.f32.mrf.mxu0
    %v4445 = vadd.f32 %v4369, %v4444
    %v4446 = vpop.f32.mrf.mxu0
    %4447 = vdwg.mxu0
    %v4449 = vsel %vm38, %v4272, 0
    %v4452 = vsel %vm38, %v4277, 0
    %v4455 = vsel %vm38, %v4356, 0
    %v4458 = vsel %vm38, %v4361, 0
    %4460 = vmatprep.subr.mxu0 0.0
    %4461 = vmatpush1.xpose.msra.mxu0 0.0
    %4462 = vmatprep.subr.mxu0 0.0
    %4463 = vmatpush1.xpose.msra.mxu0 0.0
    %4464 = vmatprep.subr.mxu0 0.0
    %4465 = vmatpush1.xpose.msra.mxu0 0.0
    %4466 = vmatprep.subr.mxu0 0.0
    %4467 = vmatpush1.xpose.msra.mxu0 0.0
    %4468 = vmatprep.subr.mxu0 0.0
    %4469 = vmatpush1.xpose.msra.mxu0 0.0
    %4470 = vmatprep.subr.mxu0 0.0
    %4471 = vmatpush1.xpose.msra.mxu0 0.0
    %4472 = vmatprep.subr.mxu0 0.0
    %4473 = vmatpush1.xpose.msra.mxu0 0.0
    %4474 = vmatprep.subr.mxu0 0.0
    %4475 = vmatpush1.xpose.msra.mxu0 0.0
    %4476 = vmatprep.subr.mxu0 0.0
    %4477 = vmatpush1.xpose.msra.mxu0 0.0
    %4478 = vmatprep.subr.mxu0 0.0
    %4479 = vmatpush1.xpose.msra.mxu0 0.0
    %4480 = vmatprep.subr.mxu0 0.0
    %4481 = vmatpush1.xpose.msra.mxu0 0.0
    %4482 = vmatprep.subr.mxu0 0.0
    %4483 = vmatpush1.xpose.msra.mxu0 0.0
    %4484 = vmatprep.subr.mxu0 0.0
    %4485 = vmatpush1.xpose.msra.mxu0 0.0
    %4486 = vmatprep.subr.mxu0 0.0
    %4487 = vmatpush1.xpose.msra.mxu0 0.0
    %4488 = vmatprep.subr.mxu0 0.0
    %4489 = vmatpush1.xpose.msra.mxu0 %v4458
    %4490 = vmatprep.subr.mxu0 0.0
    %4491 = vmatpush1.xpose.msra.mxu0 %v4455
    %4492 = vmatprep.subr.mxu0 0.0
    %4493 = vmatpush2.xpose.msra.mxu0 0.0
    %4494 = vmatprep.subr.mxu0 0.0
    %4495 = vmatpush2.xpose.msra.mxu0 0.0
    %4496 = vmatprep.subr.mxu0 0.0
    %4497 = vmatpush2.xpose.msra.mxu0 0.0
    %4498 = vmatprep.subr.mxu0 0.0
    %4499 = vmatpush2.xpose.msra.mxu0 0.0
    %4500 = vmatprep.subr.mxu0 0.0
    %4501 = vmatpush2.xpose.msra.mxu0 0.0
    %4502 = vmatprep.subr.mxu0 0.0
    %4503 = vmatpush2.xpose.msra.mxu0 0.0
    %4504 = vmatprep.subr.mxu0 0.0
    %4505 = vmatpush2.xpose.msra.mxu0 0.0
    %4506 = vmatprep.subr.mxu0 0.0
    %4507 = vmatpush2.xpose.msra.mxu0 0.0
    %4508 = vmatprep.subr.mxu0 0.0
    %4509 = vmatpush2.xpose.msra.mxu0 0.0
    %4510 = vmatprep.subr.mxu0 0.0
    %4511 = vmatpush2.xpose.msra.mxu0 0.0
    %4512 = vmatprep.subr.mxu0 0.0
    %4513 = vmatpush2.xpose.msra.mxu0 0.0
    %4514 = vmatprep.subr.mxu0 0.0
    %4515 = vmatpush2.xpose.msra.mxu0 0.0
    %4516 = vmatprep.subr.mxu0 0.0
    %4517 = vmatpush2.xpose.msra.mxu0 0.0
    %4518 = vmatprep.subr.mxu0 0.0
    %4519 = vmatpush2.xpose.msra.mxu0 0.0
    %4520 = vmatprep.subr.mxu0 0.0
    %4521 = vmatpush2.xpose.msra.mxu0 0.0
    %4522 = vmatprep.subr.mxu0 0.0
    %4523 = vmatpush2.xpose.msra.mxu0 0.0
    %4524 = vmatprep.mubr.f32.mxu0 0.0
    %4525 = vmatmul.mubr.f32.gmra.mxu0 %v4449
    %v4526 = vpop.f32.mrf.mxu0
    %v4527 = vadd.f32 %v176, %v4526
    %v4528 = vpop.f32.mrf.mxu0
    %4529 = vmatprep.mubr.f32.mxu0 0.0
    %4530 = vmatmul.mubr.f32.gmra.mxu0 %v4452
    %v4531 = vpop.f32.mrf.mxu0
    %v4532 = vadd.f32 %v177, %v4531
    %v4533 = vpop.f32.mrf.mxu0
    %4534 = vdwg.mxu0
    %v4535 = vsel %vm529, %v4527, -inf
    %4536 = vmax.xlane.f32.xlu0 %v4535
    %v4537 = vpop.xlane.xlu0 %4536
    %v4538 = vsel %vm529, %v4532, -inf
    %4539 = vmax.xlane.f32.xlu0 %v4538
    %v4540 = vpop.xlane.xlu0 %4539
    %v4541 = vsub.f32 %v4527, %v4537
    %v4542 = vsub.f32 %v4532, %v4540
    %v4543 = vmul.f32 %v4541, 1.442695
    %v4544 = vpow.pop %v4543
    %v4545 = vmul.f32 %v4542, 1.442695
    %v4546 = vpow.pop %v4545
    %v4547 = vsel %vm529, %v4544, 0.0
    %4548 = vadd.xlane.f32.xlu0 %v4547
    %v4549 = vpop.xlane.xlu0 %4548
    %v4550 = vsel %vm529, %v4546, 0.0
    %4551 = vadd.xlane.f32.xlu0 %v4550
    %v4552 = vpop.xlane.xlu0 %4551
    %v4553 = vrcp.pop %v4549
    %v4554 = vrcp.pop %v4552
    %v4555 = vmul.f32 %v4544, %v4553
    %v4556 = vmul.f32 %v4546, %v4554
    %v4558 = vsel %vm529, %v4555, 0
    %v4561 = vsel %vm529, %v4556, 0
    %4563 = vmatprep.subr.mxu0 0.0
    %4564 = vmatpush1.msra.mxu0 0.0
    %4565 = vmatprep.subr.mxu0 0.0
    %4566 = vmatpush1.msra.mxu0 0.0
    %4567 = vmatprep.subr.mxu0 0.0
    %4568 = vmatpush1.msra.mxu0 0.0
    %4569 = vmatprep.subr.mxu0 0.0
    %4570 = vmatpush1.msra.mxu0 0.0
    %4571 = vmatprep.subr.mxu0 0.0
    %4572 = vmatpush1.msra.mxu0 0.0
    %4573 = vmatprep.subr.mxu0 0.0
    %4574 = vmatpush1.msra.mxu0 0.0
    %4575 = vmatprep.subr.mxu0 0.0
    %4576 = vmatpush1.msra.mxu0 0.0
    %4577 = vmatprep.subr.mxu0 0.0
    %4578 = vmatpush1.msra.mxu0 0.0
    %4579 = vmatprep.subr.mxu0 0.0
    %4580 = vmatpush1.msra.mxu0 0.0
    %4581 = vmatprep.subr.mxu0 0.0
    %4582 = vmatpush1.msra.mxu0 0.0
    %4583 = vmatprep.subr.mxu0 0.0
    %4584 = vmatpush1.msra.mxu0 0.0
    %4585 = vmatprep.subr.mxu0 0.0
    %4586 = vmatpush1.msra.mxu0 0.0
    %4587 = vmatprep.subr.mxu0 0.0
    %4588 = vmatpush1.msra.mxu0 0.0
    %4589 = vmatprep.subr.mxu0 0.0
    %4590 = vmatpush1.msra.mxu0 0.0
    %4591 = vmatprep.subr.mxu0 0.0
    %4592 = vmatpush1.msra.mxu0 %v4445
    %4593 = vmatprep.subr.mxu0 0.0
    %4594 = vmatpush1.msra.mxu0 %v4440
    %4595 = vmatprep.subr.mxu0 0.0
    %4596 = vmatpush2.msra.mxu0 0.0
    %4597 = vmatprep.subr.mxu0 0.0
    %4598 = vmatpush2.msra.mxu0 0.0
    %4599 = vmatprep.subr.mxu0 0.0
    %4600 = vmatpush2.msra.mxu0 0.0
    %4601 = vmatprep.subr.mxu0 0.0
    %4602 = vmatpush2.msra.mxu0 0.0
    %4603 = vmatprep.subr.mxu0 0.0
    %4604 = vmatpush2.msra.mxu0 0.0
    %4605 = vmatprep.subr.mxu0 0.0
    %4606 = vmatpush2.msra.mxu0 0.0
    %4607 = vmatprep.subr.mxu0 0.0
    %4608 = vmatpush2.msra.mxu0 0.0
    %4609 = vmatprep.subr.mxu0 0.0
    %4610 = vmatpush2.msra.mxu0 0.0
    %4611 = vmatprep.subr.mxu0 0.0
    %4612 = vmatpush2.msra.mxu0 0.0
    %4613 = vmatprep.subr.mxu0 0.0
    %4614 = vmatpush2.msra.mxu0 0.0
    %4615 = vmatprep.subr.mxu0 0.0
    %4616 = vmatpush2.msra.mxu0 0.0
    %4617 = vmatprep.subr.mxu0 0.0
    %4618 = vmatpush2.msra.mxu0 0.0
    %4619 = vmatprep.subr.mxu0 0.0
    %4620 = vmatpush2.msra.mxu0 0.0
    %4621 = vmatprep.subr.mxu0 0.0
    %4622 = vmatpush2.msra.mxu0 0.0
    %4623 = vmatprep.subr.mxu0 0.0
    %4624 = vmatpush2.msra.mxu0 0.0
    %4625 = vmatprep.subr.mxu0 0.0
    %4626 = vmatpush2.msra.mxu0 0.0
    %4627 = vmatprep.mubr.f32.mxu0 0.0
    %4628 = vmatmul.mubr.f32.gmra.mxu0 %v4558
    %v4629 = vpop.f32.mrf.mxu0
    %v4630 = vadd.f32 0.0, %v4629
    %v4631 = vpop.f32.mrf.mxu0
    %4632 = vmatprep.mubr.f32.mxu0 0.0
    %4633 = vmatmul.mubr.f32.gmra.mxu0 %v4561
    %v4634 = vpop.f32.mrf.mxu0
    %v4635 = vadd.f32 0.0, %v4634
    %v4636 = vpop.f32.mrf.mxu0
    %4637 = vdwg.mxu0
    %v4638 = vld [vmem:[#allocation2 + $0x160] sm:$0xff]
    %v4640 = vsel %vm38, %v4630, 0
    %v4643 = vsel %vm38, %v4635, 0
    %4645 = vmatprep.subr.mxu0 0.0
    %4646 = vmatpush1.msra.mxu0 0.0
    %4647 = vmatprep.subr.mxu0 0.0
    %4648 = vmatpush1.msra.mxu0 0.0
    %4649 = vmatprep.subr.mxu0 0.0
    %4650 = vmatpush1.msra.mxu0 0.0
    %4651 = vmatprep.subr.mxu0 0.0
    %4652 = vmatpush1.msra.mxu0 0.0
    %4653 = vmatprep.subr.mxu0 0.0
    %4654 = vmatpush1.msra.mxu0 0.0
    %4655 = vmatprep.subr.mxu0 0.0
    %4656 = vmatpush1.msra.mxu0 0.0
    %4657 = vmatprep.subr.mxu0 0.0
    %4658 = vmatpush1.msra.mxu0 0.0
    %4659 = vmatprep.subr.mxu0 0.0
    %4660 = vmatpush1.msra.mxu0 0.0
    %4661 = vmatprep.subr.mxu0 0.0
    %4662 = vmatpush1.msra.mxu0 0.0
    %4663 = vmatprep.subr.mxu0 0.0
    %4664 = vmatpush1.msra.mxu0 0.0
    %4665 = vmatprep.subr.mxu0 0.0
    %4666 = vmatpush1.msra.mxu0 0.0
    %4667 = vmatprep.subr.mxu0 0.0
    %4668 = vmatpush1.msra.mxu0 0.0
    %4669 = vmatprep.subr.mxu0 0.0
    %4670 = vmatpush1.msra.mxu0 0.0
    %4671 = vmatprep.subr.mxu0 0.0
    %4672 = vmatpush1.msra.mxu0 0.0
    %4673 = vmatprep.subr.mxu0 0.0
    %4674 = vmatpush1.msra.mxu0 0.0
    %4675 = vmatprep.subr.mxu0 0.0
    %4676 = vmatpush1.msra.mxu0 %v4638
    %4677 = vmatprep.subr.mxu0 0.0
    %4678 = vmatpush2.msra.mxu0 0.0
    %4679 = vmatprep.subr.mxu0 0.0
    %4680 = vmatpush2.msra.mxu0 0.0
    %4681 = vmatprep.subr.mxu0 0.0
    %4682 = vmatpush2.msra.mxu0 0.0
    %4683 = vmatprep.subr.mxu0 0.0
    %4684 = vmatpush2.msra.mxu0 0.0
    %4685 = vmatprep.subr.mxu0 0.0
    %4686 = vmatpush2.msra.mxu0 0.0
    %4687 = vmatprep.subr.mxu0 0.0
    %4688 = vmatpush2.msra.mxu0 0.0
    %4689 = vmatprep.subr.mxu0 0.0
    %4690 = vmatpush2.msra.mxu0 0.0
    %4691 = vmatprep.subr.mxu0 0.0
    %4692 = vmatpush2.msra.mxu0 0.0
    %4693 = vmatprep.subr.mxu0 0.0
    %4694 = vmatpush2.msra.mxu0 0.0
    %4695 = vmatprep.subr.mxu0 0.0
    %4696 = vmatpush2.msra.mxu0 0.0
    %4697 = vmatprep.subr.mxu0 0.0
    %4698 = vmatpush2.msra.mxu0 0.0
    %4699 = vmatprep.subr.mxu0 0.0
    %4700 = vmatpush2.msra.mxu0 0.0
    %4701 = vmatprep.subr.mxu0 0.0
    %4702 = vmatpush2.msra.mxu0 0.0
    %4703 = vmatprep.subr.mxu0 0.0
    %4704 = vmatpush2.msra.mxu0 0.0
    %4705 = vmatprep.subr.mxu0 0.0
    %4706 = vmatpush2.msra.mxu0 0.0
    %4707 = vmatprep.subr.mxu0 0.0
    %4708 = vmatpush2.msra.mxu0 0.0
    %4709 = vmatprep.mubr.f32.mxu0 0.0
    %4710 = vmatmul.mubr.f32.gmra.mxu0 %v4640
    %v4711 = vpop.f32.mrf.mxu0
    %v4712 = vadd.f32 0.0, %v4711
    %v4713 = vpop.f32.mrf.mxu0
    %4714 = vmatprep.mubr.f32.mxu0 0.0
    %4715 = vmatmul.mubr.f32.gmra.mxu0 %v4643
    %v4716 = vpop.f32.mrf.mxu0
    %v4717 = vadd.f32 0.0, %v4716
    %v4718 = vpop.f32.mrf.mxu0
    %4719 = vdwg.mxu0
    %v4720 = vadd.f32 %v4194, %v4712
    %v4721 = vadd.f32 %v4195, %v4717
    %v4722 = vadd.f32 %v139, %v4720
    %v4723 = vadd.f32 %v140, %v4721
    %v4724 = vsel %vm189, %v4722, 0.0
    %4725 = vadd.xlane.f32.xlu0 %v4724
    %v4726 = vpop.xlane.xlu0 %4725
    %v4727 = vsel %vm189, %v4723, 0.0
    %4728 = vadd.xlane.f32.xlu0 %v4727
    %v4729 = vpop.xlane.xlu0 %4728
    %v4730 = vmul.f32 %v4726, %v2303
    %v4731 = vmul.f32 %v4729, %v2303
    %v4732 = vsub.f32 %v4722, %v4730
    %v4733 = vsub.f32 %v4723, %v4731
    %v4734 = vmul.f32 %v4732, %v4732
    %v4735 = vmul.f32 %v4733, %v4733
    %v4736 = vsel %vm189, %v4734, 0.0
    %4737 = vadd.xlane.f32.xlu0 %v4736
    %v4738 = vpop.xlane.xlu0 %4737
    %v4739 = vsel %vm189, %v4735, 0.0
    %4740 = vadd.xlane.f32.xlu0 %v4739
    %v4741 = vpop.xlane.xlu0 %4740
    %v4742 = vmul.f32 %v4738, %v2303
    %v4743 = vmul.f32 %v4741, %v2303
    %v4744 = vadd.f32 %v4742, 1e-05
    %v4745 = vadd.f32 %v4743, 1e-05
    %v4746 = vrsqrt.pop %v4744
    %v4747 = vrsqrt.pop %v4745
    %v4748 = vmul.f32 %v4732, %v4746
    %v4749 = vmul.f32 %v4733, %v4747
    %v4750 = vld [vmem:[%s2 + $0x63] sm:$0x1]
    %v4751 = vlaneseq
    %v4752 = vshrl.u32 %v4751, 7
    %v4753 = vsub.s32 0, %v4752
    %v4754 = vrot.slane %v4750, %v4753
    %v4755 = vmul.f32 %v4748, %v4754
    %v4756 = vmul.f32 %v4749, %v4754
    %v4757 = vld [vmem:[%s2 + $0x64] sm:$0x1]
    %v4758 = vlaneseq
    %v4759 = vshrl.u32 %v4758, 7
    %v4760 = vsub.s32 0, %v4759
    %v4761 = vrot.slane %v4757, %v4760
    %v4762 = vadd.f32 %v4755, %v4761
    %v4763 = vadd.f32 %v4756, %v4761
    %v4764 = vsel %vm170, 0.0, -1e+30
    %v4765 = vsel %vm171, 0.0, -1e+30
    %v4766 = vld [vmem:[%s2 + $0x71] sm:$0x1]
    %v4767 = vlaneseq
    %v4768 = vshrl.u32 %v4767, 7
    %v4769 = vsub.s32 0, %v4768
    %v4770 = vrot.slane %v4766, %v4769
    %v4771 = vld [vmem:[#allocation2 + $0x168] sm:$0xff]
    %v4772 = vld [vmem:[%s2 + $0x65] sm:$0x1]
    %v4773 = vlaneseq
    %v4774 = vshrl.u32 %v4773, 7
    %v4775 = vsub.s32 0, %v4774
    %v4776 = vrot.slane %v4772, %v4775
    %v4778 = vsel %vm189, %v4762, 0
    %v4781 = vsel %vm189, %v4763, 0
    %v4784 = vsel %vm189, %v4771, 0
    %4786 = vmatprep.subr.mxu0 0.0
    %4787 = vmatpush1.xpose.msra.mxu0 0.0
    %4788 = vmatprep.subr.mxu0 0.0
    %4789 = vmatpush1.xpose.msra.mxu0 0.0
    %4790 = vmatprep.subr.mxu0 0.0
    %4791 = vmatpush1.xpose.msra.mxu0 0.0
    %4792 = vmatprep.subr.mxu0 0.0
    %4793 = vmatpush1.xpose.msra.mxu0 0.0
    %4794 = vmatprep.subr.mxu0 0.0
    %4795 = vmatpush1.xpose.msra.mxu0 0.0
    %4796 = vmatprep.subr.mxu0 0.0
    %4797 = vmatpush1.xpose.msra.mxu0 0.0
    %4798 = vmatprep.subr.mxu0 0.0
    %4799 = vmatpush1.xpose.msra.mxu0 0.0
    %4800 = vmatprep.subr.mxu0 0.0
    %4801 = vmatpush1.xpose.msra.mxu0 0.0
    %4802 = vmatprep.subr.mxu0 0.0
    %4803 = vmatpush1.xpose.msra.mxu0 0.0
    %4804 = vmatprep.subr.mxu0 0.0
    %4805 = vmatpush1.xpose.msra.mxu0 0.0
    %4806 = vmatprep.subr.mxu0 0.0
    %4807 = vmatpush1.xpose.msra.mxu0 0.0
    %4808 = vmatprep.subr.mxu0 0.0
    %4809 = vmatpush1.xpose.msra.mxu0 0.0
    %4810 = vmatprep.subr.mxu0 0.0
    %4811 = vmatpush1.xpose.msra.mxu0 0.0
    %4812 = vmatprep.subr.mxu0 0.0
    %4813 = vmatpush1.xpose.msra.mxu0 0.0
    %4814 = vmatprep.subr.mxu0 0.0
    %4815 = vmatpush1.xpose.msra.mxu0 0.0
    %4816 = vmatprep.subr.mxu0 0.0
    %4817 = vmatpush1.xpose.msra.mxu0 %v4784
    %4818 = vmatprep.subr.mxu0 0.0
    %4819 = vmatpush2.xpose.msra.mxu0 0.0
    %4820 = vmatprep.subr.mxu0 0.0
    %4821 = vmatpush2.xpose.msra.mxu0 0.0
    %4822 = vmatprep.subr.mxu0 0.0
    %4823 = vmatpush2.xpose.msra.mxu0 0.0
    %4824 = vmatprep.subr.mxu0 0.0
    %4825 = vmatpush2.xpose.msra.mxu0 0.0
    %4826 = vmatprep.subr.mxu0 0.0
    %4827 = vmatpush2.xpose.msra.mxu0 0.0
    %4828 = vmatprep.subr.mxu0 0.0
    %4829 = vmatpush2.xpose.msra.mxu0 0.0
    %4830 = vmatprep.subr.mxu0 0.0
    %4831 = vmatpush2.xpose.msra.mxu0 0.0
    %4832 = vmatprep.subr.mxu0 0.0
    %4833 = vmatpush2.xpose.msra.mxu0 0.0
    %4834 = vmatprep.subr.mxu0 0.0
    %4835 = vmatpush2.xpose.msra.mxu0 0.0
    %4836 = vmatprep.subr.mxu0 0.0
    %4837 = vmatpush2.xpose.msra.mxu0 0.0
    %4838 = vmatprep.subr.mxu0 0.0
    %4839 = vmatpush2.xpose.msra.mxu0 0.0
    %4840 = vmatprep.subr.mxu0 0.0
    %4841 = vmatpush2.xpose.msra.mxu0 0.0
    %4842 = vmatprep.subr.mxu0 0.0
    %4843 = vmatpush2.xpose.msra.mxu0 0.0
    %4844 = vmatprep.subr.mxu0 0.0
    %4845 = vmatpush2.xpose.msra.mxu0 0.0
    %4846 = vmatprep.subr.mxu0 0.0
    %4847 = vmatpush2.xpose.msra.mxu0 0.0
    %4848 = vmatprep.subr.mxu0 0.0
    %4849 = vmatpush2.xpose.msra.mxu0 0.0
    %4850 = vmatprep.mubr.f32.mxu0 0.0
    %4851 = vmatmul.mubr.f32.gmra.mxu0 %v4778
    %v4852 = vpop.f32.mrf.mxu0
    %v4853 = vadd.f32 %v4776, %v4852
    %v4854 = vpop.f32.mrf.mxu0
    %4855 = vmatprep.mubr.f32.mxu0 0.0
    %4856 = vmatmul.mubr.f32.gmra.mxu0 %v4781
    %v4857 = vpop.f32.mrf.mxu0
    %v4858 = vadd.f32 %v4776, %v4857
    %v4859 = vpop.f32.mrf.mxu0
    %4860 = vdwg.mxu0
    %v4861 = vld [vmem:[#allocation2 + $0x188] sm:$0xff]
    %v4862 = vld [vmem:[%s2 + $0x69] sm:$0x1]
    %v4863 = vlaneseq
    %v4864 = vshrl.u32 %v4863, 7
    %v4865 = vsub.s32 0, %v4864
    %v4866 = vrot.slane %v4862, %v4865
    %v4868 = vsel %vm189, %v2605, 0
    %v4871 = vsel %vm189, %v2606, 0
    %v4874 = vsel %vm189, %v4861, 0
    %4876 = vmatprep.subr.mxu0 0.0
    %4877 = vmatpush1.xpose.msra.mxu0 0.0
    %4878 = vmatprep.subr.mxu0 0.0
    %4879 = vmatpush1.xpose.msra.mxu0 0.0
    %4880 = vmatprep.subr.mxu0 0.0
    %4881 = vmatpush1.xpose.msra.mxu0 0.0
    %4882 = vmatprep.subr.mxu0 0.0
    %4883 = vmatpush1.xpose.msra.mxu0 0.0
    %4884 = vmatprep.subr.mxu0 0.0
    %4885 = vmatpush1.xpose.msra.mxu0 0.0
    %4886 = vmatprep.subr.mxu0 0.0
    %4887 = vmatpush1.xpose.msra.mxu0 0.0
    %4888 = vmatprep.subr.mxu0 0.0
    %4889 = vmatpush1.xpose.msra.mxu0 0.0
    %4890 = vmatprep.subr.mxu0 0.0
    %4891 = vmatpush1.xpose.msra.mxu0 0.0
    %4892 = vmatprep.subr.mxu0 0.0
    %4893 = vmatpush1.xpose.msra.mxu0 0.0
    %4894 = vmatprep.subr.mxu0 0.0
    %4895 = vmatpush1.xpose.msra.mxu0 0.0
    %4896 = vmatprep.subr.mxu0 0.0
    %4897 = vmatpush1.xpose.msra.mxu0 0.0
    %4898 = vmatprep.subr.mxu0 0.0
    %4899 = vmatpush1.xpose.msra.mxu0 0.0
    %4900 = vmatprep.subr.mxu0 0.0
    %4901 = vmatpush1.xpose.msra.mxu0 0.0
    %4902 = vmatprep.subr.mxu0 0.0
    %4903 = vmatpush1.xpose.msra.mxu0 0.0
    %4904 = vmatprep.subr.mxu0 0.0
    %4905 = vmatpush1.xpose.msra.mxu0 0.0
    %4906 = vmatprep.subr.mxu0 0.0
    %4907 = vmatpush1.xpose.msra.mxu0 %v4874
    %4908 = vmatprep.subr.mxu0 0.0
    %4909 = vmatpush2.xpose.msra.mxu0 0.0
    %4910 = vmatprep.subr.mxu0 0.0
    %4911 = vmatpush2.xpose.msra.mxu0 0.0
    %4912 = vmatprep.subr.mxu0 0.0
    %4913 = vmatpush2.xpose.msra.mxu0 0.0
    %4914 = vmatprep.subr.mxu0 0.0
    %4915 = vmatpush2.xpose.msra.mxu0 0.0
    %4916 = vmatprep.subr.mxu0 0.0
    %4917 = vmatpush2.xpose.msra.mxu0 0.0
    %4918 = vmatprep.subr.mxu0 0.0
    %4919 = vmatpush2.xpose.msra.mxu0 0.0
    %4920 = vmatprep.subr.mxu0 0.0
    %4921 = vmatpush2.xpose.msra.mxu0 0.0
    %4922 = vmatprep.subr.mxu0 0.0
    %4923 = vmatpush2.xpose.msra.mxu0 0.0
    %4924 = vmatprep.subr.mxu0 0.0
    %4925 = vmatpush2.xpose.msra.mxu0 0.0
    %4926 = vmatprep.subr.mxu0 0.0
    %4927 = vmatpush2.xpose.msra.mxu0 0.0
    %4928 = vmatprep.subr.mxu0 0.0
    %4929 = vmatpush2.xpose.msra.mxu0 0.0
    %4930 = vmatprep.subr.mxu0 0.0
    %4931 = vmatpush2.xpose.msra.mxu0 0.0
    %4932 = vmatprep.subr.mxu0 0.0
    %4933 = vmatpush2.xpose.msra.mxu0 0.0
    %4934 = vmatprep.subr.mxu0 0.0
    %4935 = vmatpush2.xpose.msra.mxu0 0.0
    %4936 = vmatprep.subr.mxu0 0.0
    %4937 = vmatpush2.xpose.msra.mxu0 0.0
    %4938 = vmatprep.subr.mxu0 0.0
    %4939 = vmatpush2.xpose.msra.mxu0 0.0
    %4940 = vmatprep.mubr.f32.mxu0 0.0
    %4941 = vmatmul.mubr.f32.gmra.mxu0 %v4868
    %v4942 = vpop.f32.mrf.mxu0
    %v4943 = vadd.f32 %v4866, %v4942
    %v4944 = vpop.f32.mrf.mxu0
    %4945 = vmatprep.mubr.f32.mxu0 0.0
    %4946 = vmatmul.mubr.f32.gmra.mxu0 %v4871
    %v4947 = vpop.f32.mrf.mxu0
    %v4948 = vadd.f32 %v4866, %v4947
    %v4949 = vpop.f32.mrf.mxu0
    %4950 = vdwg.mxu0
    %v4951 = vld [vmem:[#allocation2 + $0x1a8] sm:$0xff]
    %v4952 = vld [vmem:[%s2 + $0x6d] sm:$0x1]
    %v4953 = vlaneseq
    %v4954 = vshrl.u32 %v4953, 7
    %v4955 = vsub.s32 0, %v4954
    %v4956 = vrot.slane %v4952, %v4955
    %v4958 = vsel %vm189, %v4951, 0
    %4960 = vmatprep.subr.mxu0 0.0
    %4961 = vmatpush1.xpose.msra.mxu0 0.0
    %4962 = vmatprep.subr.mxu0 0.0
    %4963 = vmatpush1.xpose.msra.mxu0 0.0
    %4964 = vmatprep.subr.mxu0 0.0
    %4965 = vmatpush1.xpose.msra.mxu0 0.0
    %4966 = vmatprep.subr.mxu0 0.0
    %4967 = vmatpush1.xpose.msra.mxu0 0.0
    %4968 = vmatprep.subr.mxu0 0.0
    %4969 = vmatpush1.xpose.msra.mxu0 0.0
    %4970 = vmatprep.subr.mxu0 0.0
    %4971 = vmatpush1.xpose.msra.mxu0 0.0
    %4972 = vmatprep.subr.mxu0 0.0
    %4973 = vmatpush1.xpose.msra.mxu0 0.0
    %4974 = vmatprep.subr.mxu0 0.0
    %4975 = vmatpush1.xpose.msra.mxu0 0.0
    %4976 = vmatprep.subr.mxu0 0.0
    %4977 = vmatpush1.xpose.msra.mxu0 0.0
    %4978 = vmatprep.subr.mxu0 0.0
    %4979 = vmatpush1.xpose.msra.mxu0 0.0
    %4980 = vmatprep.subr.mxu0 0.0
    %4981 = vmatpush1.xpose.msra.mxu0 0.0
    %4982 = vmatprep.subr.mxu0 0.0
    %4983 = vmatpush1.xpose.msra.mxu0 0.0
    %4984 = vmatprep.subr.mxu0 0.0
    %4985 = vmatpush1.xpose.msra.mxu0 0.0
    %4986 = vmatprep.subr.mxu0 0.0
    %4987 = vmatpush1.xpose.msra.mxu0 0.0
    %4988 = vmatprep.subr.mxu0 0.0
    %4989 = vmatpush1.xpose.msra.mxu0 0.0
    %4990 = vmatprep.subr.mxu0 0.0
    %4991 = vmatpush1.xpose.msra.mxu0 %v4958
    %4992 = vmatprep.subr.mxu0 0.0
    %4993 = vmatpush2.xpose.msra.mxu0 0.0
    %4994 = vmatprep.subr.mxu0 0.0
    %4995 = vmatpush2.xpose.msra.mxu0 0.0
    %4996 = vmatprep.subr.mxu0 0.0
    %4997 = vmatpush2.xpose.msra.mxu0 0.0
    %4998 = vmatprep.subr.mxu0 0.0
    %4999 = vmatpush2.xpose.msra.mxu0 0.0
    %5000 = vmatprep.subr.mxu0 0.0
    %5001 = vmatpush2.xpose.msra.mxu0 0.0
    %5002 = vmatprep.subr.mxu0 0.0
    %5003 = vmatpush2.xpose.msra.mxu0 0.0
    %5004 = vmatprep.subr.mxu0 0.0
    %5005 = vmatpush2.xpose.msra.mxu0 0.0
    %5006 = vmatprep.subr.mxu0 0.0
    %5007 = vmatpush2.xpose.msra.mxu0 0.0
    %5008 = vmatprep.subr.mxu0 0.0
    %5009 = vmatpush2.xpose.msra.mxu0 0.0
    %5010 = vmatprep.subr.mxu0 0.0
    %5011 = vmatpush2.xpose.msra.mxu0 0.0
    %5012 = vmatprep.subr.mxu0 0.0
    %5013 = vmatpush2.xpose.msra.mxu0 0.0
    %5014 = vmatprep.subr.mxu0 0.0
    %5015 = vmatpush2.xpose.msra.mxu0 0.0
    %5016 = vmatprep.subr.mxu0 0.0
    %5017 = vmatpush2.xpose.msra.mxu0 0.0
    %5018 = vmatprep.subr.mxu0 0.0
    %5019 = vmatpush2.xpose.msra.mxu0 0.0
    %5020 = vmatprep.subr.mxu0 0.0
    %5021 = vmatpush2.xpose.msra.mxu0 0.0
    %5022 = vmatprep.subr.mxu0 0.0
    %5023 = vmatpush2.xpose.msra.mxu0 0.0
    %5024 = vmatprep.mubr.f32.mxu0 0.0
    %5025 = vmatmul.mubr.f32.gmra.mxu0 %v4868
    %v5026 = vpop.f32.mrf.mxu0
    %v5027 = vadd.f32 %v4956, %v5026
    %v5028 = vpop.f32.mrf.mxu0
    %5029 = vmatprep.mubr.f32.mxu0 0.0
    %5030 = vmatmul.mubr.f32.gmra.mxu0 %v4871
    %v5031 = vpop.f32.mrf.mxu0
    %v5032 = vadd.f32 %v4956, %v5031
    %v5033 = vpop.f32.mrf.mxu0
    %5034 = vdwg.mxu0
    %v5036 = vsel %vm38, %v4853, 0
    %v5039 = vsel %vm38, %v4858, 0
    %v5042 = vsel %vm38, %v4943, 0
    %v5045 = vsel %vm38, %v4948, 0
    %5047 = vmatprep.subr.mxu0 0.0
    %5048 = vmatpush1.xpose.msra.mxu0 0.0
    %5049 = vmatprep.subr.mxu0 0.0
    %5050 = vmatpush1.xpose.msra.mxu0 0.0
    %5051 = vmatprep.subr.mxu0 0.0
    %5052 = vmatpush1.xpose.msra.mxu0 0.0
    %5053 = vmatprep.subr.mxu0 0.0
    %5054 = vmatpush1.xpose.msra.mxu0 0.0
    %5055 = vmatprep.subr.mxu0 0.0
    %5056 = vmatpush1.xpose.msra.mxu0 0.0
    %5057 = vmatprep.subr.mxu0 0.0
    %5058 = vmatpush1.xpose.msra.mxu0 0.0
    %5059 = vmatprep.subr.mxu0 0.0
    %5060 = vmatpush1.xpose.msra.mxu0 0.0
    %5061 = vmatprep.subr.mxu0 0.0
    %5062 = vmatpush1.xpose.msra.mxu0 0.0
    %5063 = vmatprep.subr.mxu0 0.0
    %5064 = vmatpush1.xpose.msra.mxu0 0.0
    %5065 = vmatprep.subr.mxu0 0.0
    %5066 = vmatpush1.xpose.msra.mxu0 0.0
    %5067 = vmatprep.subr.mxu0 0.0
    %5068 = vmatpush1.xpose.msra.mxu0 0.0
    %5069 = vmatprep.subr.mxu0 0.0
    %5070 = vmatpush1.xpose.msra.mxu0 0.0
    %5071 = vmatprep.subr.mxu0 0.0
    %5072 = vmatpush1.xpose.msra.mxu0 0.0
    %5073 = vmatprep.subr.mxu0 0.0
    %5074 = vmatpush1.xpose.msra.mxu0 0.0
    %5075 = vmatprep.subr.mxu0 0.0
    %5076 = vmatpush1.xpose.msra.mxu0 %v5045
    %5077 = vmatprep.subr.mxu0 0.0
    %5078 = vmatpush1.xpose.msra.mxu0 %v5042
    %5079 = vmatprep.subr.mxu0 0.0
    %5080 = vmatpush2.xpose.msra.mxu0 0.0
    %5081 = vmatprep.subr.mxu0 0.0
    %5082 = vmatpush2.xpose.msra.mxu0 0.0
    %5083 = vmatprep.subr.mxu0 0.0
    %5084 = vmatpush2.xpose.msra.mxu0 0.0
    %5085 = vmatprep.subr.mxu0 0.0
    %5086 = vmatpush2.xpose.msra.mxu0 0.0
    %5087 = vmatprep.subr.mxu0 0.0
    %5088 = vmatpush2.xpose.msra.mxu0 0.0
    %5089 = vmatprep.subr.mxu0 0.0
    %5090 = vmatpush2.xpose.msra.mxu0 0.0
    %5091 = vmatprep.subr.mxu0 0.0
    %5092 = vmatpush2.xpose.msra.mxu0 0.0
    %5093 = vmatprep.subr.mxu0 0.0
    %5094 = vmatpush2.xpose.msra.mxu0 0.0
    %5095 = vmatprep.subr.mxu0 0.0
    %5096 = vmatpush2.xpose.msra.mxu0 0.0
    %5097 = vmatprep.subr.mxu0 0.0
    %5098 = vmatpush2.xpose.msra.mxu0 0.0
    %5099 = vmatprep.subr.mxu0 0.0
    %5100 = vmatpush2.xpose.msra.mxu0 0.0
    %5101 = vmatprep.subr.mxu0 0.0
    %5102 = vmatpush2.xpose.msra.mxu0 0.0
    %5103 = vmatprep.subr.mxu0 0.0
    %5104 = vmatpush2.xpose.msra.mxu0 0.0
    %5105 = vmatprep.subr.mxu0 0.0
    %5106 = vmatpush2.xpose.msra.mxu0 0.0
    %5107 = vmatprep.subr.mxu0 0.0
    %5108 = vmatpush2.xpose.msra.mxu0 0.0
    %5109 = vmatprep.subr.mxu0 0.0
    %5110 = vmatpush2.xpose.msra.mxu0 0.0
    %5111 = vmatprep.mubr.f32.mxu0 0.0
    %5112 = vmatmul.mubr.f32.gmra.mxu0 %v5036
    %v5113 = vpop.f32.mrf.mxu0
    %v5114 = vadd.f32 %v4764, %v5113
    %v5115 = vpop.f32.mrf.mxu0
    %5116 = vmatprep.mubr.f32.mxu0 0.0
    %5117 = vmatmul.mubr.f32.gmra.mxu0 %v5039
    %v5118 = vpop.f32.mrf.mxu0
    %v5119 = vadd.f32 %v4765, %v5118
    %v5120 = vpop.f32.mrf.mxu0
    %5121 = vdwg.mxu0
    %v5122 = vsel %vm529, %v5114, -inf
    %5123 = vmax.xlane.f32.xlu0 %v5122
    %v5124 = vpop.xlane.xlu0 %5123
    %v5125 = vsel %vm529, %v5119, -inf
    %5126 = vmax.xlane.f32.xlu0 %v5125
    %v5127 = vpop.xlane.xlu0 %5126
    %v5128 = vsub.f32 %v5114, %v5124
    %v5129 = vsub.f32 %v5119, %v5127
    %v5130 = vmul.f32 %v5128, 1.442695
    %v5131 = vpow.pop %v5130
    %v5132 = vmul.f32 %v5129, 1.442695
    %v5133 = vpow.pop %v5132
    %v5134 = vsel %vm529, %v5131, 0.0
    %5135 = vadd.xlane.f32.xlu0 %v5134
    %v5136 = vpop.xlane.xlu0 %5135
    %v5137 = vsel %vm529, %v5133, 0.0
    %5138 = vadd.xlane.f32.xlu0 %v5137
    %v5139 = vpop.xlane.xlu0 %5138
    %v5140 = vrcp.pop %v5136
    %v5141 = vrcp.pop %v5139
    %v5142 = vmul.f32 %v5131, %v5140
    %v5143 = vmul.f32 %v5133, %v5141
    %v5145 = vsel %vm529, %v5142, 0
    %v5148 = vsel %vm529, %v5143, 0
    %5150 = vmatprep.subr.mxu0 0.0
    %5151 = vmatpush1.msra.mxu0 0.0
    %5152 = vmatprep.subr.mxu0 0.0
    %5153 = vmatpush1.msra.mxu0 0.0
    %5154 = vmatprep.subr.mxu0 0.0
    %5155 = vmatpush1.msra.mxu0 0.0
    %5156 = vmatprep.subr.mxu0 0.0
    %5157 = vmatpush1.msra.mxu0 0.0
    %5158 = vmatprep.subr.mxu0 0.0
    %5159 = vmatpush1.msra.mxu0 0.0
    %5160 = vmatprep.subr.mxu0 0.0
    %5161 = vmatpush1.msra.mxu0 0.0
    %5162 = vmatprep.subr.mxu0 0.0
    %5163 = vmatpush1.msra.mxu0 0.0
    %5164 = vmatprep.subr.mxu0 0.0
    %5165 = vmatpush1.msra.mxu0 0.0
    %5166 = vmatprep.subr.mxu0 0.0
    %5167 = vmatpush1.msra.mxu0 0.0
    %5168 = vmatprep.subr.mxu0 0.0
    %5169 = vmatpush1.msra.mxu0 0.0
    %5170 = vmatprep.subr.mxu0 0.0
    %5171 = vmatpush1.msra.mxu0 0.0
    %5172 = vmatprep.subr.mxu0 0.0
    %5173 = vmatpush1.msra.mxu0 0.0
    %5174 = vmatprep.subr.mxu0 0.0
    %5175 = vmatpush1.msra.mxu0 0.0
    %5176 = vmatprep.subr.mxu0 0.0
    %5177 = vmatpush1.msra.mxu0 0.0
    %5178 = vmatprep.subr.mxu0 0.0
    %5179 = vmatpush1.msra.mxu0 %v5032
    %5180 = vmatprep.subr.mxu0 0.0
    %5181 = vmatpush1.msra.mxu0 %v5027
    %5182 = vmatprep.subr.mxu0 0.0
    %5183 = vmatpush2.msra.mxu0 0.0
    %5184 = vmatprep.subr.mxu0 0.0
    %5185 = vmatpush2.msra.mxu0 0.0
    %5186 = vmatprep.subr.mxu0 0.0
    %5187 = vmatpush2.msra.mxu0 0.0
    %5188 = vmatprep.subr.mxu0 0.0
    %5189 = vmatpush2.msra.mxu0 0.0
    %5190 = vmatprep.subr.mxu0 0.0
    %5191 = vmatpush2.msra.mxu0 0.0
    %5192 = vmatprep.subr.mxu0 0.0
    %5193 = vmatpush2.msra.mxu0 0.0
    %5194 = vmatprep.subr.mxu0 0.0
    %5195 = vmatpush2.msra.mxu0 0.0
    %5196 = vmatprep.subr.mxu0 0.0
    %5197 = vmatpush2.msra.mxu0 0.0
    %5198 = vmatprep.subr.mxu0 0.0
    %5199 = vmatpush2.msra.mxu0 0.0
    %5200 = vmatprep.subr.mxu0 0.0
    %5201 = vmatpush2.msra.mxu0 0.0
    %5202 = vmatprep.subr.mxu0 0.0
    %5203 = vmatpush2.msra.mxu0 0.0
    %5204 = vmatprep.subr.mxu0 0.0
    %5205 = vmatpush2.msra.mxu0 0.0
    %5206 = vmatprep.subr.mxu0 0.0
    %5207 = vmatpush2.msra.mxu0 0.0
    %5208 = vmatprep.subr.mxu0 0.0
    %5209 = vmatpush2.msra.mxu0 0.0
    %5210 = vmatprep.subr.mxu0 0.0
    %5211 = vmatpush2.msra.mxu0 0.0
    %5212 = vmatprep.subr.mxu0 0.0
    %5213 = vmatpush2.msra.mxu0 0.0
    %5214 = vmatprep.mubr.f32.mxu0 0.0
    %5215 = vmatmul.mubr.f32.gmra.mxu0 %v5145
    %v5216 = vpop.f32.mrf.mxu0
    %v5217 = vadd.f32 0.0, %v5216
    %v5218 = vpop.f32.mrf.mxu0
    %5219 = vmatprep.mubr.f32.mxu0 0.0
    %5220 = vmatmul.mubr.f32.gmra.mxu0 %v5148
    %v5221 = vpop.f32.mrf.mxu0
    %v5222 = vadd.f32 0.0, %v5221
    %v5223 = vpop.f32.mrf.mxu0
    %5224 = vdwg.mxu0
    %v5225 = vld [vmem:[#allocation2 + $0x1c8] sm:$0xff]
    %v5227 = vsel %vm38, %v5217, 0
    %v5230 = vsel %vm38, %v5222, 0
    %5232 = vmatprep.subr.mxu0 0.0
    %5233 = vmatpush1.msra.mxu0 0.0
    %5234 = vmatprep.subr.mxu0 0.0
    %5235 = vmatpush1.msra.mxu0 0.0
    %5236 = vmatprep.subr.mxu0 0.0
    %5237 = vmatpush1.msra.mxu0 0.0
    %5238 = vmatprep.subr.mxu0 0.0
    %5239 = vmatpush1.msra.mxu0 0.0
    %5240 = vmatprep.subr.mxu0 0.0
    %5241 = vmatpush1.msra.mxu0 0.0
    %5242 = vmatprep.subr.mxu0 0.0
    %5243 = vmatpush1.msra.mxu0 0.0
    %5244 = vmatprep.subr.mxu0 0.0
    %5245 = vmatpush1.msra.mxu0 0.0
    %5246 = vmatprep.subr.mxu0 0.0
    %5247 = vmatpush1.msra.mxu0 0.0
    %5248 = vmatprep.subr.mxu0 0.0
    %5249 = vmatpush1.msra.mxu0 0.0
    %5250 = vmatprep.subr.mxu0 0.0
    %5251 = vmatpush1.msra.mxu0 0.0
    %5252 = vmatprep.subr.mxu0 0.0
    %5253 = vmatpush1.msra.mxu0 0.0
    %5254 = vmatprep.subr.mxu0 0.0
    %5255 = vmatpush1.msra.mxu0 0.0
    %5256 = vmatprep.subr.mxu0 0.0
    %5257 = vmatpush1.msra.mxu0 0.0
    %5258 = vmatprep.subr.mxu0 0.0
    %5259 = vmatpush1.msra.mxu0 0.0
    %5260 = vmatprep.subr.mxu0 0.0
    %5261 = vmatpush1.msra.mxu0 0.0
    %5262 = vmatprep.subr.mxu0 0.0
    %5263 = vmatpush1.msra.mxu0 %v5225
    %5264 = vmatprep.subr.mxu0 0.0
    %5265 = vmatpush2.msra.mxu0 0.0
    %5266 = vmatprep.subr.mxu0 0.0
    %5267 = vmatpush2.msra.mxu0 0.0
    %5268 = vmatprep.subr.mxu0 0.0
    %5269 = vmatpush2.msra.mxu0 0.0
    %5270 = vmatprep.subr.mxu0 0.0
    %5271 = vmatpush2.msra.mxu0 0.0
    %5272 = vmatprep.subr.mxu0 0.0
    %5273 = vmatpush2.msra.mxu0 0.0
    %5274 = vmatprep.subr.mxu0 0.0
    %5275 = vmatpush2.msra.mxu0 0.0
    %5276 = vmatprep.subr.mxu0 0.0
    %5277 = vmatpush2.msra.mxu0 0.0
    %5278 = vmatprep.subr.mxu0 0.0
    %5279 = vmatpush2.msra.mxu0 0.0
    %5280 = vmatprep.subr.mxu0 0.0
    %5281 = vmatpush2.msra.mxu0 0.0
    %5282 = vmatprep.subr.mxu0 0.0
    %5283 = vmatpush2.msra.mxu0 0.0
    %5284 = vmatprep.subr.mxu0 0.0
    %5285 = vmatpush2.msra.mxu0 0.0
    %5286 = vmatprep.subr.mxu0 0.0
    %5287 = vmatpush2.msra.mxu0 0.0
    %5288 = vmatprep.subr.mxu0 0.0
    %5289 = vmatpush2.msra.mxu0 0.0
    %5290 = vmatprep.subr.mxu0 0.0
    %5291 = vmatpush2.msra.mxu0 0.0
    %5292 = vmatprep.subr.mxu0 0.0
    %5293 = vmatpush2.msra.mxu0 0.0
    %5294 = vmatprep.subr.mxu0 0.0
    %5295 = vmatpush2.msra.mxu0 0.0
    %5296 = vmatprep.mubr.f32.mxu0 0.0
    %5297 = vmatmul.mubr.f32.gmra.mxu0 %v5227
    %v5298 = vpop.f32.mrf.mxu0
    %v5299 = vadd.f32 0.0, %v5298
    %v5300 = vpop.f32.mrf.mxu0
    %5301 = vmatprep.mubr.f32.mxu0 0.0
    %5302 = vmatmul.mubr.f32.gmra.mxu0 %v5230
    %v5303 = vpop.f32.mrf.mxu0
    %v5304 = vadd.f32 0.0, %v5303
    %v5305 = vpop.f32.mrf.mxu0
    %5306 = vdwg.mxu0
    %v5307 = vadd.f32 %v4770, %v5299
    %v5308 = vadd.f32 %v4770, %v5304
    %v5309 = vld [vmem:[#allocation2 + $0x170] sm:$0xff]
    %v5310 = vld [vmem:[%s2 + $0x66] sm:$0x1]
    %v5311 = vlaneseq
    %v5312 = vshrl.u32 %v5311, 7
    %v5313 = vsub.s32 0, %v5312
    %v5314 = vrot.slane %v5310, %v5313
    %v5316 = vsel %vm189, %v5309, 0
    %5318 = vmatprep.subr.mxu0 0.0
    %5319 = vmatpush1.xpose.msra.mxu0 0.0
    %5320 = vmatprep.subr.mxu0 0.0
    %5321 = vmatpush1.xpose.msra.mxu0 0.0
    %5322 = vmatprep.subr.mxu0 0.0
    %5323 = vmatpush1.xpose.msra.mxu0 0.0
    %5324 = vmatprep.subr.mxu0 0.0
    %5325 = vmatpush1.xpose.msra.mxu0 0.0
    %5326 = vmatprep.subr.mxu0 0.0
    %5327 = vmatpush1.xpose.msra.mxu0 0.0
    %5328 = vmatprep.subr.mxu0 0.0
    %5329 = vmatpush1.xpose.msra.mxu0 0.0
    %5330 = vmatprep.subr.mxu0 0.0
    %5331 = vmatpush1.xpose.msra.mxu0 0.0
    %5332 = vmatprep.subr.mxu0 0.0
    %5333 = vmatpush1.xpose.msra.mxu0 0.0
    %5334 = vmatprep.subr.mxu0 0.0
    %5335 = vmatpush1.xpose.msra.mxu0 0.0
    %5336 = vmatprep.subr.mxu0 0.0
    %5337 = vmatpush1.xpose.msra.mxu0 0.0
    %5338 = vmatprep.subr.mxu0 0.0
    %5339 = vmatpush1.xpose.msra.mxu0 0.0
    %5340 = vmatprep.subr.mxu0 0.0
    %5341 = vmatpush1.xpose.msra.mxu0 0.0
    %5342 = vmatprep.subr.mxu0 0.0
    %5343 = vmatpush1.xpose.msra.mxu0 0.0
    %5344 = vmatprep.subr.mxu0 0.0
    %5345 = vmatpush1.xpose.msra.mxu0 0.0
    %5346 = vmatprep.subr.mxu0 0.0
    %5347 = vmatpush1.xpose.msra.mxu0 0.0
    %5348 = vmatprep.subr.mxu0 0.0
    %5349 = vmatpush1.xpose.msra.mxu0 %v5316
    %5350 = vmatprep.subr.mxu0 0.0
    %5351 = vmatpush2.xpose.msra.mxu0 0.0
    %5352 = vmatprep.subr.mxu0 0.0
    %5353 = vmatpush2.xpose.msra.mxu0 0.0
    %5354 = vmatprep.subr.mxu0 0.0
    %5355 = vmatpush2.xpose.msra.mxu0 0.0
    %5356 = vmatprep.subr.mxu0 0.0
    %5357 = vmatpush2.xpose.msra.mxu0 0.0
    %5358 = vmatprep.subr.mxu0 0.0
    %5359 = vmatpush2.xpose.msra.mxu0 0.0
    %5360 = vmatprep.subr.mxu0 0.0
    %5361 = vmatpush2.xpose.msra.mxu0 0.0
    %5362 = vmatprep.subr.mxu0 0.0
    %5363 = vmatpush2.xpose.msra.mxu0 0.0
    %5364 = vmatprep.subr.mxu0 0.0
    %5365 = vmatpush2.xpose.msra.mxu0 0.0
    %5366 = vmatprep.subr.mxu0 0.0
    %5367 = vmatpush2.xpose.msra.mxu0 0.0
    %5368 = vmatprep.subr.mxu0 0.0
    %5369 = vmatpush2.xpose.msra.mxu0 0.0
    %5370 = vmatprep.subr.mxu0 0.0
    %5371 = vmatpush2.xpose.msra.mxu0 0.0
    %5372 = vmatprep.subr.mxu0 0.0
    %5373 = vmatpush2.xpose.msra.mxu0 0.0
    %5374 = vmatprep.subr.mxu0 0.0
    %5375 = vmatpush2.xpose.msra.mxu0 0.0
    %5376 = vmatprep.subr.mxu0 0.0
    %5377 = vmatpush2.xpose.msra.mxu0 0.0
    %5378 = vmatprep.subr.mxu0 0.0
    %5379 = vmatpush2.xpose.msra.mxu0 0.0
    %5380 = vmatprep.subr.mxu0 0.0
    %5381 = vmatpush2.xpose.msra.mxu0 0.0
    %5382 = vmatprep.mubr.f32.mxu0 0.0
    %5383 = vmatmul.mubr.f32.gmra.mxu0 %v4778
    %v5384 = vpop.f32.mrf.mxu0
    %v5385 = vadd.f32 %v5314, %v5384
    %v5386 = vpop.f32.mrf.mxu0
    %5387 = vmatprep.mubr.f32.mxu0 0.0
    %5388 = vmatmul.mubr.f32.gmra.mxu0 %v4781
    %v5389 = vpop.f32.mrf.mxu0
    %v5390 = vadd.f32 %v5314, %v5389
    %v5391 = vpop.f32.mrf.mxu0
    %5392 = vdwg.mxu0
    %v5393 = vld [vmem:[#allocation2 + $0x190] sm:$0xff]
    %v5394 = vld [vmem:[%s2 + $0x6a] sm:$0x1]
    %v5395 = vlaneseq
    %v5396 = vshrl.u32 %v5395, 7
    %v5397 = vsub.s32 0, %v5396
    %v5398 = vrot.slane %v5394, %v5397
    %v5400 = vsel %vm189, %v5393, 0
    %5402 = vmatprep.subr.mxu0 0.0
    %5403 = vmatpush1.xpose.msra.mxu0 0.0
    %5404 = vmatprep.subr.mxu0 0.0
    %5405 = vmatpush1.xpose.msra.mxu0 0.0
    %5406 = vmatprep.subr.mxu0 0.0
    %5407 = vmatpush1.xpose.msra.mxu0 0.0
    %5408 = vmatprep.subr.mxu0 0.0
    %5409 = vmatpush1.xpose.msra.mxu0 0.0
    %5410 = vmatprep.subr.mxu0 0.0
    %5411 = vmatpush1.xpose.msra.mxu0 0.0
    %5412 = vmatprep.subr.mxu0 0.0
    %5413 = vmatpush1.xpose.msra.mxu0 0.0
    %5414 = vmatprep.subr.mxu0 0.0
    %5415 = vmatpush1.xpose.msra.mxu0 0.0
    %5416 = vmatprep.subr.mxu0 0.0
    %5417 = vmatpush1.xpose.msra.mxu0 0.0
    %5418 = vmatprep.subr.mxu0 0.0
    %5419 = vmatpush1.xpose.msra.mxu0 0.0
    %5420 = vmatprep.subr.mxu0 0.0
    %5421 = vmatpush1.xpose.msra.mxu0 0.0
    %5422 = vmatprep.subr.mxu0 0.0
    %5423 = vmatpush1.xpose.msra.mxu0 0.0
    %5424 = vmatprep.subr.mxu0 0.0
    %5425 = vmatpush1.xpose.msra.mxu0 0.0
    %5426 = vmatprep.subr.mxu0 0.0
    %5427 = vmatpush1.xpose.msra.mxu0 0.0
    %5428 = vmatprep.subr.mxu0 0.0
    %5429 = vmatpush1.xpose.msra.mxu0 0.0
    %5430 = vmatprep.subr.mxu0 0.0
    %5431 = vmatpush1.xpose.msra.mxu0 0.0
    %5432 = vmatprep.subr.mxu0 0.0
    %5433 = vmatpush1.xpose.msra.mxu0 %v5400
    %5434 = vmatprep.subr.mxu0 0.0
    %5435 = vmatpush2.xpose.msra.mxu0 0.0
    %5436 = vmatprep.subr.mxu0 0.0
    %5437 = vmatpush2.xpose.msra.mxu0 0.0
    %5438 = vmatprep.subr.mxu0 0.0
    %5439 = vmatpush2.xpose.msra.mxu0 0.0
    %5440 = vmatprep.subr.mxu0 0.0
    %5441 = vmatpush2.xpose.msra.mxu0 0.0
    %5442 = vmatprep.subr.mxu0 0.0
    %5443 = vmatpush2.xpose.msra.mxu0 0.0
    %5444 = vmatprep.subr.mxu0 0.0
    %5445 = vmatpush2.xpose.msra.mxu0 0.0
    %5446 = vmatprep.subr.mxu0 0.0
    %5447 = vmatpush2.xpose.msra.mxu0 0.0
    %5448 = vmatprep.subr.mxu0 0.0
    %5449 = vmatpush2.xpose.msra.mxu0 0.0
    %5450 = vmatprep.subr.mxu0 0.0
    %5451 = vmatpush2.xpose.msra.mxu0 0.0
    %5452 = vmatprep.subr.mxu0 0.0
    %5453 = vmatpush2.xpose.msra.mxu0 0.0
    %5454 = vmatprep.subr.mxu0 0.0
    %5455 = vmatpush2.xpose.msra.mxu0 0.0
    %5456 = vmatprep.subr.mxu0 0.0
    %5457 = vmatpush2.xpose.msra.mxu0 0.0
    %5458 = vmatprep.subr.mxu0 0.0
    %5459 = vmatpush2.xpose.msra.mxu0 0.0
    %5460 = vmatprep.subr.mxu0 0.0
    %5461 = vmatpush2.xpose.msra.mxu0 0.0
    %5462 = vmatprep.subr.mxu0 0.0
    %5463 = vmatpush2.xpose.msra.mxu0 0.0
    %5464 = vmatprep.subr.mxu0 0.0
    %5465 = vmatpush2.xpose.msra.mxu0 0.0
    %5466 = vmatprep.mubr.f32.mxu0 0.0
    %5467 = vmatmul.mubr.f32.gmra.mxu0 %v4868
    %v5468 = vpop.f32.mrf.mxu0
    %v5469 = vadd.f32 %v5398, %v5468
    %v5470 = vpop.f32.mrf.mxu0
    %5471 = vmatprep.mubr.f32.mxu0 0.0
    %5472 = vmatmul.mubr.f32.gmra.mxu0 %v4871
    %v5473 = vpop.f32.mrf.mxu0
    %v5474 = vadd.f32 %v5398, %v5473
    %v5475 = vpop.f32.mrf.mxu0
    %5476 = vdwg.mxu0
    %v5477 = vld [vmem:[#allocation2 + $0x1b0] sm:$0xff]
    %v5478 = vld [vmem:[%s2 + $0x6e] sm:$0x1]
    %v5479 = vlaneseq
    %v5480 = vshrl.u32 %v5479, 7
    %v5481 = vsub.s32 0, %v5480
    %v5482 = vrot.slane %v5478, %v5481
    %v5484 = vsel %vm189, %v5477, 0
    %5486 = vmatprep.subr.mxu0 0.0
    %5487 = vmatpush1.xpose.msra.mxu0 0.0
    %5488 = vmatprep.subr.mxu0 0.0
    %5489 = vmatpush1.xpose.msra.mxu0 0.0
    %5490 = vmatprep.subr.mxu0 0.0
    %5491 = vmatpush1.xpose.msra.mxu0 0.0
    %5492 = vmatprep.subr.mxu0 0.0
    %5493 = vmatpush1.xpose.msra.mxu0 0.0
    %5494 = vmatprep.subr.mxu0 0.0
    %5495 = vmatpush1.xpose.msra.mxu0 0.0
    %5496 = vmatprep.subr.mxu0 0.0
    %5497 = vmatpush1.xpose.msra.mxu0 0.0
    %5498 = vmatprep.subr.mxu0 0.0
    %5499 = vmatpush1.xpose.msra.mxu0 0.0
    %5500 = vmatprep.subr.mxu0 0.0
    %5501 = vmatpush1.xpose.msra.mxu0 0.0
    %5502 = vmatprep.subr.mxu0 0.0
    %5503 = vmatpush1.xpose.msra.mxu0 0.0
    %5504 = vmatprep.subr.mxu0 0.0
    %5505 = vmatpush1.xpose.msra.mxu0 0.0
    %5506 = vmatprep.subr.mxu0 0.0
    %5507 = vmatpush1.xpose.msra.mxu0 0.0
    %5508 = vmatprep.subr.mxu0 0.0
    %5509 = vmatpush1.xpose.msra.mxu0 0.0
    %5510 = vmatprep.subr.mxu0 0.0
    %5511 = vmatpush1.xpose.msra.mxu0 0.0
    %5512 = vmatprep.subr.mxu0 0.0
    %5513 = vmatpush1.xpose.msra.mxu0 0.0
    %5514 = vmatprep.subr.mxu0 0.0
    %5515 = vmatpush1.xpose.msra.mxu0 0.0
    %5516 = vmatprep.subr.mxu0 0.0
    %5517 = vmatpush1.xpose.msra.mxu0 %v5484
    %5518 = vmatprep.subr.mxu0 0.0
    %5519 = vmatpush2.xpose.msra.mxu0 0.0
    %5520 = vmatprep.subr.mxu0 0.0
    %5521 = vmatpush2.xpose.msra.mxu0 0.0
    %5522 = vmatprep.subr.mxu0 0.0
    %5523 = vmatpush2.xpose.msra.mxu0 0.0
    %5524 = vmatprep.subr.mxu0 0.0
    %5525 = vmatpush2.xpose.msra.mxu0 0.0
    %5526 = vmatprep.subr.mxu0 0.0
    %5527 = vmatpush2.xpose.msra.mxu0 0.0
    %5528 = vmatprep.subr.mxu0 0.0
    %5529 = vmatpush2.xpose.msra.mxu0 0.0
    %5530 = vmatprep.subr.mxu0 0.0
    %5531 = vmatpush2.xpose.msra.mxu0 0.0
    %5532 = vmatprep.subr.mxu0 0.0
    %5533 = vmatpush2.xpose.msra.mxu0 0.0
    %5534 = vmatprep.subr.mxu0 0.0
    %5535 = vmatpush2.xpose.msra.mxu0 0.0
    %5536 = vmatprep.subr.mxu0 0.0
    %5537 = vmatpush2.xpose.msra.mxu0 0.0
    %5538 = vmatprep.subr.mxu0 0.0
    %5539 = vmatpush2.xpose.msra.mxu0 0.0
    %5540 = vmatprep.subr.mxu0 0.0
    %5541 = vmatpush2.xpose.msra.mxu0 0.0
    %5542 = vmatprep.subr.mxu0 0.0
    %5543 = vmatpush2.xpose.msra.mxu0 0.0
    %5544 = vmatprep.subr.mxu0 0.0
    %5545 = vmatpush2.xpose.msra.mxu0 0.0
    %5546 = vmatprep.subr.mxu0 0.0
    %5547 = vmatpush2.xpose.msra.mxu0 0.0
    %5548 = vmatprep.subr.mxu0 0.0
    %5549 = vmatpush2.xpose.msra.mxu0 0.0
    %5550 = vmatprep.mubr.f32.mxu0 0.0
    %5551 = vmatmul.mubr.f32.gmra.mxu0 %v4868
    %v5552 = vpop.f32.mrf.mxu0
    %v5553 = vadd.f32 %v5482, %v5552
    %v5554 = vpop.f32.mrf.mxu0
    %5555 = vmatprep.mubr.f32.mxu0 0.0
    %5556 = vmatmul.mubr.f32.gmra.mxu0 %v4871
    %v5557 = vpop.f32.mrf.mxu0
    %v5558 = vadd.f32 %v5482, %v5557
    %v5559 = vpop.f32.mrf.mxu0
    %5560 = vdwg.mxu0
    %v5562 = vsel %vm38, %v5385, 0
    %v5565 = vsel %vm38, %v5390, 0
    %v5568 = vsel %vm38, %v5469, 0
    %v5571 = vsel %vm38, %v5474, 0
    %5573 = vmatprep.subr.mxu0 0.0
    %5574 = vmatpush1.xpose.msra.mxu0 0.0
    %5575 = vmatprep.subr.mxu0 0.0
    %5576 = vmatpush1.xpose.msra.mxu0 0.0
    %5577 = vmatprep.subr.mxu0 0.0
    %5578 = vmatpush1.xpose.msra.mxu0 0.0
    %5579 = vmatprep.subr.mxu0 0.0
    %5580 = vmatpush1.xpose.msra.mxu0 0.0
    %5581 = vmatprep.subr.mxu0 0.0
    %5582 = vmatpush1.xpose.msra.mxu0 0.0
    %5583 = vmatprep.subr.mxu0 0.0
    %5584 = vmatpush1.xpose.msra.mxu0 0.0
    %5585 = vmatprep.subr.mxu0 0.0
    %5586 = vmatpush1.xpose.msra.mxu0 0.0
    %5587 = vmatprep.subr.mxu0 0.0
    %5588 = vmatpush1.xpose.msra.mxu0 0.0
    %5589 = vmatprep.subr.mxu0 0.0
    %5590 = vmatpush1.xpose.msra.mxu0 0.0
    %5591 = vmatprep.subr.mxu0 0.0
    %5592 = vmatpush1.xpose.msra.mxu0 0.0
    %5593 = vmatprep.subr.mxu0 0.0
    %5594 = vmatpush1.xpose.msra.mxu0 0.0
    %5595 = vmatprep.subr.mxu0 0.0
    %5596 = vmatpush1.xpose.msra.mxu0 0.0
    %5597 = vmatprep.subr.mxu0 0.0
    %5598 = vmatpush1.xpose.msra.mxu0 0.0
    %5599 = vmatprep.subr.mxu0 0.0
    %5600 = vmatpush1.xpose.msra.mxu0 0.0
    %5601 = vmatprep.subr.mxu0 0.0
    %5602 = vmatpush1.xpose.msra.mxu0 %v5571
    %5603 = vmatprep.subr.mxu0 0.0
    %5604 = vmatpush1.xpose.msra.mxu0 %v5568
    %5605 = vmatprep.subr.mxu0 0.0
    %5606 = vmatpush2.xpose.msra.mxu0 0.0
    %5607 = vmatprep.subr.mxu0 0.0
    %5608 = vmatpush2.xpose.msra.mxu0 0.0
    %5609 = vmatprep.subr.mxu0 0.0
    %5610 = vmatpush2.xpose.msra.mxu0 0.0
    %5611 = vmatprep.subr.mxu0 0.0
    %5612 = vmatpush2.xpose.msra.mxu0 0.0
    %5613 = vmatprep.subr.mxu0 0.0
    %5614 = vmatpush2.xpose.msra.mxu0 0.0
    %5615 = vmatprep.subr.mxu0 0.0
    %5616 = vmatpush2.xpose.msra.mxu0 0.0
    %5617 = vmatprep.subr.mxu0 0.0
    %5618 = vmatpush2.xpose.msra.mxu0 0.0
    %5619 = vmatprep.subr.mxu0 0.0
    %5620 = vmatpush2.xpose.msra.mxu0 0.0
    %5621 = vmatprep.subr.mxu0 0.0
    %5622 = vmatpush2.xpose.msra.mxu0 0.0
    %5623 = vmatprep.subr.mxu0 0.0
    %5624 = vmatpush2.xpose.msra.mxu0 0.0
    %5625 = vmatprep.subr.mxu0 0.0
    %5626 = vmatpush2.xpose.msra.mxu0 0.0
    %5627 = vmatprep.subr.mxu0 0.0
    %5628 = vmatpush2.xpose.msra.mxu0 0.0
    %5629 = vmatprep.subr.mxu0 0.0
    %5630 = vmatpush2.xpose.msra.mxu0 0.0
    %5631 = vmatprep.subr.mxu0 0.0
    %5632 = vmatpush2.xpose.msra.mxu0 0.0
    %5633 = vmatprep.subr.mxu0 0.0
    %5634 = vmatpush2.xpose.msra.mxu0 0.0
    %5635 = vmatprep.subr.mxu0 0.0
    %5636 = vmatpush2.xpose.msra.mxu0 0.0
    %5637 = vmatprep.mubr.f32.mxu0 0.0
    %5638 = vmatmul.mubr.f32.gmra.mxu0 %v5562
    %v5639 = vpop.f32.mrf.mxu0
    %v5640 = vadd.f32 %v4764, %v5639
    %v5641 = vpop.f32.mrf.mxu0
    %5642 = vmatprep.mubr.f32.mxu0 0.0
    %5643 = vmatmul.mubr.f32.gmra.mxu0 %v5565
    %v5644 = vpop.f32.mrf.mxu0
    %v5645 = vadd.f32 %v4765, %v5644
    %v5646 = vpop.f32.mrf.mxu0
    %5647 = vdwg.mxu0
    %v5648 = vsel %vm529, %v5640, -inf
    %5649 = vmax.xlane.f32.xlu0 %v5648
    %v5650 = vpop.xlane.xlu0 %5649
    %v5651 = vsel %vm529, %v5645, -inf
    %5652 = vmax.xlane.f32.xlu0 %v5651
    %v5653 = vpop.xlane.xlu0 %5652
    %v5654 = vsub.f32 %v5640, %v5650
    %v5655 = vsub.f32 %v5645, %v5653
    %v5656 = vmul.f32 %v5654, 1.442695
    %v5657 = vpow.pop %v5656
    %v5658 = vmul.f32 %v5655, 1.442695
    %v5659 = vpow.pop %v5658
    %v5660 = vsel %vm529, %v5657, 0.0
    %5661 = vadd.xlane.f32.xlu0 %v5660
    %v5662 = vpop.xlane.xlu0 %5661
    %v5663 = vsel %vm529, %v5659, 0.0
    %5664 = vadd.xlane.f32.xlu0 %v5663
    %v5665 = vpop.xlane.xlu0 %5664
    %v5666 = vrcp.pop %v5662
    %v5667 = vrcp.pop %v5665
    %v5668 = vmul.f32 %v5657, %v5666
    %v5669 = vmul.f32 %v5659, %v5667
    %v5671 = vsel %vm529, %v5668, 0
    %v5674 = vsel %vm529, %v5669, 0
    %5676 = vmatprep.subr.mxu0 0.0
    %5677 = vmatpush1.msra.mxu0 0.0
    %5678 = vmatprep.subr.mxu0 0.0
    %5679 = vmatpush1.msra.mxu0 0.0
    %5680 = vmatprep.subr.mxu0 0.0
    %5681 = vmatpush1.msra.mxu0 0.0
    %5682 = vmatprep.subr.mxu0 0.0
    %5683 = vmatpush1.msra.mxu0 0.0
    %5684 = vmatprep.subr.mxu0 0.0
    %5685 = vmatpush1.msra.mxu0 0.0
    %5686 = vmatprep.subr.mxu0 0.0
    %5687 = vmatpush1.msra.mxu0 0.0
    %5688 = vmatprep.subr.mxu0 0.0
    %5689 = vmatpush1.msra.mxu0 0.0
    %5690 = vmatprep.subr.mxu0 0.0
    %5691 = vmatpush1.msra.mxu0 0.0
    %5692 = vmatprep.subr.mxu0 0.0
    %5693 = vmatpush1.msra.mxu0 0.0
    %5694 = vmatprep.subr.mxu0 0.0
    %5695 = vmatpush1.msra.mxu0 0.0
    %5696 = vmatprep.subr.mxu0 0.0
    %5697 = vmatpush1.msra.mxu0 0.0
    %5698 = vmatprep.subr.mxu0 0.0
    %5699 = vmatpush1.msra.mxu0 0.0
    %5700 = vmatprep.subr.mxu0 0.0
    %5701 = vmatpush1.msra.mxu0 0.0
    %5702 = vmatprep.subr.mxu0 0.0
    %5703 = vmatpush1.msra.mxu0 0.0
    %5704 = vmatprep.subr.mxu0 0.0
    %5705 = vmatpush1.msra.mxu0 %v5558
    %5706 = vmatprep.subr.mxu0 0.0
    %5707 = vmatpush1.msra.mxu0 %v5553
    %5708 = vmatprep.subr.mxu0 0.0
    %5709 = vmatpush2.msra.mxu0 0.0
    %5710 = vmatprep.subr.mxu0 0.0
    %5711 = vmatpush2.msra.mxu0 0.0
    %5712 = vmatprep.subr.mxu0 0.0
    %5713 = vmatpush2.msra.mxu0 0.0
    %5714 = vmatprep.subr.mxu0 0.0
    %5715 = vmatpush2.msra.mxu0 0.0
    %5716 = vmatprep.subr.mxu0 0.0
    %5717 = vmatpush2.msra.mxu0 0.0
    %5718 = vmatprep.subr.mxu0 0.0
    %5719 = vmatpush2.msra.mxu0 0.0
    %5720 = vmatprep.subr.mxu0 0.0
    %5721 = vmatpush2.msra.mxu0 0.0
    %5722 = vmatprep.subr.mxu0 0.0
    %5723 = vmatpush2.msra.mxu0 0.0
    %5724 = vmatprep.subr.mxu0 0.0
    %5725 = vmatpush2.msra.mxu0 0.0
    %5726 = vmatprep.subr.mxu0 0.0
    %5727 = vmatpush2.msra.mxu0 0.0
    %5728 = vmatprep.subr.mxu0 0.0
    %5729 = vmatpush2.msra.mxu0 0.0
    %5730 = vmatprep.subr.mxu0 0.0
    %5731 = vmatpush2.msra.mxu0 0.0
    %5732 = vmatprep.subr.mxu0 0.0
    %5733 = vmatpush2.msra.mxu0 0.0
    %5734 = vmatprep.subr.mxu0 0.0
    %5735 = vmatpush2.msra.mxu0 0.0
    %5736 = vmatprep.subr.mxu0 0.0
    %5737 = vmatpush2.msra.mxu0 0.0
    %5738 = vmatprep.subr.mxu0 0.0
    %5739 = vmatpush2.msra.mxu0 0.0
    %5740 = vmatprep.mubr.f32.mxu0 0.0
    %5741 = vmatmul.mubr.f32.gmra.mxu0 %v5671
    %v5742 = vpop.f32.mrf.mxu0
    %v5743 = vadd.f32 0.0, %v5742
    %v5744 = vpop.f32.mrf.mxu0
    %5745 = vmatprep.mubr.f32.mxu0 0.0
    %5746 = vmatmul.mubr.f32.gmra.mxu0 %v5674
    %v5747 = vpop.f32.mrf.mxu0
    %v5748 = vadd.f32 0.0, %v5747
    %v5749 = vpop.f32.mrf.mxu0
    %5750 = vdwg.mxu0
    %v5751 = vld [vmem:[#allocation2 + $0x1d0] sm:$0xff]
    %v5753 = vsel %vm38, %v5743, 0
    %v5756 = vsel %vm38, %v5748, 0
    %5758 = vmatprep.subr.mxu0 0.0
    %5759 = vmatpush1.msra.mxu0 0.0
    %5760 = vmatprep.subr.mxu0 0.0
    %5761 = vmatpush1.msra.mxu0 0.0
    %5762 = vmatprep.subr.mxu0 0.0
    %5763 = vmatpush1.msra.mxu0 0.0
    %5764 = vmatprep.subr.mxu0 0.0
    %5765 = vmatpush1.msra.mxu0 0.0
    %5766 = vmatprep.subr.mxu0 0.0
    %5767 = vmatpush1.msra.mxu0 0.0
    %5768 = vmatprep.subr.mxu0 0.0
    %5769 = vmatpush1.msra.mxu0 0.0
    %5770 = vmatprep.subr.mxu0 0.0
    %5771 = vmatpush1.msra.mxu0 0.0
    %5772 = vmatprep.subr.mxu0 0.0
    %5773 = vmatpush1.msra.mxu0 0.0
    %5774 = vmatprep.subr.mxu0 0.0
    %5775 = vmatpush1.msra.mxu0 0.0
    %5776 = vmatprep.subr.mxu0 0.0
    %5777 = vmatpush1.msra.mxu0 0.0
    %5778 = vmatprep.subr.mxu0 0.0
    %5779 = vmatpush1.msra.mxu0 0.0
    %5780 = vmatprep.subr.mxu0 0.0
    %5781 = vmatpush1.msra.mxu0 0.0
    %5782 = vmatprep.subr.mxu0 0.0
    %5783 = vmatpush1.msra.mxu0 0.0
    %5784 = vmatprep.subr.mxu0 0.0
    %5785 = vmatpush1.msra.mxu0 0.0
    %5786 = vmatprep.subr.mxu0 0.0
    %5787 = vmatpush1.msra.mxu0 0.0
    %5788 = vmatprep.subr.mxu0 0.0
    %5789 = vmatpush1.msra.mxu0 %v5751
    %5790 = vmatprep.subr.mxu0 0.0
    %5791 = vmatpush2.msra.mxu0 0.0
    %5792 = vmatprep.subr.mxu0 0.0
    %5793 = vmatpush2.msra.mxu0 0.0
    %5794 = vmatprep.subr.mxu0 0.0
    %5795 = vmatpush2.msra.mxu0 0.0
    %5796 = vmatprep.subr.mxu0 0.0
    %5797 = vmatpush2.msra.mxu0 0.0
    %5798 = vmatprep.subr.mxu0 0.0
    %5799 = vmatpush2.msra.mxu0 0.0
    %5800 = vmatprep.subr.mxu0 0.0
    %5801 = vmatpush2.msra.mxu0 0.0
    %5802 = vmatprep.subr.mxu0 0.0
    %5803 = vmatpush2.msra.mxu0 0.0
    %5804 = vmatprep.subr.mxu0 0.0
    %5805 = vmatpush2.msra.mxu0 0.0
    %5806 = vmatprep.subr.mxu0 0.0
    %5807 = vmatpush2.msra.mxu0 0.0
    %5808 = vmatprep.subr.mxu0 0.0
    %5809 = vmatpush2.msra.mxu0 0.0
    %5810 = vmatprep.subr.mxu0 0.0
    %5811 = vmatpush2.msra.mxu0 0.0
    %5812 = vmatprep.subr.mxu0 0.0
    %5813 = vmatpush2.msra.mxu0 0.0
    %5814 = vmatprep.subr.mxu0 0.0
    %5815 = vmatpush2.msra.mxu0 0.0
    %5816 = vmatprep.subr.mxu0 0.0
    %5817 = vmatpush2.msra.mxu0 0.0
    %5818 = vmatprep.subr.mxu0 0.0
    %5819 = vmatpush2.msra.mxu0 0.0
    %5820 = vmatprep.subr.mxu0 0.0
    %5821 = vmatpush2.msra.mxu0 0.0
    %5822 = vmatprep.mubr.f32.mxu0 0.0
    %5823 = vmatmul.mubr.f32.gmra.mxu0 %v5753
    %v5824 = vpop.f32.mrf.mxu0
    %v5825 = vadd.f32 0.0, %v5824
    %v5826 = vpop.f32.mrf.mxu0
    %5827 = vmatprep.mubr.f32.mxu0 0.0
    %5828 = vmatmul.mubr.f32.gmra.mxu0 %v5756
    %v5829 = vpop.f32.mrf.mxu0
    %v5830 = vadd.f32 0.0, %v5829
    %v5831 = vpop.f32.mrf.mxu0
    %5832 = vdwg.mxu0
    %v5833 = vadd.f32 %v5307, %v5825
    %v5834 = vadd.f32 %v5308, %v5830
    %v5835 = vld [vmem:[#allocation2 + $0x178] sm:$0xff]
    %v5836 = vld [vmem:[%s2 + $0x67] sm:$0x1]
    %v5837 = vlaneseq
    %v5838 = vshrl.u32 %v5837, 7
    %v5839 = vsub.s32 0, %v5838
    %v5840 = vrot.slane %v5836, %v5839
    %v5842 = vsel %vm189, %v5835, 0
    %5844 = vmatprep.subr.mxu0 0.0
    %5845 = vmatpush1.xpose.msra.mxu0 0.0
    %5846 = vmatprep.subr.mxu0 0.0
    %5847 = vmatpush1.xpose.msra.mxu0 0.0
    %5848 = vmatprep.subr.mxu0 0.0
    %5849 = vmatpush1.xpose.msra.mxu0 0.0
    %5850 = vmatprep.subr.mxu0 0.0
    %5851 = vmatpush1.xpose.msra.mxu0 0.0
    %5852 = vmatprep.subr.mxu0 0.0
    %5853 = vmatpush1.xpose.msra.mxu0 0.0
    %5854 = vmatprep.subr.mxu0 0.0
    %5855 = vmatpush1.xpose.msra.mxu0 0.0
    %5856 = vmatprep.subr.mxu0 0.0
    %5857 = vmatpush1.xpose.msra.mxu0 0.0
    %5858 = vmatprep.subr.mxu0 0.0
    %5859 = vmatpush1.xpose.msra.mxu0 0.0
    %5860 = vmatprep.subr.mxu0 0.0
    %5861 = vmatpush1.xpose.msra.mxu0 0.0
    %5862 = vmatprep.subr.mxu0 0.0
    %5863 = vmatpush1.xpose.msra.mxu0 0.0
    %5864 = vmatprep.subr.mxu0 0.0
    %5865 = vmatpush1.xpose.msra.mxu0 0.0
    %5866 = vmatprep.subr.mxu0 0.0
    %5867 = vmatpush1.xpose.msra.mxu0 0.0
    %5868 = vmatprep.subr.mxu0 0.0
    %5869 = vmatpush1.xpose.msra.mxu0 0.0
    %5870 = vmatprep.subr.mxu0 0.0
    %5871 = vmatpush1.xpose.msra.mxu0 0.0
    %5872 = vmatprep.subr.mxu0 0.0
    %5873 = vmatpush1.xpose.msra.mxu0 0.0
    %5874 = vmatprep.subr.mxu0 0.0
    %5875 = vmatpush1.xpose.msra.mxu0 %v5842
    %5876 = vmatprep.subr.mxu0 0.0
    %5877 = vmatpush2.xpose.msra.mxu0 0.0
    %5878 = vmatprep.subr.mxu0 0.0
    %5879 = vmatpush2.xpose.msra.mxu0 0.0
    %5880 = vmatprep.subr.mxu0 0.0
    %5881 = vmatpush2.xpose.msra.mxu0 0.0
    %5882 = vmatprep.subr.mxu0 0.0
    %5883 = vmatpush2.xpose.msra.mxu0 0.0
    %5884 = vmatprep.subr.mxu0 0.0
    %5885 = vmatpush2.xpose.msra.mxu0 0.0
    %5886 = vmatprep.subr.mxu0 0.0
    %5887 = vmatpush2.xpose.msra.mxu0 0.0
    %5888 = vmatprep.subr.mxu0 0.0
    %5889 = vmatpush2.xpose.msra.mxu0 0.0
    %5890 = vmatprep.subr.mxu0 0.0
    %5891 = vmatpush2.xpose.msra.mxu0 0.0
    %5892 = vmatprep.subr.mxu0 0.0
    %5893 = vmatpush2.xpose.msra.mxu0 0.0
    %5894 = vmatprep.subr.mxu0 0.0
    %5895 = vmatpush2.xpose.msra.mxu0 0.0
    %5896 = vmatprep.subr.mxu0 0.0
    %5897 = vmatpush2.xpose.msra.mxu0 0.0
    %5898 = vmatprep.subr.mxu0 0.0
    %5899 = vmatpush2.xpose.msra.mxu0 0.0
    %5900 = vmatprep.subr.mxu0 0.0
    %5901 = vmatpush2.xpose.msra.mxu0 0.0
    %5902 = vmatprep.subr.mxu0 0.0
    %5903 = vmatpush2.xpose.msra.mxu0 0.0
    %5904 = vmatprep.subr.mxu0 0.0
    %5905 = vmatpush2.xpose.msra.mxu0 0.0
    %5906 = vmatprep.subr.mxu0 0.0
    %5907 = vmatpush2.xpose.msra.mxu0 0.0
    %5908 = vmatprep.mubr.f32.mxu0 0.0
    %5909 = vmatmul.mubr.f32.gmra.mxu0 %v4778
    %v5910 = vpop.f32.mrf.mxu0
    %v5911 = vadd.f32 %v5840, %v5910
    %v5912 = vpop.f32.mrf.mxu0
    %5913 = vmatprep.mubr.f32.mxu0 0.0
    %5914 = vmatmul.mubr.f32.gmra.mxu0 %v4781
    %v5915 = vpop.f32.mrf.mxu0
    %v5916 = vadd.f32 %v5840, %v5915
    %v5917 = vpop.f32.mrf.mxu0
    %5918 = vdwg.mxu0
    %v5919 = vld [vmem:[#allocation2 + $0x198] sm:$0xff]
    %v5920 = vld [vmem:[%s2 + $0x6b] sm:$0x1]
    %v5921 = vlaneseq
    %v5922 = vshrl.u32 %v5921, 7
    %v5923 = vsub.s32 0, %v5922
    %v5924 = vrot.slane %v5920, %v5923
    %v5926 = vsel %vm189, %v5919, 0
    %5928 = vmatprep.subr.mxu0 0.0
    %5929 = vmatpush1.xpose.msra.mxu0 0.0
    %5930 = vmatprep.subr.mxu0 0.0
    %5931 = vmatpush1.xpose.msra.mxu0 0.0
    %5932 = vmatprep.subr.mxu0 0.0
    %5933 = vmatpush1.xpose.msra.mxu0 0.0
    %5934 = vmatprep.subr.mxu0 0.0
    %5935 = vmatpush1.xpose.msra.mxu0 0.0
    %5936 = vmatprep.subr.mxu0 0.0
    %5937 = vmatpush1.xpose.msra.mxu0 0.0
    %5938 = vmatprep.subr.mxu0 0.0
    %5939 = vmatpush1.xpose.msra.mxu0 0.0
    %5940 = vmatprep.subr.mxu0 0.0
    %5941 = vmatpush1.xpose.msra.mxu0 0.0
    %5942 = vmatprep.subr.mxu0 0.0
    %5943 = vmatpush1.xpose.msra.mxu0 0.0
    %5944 = vmatprep.subr.mxu0 0.0
    %5945 = vmatpush1.xpose.msra.mxu0 0.0
    %5946 = vmatprep.subr.mxu0 0.0
    %5947 = vmatpush1.xpose.msra.mxu0 0.0
    %5948 = vmatprep.subr.mxu0 0.0
    %5949 = vmatpush1.xpose.msra.mxu0 0.0
    %5950 = vmatprep.subr.mxu0 0.0
    %5951 = vmatpush1.xpose.msra.mxu0 0.0
    %5952 = vmatprep.subr.mxu0 0.0
    %5953 = vmatpush1.xpose.msra.mxu0 0.0
    %5954 = vmatprep.subr.mxu0 0.0
    %5955 = vmatpush1.xpose.msra.mxu0 0.0
    %5956 = vmatprep.subr.mxu0 0.0
    %5957 = vmatpush1.xpose.msra.mxu0 0.0
    %5958 = vmatprep.subr.mxu0 0.0
    %5959 = vmatpush1.xpose.msra.mxu0 %v5926
    %5960 = vmatprep.subr.mxu0 0.0
    %5961 = vmatpush2.xpose.msra.mxu0 0.0
    %5962 = vmatprep.subr.mxu0 0.0
    %5963 = vmatpush2.xpose.msra.mxu0 0.0
    %5964 = vmatprep.subr.mxu0 0.0
    %5965 = vmatpush2.xpose.msra.mxu0 0.0
    %5966 = vmatprep.subr.mxu0 0.0
    %5967 = vmatpush2.xpose.msra.mxu0 0.0
    %5968 = vmatprep.subr.mxu0 0.0
    %5969 = vmatpush2.xpose.msra.mxu0 0.0
    %5970 = vmatprep.subr.mxu0 0.0
    %5971 = vmatpush2.xpose.msra.mxu0 0.0
    %5972 = vmatprep.subr.mxu0 0.0
    %5973 = vmatpush2.xpose.msra.mxu0 0.0
    %5974 = vmatprep.subr.mxu0 0.0
    %5975 = vmatpush2.xpose.msra.mxu0 0.0
    %5976 = vmatprep.subr.mxu0 0.0
    %5977 = vmatpush2.xpose.msra.mxu0 0.0
    %5978 = vmatprep.subr.mxu0 0.0
    %5979 = vmatpush2.xpose.msra.mxu0 0.0
    %5980 = vmatprep.subr.mxu0 0.0
    %5981 = vmatpush2.xpose.msra.mxu0 0.0
    %5982 = vmatprep.subr.mxu0 0.0
    %5983 = vmatpush2.xpose.msra.mxu0 0.0
    %5984 = vmatprep.subr.mxu0 0.0
    %5985 = vmatpush2.xpose.msra.mxu0 0.0
    %5986 = vmatprep.subr.mxu0 0.0
    %5987 = vmatpush2.xpose.msra.mxu0 0.0
    %5988 = vmatprep.subr.mxu0 0.0
    %5989 = vmatpush2.xpose.msra.mxu0 0.0
    %5990 = vmatprep.subr.mxu0 0.0
    %5991 = vmatpush2.xpose.msra.mxu0 0.0
    %5992 = vmatprep.mubr.f32.mxu0 0.0
    %5993 = vmatmul.mubr.f32.gmra.mxu0 %v4868
    %v5994 = vpop.f32.mrf.mxu0
    %v5995 = vadd.f32 %v5924, %v5994
    %v5996 = vpop.f32.mrf.mxu0
    %5997 = vmatprep.mubr.f32.mxu0 0.0
    %5998 = vmatmul.mubr.f32.gmra.mxu0 %v4871
    %v5999 = vpop.f32.mrf.mxu0
    %v6000 = vadd.f32 %v5924, %v5999
    %v6001 = vpop.f32.mrf.mxu0
    %6002 = vdwg.mxu0
    %v6003 = vld [vmem:[#allocation2 + $0x1b8] sm:$0xff]
    %v6004 = vld [vmem:[%s2 + $0x6f] sm:$0x1]
    %v6005 = vlaneseq
    %v6006 = vshrl.u32 %v6005, 7
    %v6007 = vsub.s32 0, %v6006
    %v6008 = vrot.slane %v6004, %v6007
    %v6010 = vsel %vm189, %v6003, 0
    %6012 = vmatprep.subr.mxu0 0.0
    %6013 = vmatpush1.xpose.msra.mxu0 0.0
    %6014 = vmatprep.subr.mxu0 0.0
    %6015 = vmatpush1.xpose.msra.mxu0 0.0
    %6016 = vmatprep.subr.mxu0 0.0
    %6017 = vmatpush1.xpose.msra.mxu0 0.0
    %6018 = vmatprep.subr.mxu0 0.0
    %6019 = vmatpush1.xpose.msra.mxu0 0.0
    %6020 = vmatprep.subr.mxu0 0.0
    %6021 = vmatpush1.xpose.msra.mxu0 0.0
    %6022 = vmatprep.subr.mxu0 0.0
    %6023 = vmatpush1.xpose.msra.mxu0 0.0
    %6024 = vmatprep.subr.mxu0 0.0
    %6025 = vmatpush1.xpose.msra.mxu0 0.0
    %6026 = vmatprep.subr.mxu0 0.0
    %6027 = vmatpush1.xpose.msra.mxu0 0.0
    %6028 = vmatprep.subr.mxu0 0.0
    %6029 = vmatpush1.xpose.msra.mxu0 0.0
    %6030 = vmatprep.subr.mxu0 0.0
    %6031 = vmatpush1.xpose.msra.mxu0 0.0
    %6032 = vmatprep.subr.mxu0 0.0
    %6033 = vmatpush1.xpose.msra.mxu0 0.0
    %6034 = vmatprep.subr.mxu0 0.0
    %6035 = vmatpush1.xpose.msra.mxu0 0.0
    %6036 = vmatprep.subr.mxu0 0.0
    %6037 = vmatpush1.xpose.msra.mxu0 0.0
    %6038 = vmatprep.subr.mxu0 0.0
    %6039 = vmatpush1.xpose.msra.mxu0 0.0
    %6040 = vmatprep.subr.mxu0 0.0
    %6041 = vmatpush1.xpose.msra.mxu0 0.0
    %6042 = vmatprep.subr.mxu0 0.0
    %6043 = vmatpush1.xpose.msra.mxu0 %v6010
    %6044 = vmatprep.subr.mxu0 0.0
    %6045 = vmatpush2.xpose.msra.mxu0 0.0
    %6046 = vmatprep.subr.mxu0 0.0
    %6047 = vmatpush2.xpose.msra.mxu0 0.0
    %6048 = vmatprep.subr.mxu0 0.0
    %6049 = vmatpush2.xpose.msra.mxu0 0.0
    %6050 = vmatprep.subr.mxu0 0.0
    %6051 = vmatpush2.xpose.msra.mxu0 0.0
    %6052 = vmatprep.subr.mxu0 0.0
    %6053 = vmatpush2.xpose.msra.mxu0 0.0
    %6054 = vmatprep.subr.mxu0 0.0
    %6055 = vmatpush2.xpose.msra.mxu0 0.0
    %6056 = vmatprep.subr.mxu0 0.0
    %6057 = vmatpush2.xpose.msra.mxu0 0.0
    %6058 = vmatprep.subr.mxu0 0.0
    %6059 = vmatpush2.xpose.msra.mxu0 0.0
    %6060 = vmatprep.subr.mxu0 0.0
    %6061 = vmatpush2.xpose.msra.mxu0 0.0
    %6062 = vmatprep.subr.mxu0 0.0
    %6063 = vmatpush2.xpose.msra.mxu0 0.0
    %6064 = vmatprep.subr.mxu0 0.0
    %6065 = vmatpush2.xpose.msra.mxu0 0.0
    %6066 = vmatprep.subr.mxu0 0.0
    %6067 = vmatpush2.xpose.msra.mxu0 0.0
    %6068 = vmatprep.subr.mxu0 0.0
    %6069 = vmatpush2.xpose.msra.mxu0 0.0
    %6070 = vmatprep.subr.mxu0 0.0
    %6071 = vmatpush2.xpose.msra.mxu0 0.0
    %6072 = vmatprep.subr.mxu0 0.0
    %6073 = vmatpush2.xpose.msra.mxu0 0.0
    %6074 = vmatprep.subr.mxu0 0.0
    %6075 = vmatpush2.xpose.msra.mxu0 0.0
    %6076 = vmatprep.mubr.f32.mxu0 0.0
    %6077 = vmatmul.mubr.f32.gmra.mxu0 %v4868
    %v6078 = vpop.f32.mrf.mxu0
    %v6079 = vadd.f32 %v6008, %v6078
    %v6080 = vpop.f32.mrf.mxu0
    %6081 = vmatprep.mubr.f32.mxu0 0.0
    %6082 = vmatmul.mubr.f32.gmra.mxu0 %v4871
    %v6083 = vpop.f32.mrf.mxu0
    %v6084 = vadd.f32 %v6008, %v6083
    %v6085 = vpop.f32.mrf.mxu0
    %6086 = vdwg.mxu0
    %v6088 = vsel %vm38, %v5911, 0
    %v6091 = vsel %vm38, %v5916, 0
    %v6094 = vsel %vm38, %v5995, 0
    %v6097 = vsel %vm38, %v6000, 0
    %6099 = vmatprep.subr.mxu0 0.0
    %6100 = vmatpush1.xpose.msra.mxu0 0.0
    %6101 = vmatprep.subr.mxu0 0.0
    %6102 = vmatpush1.xpose.msra.mxu0 0.0
    %6103 = vmatprep.subr.mxu0 0.0
    %6104 = vmatpush1.xpose.msra.mxu0 0.0
    %6105 = vmatprep.subr.mxu0 0.0
    %6106 = vmatpush1.xpose.msra.mxu0 0.0
    %6107 = vmatprep.subr.mxu0 0.0
    %6108 = vmatpush1.xpose.msra.mxu0 0.0
    %6109 = vmatprep.subr.mxu0 0.0
    %6110 = vmatpush1.xpose.msra.mxu0 0.0
    %6111 = vmatprep.subr.mxu0 0.0
    %6112 = vmatpush1.xpose.msra.mxu0 0.0
    %6113 = vmatprep.subr.mxu0 0.0
    %6114 = vmatpush1.xpose.msra.mxu0 0.0
    %6115 = vmatprep.subr.mxu0 0.0
    %6116 = vmatpush1.xpose.msra.mxu0 0.0
    %6117 = vmatprep.subr.mxu0 0.0
    %6118 = vmatpush1.xpose.msra.mxu0 0.0
    %6119 = vmatprep.subr.mxu0 0.0
    %6120 = vmatpush1.xpose.msra.mxu0 0.0
    %6121 = vmatprep.subr.mxu0 0.0
    %6122 = vmatpush1.xpose.msra.mxu0 0.0
    %6123 = vmatprep.subr.mxu0 0.0
    %6124 = vmatpush1.xpose.msra.mxu0 0.0
    %6125 = vmatprep.subr.mxu0 0.0
    %6126 = vmatpush1.xpose.msra.mxu0 0.0
    %6127 = vmatprep.subr.mxu0 0.0
    %6128 = vmatpush1.xpose.msra.mxu0 %v6097
    %6129 = vmatprep.subr.mxu0 0.0
    %6130 = vmatpush1.xpose.msra.mxu0 %v6094
    %6131 = vmatprep.subr.mxu0 0.0
    %6132 = vmatpush2.xpose.msra.mxu0 0.0
    %6133 = vmatprep.subr.mxu0 0.0
    %6134 = vmatpush2.xpose.msra.mxu0 0.0
    %6135 = vmatprep.subr.mxu0 0.0
    %6136 = vmatpush2.xpose.msra.mxu0 0.0
    %6137 = vmatprep.subr.mxu0 0.0
    %6138 = vmatpush2.xpose.msra.mxu0 0.0
    %6139 = vmatprep.subr.mxu0 0.0
    %6140 = vmatpush2.xpose.msra.mxu0 0.0
    %6141 = vmatprep.subr.mxu0 0.0
    %6142 = vmatpush2.xpose.msra.mxu0 0.0
    %6143 = vmatprep.subr.mxu0 0.0
    %6144 = vmatpush2.xpose.msra.mxu0 0.0
    %6145 = vmatprep.subr.mxu0 0.0
    %6146 = vmatpush2.xpose.msra.mxu0 0.0
    %6147 = vmatprep.subr.mxu0 0.0
    %6148 = vmatpush2.xpose.msra.mxu0 0.0
    %6149 = vmatprep.subr.mxu0 0.0
    %6150 = vmatpush2.xpose.msra.mxu0 0.0
    %6151 = vmatprep.subr.mxu0 0.0
    %6152 = vmatpush2.xpose.msra.mxu0 0.0
    %6153 = vmatprep.subr.mxu0 0.0
    %6154 = vmatpush2.xpose.msra.mxu0 0.0
    %6155 = vmatprep.subr.mxu0 0.0
    %6156 = vmatpush2.xpose.msra.mxu0 0.0
    %6157 = vmatprep.subr.mxu0 0.0
    %6158 = vmatpush2.xpose.msra.mxu0 0.0
    %6159 = vmatprep.subr.mxu0 0.0
    %6160 = vmatpush2.xpose.msra.mxu0 0.0
    %6161 = vmatprep.subr.mxu0 0.0
    %6162 = vmatpush2.xpose.msra.mxu0 0.0
    %6163 = vmatprep.mubr.f32.mxu0 0.0
    %6164 = vmatmul.mubr.f32.gmra.mxu0 %v6088
    %v6165 = vpop.f32.mrf.mxu0
    %v6166 = vadd.f32 %v4764, %v6165
    %v6167 = vpop.f32.mrf.mxu0
    %6168 = vmatprep.mubr.f32.mxu0 0.0
    %6169 = vmatmul.mubr.f32.gmra.mxu0 %v6091
    %v6170 = vpop.f32.mrf.mxu0
    %v6171 = vadd.f32 %v4765, %v6170
    %v6172 = vpop.f32.mrf.mxu0
    %6173 = vdwg.mxu0
    %v6174 = vsel %vm529, %v6166, -inf
    %6175 = vmax.xlane.f32.xlu0 %v6174
    %v6176 = vpop.xlane.xlu0 %6175
    %v6177 = vsel %vm529, %v6171, -inf
    %6178 = vmax.xlane.f32.xlu0 %v6177
    %v6179 = vpop.xlane.xlu0 %6178
    %v6180 = vsub.f32 %v6166, %v6176
    %v6181 = vsub.f32 %v6171, %v6179
    %v6182 = vmul.f32 %v6180, 1.442695
    %v6183 = vpow.pop %v6182
    %v6184 = vmul.f32 %v6181, 1.442695
    %v6185 = vpow.pop %v6184
    %v6186 = vsel %vm529, %v6183, 0.0
    %6187 = vadd.xlane.f32.xlu0 %v6186
    %v6188 = vpop.xlane.xlu0 %6187
    %v6189 = vsel %vm529, %v6185, 0.0
    %6190 = vadd.xlane.f32.xlu0 %v6189
    %v6191 = vpop.xlane.xlu0 %6190
    %v6192 = vrcp.pop %v6188
    %v6193 = vrcp.pop %v6191
    %v6194 = vmul.f32 %v6183, %v6192
    %v6195 = vmul.f32 %v6185, %v6193
    %v6197 = vsel %vm529, %v6194, 0
    %v6200 = vsel %vm529, %v6195, 0
    %6202 = vmatprep.subr.mxu0 0.0
    %6203 = vmatpush1.msra.mxu0 0.0
    %6204 = vmatprep.subr.mxu0 0.0
    %6205 = vmatpush1.msra.mxu0 0.0
    %6206 = vmatprep.subr.mxu0 0.0
    %6207 = vmatpush1.msra.mxu0 0.0
    %6208 = vmatprep.subr.mxu0 0.0
    %6209 = vmatpush1.msra.mxu0 0.0
    %6210 = vmatprep.subr.mxu0 0.0
    %6211 = vmatpush1.msra.mxu0 0.0
    %6212 = vmatprep.subr.mxu0 0.0
    %6213 = vmatpush1.msra.mxu0 0.0
    %6214 = vmatprep.subr.mxu0 0.0
    %6215 = vmatpush1.msra.mxu0 0.0
    %6216 = vmatprep.subr.mxu0 0.0
    %6217 = vmatpush1.msra.mxu0 0.0
    %6218 = vmatprep.subr.mxu0 0.0
    %6219 = vmatpush1.msra.mxu0 0.0
    %6220 = vmatprep.subr.mxu0 0.0
    %6221 = vmatpush1.msra.mxu0 0.0
    %6222 = vmatprep.subr.mxu0 0.0
    %6223 = vmatpush1.msra.mxu0 0.0
    %6224 = vmatprep.subr.mxu0 0.0
    %6225 = vmatpush1.msra.mxu0 0.0
    %6226 = vmatprep.subr.mxu0 0.0
    %6227 = vmatpush1.msra.mxu0 0.0
    %6228 = vmatprep.subr.mxu0 0.0
    %6229 = vmatpush1.msra.mxu0 0.0
    %6230 = vmatprep.subr.mxu0 0.0
    %6231 = vmatpush1.msra.mxu0 %v6084
    %6232 = vmatprep.subr.mxu0 0.0
    %6233 = vmatpush1.msra.mxu0 %v6079
    %6234 = vmatprep.subr.mxu0 0.0
    %6235 = vmatpush2.msra.mxu0 0.0
    %6236 = vmatprep.subr.mxu0 0.0
    %6237 = vmatpush2.msra.mxu0 0.0
    %6238 = vmatprep.subr.mxu0 0.0
    %6239 = vmatpush2.msra.mxu0 0.0
    %6240 = vmatprep.subr.mxu0 0.0
    %6241 = vmatpush2.msra.mxu0 0.0
    %6242 = vmatprep.subr.mxu0 0.0
    %6243 = vmatpush2.msra.mxu0 0.0
    %6244 = vmatprep.subr.mxu0 0.0
    %6245 = vmatpush2.msra.mxu0 0.0
    %6246 = vmatprep.subr.mxu0 0.0
    %6247 = vmatpush2.msra.mxu0 0.0
    %6248 = vmatprep.subr.mxu0 0.0
    %6249 = vmatpush2.msra.mxu0 0.0
    %6250 = vmatprep.subr.mxu0 0.0
    %6251 = vmatpush2.msra.mxu0 0.0
    %6252 = vmatprep.subr.mxu0 0.0
    %6253 = vmatpush2.msra.mxu0 0.0
    %6254 = vmatprep.subr.mxu0 0.0
    %6255 = vmatpush2.msra.mxu0 0.0
    %6256 = vmatprep.subr.mxu0 0.0
    %6257 = vmatpush2.msra.mxu0 0.0
    %6258 = vmatprep.subr.mxu0 0.0
    %6259 = vmatpush2.msra.mxu0 0.0
    %6260 = vmatprep.subr.mxu0 0.0
    %6261 = vmatpush2.msra.mxu0 0.0
    %6262 = vmatprep.subr.mxu0 0.0
    %6263 = vmatpush2.msra.mxu0 0.0
    %6264 = vmatprep.subr.mxu0 0.0
    %6265 = vmatpush2.msra.mxu0 0.0
    %6266 = vmatprep.mubr.f32.mxu0 0.0
    %6267 = vmatmul.mubr.f32.gmra.mxu0 %v6197
    %v6268 = vpop.f32.mrf.mxu0
    %v6269 = vadd.f32 0.0, %v6268
    %v6270 = vpop.f32.mrf.mxu0
    %6271 = vmatprep.mubr.f32.mxu0 0.0
    %6272 = vmatmul.mubr.f32.gmra.mxu0 %v6200
    %v6273 = vpop.f32.mrf.mxu0
    %v6274 = vadd.f32 0.0, %v6273
    %v6275 = vpop.f32.mrf.mxu0
    %6276 = vdwg.mxu0
    %v6277 = vld [vmem:[#allocation2 + $0x1d8] sm:$0xff]
    %v6279 = vsel %vm38, %v6269, 0
    %v6282 = vsel %vm38, %v6274, 0
    %6284 = vmatprep.subr.mxu0 0.0
    %6285 = vmatpush1.msra.mxu0 0.0
    %6286 = vmatprep.subr.mxu0 0.0
    %6287 = vmatpush1.msra.mxu0 0.0
    %6288 = vmatprep.subr.mxu0 0.0
    %6289 = vmatpush1.msra.mxu0 0.0
    %6290 = vmatprep.subr.mxu0 0.0
    %6291 = vmatpush1.msra.mxu0 0.0
    %6292 = vmatprep.subr.mxu0 0.0
    %6293 = vmatpush1.msra.mxu0 0.0
    %6294 = vmatprep.subr.mxu0 0.0
    %6295 = vmatpush1.msra.mxu0 0.0
    %6296 = vmatprep.subr.mxu0 0.0
    %6297 = vmatpush1.msra.mxu0 0.0
    %6298 = vmatprep.subr.mxu0 0.0
    %6299 = vmatpush1.msra.mxu0 0.0
    %6300 = vmatprep.subr.mxu0 0.0
    %6301 = vmatpush1.msra.mxu0 0.0
    %6302 = vmatprep.subr.mxu0 0.0
    %6303 = vmatpush1.msra.mxu0 0.0
    %6304 = vmatprep.subr.mxu0 0.0
    %6305 = vmatpush1.msra.mxu0 0.0
    %6306 = vmatprep.subr.mxu0 0.0
    %6307 = vmatpush1.msra.mxu0 0.0
    %6308 = vmatprep.subr.mxu0 0.0
    %6309 = vmatpush1.msra.mxu0 0.0
    %6310 = vmatprep.subr.mxu0 0.0
    %6311 = vmatpush1.msra.mxu0 0.0
    %6312 = vmatprep.subr.mxu0 0.0
    %6313 = vmatpush1.msra.mxu0 0.0
    %6314 = vmatprep.subr.mxu0 0.0
    %6315 = vmatpush1.msra.mxu0 %v6277
    %6316 = vmatprep.subr.mxu0 0.0
    %6317 = vmatpush2.msra.mxu0 0.0
    %6318 = vmatprep.subr.mxu0 0.0
    %6319 = vmatpush2.msra.mxu0 0.0
    %6320 = vmatprep.subr.mxu0 0.0
    %6321 = vmatpush2.msra.mxu0 0.0
    %6322 = vmatprep.subr.mxu0 0.0
    %6323 = vmatpush2.msra.mxu0 0.0
    %6324 = vmatprep.subr.mxu0 0.0
    %6325 = vmatpush2.msra.mxu0 0.0
    %6326 = vmatprep.subr.mxu0 0.0
    %6327 = vmatpush2.msra.mxu0 0.0
    %6328 = vmatprep.subr.mxu0 0.0
    %6329 = vmatpush2.msra.mxu0 0.0
    %6330 = vmatprep.subr.mxu0 0.0
    %6331 = vmatpush2.msra.mxu0 0.0
    %6332 = vmatprep.subr.mxu0 0.0
    %6333 = vmatpush2.msra.mxu0 0.0
    %6334 = vmatprep.subr.mxu0 0.0
    %6335 = vmatpush2.msra.mxu0 0.0
    %6336 = vmatprep.subr.mxu0 0.0
    %6337 = vmatpush2.msra.mxu0 0.0
    %6338 = vmatprep.subr.mxu0 0.0
    %6339 = vmatpush2.msra.mxu0 0.0
    %6340 = vmatprep.subr.mxu0 0.0
    %6341 = vmatpush2.msra.mxu0 0.0
    %6342 = vmatprep.subr.mxu0 0.0
    %6343 = vmatpush2.msra.mxu0 0.0
    %6344 = vmatprep.subr.mxu0 0.0
    %6345 = vmatpush2.msra.mxu0 0.0
    %6346 = vmatprep.subr.mxu0 0.0
    %6347 = vmatpush2.msra.mxu0 0.0
    %6348 = vmatprep.mubr.f32.mxu0 0.0
    %6349 = vmatmul.mubr.f32.gmra.mxu0 %v6279
    %v6350 = vpop.f32.mrf.mxu0
    %v6351 = vadd.f32 0.0, %v6350
    %v6352 = vpop.f32.mrf.mxu0
    %6353 = vmatprep.mubr.f32.mxu0 0.0
    %6354 = vmatmul.mubr.f32.gmra.mxu0 %v6282
    %v6355 = vpop.f32.mrf.mxu0
    %v6356 = vadd.f32 0.0, %v6355
    %v6357 = vpop.f32.mrf.mxu0
    %6358 = vdwg.mxu0
    %v6359 = vadd.f32 %v5833, %v6351
    %v6360 = vadd.f32 %v5834, %v6356
    %v6361 = vld [vmem:[#allocation2 + $0x180] sm:$0xff]
    %v6362 = vld [vmem:[%s2 + $0x68] sm:$0x1]
    %v6363 = vlaneseq
    %v6364 = vshrl.u32 %v6363, 7
    %v6365 = vsub.s32 0, %v6364
    %v6366 = vrot.slane %v6362, %v6365
    %v6368 = vsel %vm189, %v6361, 0
    %6370 = vmatprep.subr.mxu0 0.0
    %6371 = vmatpush1.xpose.msra.mxu0 0.0
    %6372 = vmatprep.subr.mxu0 0.0
    %6373 = vmatpush1.xpose.msra.mxu0 0.0
    %6374 = vmatprep.subr.mxu0 0.0
    %6375 = vmatpush1.xpose.msra.mxu0 0.0
    %6376 = vmatprep.subr.mxu0 0.0
    %6377 = vmatpush1.xpose.msra.mxu0 0.0
    %6378 = vmatprep.subr.mxu0 0.0
    %6379 = vmatpush1.xpose.msra.mxu0 0.0
    %6380 = vmatprep.subr.mxu0 0.0
    %6381 = vmatpush1.xpose.msra.mxu0 0.0
    %6382 = vmatprep.subr.mxu0 0.0
    %6383 = vmatpush1.xpose.msra.mxu0 0.0
    %6384 = vmatprep.subr.mxu0 0.0
    %6385 = vmatpush1.xpose.msra.mxu0 0.0
    %6386 = vmatprep.subr.mxu0 0.0
    %6387 = vmatpush1.xpose.msra.mxu0 0.0
    %6388 = vmatprep.subr.mxu0 0.0
    %6389 = vmatpush1.xpose.msra.mxu0 0.0
    %6390 = vmatprep.subr.mxu0 0.0
    %6391 = vmatpush1.xpose.msra.mxu0 0.0
    %6392 = vmatprep.subr.mxu0 0.0
    %6393 = vmatpush1.xpose.msra.mxu0 0.0
    %6394 = vmatprep.subr.mxu0 0.0
    %6395 = vmatpush1.xpose.msra.mxu0 0.0
    %6396 = vmatprep.subr.mxu0 0.0
    %6397 = vmatpush1.xpose.msra.mxu0 0.0
    %6398 = vmatprep.subr.mxu0 0.0
    %6399 = vmatpush1.xpose.msra.mxu0 0.0
    %6400 = vmatprep.subr.mxu0 0.0
    %6401 = vmatpush1.xpose.msra.mxu0 %v6368
    %6402 = vmatprep.subr.mxu0 0.0
    %6403 = vmatpush2.xpose.msra.mxu0 0.0
    %6404 = vmatprep.subr.mxu0 0.0
    %6405 = vmatpush2.xpose.msra.mxu0 0.0
    %6406 = vmatprep.subr.mxu0 0.0
    %6407 = vmatpush2.xpose.msra.mxu0 0.0
    %6408 = vmatprep.subr.mxu0 0.0
    %6409 = vmatpush2.xpose.msra.mxu0 0.0
    %6410 = vmatprep.subr.mxu0 0.0
    %6411 = vmatpush2.xpose.msra.mxu0 0.0
    %6412 = vmatprep.subr.mxu0 0.0
    %6413 = vmatpush2.xpose.msra.mxu0 0.0
    %6414 = vmatprep.subr.mxu0 0.0
    %6415 = vmatpush2.xpose.msra.mxu0 0.0
    %6416 = vmatprep.subr.mxu0 0.0
    %6417 = vmatpush2.xpose.msra.mxu0 0.0
    %6418 = vmatprep.subr.mxu0 0.0
    %6419 = vmatpush2.xpose.msra.mxu0 0.0
    %6420 = vmatprep.subr.mxu0 0.0
    %6421 = vmatpush2.xpose.msra.mxu0 0.0
    %6422 = vmatprep.subr.mxu0 0.0
    %6423 = vmatpush2.xpose.msra.mxu0 0.0
    %6424 = vmatprep.subr.mxu0 0.0
    %6425 = vmatpush2.xpose.msra.mxu0 0.0
    %6426 = vmatprep.subr.mxu0 0.0
    %6427 = vmatpush2.xpose.msra.mxu0 0.0
    %6428 = vmatprep.subr.mxu0 0.0
    %6429 = vmatpush2.xpose.msra.mxu0 0.0
    %6430 = vmatprep.subr.mxu0 0.0
    %6431 = vmatpush2.xpose.msra.mxu0 0.0
    %6432 = vmatprep.subr.mxu0 0.0
    %6433 = vmatpush2.xpose.msra.mxu0 0.0
    %6434 = vmatprep.mubr.f32.mxu0 0.0
    %6435 = vmatmul.mubr.f32.gmra.mxu0 %v4778
    %v6436 = vpop.f32.mrf.mxu0
    %v6437 = vadd.f32 %v6366, %v6436
    %v6438 = vpop.f32.mrf.mxu0
    %6439 = vmatprep.mubr.f32.mxu0 0.0
    %6440 = vmatmul.mubr.f32.gmra.mxu0 %v4781
    %v6441 = vpop.f32.mrf.mxu0
    %v6442 = vadd.f32 %v6366, %v6441
    %v6443 = vpop.f32.mrf.mxu0
    %6444 = vdwg.mxu0
    %v6445 = vld [vmem:[#allocation2 + $0x1a0] sm:$0xff]
    %v6446 = vld [vmem:[%s2 + $0x6c] sm:$0x1]
    %v6447 = vlaneseq
    %v6448 = vshrl.u32 %v6447, 7
    %v6449 = vsub.s32 0, %v6448
    %v6450 = vrot.slane %v6446, %v6449
    %v6452 = vsel %vm189, %v6445, 0
    %6454 = vmatprep.subr.mxu0 0.0
    %6455 = vmatpush1.xpose.msra.mxu0 0.0
    %6456 = vmatprep.subr.mxu0 0.0
    %6457 = vmatpush1.xpose.msra.mxu0 0.0
    %6458 = vmatprep.subr.mxu0 0.0
    %6459 = vmatpush1.xpose.msra.mxu0 0.0
    %6460 = vmatprep.subr.mxu0 0.0
    %6461 = vmatpush1.xpose.msra.mxu0 0.0
    %6462 = vmatprep.subr.mxu0 0.0
    %6463 = vmatpush1.xpose.msra.mxu0 0.0
    %6464 = vmatprep.subr.mxu0 0.0
    %6465 = vmatpush1.xpose.msra.mxu0 0.0
    %6466 = vmatprep.subr.mxu0 0.0
    %6467 = vmatpush1.xpose.msra.mxu0 0.0
    %6468 = vmatprep.subr.mxu0 0.0
    %6469 = vmatpush1.xpose.msra.mxu0 0.0
    %6470 = vmatprep.subr.mxu0 0.0
    %6471 = vmatpush1.xpose.msra.mxu0 0.0
    %6472 = vmatprep.subr.mxu0 0.0
    %6473 = vmatpush1.xpose.msra.mxu0 0.0
    %6474 = vmatprep.subr.mxu0 0.0
    %6475 = vmatpush1.xpose.msra.mxu0 0.0
    %6476 = vmatprep.subr.mxu0 0.0
    %6477 = vmatpush1.xpose.msra.mxu0 0.0
    %6478 = vmatprep.subr.mxu0 0.0
    %6479 = vmatpush1.xpose.msra.mxu0 0.0
    %6480 = vmatprep.subr.mxu0 0.0
    %6481 = vmatpush1.xpose.msra.mxu0 0.0
    %6482 = vmatprep.subr.mxu0 0.0
    %6483 = vmatpush1.xpose.msra.mxu0 0.0
    %6484 = vmatprep.subr.mxu0 0.0
    %6485 = vmatpush1.xpose.msra.mxu0 %v6452
    %6486 = vmatprep.subr.mxu0 0.0
    %6487 = vmatpush2.xpose.msra.mxu0 0.0
    %6488 = vmatprep.subr.mxu0 0.0
    %6489 = vmatpush2.xpose.msra.mxu0 0.0
    %6490 = vmatprep.subr.mxu0 0.0
    %6491 = vmatpush2.xpose.msra.mxu0 0.0
    %6492 = vmatprep.subr.mxu0 0.0
    %6493 = vmatpush2.xpose.msra.mxu0 0.0
    %6494 = vmatprep.subr.mxu0 0.0
    %6495 = vmatpush2.xpose.msra.mxu0 0.0
    %6496 = vmatprep.subr.mxu0 0.0
    %6497 = vmatpush2.xpose.msra.mxu0 0.0
    %6498 = vmatprep.subr.mxu0 0.0
    %6499 = vmatpush2.xpose.msra.mxu0 0.0
    %6500 = vmatprep.subr.mxu0 0.0
    %6501 = vmatpush2.xpose.msra.mxu0 0.0
    %6502 = vmatprep.subr.mxu0 0.0
    %6503 = vmatpush2.xpose.msra.mxu0 0.0
    %6504 = vmatprep.subr.mxu0 0.0
    %6505 = vmatpush2.xpose.msra.mxu0 0.0
    %6506 = vmatprep.subr.mxu0 0.0
    %6507 = vmatpush2.xpose.msra.mxu0 0.0
    %6508 = vmatprep.subr.mxu0 0.0
    %6509 = vmatpush2.xpose.msra.mxu0 0.0
    %6510 = vmatprep.subr.mxu0 0.0
    %6511 = vmatpush2.xpose.msra.mxu0 0.0
    %6512 = vmatprep.subr.mxu0 0.0
    %6513 = vmatpush2.xpose.msra.mxu0 0.0
    %6514 = vmatprep.subr.mxu0 0.0
    %6515 = vmatpush2.xpose.msra.mxu0 0.0
    %6516 = vmatprep.subr.mxu0 0.0
    %6517 = vmatpush2.xpose.msra.mxu0 0.0
    %6518 = vmatprep.mubr.f32.mxu0 0.0
    %6519 = vmatmul.mubr.f32.gmra.mxu0 %v4868
    %v6520 = vpop.f32.mrf.mxu0
    %v6521 = vadd.f32 %v6450, %v6520
    %v6522 = vpop.f32.mrf.mxu0
    %6523 = vmatprep.mubr.f32.mxu0 0.0
    %6524 = vmatmul.mubr.f32.gmra.mxu0 %v4871
    %v6525 = vpop.f32.mrf.mxu0
    %v6526 = vadd.f32 %v6450, %v6525
    %v6527 = vpop.f32.mrf.mxu0
    %6528 = vdwg.mxu0
    %v6529 = vld [vmem:[#allocation2 + $0x1c0] sm:$0xff]
    %v6530 = vld [vmem:[%s2 + $0x70] sm:$0x1]
    %v6531 = vlaneseq
    %v6532 = vshrl.u32 %v6531, 7
    %v6533 = vsub.s32 0, %v6532
    %v6534 = vrot.slane %v6530, %v6533
    %v6536 = vsel %vm189, %v6529, 0
    %6538 = vmatprep.subr.mxu0 0.0
    %6539 = vmatpush1.xpose.msra.mxu0 0.0
    %6540 = vmatprep.subr.mxu0 0.0
    %6541 = vmatpush1.xpose.msra.mxu0 0.0
    %6542 = vmatprep.subr.mxu0 0.0
    %6543 = vmatpush1.xpose.msra.mxu0 0.0
    %6544 = vmatprep.subr.mxu0 0.0
    %6545 = vmatpush1.xpose.msra.mxu0 0.0
    %6546 = vmatprep.subr.mxu0 0.0
    %6547 = vmatpush1.xpose.msra.mxu0 0.0
    %6548 = vmatprep.subr.mxu0 0.0
    %6549 = vmatpush1.xpose.msra.mxu0 0.0
    %6550 = vmatprep.subr.mxu0 0.0
    %6551 = vmatpush1.xpose.msra.mxu0 0.0
    %6552 = vmatprep.subr.mxu0 0.0
    %6553 = vmatpush1.xpose.msra.mxu0 0.0
    %6554 = vmatprep.subr.mxu0 0.0
    %6555 = vmatpush1.xpose.msra.mxu0 0.0
    %6556 = vmatprep.subr.mxu0 0.0
    %6557 = vmatpush1.xpose.msra.mxu0 0.0
    %6558 = vmatprep.subr.mxu0 0.0
    %6559 = vmatpush1.xpose.msra.mxu0 0.0
    %6560 = vmatprep.subr.mxu0 0.0
    %6561 = vmatpush1.xpose.msra.mxu0 0.0
    %6562 = vmatprep.subr.mxu0 0.0
    %6563 = vmatpush1.xpose.msra.mxu0 0.0
    %6564 = vmatprep.subr.mxu0 0.0
    %6565 = vmatpush1.xpose.msra.mxu0 0.0
    %6566 = vmatprep.subr.mxu0 0.0
    %6567 = vmatpush1.xpose.msra.mxu0 0.0
    %6568 = vmatprep.subr.mxu0 0.0
    %6569 = vmatpush1.xpose.msra.mxu0 %v6536
    %6570 = vmatprep.subr.mxu0 0.0
    %6571 = vmatpush2.xpose.msra.mxu0 0.0
    %6572 = vmatprep.subr.mxu0 0.0
    %6573 = vmatpush2.xpose.msra.mxu0 0.0
    %6574 = vmatprep.subr.mxu0 0.0
    %6575 = vmatpush2.xpose.msra.mxu0 0.0
    %6576 = vmatprep.subr.mxu0 0.0
    %6577 = vmatpush2.xpose.msra.mxu0 0.0
    %6578 = vmatprep.subr.mxu0 0.0
    %6579 = vmatpush2.xpose.msra.mxu0 0.0
    %6580 = vmatprep.subr.mxu0 0.0
    %6581 = vmatpush2.xpose.msra.mxu0 0.0
    %6582 = vmatprep.subr.mxu0 0.0
    %6583 = vmatpush2.xpose.msra.mxu0 0.0
    %6584 = vmatprep.subr.mxu0 0.0
    %6585 = vmatpush2.xpose.msra.mxu0 0.0
    %6586 = vmatprep.subr.mxu0 0.0
    %6587 = vmatpush2.xpose.msra.mxu0 0.0
    %6588 = vmatprep.subr.mxu0 0.0
    %6589 = vmatpush2.xpose.msra.mxu0 0.0
    %6590 = vmatprep.subr.mxu0 0.0
    %6591 = vmatpush2.xpose.msra.mxu0 0.0
    %6592 = vmatprep.subr.mxu0 0.0
    %6593 = vmatpush2.xpose.msra.mxu0 0.0
    %6594 = vmatprep.subr.mxu0 0.0
    %6595 = vmatpush2.xpose.msra.mxu0 0.0
    %6596 = vmatprep.subr.mxu0 0.0
    %6597 = vmatpush2.xpose.msra.mxu0 0.0
    %6598 = vmatprep.subr.mxu0 0.0
    %6599 = vmatpush2.xpose.msra.mxu0 0.0
    %6600 = vmatprep.subr.mxu0 0.0
    %6601 = vmatpush2.xpose.msra.mxu0 0.0
    %6602 = vmatprep.mubr.f32.mxu0 0.0
    %6603 = vmatmul.mubr.f32.gmra.mxu0 %v4868
    %v6604 = vpop.f32.mrf.mxu0
    %v6605 = vadd.f32 %v6534, %v6604
    %v6606 = vpop.f32.mrf.mxu0
    %6607 = vmatprep.mubr.f32.mxu0 0.0
    %6608 = vmatmul.mubr.f32.gmra.mxu0 %v4871
    %v6609 = vpop.f32.mrf.mxu0
    %v6610 = vadd.f32 %v6534, %v6609
    %v6611 = vpop.f32.mrf.mxu0
    %6612 = vdwg.mxu0
    %v6614 = vsel %vm38, %v6437, 0
    %v6617 = vsel %vm38, %v6442, 0
    %v6620 = vsel %vm38, %v6521, 0
    %v6623 = vsel %vm38, %v6526, 0
    %6625 = vmatprep.subr.mxu0 0.0
    %6626 = vmatpush1.xpose.msra.mxu0 0.0
    %6627 = vmatprep.subr.mxu0 0.0
    %6628 = vmatpush1.xpose.msra.mxu0 0.0
    %6629 = vmatprep.subr.mxu0 0.0
    %6630 = vmatpush1.xpose.msra.mxu0 0.0
    %6631 = vmatprep.subr.mxu0 0.0
    %6632 = vmatpush1.xpose.msra.mxu0 0.0
    %6633 = vmatprep.subr.mxu0 0.0
    %6634 = vmatpush1.xpose.msra.mxu0 0.0
    %6635 = vmatprep.subr.mxu0 0.0
    %6636 = vmatpush1.xpose.msra.mxu0 0.0
    %6637 = vmatprep.subr.mxu0 0.0
    %6638 = vmatpush1.xpose.msra.mxu0 0.0
    %6639 = vmatprep.subr.mxu0 0.0
    %6640 = vmatpush1.xpose.msra.mxu0 0.0
    %6641 = vmatprep.subr.mxu0 0.0
    %6642 = vmatpush1.xpose.msra.mxu0 0.0
    %6643 = vmatprep.subr.mxu0 0.0
    %6644 = vmatpush1.xpose.msra.mxu0 0.0
    %6645 = vmatprep.subr.mxu0 0.0
    %6646 = vmatpush1.xpose.msra.mxu0 0.0
    %6647 = vmatprep.subr.mxu0 0.0
    %6648 = vmatpush1.xpose.msra.mxu0 0.0
    %6649 = vmatprep.subr.mxu0 0.0
    %6650 = vmatpush1.xpose.msra.mxu0 0.0
    %6651 = vmatprep.subr.mxu0 0.0
    %6652 = vmatpush1.xpose.msra.mxu0 0.0
    %6653 = vmatprep.subr.mxu0 0.0
    %6654 = vmatpush1.xpose.msra.mxu0 %v6623
    %6655 = vmatprep.subr.mxu0 0.0
    %6656 = vmatpush1.xpose.msra.mxu0 %v6620
    %6657 = vmatprep.subr.mxu0 0.0
    %6658 = vmatpush2.xpose.msra.mxu0 0.0
    %6659 = vmatprep.subr.mxu0 0.0
    %6660 = vmatpush2.xpose.msra.mxu0 0.0
    %6661 = vmatprep.subr.mxu0 0.0
    %6662 = vmatpush2.xpose.msra.mxu0 0.0
    %6663 = vmatprep.subr.mxu0 0.0
    %6664 = vmatpush2.xpose.msra.mxu0 0.0
    %6665 = vmatprep.subr.mxu0 0.0
    %6666 = vmatpush2.xpose.msra.mxu0 0.0
    %6667 = vmatprep.subr.mxu0 0.0
    %6668 = vmatpush2.xpose.msra.mxu0 0.0
    %6669 = vmatprep.subr.mxu0 0.0
    %6670 = vmatpush2.xpose.msra.mxu0 0.0
    %6671 = vmatprep.subr.mxu0 0.0
    %6672 = vmatpush2.xpose.msra.mxu0 0.0
    %6673 = vmatprep.subr.mxu0 0.0
    %6674 = vmatpush2.xpose.msra.mxu0 0.0
    %6675 = vmatprep.subr.mxu0 0.0
    %6676 = vmatpush2.xpose.msra.mxu0 0.0
    %6677 = vmatprep.subr.mxu0 0.0
    %6678 = vmatpush2.xpose.msra.mxu0 0.0
    %6679 = vmatprep.subr.mxu0 0.0
    %6680 = vmatpush2.xpose.msra.mxu0 0.0
    %6681 = vmatprep.subr.mxu0 0.0
    %6682 = vmatpush2.xpose.msra.mxu0 0.0
    %6683 = vmatprep.subr.mxu0 0.0
    %6684 = vmatpush2.xpose.msra.mxu0 0.0
    %6685 = vmatprep.subr.mxu0 0.0
    %6686 = vmatpush2.xpose.msra.mxu0 0.0
    %6687 = vmatprep.subr.mxu0 0.0
    %6688 = vmatpush2.xpose.msra.mxu0 0.0
    %6689 = vmatprep.mubr.f32.mxu0 0.0
    %6690 = vmatmul.mubr.f32.gmra.mxu0 %v6614
    %v6691 = vpop.f32.mrf.mxu0
    %v6692 = vadd.f32 %v4764, %v6691
    %v6693 = vpop.f32.mrf.mxu0
    %6694 = vmatprep.mubr.f32.mxu0 0.0
    %6695 = vmatmul.mubr.f32.gmra.mxu0 %v6617
    %v6696 = vpop.f32.mrf.mxu0
    %v6697 = vadd.f32 %v4765, %v6696
    %v6698 = vpop.f32.mrf.mxu0
    %6699 = vdwg.mxu0
    %v6700 = vsel %vm529, %v6692, -inf
    %6701 = vmax.xlane.f32.xlu0 %v6700
    %v6702 = vpop.xlane.xlu0 %6701
    %v6703 = vsel %vm529, %v6697, -inf
    %6704 = vmax.xlane.f32.xlu0 %v6703
    %v6705 = vpop.xlane.xlu0 %6704
    %v6706 = vsub.f32 %v6692, %v6702
    %v6707 = vsub.f32 %v6697, %v6705
    %v6708 = vmul.f32 %v6706, 1.442695
    %v6709 = vpow.pop %v6708
    %v6710 = vmul.f32 %v6707, 1.442695
    %v6711 = vpow.pop %v6710
    %v6712 = vsel %vm529, %v6709, 0.0
    %6713 = vadd.xlane.f32.xlu0 %v6712
    %v6714 = vpop.xlane.xlu0 %6713
    %v6715 = vsel %vm529, %v6711, 0.0
    %6716 = vadd.xlane.f32.xlu0 %v6715
    %v6717 = vpop.xlane.xlu0 %6716
    %v6718 = vrcp.pop %v6714
    %v6719 = vrcp.pop %v6717
    %v6720 = vmul.f32 %v6709, %v6718
    %v6721 = vmul.f32 %v6711, %v6719
    %v6723 = vsel %vm529, %v6720, 0
    %v6726 = vsel %vm529, %v6721, 0
    %6728 = vmatprep.subr.mxu0 0.0
    %6729 = vmatpush1.msra.mxu0 0.0
    %6730 = vmatprep.subr.mxu0 0.0
    %6731 = vmatpush1.msra.mxu0 0.0
    %6732 = vmatprep.subr.mxu0 0.0
    %6733 = vmatpush1.msra.mxu0 0.0
    %6734 = vmatprep.subr.mxu0 0.0
    %6735 = vmatpush1.msra.mxu0 0.0
    %6736 = vmatprep.subr.mxu0 0.0
    %6737 = vmatpush1.msra.mxu0 0.0
    %6738 = vmatprep.subr.mxu0 0.0
    %6739 = vmatpush1.msra.mxu0 0.0
    %6740 = vmatprep.subr.mxu0 0.0
    %6741 = vmatpush1.msra.mxu0 0.0
    %6742 = vmatprep.subr.mxu0 0.0
    %6743 = vmatpush1.msra.mxu0 0.0
    %6744 = vmatprep.subr.mxu0 0.0
    %6745 = vmatpush1.msra.mxu0 0.0
    %6746 = vmatprep.subr.mxu0 0.0
    %6747 = vmatpush1.msra.mxu0 0.0
    %6748 = vmatprep.subr.mxu0 0.0
    %6749 = vmatpush1.msra.mxu0 0.0
    %6750 = vmatprep.subr.mxu0 0.0
    %6751 = vmatpush1.msra.mxu0 0.0
    %6752 = vmatprep.subr.mxu0 0.0
    %6753 = vmatpush1.msra.mxu0 0.0
    %6754 = vmatprep.subr.mxu0 0.0
    %6755 = vmatpush1.msra.mxu0 0.0
    %6756 = vmatprep.subr.mxu0 0.0
    %6757 = vmatpush1.msra.mxu0 %v6610
    %6758 = vmatprep.subr.mxu0 0.0
    %6759 = vmatpush1.msra.mxu0 %v6605
    %6760 = vmatprep.subr.mxu0 0.0
    %6761 = vmatpush2.msra.mxu0 0.0
    %6762 = vmatprep.subr.mxu0 0.0
    %6763 = vmatpush2.msra.mxu0 0.0
    %6764 = vmatprep.subr.mxu0 0.0
    %6765 = vmatpush2.msra.mxu0 0.0
    %6766 = vmatprep.subr.mxu0 0.0
    %6767 = vmatpush2.msra.mxu0 0.0
    %6768 = vmatprep.subr.mxu0 0.0
    %6769 = vmatpush2.msra.mxu0 0.0
    %6770 = vmatprep.subr.mxu0 0.0
    %6771 = vmatpush2.msra.mxu0 0.0
    %6772 = vmatprep.subr.mxu0 0.0
    %6773 = vmatpush2.msra.mxu0 0.0
    %6774 = vmatprep.subr.mxu0 0.0
    %6775 = vmatpush2.msra.mxu0 0.0
    %6776 = vmatprep.subr.mxu0 0.0
    %6777 = vmatpush2.msra.mxu0 0.0
    %6778 = vmatprep.subr.mxu0 0.0
    %6779 = vmatpush2.msra.mxu0 0.0
    %6780 = vmatprep.subr.mxu0 0.0
    %6781 = vmatpush2.msra.mxu0 0.0
    %6782 = vmatprep.subr.mxu0 0.0
    %6783 = vmatpush2.msra.mxu0 0.0
    %6784 = vmatprep.subr.mxu0 0.0
    %6785 = vmatpush2.msra.mxu0 0.0
    %6786 = vmatprep.subr.mxu0 0.0
    %6787 = vmatpush2.msra.mxu0 0.0
    %6788 = vmatprep.subr.mxu0 0.0
    %6789 = vmatpush2.msra.mxu0 0.0
    %6790 = vmatprep.subr.mxu0 0.0
    %6791 = vmatpush2.msra.mxu0 0.0
    %6792 = vmatprep.mubr.f32.mxu0 0.0
    %6793 = vmatmul.mubr.f32.gmra.mxu0 %v6723
    %v6794 = vpop.f32.mrf.mxu0
    %v6795 = vadd.f32 0.0, %v6794
    %v6796 = vpop.f32.mrf.mxu0
    %6797 = vmatprep.mubr.f32.mxu0 0.0
    %6798 = vmatmul.mubr.f32.gmra.mxu0 %v6726
    %v6799 = vpop.f32.mrf.mxu0
    %v6800 = vadd.f32 0.0, %v6799
    %v6801 = vpop.f32.mrf.mxu0
    %6802 = vdwg.mxu0
    %v6803 = vld [vmem:[#allocation2 + $0x1e0] sm:$0xff]
    %v6805 = vsel %vm38, %v6795, 0
    %v6808 = vsel %vm38, %v6800, 0
    %6810 = vmatprep.subr.mxu0 0.0
    %6811 = vmatpush1.msra.mxu0 0.0
    %6812 = vmatprep.subr.mxu0 0.0
    %6813 = vmatpush1.msra.mxu0 0.0
    %6814 = vmatprep.subr.mxu0 0.0
    %6815 = vmatpush1.msra.mxu0 0.0
    %6816 = vmatprep.subr.mxu0 0.0
    %6817 = vmatpush1.msra.mxu0 0.0
    %6818 = vmatprep.subr.mxu0 0.0
    %6819 = vmatpush1.msra.mxu0 0.0
    %6820 = vmatprep.subr.mxu0 0.0
    %6821 = vmatpush1.msra.mxu0 0.0
    %6822 = vmatprep.subr.mxu0 0.0
    %6823 = vmatpush1.msra.mxu0 0.0
    %6824 = vmatprep.subr.mxu0 0.0
    %6825 = vmatpush1.msra.mxu0 0.0
    %6826 = vmatprep.subr.mxu0 0.0
    %6827 = vmatpush1.msra.mxu0 0.0
    %6828 = vmatprep.subr.mxu0 0.0
    %6829 = vmatpush1.msra.mxu0 0.0
    %6830 = vmatprep.subr.mxu0 0.0
    %6831 = vmatpush1.msra.mxu0 0.0
    %6832 = vmatprep.subr.mxu0 0.0
    %6833 = vmatpush1.msra.mxu0 0.0
    %6834 = vmatprep.subr.mxu0 0.0
    %6835 = vmatpush1.msra.mxu0 0.0
    %6836 = vmatprep.subr.mxu0 0.0
    %6837 = vmatpush1.msra.mxu0 0.0
    %6838 = vmatprep.subr.mxu0 0.0
    %6839 = vmatpush1.msra.mxu0 0.0
    %6840 = vmatprep.subr.mxu0 0.0
    %6841 = vmatpush1.msra.mxu0 %v6803
    %6842 = vmatprep.subr.mxu0 0.0
    %6843 = vmatpush2.msra.mxu0 0.0
    %6844 = vmatprep.subr.mxu0 0.0
    %6845 = vmatpush2.msra.mxu0 0.0
    %6846 = vmatprep.subr.mxu0 0.0
    %6847 = vmatpush2.msra.mxu0 0.0
    %6848 = vmatprep.subr.mxu0 0.0
    %6849 = vmatpush2.msra.mxu0 0.0
    %6850 = vmatprep.subr.mxu0 0.0
    %6851 = vmatpush2.msra.mxu0 0.0
    %6852 = vmatprep.subr.mxu0 0.0
    %6853 = vmatpush2.msra.mxu0 0.0
    %6854 = vmatprep.subr.mxu0 0.0
    %6855 = vmatpush2.msra.mxu0 0.0
    %6856 = vmatprep.subr.mxu0 0.0
    %6857 = vmatpush2.msra.mxu0 0.0
    %6858 = vmatprep.subr.mxu0 0.0
    %6859 = vmatpush2.msra.mxu0 0.0
    %6860 = vmatprep.subr.mxu0 0.0
    %6861 = vmatpush2.msra.mxu0 0.0
    %6862 = vmatprep.subr.mxu0 0.0
    %6863 = vmatpush2.msra.mxu0 0.0
    %6864 = vmatprep.subr.mxu0 0.0
    %6865 = vmatpush2.msra.mxu0 0.0
    %6866 = vmatprep.subr.mxu0 0.0
    %6867 = vmatpush2.msra.mxu0 0.0
    %6868 = vmatprep.subr.mxu0 0.0
    %6869 = vmatpush2.msra.mxu0 0.0
    %6870 = vmatprep.subr.mxu0 0.0
    %6871 = vmatpush2.msra.mxu0 0.0
    %6872 = vmatprep.subr.mxu0 0.0
    %6873 = vmatpush2.msra.mxu0 0.0
    %6874 = vmatprep.mubr.f32.mxu0 0.0
    %6875 = vmatmul.mubr.f32.gmra.mxu0 %v6805
    %v6876 = vpop.f32.mrf.mxu0
    %v6877 = vadd.f32 0.0, %v6876
    %v6878 = vpop.f32.mrf.mxu0
    %6879 = vmatprep.mubr.f32.mxu0 0.0
    %6880 = vmatmul.mubr.f32.gmra.mxu0 %v6808
    %v6881 = vpop.f32.mrf.mxu0
    %v6882 = vadd.f32 0.0, %v6881
    %v6883 = vpop.f32.mrf.mxu0
    %6884 = vdwg.mxu0
    %v6885 = vadd.f32 %v6359, %v6877
    %v6886 = vadd.f32 %v6360, %v6882
    %v6887 = vadd.f32 %v4762, %v6885
    %v6888 = vadd.f32 %v4763, %v6886
    %v6889 = vsel %vm189, %v6887, 0.0
    %6890 = vadd.xlane.f32.xlu0 %v6889
    %v6891 = vpop.xlane.xlu0 %6890
    %v6892 = vsel %vm189, %v6888, 0.0
    %6893 = vadd.xlane.f32.xlu0 %v6892
    %v6894 = vpop.xlane.xlu0 %6893
    %v6895 = vmul.f32 %v6891, %v2303
    %v6896 = vmul.f32 %v6894, %v2303
    %v6897 = vsub.f32 %v6887, %v6895
    %v6898 = vsub.f32 %v6888, %v6896
    %v6899 = vmul.f32 %v6897, %v6897
    %v6900 = vmul.f32 %v6898, %v6898
    %v6901 = vsel %vm189, %v6899, 0.0
    %6902 = vadd.xlane.f32.xlu0 %v6901
    %v6903 = vpop.xlane.xlu0 %6902
    %v6904 = vsel %vm189, %v6900, 0.0
    %6905 = vadd.xlane.f32.xlu0 %v6904
    %v6906 = vpop.xlane.xlu0 %6905
    %v6907 = vmul.f32 %v6903, %v2303
    %v6908 = vmul.f32 %v6906, %v2303
    %v6909 = vadd.f32 %v6907, 1e-05
    %v6910 = vadd.f32 %v6908, 1e-05
    %v6911 = vrsqrt.pop %v6909
    %v6912 = vrsqrt.pop %v6910
    %v6913 = vmul.f32 %v6897, %v6911
    %v6914 = vmul.f32 %v6898, %v6912
    %v6915 = vld [vmem:[%s2 + $0x72] sm:$0x1]
    %v6916 = vlaneseq
    %v6917 = vshrl.u32 %v6916, 7
    %v6918 = vsub.s32 0, %v6917
    %v6919 = vrot.slane %v6915, %v6918
    %v6920 = vmul.f32 %v6913, %v6919
    %v6921 = vmul.f32 %v6914, %v6919
    %v6922 = vld [vmem:[%s2 + $0x73] sm:$0x1]
    %v6923 = vlaneseq
    %v6924 = vshrl.u32 %v6923, 7
    %v6925 = vsub.s32 0, %v6924
    %v6926 = vrot.slane %v6922, %v6925
    %v6927 = vadd.f32 %v6920, %v6926
    %v6928 = vadd.f32 %v6921, %v6926
    %v6929 = vld [vmem:[#allocation2 + $0x1e8] sm:$0xff]
    %v6930 = vld [vmem:[#allocation2 + $0x1f0] sm:$0xff]
    %v6931 = vld [vmem:[#allocation2 + $0x1f8] sm:$0xff]
    %v6932 = vld [vmem:[#allocation2 + $0x200] sm:$0xff]
    %v6933 = vld [vmem:[%s2 + $0x74] sm:$0x1]
    %v6934 = vlaneseq
    %v6935 = vshrl.u32 %v6934, 7
    %v6936 = vsub.s32 0, %v6935
    %v6937 = vrot.slane %v6933, %v6936
    %v6939 = vsel %vm189, %v6927, 0
    %v6942 = vsel %vm189, %v6928, 0
    %6944 = vmatprep.subr.mxu0 0.0
    %6945 = vmatpush1.msra.mxu0 0.0
    %6946 = vmatprep.subr.mxu0 0.0
    %6947 = vmatpush1.msra.mxu0 0.0
    %6948 = vmatprep.subr.mxu0 0.0
    %6949 = vmatpush1.msra.mxu0 0.0
    %6950 = vmatprep.subr.mxu0 0.0
    %6951 = vmatpush1.msra.mxu0 0.0
    %6952 = vmatprep.subr.mxu0 0.0
    %6953 = vmatpush1.msra.mxu0 0.0
    %6954 = vmatprep.subr.mxu0 0.0
    %6955 = vmatpush1.msra.mxu0 0.0
    %6956 = vmatprep.subr.mxu0 0.0
    %6957 = vmatpush1.msra.mxu0 0.0
    %6958 = vmatprep.subr.mxu0 0.0
    %6959 = vmatpush1.msra.mxu0 0.0
    %6960 = vmatprep.subr.mxu0 0.0
    %6961 = vmatpush1.msra.mxu0 0.0
    %6962 = vmatprep.subr.mxu0 0.0
    %6963 = vmatpush1.msra.mxu0 0.0
    %6964 = vmatprep.subr.mxu0 0.0
    %6965 = vmatpush1.msra.mxu0 0.0
    %6966 = vmatprep.subr.mxu0 0.0
    %6967 = vmatpush1.msra.mxu0 0.0
    %6968 = vmatprep.subr.mxu0 0.0
    %6969 = vmatpush1.msra.mxu0 %v6932
    %6970 = vmatprep.subr.mxu0 0.0
    %6971 = vmatpush1.msra.mxu0 %v6931
    %6972 = vmatprep.subr.mxu0 0.0
    %6973 = vmatpush1.msra.mxu0 %v6930
    %6974 = vmatprep.subr.mxu0 0.0
    %6975 = vmatpush1.msra.mxu0 %v6929
    %6976 = vmatprep.subr.mxu0 0.0
    %6977 = vmatpush2.msra.mxu0 0.0
    %6978 = vmatprep.subr.mxu0 0.0
    %6979 = vmatpush2.msra.mxu0 0.0
    %6980 = vmatprep.subr.mxu0 0.0
    %6981 = vmatpush2.msra.mxu0 0.0
    %6982 = vmatprep.subr.mxu0 0.0
    %6983 = vmatpush2.msra.mxu0 0.0
    %6984 = vmatprep.subr.mxu0 0.0
    %6985 = vmatpush2.msra.mxu0 0.0
    %6986 = vmatprep.subr.mxu0 0.0
    %6987 = vmatpush2.msra.mxu0 0.0
    %6988 = vmatprep.subr.mxu0 0.0
    %6989 = vmatpush2.msra.mxu0 0.0
    %6990 = vmatprep.subr.mxu0 0.0
    %6991 = vmatpush2.msra.mxu0 0.0
    %6992 = vmatprep.subr.mxu0 0.0
    %6993 = vmatpush2.msra.mxu0 0.0
    %6994 = vmatprep.subr.mxu0 0.0
    %6995 = vmatpush2.msra.mxu0 0.0
    %6996 = vmatprep.subr.mxu0 0.0
    %6997 = vmatpush2.msra.mxu0 0.0
    %6998 = vmatprep.subr.mxu0 0.0
    %6999 = vmatpush2.msra.mxu0 0.0
    %7000 = vmatprep.subr.mxu0 0.0
    %7001 = vmatpush2.msra.mxu0 0.0
    %7002 = vmatprep.subr.mxu0 0.0
    %7003 = vmatpush2.msra.mxu0 0.0
    %7004 = vmatprep.subr.mxu0 0.0
    %7005 = vmatpush2.msra.mxu0 0.0
    %7006 = vmatprep.subr.mxu0 0.0
    %7007 = vmatpush2.msra.mxu0 0.0
    %7008 = vmatprep.mubr.f32.mxu0 0.0
    %7009 = vmatmul.mubr.f32.gmra.mxu0 %v6939
    %v7010 = vpop.f32.mrf.mxu0
    %v7011 = vadd.f32 %v6937, %v7010
    %v7012 = vpop.f32.mrf.mxu0
    %7013 = vmatprep.mubr.f32.mxu0 0.0
    %7014 = vmatmul.mubr.f32.gmra.mxu0 %v6942
    %v7015 = vpop.f32.mrf.mxu0
    %v7016 = vadd.f32 %v6937, %v7015
    %v7017 = vpop.f32.mrf.mxu0
    %7018 = vdwg.mxu0
    %v7019 = vmax.f32 %v7011, 0.0
    %v7020 = vmax.f32 %v7016, 0.0
    %v7021 = vld [vmem:[#allocation2 + $0x208] sm:$0xff]
    %v7022 = vld [vmem:[#allocation2 + $0x210] sm:$0xff]
    %v7023 = vld [vmem:[#allocation2 + $0x218] sm:$0xff]
    %v7024 = vld [vmem:[#allocation2 + $0x220] sm:$0xff]
    %v7025 = vld [vmem:[#allocation2 + $0x228] sm:$0xff]
    %v7026 = vld [vmem:[#allocation2 + $0x230] sm:$0xff]
    %v7027 = vld [vmem:[#allocation2 + $0x238] sm:$0xff]
    %v7028 = vld [vmem:[#allocation2 + $0x240] sm:$0xff]
    %v7029 = vld [vmem:[%s2 + $0x75] sm:$0x1]
    %v7030 = vlaneseq
    %v7031 = vshrl.u32 %v7030, 7
    %v7032 = vsub.s32 0, %v7031
    %v7033 = vrot.slane %v7029, %v7032
    %v7035 = vsel %vm2443, %v7019, 0
    %v7038 = vsel %vm2443, %v7020, 0
    %7040 = vmatprep.subr.mxu0 0.0
    %7041 = vmatpush1.msra.mxu0 0.0
    %7042 = vmatprep.subr.mxu0 0.0
    %7043 = vmatpush1.msra.mxu0 0.0
    %7044 = vmatprep.subr.mxu0 0.0
    %7045 = vmatpush1.msra.mxu0 0.0
    %7046 = vmatprep.subr.mxu0 0.0
    %7047 = vmatpush1.msra.mxu0 0.0
    %7048 = vmatprep.subr.mxu0 0.0
    %7049 = vmatpush1.msra.mxu0 0.0
    %7050 = vmatprep.subr.mxu0 0.0
    %7051 = vmatpush1.msra.mxu0 0.0
    %7052 = vmatprep.subr.mxu0 0.0
    %7053 = vmatpush1.msra.mxu0 0.0
    %7054 = vmatprep.subr.mxu0 0.0
    %7055 = vmatpush1.msra.mxu0 0.0
    %7056 = vmatprep.subr.mxu0 0.0
    %7057 = vmatpush1.msra.mxu0 %v7028
    %7058 = vmatprep.subr.mxu0 0.0
    %7059 = vmatpush1.msra.mxu0 %v7027
    %7060 = vmatprep.subr.mxu0 0.0
    %7061 = vmatpush1.msra.mxu0 %v7026
    %7062 = vmatprep.subr.mxu0 0.0
    %7063 = vmatpush1.msra.mxu0 %v7025
    %7064 = vmatprep.subr.mxu0 0.0
    %7065 = vmatpush1.msra.mxu0 %v7024
    %7066 = vmatprep.subr.mxu0 0.0
    %7067 = vmatpush1.msra.mxu0 %v7023
    %7068 = vmatprep.subr.mxu0 0.0
    %7069 = vmatpush1.msra.mxu0 %v7022
    %7070 = vmatprep.subr.mxu0 0.0
    %7071 = vmatpush1.msra.mxu0 %v7021
    %7072 = vmatprep.subr.mxu0 0.0
    %7073 = vmatpush2.msra.mxu0 0.0
    %7074 = vmatprep.subr.mxu0 0.0
    %7075 = vmatpush2.msra.mxu0 0.0
    %7076 = vmatprep.subr.mxu0 0.0
    %7077 = vmatpush2.msra.mxu0 0.0
    %7078 = vmatprep.subr.mxu0 0.0
    %7079 = vmatpush2.msra.mxu0 0.0
    %7080 = vmatprep.subr.mxu0 0.0
    %7081 = vmatpush2.msra.mxu0 0.0
    %7082 = vmatprep.subr.mxu0 0.0
    %7083 = vmatpush2.msra.mxu0 0.0
    %7084 = vmatprep.subr.mxu0 0.0
    %7085 = vmatpush2.msra.mxu0 0.0
    %7086 = vmatprep.subr.mxu0 0.0
    %7087 = vmatpush2.msra.mxu0 0.0
    %7088 = vmatprep.subr.mxu0 0.0
    %7089 = vmatpush2.msra.mxu0 0.0
    %7090 = vmatprep.subr.mxu0 0.0
    %7091 = vmatpush2.msra.mxu0 0.0
    %7092 = vmatprep.subr.mxu0 0.0
    %7093 = vmatpush2.msra.mxu0 0.0
    %7094 = vmatprep.subr.mxu0 0.0
    %7095 = vmatpush2.msra.mxu0 0.0
    %7096 = vmatprep.subr.mxu0 0.0
    %7097 = vmatpush2.msra.mxu0 0.0
    %7098 = vmatprep.subr.mxu0 0.0
    %7099 = vmatpush2.msra.mxu0 0.0
    %7100 = vmatprep.subr.mxu0 0.0
    %7101 = vmatpush2.msra.mxu0 0.0
    %7102 = vmatprep.subr.mxu0 0.0
    %7103 = vmatpush2.msra.mxu0 0.0
    %7104 = vmatprep.mubr.f32.mxu0 0.0
    %7105 = vmatmul.mubr.f32.gmra.mxu0 %v7035
    %v7106 = vpop.f32.mrf.mxu0
    %v7107 = vadd.f32 %v7033, %v7106
    %v7108 = vpop.f32.mrf.mxu0
    %7109 = vmatprep.mubr.f32.mxu0 0.0
    %7110 = vmatmul.mubr.f32.gmra.mxu0 %v7038
    %v7111 = vpop.f32.mrf.mxu0
    %v7112 = vadd.f32 %v7033, %v7111
    %v7113 = vpop.f32.mrf.mxu0
    %7114 = vdwg.mxu0
    %v7115 = vadd.f32 %v6927, %v7107
    %v7116 = vadd.f32 %v6928, %v7112
    %v7117 = vsel %vm189, %v7115, 0.0
    %7118 = vadd.xlane.f32.xlu0 %v7117
    %v7119 = vpop.xlane.xlu0 %7118
    %v7120 = vsel %vm189, %v7116, 0.0
    %7121 = vadd.xlane.f32.xlu0 %v7120
    %v7122 = vpop.xlane.xlu0 %7121
    %v7123 = vmul.f32 %v7119, %v2303
    %v7124 = vmul.f32 %v7122, %v2303
    %v7125 = vsub.f32 %v7115, %v7123
    %v7126 = vsub.f32 %v7116, %v7124
    %v7127 = vmul.f32 %v7125, %v7125
    %v7128 = vmul.f32 %v7126, %v7126
    %v7129 = vsel %vm189, %v7127, 0.0
    %7130 = vadd.xlane.f32.xlu0 %v7129
    %v7131 = vpop.xlane.xlu0 %7130
    %v7132 = vsel %vm189, %v7128, 0.0
    %7133 = vadd.xlane.f32.xlu0 %v7132
    %v7134 = vpop.xlane.xlu0 %7133
    %v7135 = vmul.f32 %v7131, %v2303
    %v7136 = vmul.f32 %v7134, %v2303
    %v7137 = vadd.f32 %v7135, 1e-05
    %v7138 = vadd.f32 %v7136, 1e-05
    %v7139 = vrsqrt.pop %v7137
    %v7140 = vrsqrt.pop %v7138
    %v7141 = vmul.f32 %v7125, %v7139
    %v7142 = vmul.f32 %v7126, %v7140
    %v7143 = vld [vmem:[%s2 + $0x76] sm:$0x1]
    %v7144 = vlaneseq
    %v7145 = vshrl.u32 %v7144, 7
    %v7146 = vsub.s32 0, %v7145
    %v7147 = vrot.slane %v7143, %v7146
    %v7148 = vmul.f32 %v7141, %v7147
    %v7149 = vmul.f32 %v7142, %v7147
    %v7150 = vld [vmem:[%s2 + $0x77] sm:$0x1]
    %v7151 = vlaneseq
    %v7152 = vshrl.u32 %v7151, 7
    %v7153 = vsub.s32 0, %v7152
    %v7154 = vrot.slane %v7150, %v7153
    %v7155 = vadd.f32 %v7148, %v7154
    %v7156 = vadd.f32 %v7149, %v7154
    %v7157 = vsel %vm189, %v7155, 0.0
    %7158 = vadd.xlane.f32.xlu0 %v7157
    %v7159 = vpop.xlane.xlu0 %7158
    %v7160 = vsel %vm189, %v7156, 0.0
    %7161 = vadd.xlane.f32.xlu0 %v7160
    %v7162 = vpop.xlane.xlu0 %7161
    %v7163 = vmul.f32 %v7159, %v2303
    %v7164 = vmul.f32 %v7162, %v2303
    %v7165 = vsub.f32 %v7155, %v7163
    %v7166 = vsub.f32 %v7156, %v7164
    %v7167 = vmul.f32 %v7165, %v7165
    %v7168 = vmul.f32 %v7166, %v7166
    %v7169 = vsel %vm189, %v7167, 0.0
    %7170 = vadd.xlane.f32.xlu0 %v7169
    %v7171 = vpop.xlane.xlu0 %7170
    %v7172 = vsel %vm189, %v7168, 0.0
    %7173 = vadd.xlane.f32.xlu0 %v7172
    %v7174 = vpop.xlane.xlu0 %7173
    %v7175 = vmul.f32 %v7171, %v2303
    %v7176 = vmul.f32 %v7174, %v2303
    %v7177 = vadd.f32 %v7175, 1e-05
    %v7178 = vadd.f32 %v7176, 1e-05
    %v7179 = vrsqrt.pop %v7177
    %v7180 = vrsqrt.pop %v7178
    %v7181 = vmul.f32 %v7165, %v7179
    %v7182 = vmul.f32 %v7166, %v7180
    %v7183 = vld [vmem:[%s2 + $0x78] sm:$0x1]
    %v7184 = vlaneseq
    %v7185 = vshrl.u32 %v7184, 7
    %v7186 = vsub.s32 0, %v7185
    %v7187 = vrot.slane %v7183, %v7186
    %v7188 = vmul.f32 %v7181, %v7187
    %v7189 = vmul.f32 %v7182, %v7187
    %v7190 = vld [vmem:[%s2 + $0x79] sm:$0x1]
    %v7191 = vlaneseq
    %v7192 = vshrl.u32 %v7191, 7
    %v7193 = vsub.s32 0, %v7192
    %v7194 = vrot.slane %v7190, %v7193
    %v7195 = vadd.f32 %v7188, %v7194
    %v7196 = vadd.f32 %v7189, %v7194
    %v7197 = vld [vmem:[#allocation2 + $0x248] sm:$0xff]
    %v7198 = vld [vmem:[#allocation2 + $0x250] sm:$0xff]
    %v7199 = vld [vmem:[#allocation2 + $0x258] sm:$0xff]
    %v7200 = vld [vmem:[#allocation2 + $0x260] sm:$0xff]
    %v7201 = vld [vmem:[%s2 + $0x7a] sm:$0x1]
    %v7202 = vlaneseq
    %v7203 = vshrl.u32 %v7202, 7
    %v7204 = vsub.s32 0, %v7203
    %v7205 = vrot.slane %v7201, %v7204
    %v7207 = vsel %vm189, %v7195, 0
    %v7210 = vsel %vm189, %v7196, 0
    %7212 = vmatprep.subr.mxu0 0.0
    %7213 = vmatpush1.msra.mxu0 0.0
    %7214 = vmatprep.subr.mxu0 0.0
    %7215 = vmatpush1.msra.mxu0 0.0
    %7216 = vmatprep.subr.mxu0 0.0
    %7217 = vmatpush1.msra.mxu0 0.0
    %7218 = vmatprep.subr.mxu0 0.0
    %7219 = vmatpush1.msra.mxu0 0.0
    %7220 = vmatprep.subr.mxu0 0.0
    %7221 = vmatpush1.msra.mxu0 0.0
    %7222 = vmatprep.subr.mxu0 0.0
    %7223 = vmatpush1.msra.mxu0 0.0
    %7224 = vmatprep.subr.mxu0 0.0
    %7225 = vmatpush1.msra.mxu0 0.0
    %7226 = vmatprep.subr.mxu0 0.0
    %7227 = vmatpush1.msra.mxu0 0.0
    %7228 = vmatprep.subr.mxu0 0.0
    %7229 = vmatpush1.msra.mxu0 0.0
    %7230 = vmatprep.subr.mxu0 0.0
    %7231 = vmatpush1.msra.mxu0 0.0
    %7232 = vmatprep.subr.mxu0 0.0
    %7233 = vmatpush1.msra.mxu0 0.0
    %7234 = vmatprep.subr.mxu0 0.0
    %7235 = vmatpush1.msra.mxu0 0.0
    %7236 = vmatprep.subr.mxu0 0.0
    %7237 = vmatpush1.msra.mxu0 %v7200
    %7238 = vmatprep.subr.mxu0 0.0
    %7239 = vmatpush1.msra.mxu0 %v7199
    %7240 = vmatprep.subr.mxu0 0.0
    %7241 = vmatpush1.msra.mxu0 %v7198
    %7242 = vmatprep.subr.mxu0 0.0
    %7243 = vmatpush1.msra.mxu0 %v7197
    %7244 = vmatprep.subr.mxu0 0.0
    %7245 = vmatpush2.msra.mxu0 0.0
    %7246 = vmatprep.subr.mxu0 0.0
    %7247 = vmatpush2.msra.mxu0 0.0
    %7248 = vmatprep.subr.mxu0 0.0
    %7249 = vmatpush2.msra.mxu0 0.0
    %7250 = vmatprep.subr.mxu0 0.0
    %7251 = vmatpush2.msra.mxu0 0.0
    %7252 = vmatprep.subr.mxu0 0.0
    %7253 = vmatpush2.msra.mxu0 0.0
    %7254 = vmatprep.subr.mxu0 0.0
    %7255 = vmatpush2.msra.mxu0 0.0
    %7256 = vmatprep.subr.mxu0 0.0
    %7257 = vmatpush2.msra.mxu0 0.0
    %7258 = vmatprep.subr.mxu0 0.0
    %7259 = vmatpush2.msra.mxu0 0.0
    %7260 = vmatprep.subr.mxu0 0.0
    %7261 = vmatpush2.msra.mxu0 0.0
    %7262 = vmatprep.subr.mxu0 0.0
    %7263 = vmatpush2.msra.mxu0 0.0
    %7264 = vmatprep.subr.mxu0 0.0
    %7265 = vmatpush2.msra.mxu0 0.0
    %7266 = vmatprep.subr.mxu0 0.0
    %7267 = vmatpush2.msra.mxu0 0.0
    %7268 = vmatprep.subr.mxu0 0.0
    %7269 = vmatpush2.msra.mxu0 0.0
    %7270 = vmatprep.subr.mxu0 0.0
    %7271 = vmatpush2.msra.mxu0 0.0
    %7272 = vmatprep.subr.mxu0 0.0
    %7273 = vmatpush2.msra.mxu0 0.0
    %7274 = vmatprep.subr.mxu0 0.0
    %7275 = vmatpush2.msra.mxu0 0.0
    %7276 = vmatprep.mubr.f32.mxu0 0.0
    %7277 = vmatmul.mubr.f32.gmra.mxu0 %v7207
    %v7278 = vpop.f32.mrf.mxu0
    %v7279 = vadd.f32 %v7205, %v7278
    %v7280 = vpop.f32.mrf.mxu0
    %7281 = vmatprep.mubr.f32.mxu0 0.0
    %7282 = vmatmul.mubr.f32.gmra.mxu0 %v7210
    %v7283 = vpop.f32.mrf.mxu0
    %v7284 = vadd.f32 %v7205, %v7283
    %v7285 = vpop.f32.mrf.mxu0
    %7286 = vdwg.mxu0
    %7287 = vst.msk [vmem:[%s3] sm:$0xff] %vm38, %v7279
    %7288 = vst.msk [vmem:[%s3 + $0x8] sm:$0xff] %vm38, %v7284
    // Predicated region
    $region18: #{transam_forward.1} parent=1 // pred_check
      _
    $region19: #{transam_forward.1} parent=1 // pred_check_branch
      %7290 = sbr.rel (0) target = $region21
    $region20: #{transam_forward.1} parent=1 // pred_region
      _
    $region21: #{transam_forward.1} parent=1 // pred_fallthru
      _
    // Predicated region
    $region22: #{transam_forward.1} parent=1 // pred_check
      _
    $region23: #{transam_forward.1} parent=1 // pred_check_branch
      %7292 = sbr.rel (0) target = $region25
    $region24: #{transam_forward.1} parent=1 // pred_region
      _
    $region25: #{transam_forward.1} parent=1 // pred_fallthru
      _
    %7293 = vsyncpa [#allocation3], 1

</llo_original>
